<compile_context>
chip_gen: v6e
topology: v6e:2x2x1
jax: 0.10.0
libtpu: 0.0.40
codegen_flags: <defaults>
</compile_context>

<pallas_src>
import functools

import jax
import jax.numpy as jnp
import numpy as np
from jax import lax
from jax.experimental import pallas as pl
from jax.experimental.pallas import tpu as pltpu

BN_EPS = 1e-5

# Scoped VMEM limit: above the 16/32 MiB defaults, safely under v7x's 64 MiB physical.
_VMEM_LIMIT_BYTES = 48 * 1024 * 1024
# Demo-sized tile caps (small so the multi-tile grid path is exercised at H=W=16);
# raise to 512-1024 rows for production LaMa shapes (C=512, H=W>=64).
_SPATIAL_TILE_POSITIONS = 128
_POINTWISE_MAX_ROWS = 128


def _nbytes(a):
    return int(a.size) * int(a.dtype.itemsize)


def _h_tile(h, w, max_positions=_SPATIAL_TILE_POSITIONS):
    """Largest divisor of h with tile_h*w <= max_positions (fallback 1)."""
    best = 1
    for t in range(1, h + 1):
        if h % t == 0 and t * w <= max_positions:
            best = t
    return best


def _row_tile(n, max_tile=_POINTWISE_MAX_ROWS):
    """Largest divisor of n that is <= max_tile and a multiple of 8 (fallback n)."""
    for t in range(min(n, max_tile), 0, -1):
        if n % t == 0 and (t % 8 == 0 or t == n):
            return t
    return n


# ----------------------------------------------------------------------------
# Kernel 1: fused 3x3 convolutions of one FFC layer.
#   grid=(B, H/tile_h).  The reflect-padded bf16 image stays resident per batch;
#   each grid step computes tile_h output rows.  Two accumulators:
#     local cols : (l2l + g2l), K = cl+cg, BN_l scale folded into weights,
#                  BN_l shift + ReLU (+ optional residual) fused in the epilogue.
#     global cols: l2g only, K = cl (no zero K-block), BN_g scale folded in;
#                  shift/ReLU deferred to the conv2 pointwise kernel.
# ----------------------------------------------------------------------------
def _spatial_conv_kernel(xpad_ref, wl_ref, wg_ref, bias_ref, *rest,
                         tile_h, out_w, has_res):
    if has_res:
        res_ref, out_l_ref, out_g_ref = rest
    else:
        out_l_ref, out_g_ref = rest

    c_all = wl_ref.shape[1]
    cl = wl_ref.shape[2]
    cg = wg_ref.shape[2]
    n = tile_h * out_w

    r0 = pl.multiple_of(pl.program_id(1) * tile_h, tile_h)
    slab = xpad_ref[0, pl.ds(r0, tile_h + 2), :, :]        # (tile_h+2, Wp, C) bf16

    acc_l = jnp.zeros((n, cl), jnp.float32)
    acc_g = jnp.zeros((n, cg), jnp.float32)
    for kh in range(3):
        rows = slab[kh:kh + tile_h]                         # (tile_h, Wp, C)
        for kw in range(3):
            tap = kh * 3 + kw
            patch = rows[:, kw:kw + out_w, :].reshape(n, c_all)
            acc_l = acc_l + jnp.dot(patch, wl_ref[tap],
                                    preferred_element_type=jnp.float32)
            acc_g = acc_g + jnp.dot(patch[:, :cl], wg_ref[tap],
                                    preferred_element_type=jnp.float32)

    out_l = jnp.maximum(acc_l + bias_ref[...], 0.0)         # BN_l shift + ReLU
    if has_res:
        out_l = out_l + res_ref[0]                          # block residual (layer 2)
    out_l_ref[0] = out_l.astype(out_l_ref.dtype)
    out_g_ref[0] = acc_g.astype(out_g_ref.dtype)


def _spatial_conv(x_full, w_local, w_globl, bias_l, residual_l=None):
    """All 3x3 convs of one FFC layer.  x_full (B,H,W,C) f32; weights bf16."""
    B, H, W, C = x_full.shape
    cl = w_local.shape[-1]
    cg = w_globl.shape[-1]
    xpad = jnp.pad(x_full, ((0, 0), (1, 1), (1, 1), (0, 0)),
                   mode="reflect").astype(jnp.bfloat16)
    Hp, Wp = H + 2, W + 2
    tile_h = _h_tile(H, W)
    grid = (B, H // tile_h)

    in_specs = [
        pl.BlockSpec((1, Hp, Wp, C), lambda b, t: (b, 0, 0, 0)),
        pl.BlockSpec((9, C, cl), lambda b, t: (0, 0, 0)),
        pl.BlockSpec((9, cl, cg), lambda b, t: (0, 0, 0)),
        pl.BlockSpec((1, cl), lambda b, t: (0, 0)),
    ]
    args = [xpad, w_local, w_globl, bias_l]
    if residual_l is not None:
        in_specs.append(pl.BlockSpec((1, tile_h * W, cl), lambda b, t: (b, t, 0)))
        args.append(residual_l)

    kern = functools.partial(_spatial_conv_kernel, tile_h=tile_h, out_w=W,
                             has_res=residual_l is not None)
    flops = 2 * 9 * B * H * W * (C * cl + cl * cg)
    bytes_accessed = (sum(_nbytes(a) for a in args)
                      + B * H * W * (cl + cg) * 4)

    return pl.pallas_call(
        kern,
        out_shape=(jax.ShapeDtypeStruct((B, H * W, cl), jnp.float32),
                   jax.ShapeDtypeStruct((B, H * W, cg), jnp.float32)),
        grid=grid,
        in_specs=in_specs,
        out_specs=[pl.BlockSpec((1, tile_h * W, cl), lambda b, t: (b, t, 0)),
                   pl.BlockSpec((1, tile_h * W, cg), lambda b, t: (b, t, 0))],
        compiler_params=pltpu.CompilerParams(
            dimension_semantics=("parallel", "parallel"),
            vmem_limit_bytes=_VMEM_LIMIT_BYTES),
        cost_estimate=pl.CostEstimate(flops=flops, transcendentals=0,
                                      bytes_accessed=int(bytes_accessed)),
    )(*args)


# ----------------------------------------------------------------------------
# Kernel 2: fused pointwise (1x1 conv) kernel.
#   out = [relu]( (x [+pre]) @ w + bias [+add] ) [+res], row-tiled over (B, N).
# ----------------------------------------------------------------------------
def _pointwise_kernel(x_ref, w_ref, bias_ref, *rest, relu, has_pre, has_add, has_res):
    rest = list(rest)
    pre_ref = rest.pop(0) if has_pre else None
    add_ref = rest.pop(0) if has_add else None
    res_ref = rest.pop(0) if has_res else None
    (out_ref,) = rest

    x = x_ref[0]
    if has_pre:
        x = x + pre_ref[0]
    acc = jnp.dot(x.astype(jnp.bfloat16), w_ref[...],
                  preferred_element_type=jnp.float32)
    acc = acc + bias_ref[...]
    if has_add:
        acc = acc + add_ref[0]
    if relu:
        acc = jnp.maximum(acc, 0.0)
    if has_res:
        acc = acc + res_ref[0]
    out_ref[0] = acc.astype(out_ref.dtype)


def _pointwise(x, w, bias, pre_add=None, add=None, residual=None, relu=True):
    """Fused 1x1 conv (+BN shift) (+adds) (+ReLU) (+residual). (B,N,Cin)->(B,N,Cout)."""
    B, N, Cin = x.shape
    Cout = w.shape[-1]
    tile = _row_tile(N)
    grid = (B, N // tile)

    in_specs = [pl.BlockSpec((1, tile, Cin), lambda b, t: (b, t, 0)),
                pl.BlockSpec((Cin, Cout), lambda b, t: (0, 0)),
                pl.BlockSpec((1, Cout), lambda b, t: (0, 0))]
    args = [x, w, bias]
    extras = []
    if pre_add is not None:
        extras.append((pre_add, Cin))
    if add is not None:
        extras.append((add, Cout))
    if residual is not None:
        extras.append((residual, Cout))
    for arr, width in extras:
        in_specs.append(pl.BlockSpec((1, tile, width), lambda b, t: (b, t, 0)))
        args.append(arr)

    kern = functools.partial(_pointwise_kernel, relu=relu,
                             has_pre=pre_add is not None,
                             has_add=add is not None,
                             has_res=residual is not None)
    flops = 2 * B * N * Cin * Cout
    bytes_accessed = sum(_nbytes(a) for a in args) + B * N * Cout * 4

    return pl.pallas_call(
        kern,
        out_shape=jax.ShapeDtypeStruct((B, N, Cout), jnp.float32),
        grid=grid,
        in_specs=in_specs,
        out_specs=pl.BlockSpec((1, tile, Cout), lambda b, t: (b, t, 0)),
        compiler_params=pltpu.CompilerParams(
            dimension_semantics=("parallel", "parallel"),
            vmem_limit_bytes=_VMEM_LIMIT_BYTES),
        cost_estimate=pl.CostEstimate(flops=flops, transcendentals=0,
                                      bytes_accessed=int(bytes_accessed)),
    )(*args)


# ----------------------------------------------------------------------------
# Parameter preparation (done ONCE, outside the forward trace): BN folding,
# tap-transposed weights, bf16 casts.
# ----------------------------------------------------------------------------
def _bn_fold(bn, eps=BN_EPS):
    scale = bn["gamma"] / jnp.sqrt(bn["var"] + eps)
    shift = bn["beta"] - bn["mean"] * scale
    return scale, shift


def _prepare_layer(p, cl, cg):
    cg2 = cg // 2
    scale_l, shift_l = _bn_fold(p["bn_l"])
    scale_g, shift_g = _bn_fold(p["bn_g"])
    scale_1, shift_1 = _bn_fold(p["spec"]["bn1"])
    scale_f, shift_f = _bn_fold(p["spec"]["bn_fu"])

    def _taps(w_oihw):                                  # (O, I, 3, 3) -> (9, I, O)
        return jnp.transpose(w_oihw, (2, 3, 1, 0)).reshape(
            9, w_oihw.shape[1], w_oihw.shape[0])

    w_local = (jnp.concatenate([_taps(p["w_l2l"]), _taps(p["w_g2l"])], axis=1)
               * scale_l).astype(jnp.bfloat16)          # (9, cl+cg, cl)
    w_globl = (_taps(p["w_l2g"]) * scale_g).astype(jnp.bfloat16)           # (9, cl, cg)
    return {
        "w_local": w_local,
        "w_globl": w_globl,
        "bias_l": shift_l.reshape(1, cl).astype(jnp.float32),
        "w_c1": (p["spec"]["w_c1"][:, :, 0, 0].T * scale_1).astype(jnp.bfloat16),
        "b_c1": shift_1.reshape(1, cg2).astype(jnp.float32),
        "w_fu": (p["spec"]["w_fu"][:, :, 0, 0].T * scale_f).astype(jnp.bfloat16),
        "b_fu": shift_f.reshape(1, 2 * cg2).astype(jnp.float32),
        "w_c2": (p["spec"]["w_c2"][:, :, 0, 0].T * scale_g).astype(jnp.bfloat16),
        "b_c2": shift_g.reshape(1, cg).astype(jnp.float32),
    }


def prepare_params(params, cl, cg):
    return {"ffc1": _prepare_layer(params["ffc1"], cl, cg),
            "ffc2": _prepare_layer(params["ffc2"], cl, cg)}


# ----------------------------------------------------------------------------
# FFC_BN_ACT layer (Pallas path).
# ----------------------------------------------------------------------------
def _ffc_bn_act_layer(x_l, x_g, prep, cl, cg, residual=None):
    """One FFC_BN_ACT layer (ratio_gin=ratio_gout=0.75, enable_lfu=False), NHWC."""
    B, H, W, _ = x_l.shape
    cg2 = cg // 2

    res_l_flat = res_g_flat = None
    if residual is not None:
        res_l_flat = residual[..., :cl].reshape(B, H * W, cl)
        res_g_flat = residual[..., cl:].reshape(B, H * W, cg)

    # Spatial 3x3 convs (l2l + g2l -> local; l2g -> global, BN_g-scaled, pre-shift).
    x_full = jnp.concatenate([x_l, x_g], axis=-1)
    out_l_flat, gsp_flat = _spatial_conv(x_full, prep["w_local"], prep["w_globl"],
                                         prep["bias_l"], residual_l=res_l_flat)

    # ---- SpectralTransform (g -> g), enable_lfu=False -----------------------
    xg_flat = x_g.reshape(B, H * W, cg)
    y_flat = _pointwise(xg_flat, prep["w_c1"], prep["b_c1"], relu=True)        # (B,HW,cg2)

    # FourierUnit: FFTs stay in XLA (TODO(synk): no Pallas FFT primitive); the
    # frequency-domain 1x1 conv + BN + ReLU is a fused Pallas kernel.
    y_img = y_flat.reshape(B, H, W, cg2)
    freq = jnp.fft.rfft2(y_img, axes=(1, 2), norm="ortho")                    # (B,H,Wf,cg2)
    Wf = freq.shape[2]
    freq_ri = jnp.stack([jnp.real(freq), jnp.imag(freq)], axis=-1)
    freq_ri = freq_ri.reshape(B, H * Wf, 2 * cg2)       # interleaved [re0, im0, re1, ...]
    fu_flat = _pointwise(freq_ri, prep["w_fu"], prep["b_fu"], relu=True)
    fu = fu_flat.reshape(B, H, Wf, cg2, 2)
    z_img = jnp.fft.irfft2(lax.complex(fu[..., 0], fu[..., 1]),
                           s=(H, W), axes=(1, 2), norm="ortho")               # (B,H,W,cg2)
    z_flat = z_img.reshape(B, H * W, cg2)

    # conv2(y + z) + spatial l2g part + BN_g shift + ReLU (+ residual), one kernel.
    out_g_flat = _pointwise(y_flat, prep["w_c2"], prep["b_c2"],
                            pre_add=z_flat, add=gsp_flat, residual=res_g_flat,
                            relu=True)

    return (out_l_flat.reshape(B, H, W, cl), out_g_flat.reshape(B, H, W, cg))


# ----------------------------------------------------------------------------
# FFCResnetBlock forward (NCHW in / NCHW out).
# ----------------------------------------------------------------------------
@jax.jit
def ffc_resnet_block_forward(x_nchw, prepared):
    B, C, H, W = x_nchw.shape
    cg = int(C * 0.75)
    cl = C - cg
    x_nhwc = jnp.transpose(x_nchw, (0, 2, 3, 1)).astype(jnp.float32)
    x_l, x_g = x_nhwc[..., :cl], x_nhwc[..., cl:]
    x_l, x_g = _ffc_bn_act_layer(x_l, x_g, prepared["ffc1"], cl, cg)
    # Layer 2: the block residual is fused into the final kernels of this layer.
    out_l, out_g = _ffc_bn_act_layer(x_l, x_g, prepared["ffc2"], cl, cg,
                                     residual=x_nhwc)
    out_nhwc = jnp.concatenate([out_l, out_g], axis=-1)
    return jnp.transpose(out_nhwc, (0, 3, 1, 2))


# ----------------------------------------------------------------------------
# Pure-JAX reference (mirrors the PyTorch forward, NCHW, f32), for verification.
# ----------------------------------------------------------------------------
def _bn_eval(x, bn, eps=BN_EPS):
    inv = 1.0 / jnp.sqrt(bn["var"] + eps)
    return ((x - bn["mean"][None, :, None, None]) * inv[None, :, None, None]
            * bn["gamma"][None, :, None, None] + bn["beta"][None, :, None, None])


def _conv_ref(x, w, pad):
    if pad:
        x = jnp.pad(x, ((0, 0), (0, 0), (pad, pad), (pad, pad)), mode="reflect")
    return lax.conv_general_dilated(
        x, w, (1, 1), "VALID", dimension_numbers=("NCHW", "OIHW", "NCHW"),
        precision=lax.Precision.HIGHEST)


def _fourier_unit_ref(x, w, bn, eps=BN_EPS):
    B, C, H, W = x.shape
    f = jnp.fft.rfftn(x, axes=(-2, -1), norm="ortho")
    fr = jnp.stack([jnp.real(f), jnp.imag(f)], axis=-1)            # (B, C, H, Wf, 2)
    fr = jnp.transpose(fr, (0, 1, 4, 2, 3)).reshape(B, 2 * C, H, -1)
    fr = jnp.maximum(_bn_eval(_conv_ref(fr, w, 0), bn, eps), 0.0)
    fr = fr.reshape(B, C, 2, H, -1)
    fr = jnp.transpose(fr, (0, 1, 3, 4, 2))
    fc = lax.complex(fr[..., 0], fr[..., 1])
    return jnp.fft.irfftn(fc, s=(H, W), axes=(-2, -1), norm="ortho")


def _spectral_ref(x, p, eps=BN_EPS):
    y = jnp.maximum(_bn_eval(_conv_ref(x, p["w_c1"], 0), p["bn1"], eps), 0.0)
    z = _fourier_unit_ref(y, p["w_fu"], p["bn_fu"], eps)
    return _conv_ref(y + z, p["w_c2"], 0)


def _ffc_layer_ref(x_l, x_g, p, eps=BN_EPS):
    out_l = _conv_ref(x_l, p["w_l2l"], 1) + _conv_ref(x_g, p["w_g2l"], 1)
    out_g = _conv_ref(x_l, p["w_l2g"], 1) + _spectral_ref(x_g, p["spec"], eps)
    out_l = jnp.maximum(_bn_eval(out_l, p["bn_l"], eps), 0.0)
    out_g = jnp.maximum(_bn_eval(out_g, p["bn_g"], eps), 0.0)
    return out_l, out_g


def ffc_resnet_block_reference(x, params):
    B, C, H, W = x.shape
    cg = int(C * 0.75)
    cl = C - cg
    x_l, x_g = x[:, :cl], x[:, cl:]
    x_l, x_g = _ffc_layer_ref(x_l, x_g, params["ffc1"])
    x_l, x_g = _ffc_layer_ref(x_l, x_g, params["ffc2"])
    return x + jnp.concatenate([x_l, x_g], axis=1)


# ----------------------------------------------------------------------------
# Parameter init (torch layouts: conv weights OIHW, BN vectors per channel).
# ----------------------------------------------------------------------------
def init_params(key, dim):
    cg = int(dim * 0.75)
    cl = dim - cg
    cg2 = cg // 2

    def conv_w(k, cout, cin, ks):
        fan_out = cout * ks * ks
        return (jnp.sqrt(2.0 / fan_out)
                * jax.random.normal(k, (cout, cin, ks, ks))).astype(jnp.float32)

    def bn_p(k, c):
        k1, k2, k3 = jax.random.split(k, 3)
        return {"gamma": (1.0 + 0.1 * jax.random.normal(k1, (c,))).astype(jnp.float32),
                "beta": (0.1 * jax.random.normal(k2, (c,))).astype(jnp.float32),
                "mean": (0.1 * jax.random.normal(k3, (c,))).astype(jnp.float32),
                "var": (0.9 * jnp.ones((c,))).astype(jnp.float32)}

    def layer(k):
        ks = jax.random.split(k, 10)
        return {
            "w_l2l": conv_w(ks[0], cl, cl, 3),
            "w_g2l": conv_w(ks[1], cl, cg, 3),
            "w_l2g": conv_w(ks[2], cg, cl, 3),
            "bn_l": bn_p(ks[3], cl),
            "bn_g": bn_p(ks[4], cg),
            "spec": {
                "w_c1": conv_w(ks[5], cg2, cg, 1),
                "bn1": bn_p(ks[6], cg2),
                "w_fu": conv_w(ks[7], 2 * cg2, 2 * cg2, 1),
                "bn_fu": bn_p(ks[8], 2 * cg2),
                "w_c2": conv_w(ks[9], cg, cg2, 1),
            },
        }

    k1, k2 = jax.random.split(key)
    return {"ffc1": layer(k1), "ffc2": layer(k2)}


if __name__ == "__main__":
    key = jax.random.PRNGKey(0)
    kx, kp = jax.random.split(key)

    B, dim, H, W = 2, 16, 16, 16          # dim=16 -> local=4, global=12 channels
    x = jax.random.normal(kx, (B, dim, H, W), jnp.float32)   # NCHW, like PyTorch
    params = init_params(kp, dim)

    cg = int(dim * 0.75)
    cl = dim - cg
    prepared = prepare_params(params, cl, cg)     # BN folding / bf16 cast done once

    out = ffc_resnet_block_forward(x, prepared)
    out = jax.block_until_ready(out)

    ref = ffc_resnet_block_reference(x, params)   # f32 reference
    err = float(jnp.max(jnp.abs(out - ref)))
    scale = float(jnp.max(jnp.abs(ref)))

    assert out.shape == (B, dim, H, W), out.shape
    # bf16 matmul operands vs f32 reference: allow ~bf16-level relative error.
    assert np.isfinite(err) and err < 5e-2 * max(scale, 1.0), f"err={err} scale={scale}"
    print("KERNEL_OK")
</pallas_src>

<mosaic_0001>
module attributes {stable_mosaic.version = 11 : i64} {
  func.func @_pointwise_kernel(%arg0: i32, %arg1: i32, %arg2: memref<1x128x12xf32, #tpu.memory_space<vmem>>, %arg3: memref<12x6xbf16, #tpu.memory_space<vmem>>, %arg4: memref<1x6xf32, #tpu.memory_space<vmem>>, %arg5: memref<1x128x6xf32, #tpu.memory_space<vmem>>) attributes {dimension_semantics = [#tpu.dimension_semantics<parallel>, #tpu.dimension_semantics<parallel>], iteration_bounds = array<i64: 2, 2>, scalar_prefetch = 0 : i64, scratch_operands = 0 : i64, tpu.core_type = #tpu.core_type<tc>, window_params = [{transform_indices = @transform_0, window_bounds = array<i64: 1, 128, 12>}, {pipeline_mode = #tpu.pipeline_mode<synchronous>, transform_indices = @transform_1, window_bounds = array<i64: 12, 6>}, {pipeline_mode = #tpu.pipeline_mode<synchronous>, transform_indices = @transform_2, window_bounds = array<i64: 1, 6>}, {transform_indices = @transform_3, window_bounds = array<i64: 1, 128, 6>}]} {
    %c0 = arith.constant 0 : index
    %c0_0 = arith.constant 0 : index
    %c0_1 = arith.constant 0 : index
    %0 = vector.load %arg2[%c0, %c0_0, %c0_1] : memref<1x128x12xf32, #tpu.memory_space<vmem>>, vector<1x128x12xf32>
    %1 = vector.shape_cast %0 : vector<1x128x12xf32> to vector<128x12xf32>
    %2 = arith.truncf %1 : vector<128x12xf32> to vector<128x12xbf16>
    %c0_2 = arith.constant 0 : index
    %c0_3 = arith.constant 0 : index
    %3 = vector.load %arg3[%c0_2, %c0_3] : memref<12x6xbf16, #tpu.memory_space<vmem>>, vector<12x6xbf16>
    %cst = arith.constant dense<0.000000e+00> : vector<128x6xf32>
    %4 = tpu.matmul %2, %3, %cst {dimension_numbers = #tpu.dot_dimension_numbers<[1], [0], [0], [1], [0, 0, 1, 1], [], []>} : vector<128x12xbf16>, vector<12x6xbf16>, vector<128x6xf32> -> vector<128x6xf32>
    %c0_4 = arith.constant 0 : index
    %c0_5 = arith.constant 0 : index
    %5 = vector.load %arg4[%c0_4, %c0_5] : memref<1x6xf32, #tpu.memory_space<vmem>>, vector<1x6xf32>
    %6 = vector.broadcast %5 : vector<1x6xf32> to vector<128x6xf32>
    %7 = arith.addf %4, %6 : vector<128x6xf32>
    %cst_6 = arith.constant 0.000000e+00 : f32
    %8 = vector.broadcast %cst_6 : f32 to vector<128x6xf32>
    %9 = arith.maximumf %7, %8 : vector<128x6xf32>
    %c0_7 = arith.constant 0 : index
    %c0_8 = arith.constant 0 : index
    %c0_9 = arith.constant 0 : index
    %10 = vector.load %arg5[%c0_7, %c0_8, %c0_9] : memref<1x128x6xf32, #tpu.memory_space<vmem>>, vector<1x128x6xf32>
    %11 = vector.shape_cast %10 : vector<1x128x6xf32> to vector<128x6xf32>
    %12 = vector.shape_cast %9 : vector<128x6xf32> to vector<1x128x6xf32>
    tpu.vector_store %arg5[%c0_7, %c0_8, %c0_9], %12 {strides = array<i32>} : memref<1x128x6xf32, #tpu.memory_space<vmem>>, vector<1x128x6xf32>,
    return
  }
  func.func @transform_0(%arg0: i32, %arg1: i32) -> (i32, i32, i32) {
    %c0_i32 = arith.constant 0 : i32
    %c0_i32_0 = arith.constant 0 : i32
    return %arg0, %arg1, %c0_i32 : i32, i32, i32
  }
  func.func @transform_1(%arg0: i32, %arg1: i32) -> (i32, i32) {
    %c0_i32 = arith.constant 0 : i32
    %c0_i32_0 = arith.constant 0 : i32
    %c0_i32_1 = arith.constant 0 : i32
    return %c0_i32, %c0_i32_0 : i32, i32
  }
  func.func @transform_2(%arg0: i32, %arg1: i32) -> (i32, i32) {
    %c0_i32 = arith.constant 0 : i32
    %c0_i32_0 = arith.constant 0 : i32
    %c0_i32_1 = arith.constant 0 : i32
    return %c0_i32, %c0_i32_0 : i32, i32
  }
  func.func @transform_3(%arg0: i32, %arg1: i32) -> (i32, i32, i32) {
    %c0_i32 = arith.constant 0 : i32
    %c0_i32_0 = arith.constant 0 : i32
    return %arg0, %arg1, %c0_i32 : i32, i32, i32
  }
}

module attributes {stable_mosaic.version = 11 : i64} {
  func.func @_pointwise_kernel(%arg0: i32, %arg1: i32, %arg2: memref<1x72x12xf32, #tpu.memory_space<vmem>>, %arg3: memref<12x12xbf16, #tpu.memory_space<vmem>>, %arg4: memref<1x12xf32, #tpu.memory_space<vmem>>, %arg5: memref<1x72x12xf32, #tpu.memory_space<vmem>>) attributes {dimension_semantics = [#tpu.dimension_semantics<parallel>, #tpu.dimension_semantics<parallel>], iteration_bounds = array<i64: 2, 2>, scalar_prefetch = 0 : i64, scratch_operands = 0 : i64, tpu.core_type = #tpu.core_type<tc>, window_params = [{transform_indices = @transform_0, window_bounds = array<i64: 1, 72, 12>}, {pipeline_mode = #tpu.pipeline_mode<synchronous>, transform_indices = @transform_1, window_bounds = array<i64: 12, 12>}, {pipeline_mode = #tpu.pipeline_mode<synchronous>, transform_indices = @transform_2, window_bounds = array<i64: 1, 12>}, {transform_indices = @transform_3, window_bounds = array<i64: 1, 72, 12>}]} {
    %c0 = arith.constant 0 : index
    %c0_0 = arith.constant 0 : index
    %c0_1 = arith.constant 0 : index
    %0 = vector.load %arg2[%c0, %c0_0, %c0_1] : memref<1x72x12xf32, #tpu.memory_space<vmem>>, vector<1x72x12xf32>
    %1 = vector.shape_cast %0 : vector<1x72x12xf32> to vector<72x12xf32>
    %2 = arith.truncf %1 : vector<72x12xf32> to vector<72x12xbf16>
    %c0_2 = arith.constant 0 : index
    %c0_3 = arith.constant 0 : index
    %3 = vector.load %arg3[%c0_2, %c0_3] : memref<12x12xbf16, #tpu.memory_space<vmem>>, vector<12x12xbf16>
    %cst = arith.constant dense<0.000000e+00> : vector<72x12xf32>
    %4 = tpu.matmul %2, %3, %cst {dimension_numbers = #tpu.dot_dimension_numbers<[1], [0], [0], [1], [0, 0, 1, 1], [], []>} : vector<72x12xbf16>, vector<12x12xbf16>, vector<72x12xf32> -> vector<72x12xf32>
    %c0_4 = arith.constant 0 : index
    %c0_5 = arith.constant 0 : index
    %5 = vector.load %arg4[%c0_4, %c0_5] : memref<1x12xf32, #tpu.memory_space<vmem>>, vector<1x12xf32>
    %6 = vector.broadcast %5 : vector<1x12xf32> to vector<72x12xf32>
    %7 = arith.addf %4, %6 : vector<72x12xf32>
    %cst_6 = arith.constant 0.000000e+00 : f32
    %8 = vector.broadcast %cst_6 : f32 to vector<72x12xf32>
    %9 = arith.maximumf %7, %8 : vector<72x12xf32>
    %c0_7 = arith.constant 0 : index
    %c0_8 = arith.constant 0 : index
    %c0_9 = arith.constant 0 : index
    %10 = vector.load %arg5[%c0_7, %c0_8, %c0_9] : memref<1x72x12xf32, #tpu.memory_space<vmem>>, vector<1x72x12xf32>
    %11 = vector.shape_cast %10 : vector<1x72x12xf32> to vector<72x12xf32>
    %12 = vector.shape_cast %9 : vector<72x12xf32> to vector<1x72x12xf32>
    tpu.vector_store %arg5[%c0_7, %c0_8, %c0_9], %12 {strides = array<i32>} : memref<1x72x12xf32, #tpu.memory_space<vmem>>, vector<1x72x12xf32>,
    return
  }
  func.func @transform_0(%arg0: i32, %arg1: i32) -> (i32, i32, i32) {
    %c0_i32 = arith.constant 0 : i32
    %c0_i32_0 = arith.constant 0 : i32
    return %arg0, %arg1, %c0_i32 : i32, i32, i32
  }
  func.func @transform_1(%arg0: i32, %arg1: i32) -> (i32, i32) {
    %c0_i32 = arith.constant 0 : i32
    %c0_i32_0 = arith.constant 0 : i32
    %c0_i32_1 = arith.constant 0 : i32
    return %c0_i32, %c0_i32_0 : i32, i32
  }
  func.func @transform_2(%arg0: i32, %arg1: i32) -> (i32, i32) {
    %c0_i32 = arith.constant 0 : i32
    %c0_i32_0 = arith.constant 0 : i32
    %c0_i32_1 = arith.constant 0 : i32
    return %c0_i32, %c0_i32_0 : i32, i32
  }
  func.func @transform_3(%arg0: i32, %arg1: i32) -> (i32, i32, i32) {
    %c0_i32 = arith.constant 0 : i32
    %c0_i32_0 = arith.constant 0 : i32
    return %arg0, %arg1, %c0_i32 : i32, i32, i32
  }
}

module attributes {stable_mosaic.version = 11 : i64} {
  func.func @_pointwise_kernel(%arg0: i32, %arg1: i32, %arg2: memref<1x128x6xf32, #tpu.memory_space<vmem>>, %arg3: memref<6x12xbf16, #tpu.memory_space<vmem>>, %arg4: memref<1x12xf32, #tpu.memory_space<vmem>>, %arg5: memref<1x128x6xf32, #tpu.memory_space<vmem>>, %arg6: memref<1x128x12xf32, #tpu.memory_space<vmem>>, %arg7: memref<1x128x12xf32, #tpu.memory_space<vmem>>) attributes {dimension_semantics = [#tpu.dimension_semantics<parallel>, #tpu.dimension_semantics<parallel>], iteration_bounds = array<i64: 2, 2>, scalar_prefetch = 0 : i64, scratch_operands = 0 : i64, tpu.core_type = #tpu.core_type<tc>, window_params = [{transform_indices = @transform_0, window_bounds = array<i64: 1, 128, 6>}, {pipeline_mode = #tpu.pipeline_mode<synchronous>, transform_indices = @transform_1, window_bounds = array<i64: 6, 12>}, {pipeline_mode = #tpu.pipeline_mode<synchronous>, transform_indices = @transform_2, window_bounds = array<i64: 1, 12>}, {transform_indices = @transform_3, window_bounds = array<i64: 1, 128, 6>}, {transform_indices = @transform_4, window_bounds = array<i64: 1, 128, 12>}, {transform_indices = @transform_5, window_bounds = array<i64: 1, 128, 12>}]} {
    %c0 = arith.constant 0 : index
    %c0_0 = arith.constant 0 : index
    %c0_1 = arith.constant 0 : index
    %0 = vector.load %arg2[%c0, %c0_0, %c0_1] : memref<1x128x6xf32, #tpu.memory_space<vmem>>, vector<1x128x6xf32>
    %1 = vector.shape_cast %0 : vector<1x128x6xf32> to vector<128x6xf32>
    %c0_2 = arith.constant 0 : index
    %c0_3 = arith.constant 0 : index
    %c0_4 = arith.constant 0 : index
    %2 = vector.load %arg5[%c0_2, %c0_3, %c0_4] : memref<1x128x6xf32, #tpu.memory_space<vmem>>, vector<1x128x6xf32>
    %3 = vector.shape_cast %2 : vector<1x128x6xf32> to vector<128x6xf32>
    %4 = arith.addf %1, %3 : vector<128x6xf32>
    %5 = arith.truncf %4 : vector<128x6xf32> to vector<128x6xbf16>
    %c0_5 = arith.constant 0 : index
    %c0_6 = arith.constant 0 : index
    %6 = vector.load %arg3[%c0_5, %c0_6] : memref<6x12xbf16, #tpu.memory_space<vmem>>, vector<6x12xbf16>
    %cst = arith.constant dense<0.000000e+00> : vector<128x12xf32>
    %7 = tpu.matmul %5, %6, %cst {dimension_numbers = #tpu.dot_dimension_numbers<[1], [0], [0], [1], [0, 0, 1, 1], [], []>} : vector<128x6xbf16>, vector<6x12xbf16>, vector<128x12xf32> -> vector<128x12xf32>
    %c0_7 = arith.constant 0 : index
    %c0_8 = arith.constant 0 : index
    %8 = vector.load %arg4[%c0_7, %c0_8] : memref<1x12xf32, #tpu.memory_space<vmem>>, vector<1x12xf32>
    %9 = vector.broadcast %8 : vector<1x12xf32> to vector<128x12xf32>
    %10 = arith.addf %7, %9 : vector<128x12xf32>
    %c0_9 = arith.constant 0 : index
    %c0_10 = arith.constant 0 : index
    %c0_11 = arith.constant 0 : index
    %11 = vector.load %arg6[%c0_9, %c0_10, %c0_11] : memref<1x128x12xf32, #tpu.memory_space<vmem>>, vector<1x128x12xf32>
    %12 = vector.shape_cast %11 : vector<1x128x12xf32> to vector<128x12xf32>
    %13 = arith.addf %10, %12 : vector<128x12xf32>
    %cst_12 = arith.constant 0.000000e+00 : f32
    %14 = vector.broadcast %cst_12 : f32 to vector<128x12xf32>
    %15 = arith.maximumf %13, %14 : vector<128x12xf32>
    %c0_13 = arith.constant 0 : index
    %c0_14 = arith.constant 0 : index
    %c0_15 = arith.constant 0 : index
    %16 = vector.load %arg7[%c0_13, %c0_14, %c0_15] : memref<1x128x12xf32, #tpu.memory_space<vmem>>, vector<1x128x12xf32>
    %17 = vector.shape_cast %16 : vector<1x128x12xf32> to vector<128x12xf32>
    %18 = vector.shape_cast %15 : vector<128x12xf32> to vector<1x128x12xf32>
    tpu.vector_store %arg7[%c0_13, %c0_14, %c0_15], %18 {strides = array<i32>} : memref<1x128x12xf32, #tpu.memory_space<vmem>>, vector<1x128x12xf32>,
    return
  }
  func.func @transform_0(%arg0: i32, %arg1: i32) -> (i32, i32, i32) {
    %c0_i32 = arith.constant 0 : i32
    %c0_i32_0 = arith.constant 0 : i32
    return %arg0, %arg1, %c0_i32 : i32, i32, i32
  }
  func.func @transform_1(%arg0: i32, %arg1: i32) -> (i32, i32) {
    %c0_i32 = arith.constant 0 : i32
    %c0_i32_0 = arith.constant 0 : i32
    %c0_i32_1 = arith.constant 0 : i32
    return %c0_i32, %c0_i32_0 : i32, i32
  }
  func.func @transform_2(%arg0: i32, %arg1: i32) -> (i32, i32) {
    %c0_i32 = arith.constant 0 : i32
    %c0_i32_0 = arith.constant 0 : i32
    %c0_i32_1 = arith.constant 0 : i32
    return %c0_i32, %c0_i32_0 : i32, i32
  }
  func.func @transform_3(%arg0: i32, %arg1: i32) -> (i32, i32, i32) {
    %c0_i32 = arith.constant 0 : i32
    %c0_i32_0 = arith.constant 0 : i32
    return %arg0, %arg1, %c0_i32 : i32, i32, i32
  }
  func.func @transform_4(%arg0: i32, %arg1: i32) -> (i32, i32, i32) {
    %c0_i32 = arith.constant 0 : i32
    %c0_i32_0 = arith.constant 0 : i32
    return %arg0, %arg1, %c0_i32 : i32, i32, i32
  }
  func.func @transform_5(%arg0: i32, %arg1: i32) -> (i32, i32, i32) {
    %c0_i32 = arith.constant 0 : i32
    %c0_i32_0 = arith.constant 0 : i32
    return %arg0, %arg1, %c0_i32 : i32, i32, i32
  }
}

module attributes {stable_mosaic.version = 11 : i64} {
  func.func @_spatial_conv_kernel(%arg0: i32, %arg1: i32, %arg2: memref<1x18x18x16xbf16, #tpu.memory_space<vmem>>, %arg3: memref<9x16x4xbf16, #tpu.memory_space<vmem>>, %arg4: memref<9x4x12xbf16, #tpu.memory_space<vmem>>, %arg5: memref<1x4xf32, #tpu.memory_space<vmem>>, %arg6: memref<1x128x4xf32, #tpu.memory_space<vmem>>, %arg7: memref<1x128x12xf32, #tpu.memory_space<vmem>>) attributes {dimension_semantics = [#tpu.dimension_semantics<parallel>, #tpu.dimension_semantics<parallel>], iteration_bounds = array<i64: 2, 2>, scalar_prefetch = 0 : i64, scratch_operands = 0 : i64, tpu.core_type = #tpu.core_type<tc>, window_params = [{transform_indices = @transform_0, window_bounds = array<i64: 1, 18, 18, 16>}, {pipeline_mode = #tpu.pipeline_mode<synchronous>, transform_indices = @transform_1, window_bounds = array<i64: 9, 16, 4>}, {pipeline_mode = #tpu.pipeline_mode<synchronous>, transform_indices = @transform_2, window_bounds = array<i64: 9, 4, 12>}, {pipeline_mode = #tpu.pipeline_mode<synchronous>, transform_indices = @transform_3, window_bounds = array<i64: 1, 4>}, {transform_indices = @transform_4, window_bounds = array<i64: 1, 128, 4>}, {transform_indices = @transform_5, window_bounds = array<i64: 1, 128, 12>}]} {
    %c8_i32 = arith.constant 8 : i32
    %0 = arith.muli %arg1, %c8_i32 : i32
    %1 = tpu.assume_multiple %0, 8 : i32
    %c0 = arith.constant 0 : index
    %2 = arith.index_cast %1 : i32 to index
    %c0_0 = arith.constant 0 : index
    %c0_1 = arith.constant 0 : index
    %3 = vector.load %arg2[%c0, %2, %c0_0, %c0_1] : memref<1x18x18x16xbf16, #tpu.memory_space<vmem>>, vector<1x10x18x16xbf16>
    %4 = vector.shape_cast %3 : vector<1x10x18x16xbf16> to vector<10x18x16xbf16>
    %cst = arith.constant 0.000000e+00 : f32
    %5 = vector.broadcast %cst : f32 to vector<128x4xf32>
    %cst_2 = arith.constant 0.000000e+00 : f32
    %6 = vector.broadcast %cst_2 : f32 to vector<128x12xf32>
    %7 = vector.extract_strided_slice %4 {offsets = [0, 0, 0], sizes = [8, 18, 16], strides = [1, 1, 1]} : vector<10x18x16xbf16> to vector<8x18x16xbf16>
    %8 = vector.extract_strided_slice %7 {offsets = [0, 0, 0], sizes = [8, 16, 16], strides = [1, 1, 1]} : vector<8x18x16xbf16> to vector<8x16x16xbf16>
    %9 = vector.shape_cast %8 : vector<8x16x16xbf16> to vector<128x16xbf16>
    %c0_3 = arith.constant 0 : index
    %c0_4 = arith.constant 0 : index
    %c0_5 = arith.constant 0 : index
    %10 = vector.load %arg3[%c0_3, %c0_4, %c0_5] : memref<9x16x4xbf16, #tpu.memory_space<vmem>>, vector<1x16x4xbf16>
    %11 = vector.shape_cast %10 : vector<1x16x4xbf16> to vector<16x4xbf16>
    %cst_6 = arith.constant dense<0.000000e+00> : vector<128x4xf32>
    %12 = tpu.matmul %9, %11, %cst_6 {dimension_numbers = #tpu.dot_dimension_numbers<[1], [0], [0], [1], [0, 0, 1, 1], [], []>} : vector<128x16xbf16>, vector<16x4xbf16>, vector<128x4xf32> -> vector<128x4xf32>
    %13 = arith.addf %5, %12 : vector<128x4xf32>
    %14 = vector.extract_strided_slice %9 {offsets = [0, 0], sizes = [128, 4], strides = [1, 1]} : vector<128x16xbf16> to vector<128x4xbf16>
    %c0_7 = arith.constant 0 : index
    %c0_8 = arith.constant 0 : index
    %c0_9 = arith.constant 0 : index
    %15 = vector.load %arg4[%c0_7, %c0_8, %c0_9] : memref<9x4x12xbf16, #tpu.memory_space<vmem>>, vector<1x4x12xbf16>
    %16 = vector.shape_cast %15 : vector<1x4x12xbf16> to vector<4x12xbf16>
    %cst_10 = arith.constant dense<0.000000e+00> : vector<128x12xf32>
    %17 = tpu.matmul %14, %16, %cst_10 {dimension_numbers = #tpu.dot_dimension_numbers<[1], [0], [0], [1], [0, 0, 1, 1], [], []>} : vector<128x4xbf16>, vector<4x12xbf16>, vector<128x12xf32> -> vector<128x12xf32>
    %18 = arith.addf %6, %17 : vector<128x12xf32>
    %19 = vector.extract_strided_slice %7 {offsets = [0, 1, 0], sizes = [8, 16, 16], strides = [1, 1, 1]} : vector<8x18x16xbf16> to vector<8x16x16xbf16>
    %20 = vector.shape_cast %19 : vector<8x16x16xbf16> to vector<128x16xbf16>
    %c1 = arith.constant 1 : index
    %c0_11 = arith.constant 0 : index
    %c0_12 = arith.constant 0 : index
    %21 = vector.load %arg3[%c1, %c0_11, %c0_12] : memref<9x16x4xbf16, #tpu.memory_space<vmem>>, vector<1x16x4xbf16>
    %22 = vector.shape_cast %21 : vector<1x16x4xbf16> to vector<16x4xbf16>
    %cst_13 = arith.constant dense<0.000000e+00> : vector<128x4xf32>
    %23 = tpu.matmul %20, %22, %cst_13 {dimension_numbers = #tpu.dot_dimension_numbers<[1], [0], [0], [1], [0, 0, 1, 1], [], []>} : vector<128x16xbf16>, vector<16x4xbf16>, vector<128x4xf32> -> vector<128x4xf32>
    %24 = arith.addf %13, %23 : vector<128x4xf32>
    %25 = vector.extract_strided_slice %20 {offsets = [0, 0], sizes = [128, 4], strides = [1, 1]} : vector<128x16xbf16> to vector<128x4xbf16>
    %c1_14 = arith.constant 1 : index
    %c0_15 = arith.constant 0 : index
    %c0_16 = arith.constant 0 : index
    %26 = vector.load %arg4[%c1_14, %c0_15, %c0_16] : memref<9x4x12xbf16, #tpu.memory_space<vmem>>, vector<1x4x12xbf16>
    %27 = vector.shape_cast %26 : vector<1x4x12xbf16> to vector<4x12xbf16>
    %cst_17 = arith.constant dense<0.000000e+00> : vector<128x12xf32>
    %28 = tpu.matmul %25, %27, %cst_17 {dimension_numbers = #tpu.dot_dimension_numbers<[1], [0], [0], [1], [0, 0, 1, 1], [], []>} : vector<128x4xbf16>, vector<4x12xbf16>, vector<128x12xf32> -> vector<128x12xf32>
    %29 = arith.addf %18, %28 : vector<128x12xf32>
    %30 = vector.extract_strided_slice %7 {offsets = [0, 2, 0], sizes = [8, 16, 16], strides = [1, 1, 1]} : vector<8x18x16xbf16> to vector<8x16x16xbf16>
    %31 = vector.shape_cast %30 : vector<8x16x16xbf16> to vector<128x16xbf16>
    %c2 = arith.constant 2 : index
    %c0_18 = arith.constant 0 : index
    %c0_19 = arith.constant 0 : index
    %32 = vector.load %arg3[%c2, %c0_18, %c0_19] : memref<9x16x4xbf16, #tpu.memory_space<vmem>>, vector<1x16x4xbf16>
    %33 = vector.shape_cast %32 : vector<1x16x4xbf16> to vector<16x4xbf16>
    %cst_20 = arith.constant dense<0.000000e+00> : vector<128x4xf32>
    %34 = tpu.matmul %31, %33, %cst_20 {dimension_numbers = #tpu.dot_dimension_numbers<[1], [0], [0], [1], [0, 0, 1, 1], [], []>} : vector<128x16xbf16>, vector<16x4xbf16>, vector<128x4xf32> -> vector<128x4xf32>
    %35 = arith.addf %24, %34 : vector<128x4xf32>
    %36 = vector.extract_strided_slice %31 {offsets = [0, 0], sizes = [128, 4], strides = [1, 1]} : vector<128x16xbf16> to vector<128x4xbf16>
    %c2_21 = arith.constant 2 : index
    %c0_22 = arith.constant 0 : index
    %c0_23 = arith.constant 0 : index
    %37 = vector.load %arg4[%c2_21, %c0_22, %c0_23] : memref<9x4x12xbf16, #tpu.memory_space<vmem>>, vector<1x4x12xbf16>
    %38 = vector.shape_cast %37 : vector<1x4x12xbf16> to vector<4x12xbf16>
    %cst_24 = arith.constant dense<0.000000e+00> : vector<128x12xf32>
    %39 = tpu.matmul %36, %38, %cst_24 {dimension_numbers = #tpu.dot_dimension_numbers<[1], [0], [0], [1], [0, 0, 1, 1], [], []>} : vector<128x4xbf16>, vector<4x12xbf16>, vector<128x12xf32> -> vector<128x12xf32>
    %40 = arith.addf %29, %39 : vector<128x12xf32>
    %41 = vector.extract_strided_slice %4 {offsets = [1, 0, 0], sizes = [8, 18, 16], strides = [1, 1, 1]} : vector<10x18x16xbf16> to vector<8x18x16xbf16>
    %42 = vector.extract_strided_slice %41 {offsets = [0, 0, 0], sizes = [8, 16, 16], strides = [1, 1, 1]} : vector<8x18x16xbf16> to vector<8x16x16xbf16>
    %43 = vector.shape_cast %42 : vector<8x16x16xbf16> to vector<128x16xbf16>
    %c3 = arith.constant 3 : index
    %c0_25 = arith.constant 0 : index
    %c0_26 = arith.constant 0 : index
    %44 = vector.load %arg3[%c3, %c0_25, %c0_26] : memref<9x16x4xbf16, #tpu.memory_space<vmem>>, vector<1x16x4xbf16>
    %45 = vector.shape_cast %44 : vector<1x16x4xbf16> to vector<16x4xbf16>
    %cst_27 = arith.constant dense<0.000000e+00> : vector<128x4xf32>
    %46 = tpu.matmul %43, %45, %cst_27 {dimension_numbers = #tpu.dot_dimension_numbers<[1], [0], [0], [1], [0, 0, 1, 1], [], []>} : vector<128x16xbf16>, vector<16x4xbf16>, vector<128x4xf32> -> vector<128x4xf32>
    %47 = arith.addf %35, %46 : vector<128x4xf32>
    %48 = vector.extract_strided_slice %43 {offsets = [0, 0], sizes = [128, 4], strides = [1, 1]} : vector<128x16xbf16> to vector<128x4xbf16>
    %c3_28 = arith.constant 3 : index
    %c0_29 = arith.constant 0 : index
    %c0_30 = arith.constant 0 : index
    %49 = vector.load %arg4[%c3_28, %c0_29, %c0_30] : memref<9x4x12xbf16, #tpu.memory_space<vmem>>, vector<1x4x12xbf16>
    %50 = vector.shape_cast %49 : vector<1x4x12xbf16> to vector<4x12xbf16>
    %cst_31 = arith.constant dense<0.000000e+00> : vector<128x12xf32>
    %51 = tpu.matmul %48, %50, %cst_31 {dimension_numbers = #tpu.dot_dimension_numbers<[1], [0], [0], [1], [0, 0, 1, 1], [], []>} : vector<128x4xbf16>, vector<4x12xbf16>, vector<128x12xf32> -> vector<128x12xf32>
    %52 = arith.addf %40, %51 : vector<128x12xf32>
    %53 = vector.extract_strided_slice %41 {offsets = [0, 1, 0], sizes = [8, 16, 16], strides = [1, 1, 1]} : vector<8x18x16xbf16> to vector<8x16x16xbf16>
    %54 = vector.shape_cast %53 : vector<8x16x16xbf16> to vector<128x16xbf16>
    %c4 = arith.constant 4 : index
    %c0_32 = arith.constant 0 : index
    %c0_33 = arith.constant 0 : index
    %55 = vector.load %arg3[%c4, %c0_32, %c0_33] : memref<9x16x4xbf16, #tpu.memory_space<vmem>>, vector<1x16x4xbf16>
    %56 = vector.shape_cast %55 : vector<1x16x4xbf16> to vector<16x4xbf16>
    %cst_34 = arith.constant dense<0.000000e+00> : vector<128x4xf32>
    %57 = tpu.matmul %54, %56, %cst_34 {dimension_numbers = #tpu.dot_dimension_numbers<[1], [0], [0], [1], [0, 0, 1, 1], [], []>} : vector<128x16xbf16>, vector<16x4xbf16>, vector<128x4xf32> -> vector<128x4xf32>
    %58 = arith.addf %47, %57 : vector<128x4xf32>
    %59 = vector.extract_strided_slice %54 {offsets = [0, 0], sizes = [128, 4], strides = [1, 1]} : vector<128x16xbf16> to vector<128x4xbf16>
    %c4_35 = arith.constant 4 : index
    %c0_36 = arith.constant 0 : index
    %c0_37 = arith.constant 0 : index
    %60 = vector.load %arg4[%c4_35, %c0_36, %c0_37] : memref<9x4x12xbf16, #tpu.memory_space<vmem>>, vector<1x4x12xbf16>
    %61 = vector.shape_cast %60 : vector<1x4x12xbf16> to vector<4x12xbf16>
    %cst_38 = arith.constant dense<0.000000e+00> : vector<128x12xf32>
    %62 = tpu.matmul %59, %61, %cst_38 {dimension_numbers = #tpu.dot_dimension_numbers<[1], [0], [0], [1], [0, 0, 1, 1], [], []>} : vector<128x4xbf16>, vector<4x12xbf16>, vector<128x12xf32> -> vector<128x12xf32>
    %63 = arith.addf %52, %62 : vector<128x12xf32>
    %64 = vector.extract_strided_slice %41 {offsets = [0, 2, 0], sizes = [8, 16, 16], strides = [1, 1, 1]} : vector<8x18x16xbf16> to vector<8x16x16xbf16>
    %65 = vector.shape_cast %64 : vector<8x16x16xbf16> to vector<128x16xbf16>
    %c5 = arith.constant 5 : index
    %c0_39 = arith.constant 0 : index
    %c0_40 = arith.constant 0 : index
    %66 = vector.load %arg3[%c5, %c0_39, %c0_40] : memref<9x16x4xbf16, #tpu.memory_space<vmem>>, vector<1x16x4xbf16>
    %67 = vector.shape_cast %66 : vector<1x16x4xbf16> to vector<16x4xbf16>
    %cst_41 = arith.constant dense<0.000000e+00> : vector<128x4xf32>
    %68 = tpu.matmul %65, %67, %cst_41 {dimension_numbers = #tpu.dot_dimension_numbers<[1], [0], [0], [1], [0, 0, 1, 1], [], []>} : vector<128x16xbf16>, vector<16x4xbf16>, vector<128x4xf32> -> vector<128x4xf32>
    %69 = arith.addf %58, %68 : vector<128x4xf32>
    %70 = vector.extract_strided_slice %65 {offsets = [0, 0], sizes = [128, 4], strides = [1, 1]} : vector<128x16xbf16> to vector<128x4xbf16>
    %c5_42 = arith.constant 5 : index
    %c0_43 = arith.constant 0 : index
    %c0_44 = arith.constant 0 : index
    %71 = vector.load %arg4[%c5_42, %c0_43, %c0_44] : memref<9x4x12xbf16, #tpu.memory_space<vmem>>, vector<1x4x12xbf16>
    %72 = vector.shape_cast %71 : vector<1x4x12xbf16> to vector<4x12xbf16>
    %cst_45 = arith.constant dense<0.000000e+00> : vector<128x12xf32>
    %73 = tpu.matmul %70, %72, %cst_45 {dimension_numbers = #tpu.dot_dimension_numbers<[1], [0], [0], [1], [0, 0, 1, 1], [], []>} : vector<128x4xbf16>, vector<4x12xbf16>, vector<128x12xf32> -> vector<128x12xf32>
    %74 = arith.addf %63, %73 : vector<128x12xf32>
    %75 = vector.extract_strided_slice %4 {offsets = [2, 0, 0], sizes = [8, 18, 16], strides = [1, 1, 1]} : vector<10x18x16xbf16> to vector<8x18x16xbf16>
    %76 = vector.extract_strided_slice %75 {offsets = [0, 0, 0], sizes = [8, 16, 16], strides = [1, 1, 1]} : vector<8x18x16xbf16> to vector<8x16x16xbf16>
    %77 = vector.shape_cast %76 : vector<8x16x16xbf16> to vector<128x16xbf16>
    %c6 = arith.constant 6 : index
    %c0_46 = arith.constant 0 : index
    %c0_47 = arith.constant 0 : index
    %78 = vector.load %arg3[%c6, %c0_46, %c0_47] : memref<9x16x4xbf16, #tpu.memory_space<vmem>>, vector<1x16x4xbf16>
    %79 = vector.shape_cast %78 : vector<1x16x4xbf16> to vector<16x4xbf16>
    %cst_48 = arith.constant dense<0.000000e+00> : vector<128x4xf32>
    %80 = tpu.matmul %77, %79, %cst_48 {dimension_numbers = #tpu.dot_dimension_numbers<[1], [0], [0], [1], [0, 0, 1, 1], [], []>} : vector<128x16xbf16>, vector<16x4xbf16>, vector<128x4xf32> -> vector<128x4xf32>
    %81 = arith.addf %69, %80 : vector<128x4xf32>
    %82 = vector.extract_strided_slice %77 {offsets = [0, 0], sizes = [128, 4], strides = [1, 1]} : vector<128x16xbf16> to vector<128x4xbf16>
    %c6_49 = arith.constant 6 : index
    %c0_50 = arith.constant 0 : index
    %c0_51 = arith.constant 0 : index
    %83 = vector.load %arg4[%c6_49, %c0_50, %c0_51] : memref<9x4x12xbf16, #tpu.memory_space<vmem>>, vector<1x4x12xbf16>
    %84 = vector.shape_cast %83 : vector<1x4x12xbf16> to vector<4x12xbf16>
    %cst_52 = arith.constant dense<0.000000e+00> : vector<128x12xf32>
    %85 = tpu.matmul %82, %84, %cst_52 {dimension_numbers = #tpu.dot_dimension_numbers<[1], [0], [0], [1], [0, 0, 1, 1], [], []>} : vector<128x4xbf16>, vector<4x12xbf16>, vector<128x12xf32> -> vector<128x12xf32>
    %86 = arith.addf %74, %85 : vector<128x12xf32>
    %87 = vector.extract_strided_slice %75 {offsets = [0, 1, 0], sizes = [8, 16, 16], strides = [1, 1, 1]} : vector<8x18x16xbf16> to vector<8x16x16xbf16>
    %88 = vector.shape_cast %87 : vector<8x16x16xbf16> to vector<128x16xbf16>
    %c7 = arith.constant 7 : index
    %c0_53 = arith.constant 0 : index
    %c0_54 = arith.constant 0 : index
    %89 = vector.load %arg3[%c7, %c0_53, %c0_54] : memref<9x16x4xbf16, #tpu.memory_space<vmem>>, vector<1x16x4xbf16>
    %90 = vector.shape_cast %89 : vector<1x16x4xbf16> to vector<16x4xbf16>
    %cst_55 = arith.constant dense<0.000000e+00> : vector<128x4xf32>
    %91 = tpu.matmul %88, %90, %cst_55 {dimension_numbers = #tpu.dot_dimension_numbers<[1], [0], [0], [1], [0, 0, 1, 1], [], []>} : vector<128x16xbf16>, vector<16x4xbf16>, vector<128x4xf32> -> vector<128x4xf32>
    %92 = arith.addf %81, %91 : vector<128x4xf32>
    %93 = vector.extract_strided_slice %88 {offsets = [0, 0], sizes = [128, 4], strides = [1, 1]} : vector<128x16xbf16> to vector<128x4xbf16>
    %c7_56 = arith.constant 7 : index
    %c0_57 = arith.constant 0 : index
    %c0_58 = arith.constant 0 : index
    %94 = vector.load %arg4[%c7_56, %c0_57, %c0_58] : memref<9x4x12xbf16, #tpu.memory_space<vmem>>, vector<1x4x12xbf16>
    %95 = vector.shape_cast %94 : vector<1x4x12xbf16> to vector<4x12xbf16>
    %cst_59 = arith.constant dense<0.000000e+00> : vector<128x12xf32>
    %96 = tpu.matmul %93, %95, %cst_59 {dimension_numbers = #tpu.dot_dimension_numbers<[1], [0], [0], [1], [0, 0, 1, 1], [], []>} : vector<128x4xbf16>, vector<4x12xbf16>, vector<128x12xf32> -> vector<128x12xf32>
    %97 = arith.addf %86, %96 : vector<128x12xf32>
    %98 = vector.extract_strided_slice %75 {offsets = [0, 2, 0], sizes = [8, 16, 16], strides = [1, 1, 1]} : vector<8x18x16xbf16> to vector<8x16x16xbf16>
    %99 = vector.shape_cast %98 : vector<8x16x16xbf16> to vector<128x16xbf16>
    %c8 = arith.constant 8 : index
    %c0_60 = arith.constant 0 : index
    %c0_61 = arith.constant 0 : index
    %100 = vector.load %arg3[%c8, %c0_60, %c0_61] : memref<9x16x4xbf16, #tpu.memory_space<vmem>>, vector<1x16x4xbf16>
    %101 = vector.shape_cast %100 : vector<1x16x4xbf16> to vector<16x4xbf16>
    %cst_62 = arith.constant dense<0.000000e+00> : vector<128x4xf32>
    %102 = tpu.matmul %99, %101, %cst_62 {dimension_numbers = #tpu.dot_dimension_numbers<[1], [0], [0], [1], [0, 0, 1, 1], [], []>} : vector<128x16xbf16>, vector<16x4xbf16>, vector<128x4xf32> -> vector<128x4xf32>
    %103 = arith.addf %92, %102 : vector<128x4xf32>
    %104 = vector.extract_strided_slice %99 {offsets = [0, 0], sizes = [128, 4], strides = [1, 1]} : vector<128x16xbf16> to vector<128x4xbf16>
    %c8_63 = arith.constant 8 : index
    %c0_64 = arith.constant 0 : index
    %c0_65 = arith.constant 0 : index
    %105 = vector.load %arg4[%c8_63, %c0_64, %c0_65] : memref<9x4x12xbf16, #tpu.memory_space<vmem>>, vector<1x4x12xbf16>
    %106 = vector.shape_cast %105 : vector<1x4x12xbf16> to vector<4x12xbf16>
    %cst_66 = arith.constant dense<0.000000e+00> : vector<128x12xf32>
    %107 = tpu.matmul %104, %106, %cst_66 {dimension_numbers = #tpu.dot_dimension_numbers<[1], [0], [0], [1], [0, 0, 1, 1], [], []>} : vector<128x4xbf16>, vector<4x12xbf16>, vector<128x12xf32> -> vector<128x12xf32>
    %108 = arith.addf %97, %107 : vector<128x12xf32>
    %c0_67 = arith.constant 0 : index
    %c0_68 = arith.constant 0 : index
    %109 = vector.load %arg5[%c0_67, %c0_68] : memref<1x4xf32, #tpu.memory_space<vmem>>, vector<1x4xf32>
    %110 = vector.broadcast %109 : vector<1x4xf32> to vector<128x4xf32>
    %111 = arith.addf %103, %110 : vector<128x4xf32>
    %cst_69 = arith.constant 0.000000e+00 : f32
    %112 = vector.broadcast %cst_69 : f32 to vector<128x4xf32>
    %113 = arith.maximumf %111, %112 : vector<128x4xf32>
    %c0_70 = arith.constant 0 : index
    %c0_71 = arith.constant 0 : index
    %c0_72 = arith.constant 0 : index
    %114 = vector.load %arg6[%c0_70, %c0_71, %c0_72] : memref<1x128x4xf32, #tpu.memory_space<vmem>>, vector<1x128x4xf32>
    %115 = vector.shape_cast %114 : vector<1x128x4xf32> to vector<128x4xf32>
    %116 = vector.shape_cast %113 : vector<128x4xf32> to vector<1x128x4xf32>
    tpu.vector_store %arg6[%c0_70, %c0_71, %c0_72], %116 {strides = array<i32>} : memref<1x128x4xf32, #tpu.memory_space<vmem>>, vector<1x128x4xf32>,
    %c0_73 = arith.constant 0 : index
    %c0_74 = arith.constant 0 : index
    %c0_75 = arith.constant 0 : index
    %117 = vector.load %arg7[%c0_73, %c0_74, %c0_75] : memref<1x128x12xf32, #tpu.memory_space<vmem>>, vector<1x128x12xf32>
    %118 = vector.shape_cast %117 : vector<1x128x12xf32> to vector<128x12xf32>
    %119 = vector.shape_cast %108 : vector<128x12xf32> to vector<1x128x12xf32>
    tpu.vector_store %arg7[%c0_73, %c0_74, %c0_75], %119 {strides = array<i32>} : memref<1x128x12xf32, #tpu.memory_space<vmem>>, vector<1x128x12xf32>,
    return
  }
  func.func @transform_0(%arg0: i32, %arg1: i32) -> (i32, i32, i32, i32) {
    %c0_i32 = arith.constant 0 : i32
    %c0_i32_0 = arith.constant 0 : i32
    %c0_i32_1 = arith.constant 0 : i32
    %c0_i32_2 = arith.constant 0 : i32
    return %arg0, %c0_i32, %c0_i32_0, %c0_i32_1 : i32, i32, i32, i32
  }
  func.func @transform_1(%arg0: i32, %arg1: i32) -> (i32, i32, i32) {
    %c0_i32 = arith.constant 0 : i32
    %c0_i32_0 = arith.constant 0 : i32
    %c0_i32_1 = arith.constant 0 : i32
    %c0_i32_2 = arith.constant 0 : i32
    return %c0_i32, %c0_i32_0, %c0_i32_1 : i32, i32, i32
  }
  func.func @transform_2(%arg0: i32, %arg1: i32) -> (i32, i32, i32) {
    %c0_i32 = arith.constant 0 : i32
    %c0_i32_0 = arith.constant 0 : i32
    %c0_i32_1 = arith.constant 0 : i32
    %c0_i32_2 = arith.constant 0 : i32
    return %c0_i32, %c0_i32_0, %c0_i32_1 : i32, i32, i32
  }
  func.func @transform_3(%arg0: i32, %arg1: i32) -> (i32, i32) {
    %c0_i32 = arith.constant 0 : i32
    %c0_i32_0 = arith.constant 0 : i32
    %c0_i32_1 = arith.constant 0 : i32
    return %c0_i32, %c0_i32_0 : i32, i32
  }
  func.func @transform_4(%arg0: i32, %arg1: i32) -> (i32, i32, i32) {
    %c0_i32 = arith.constant 0 : i32
    %c0_i32_0 = arith.constant 0 : i32
    return %arg0, %arg1, %c0_i32 : i32, i32, i32
  }
  func.func @transform_5(%arg0: i32, %arg1: i32) -> (i32, i32, i32) {
    %c0_i32 = arith.constant 0 : i32
    %c0_i32_0 = arith.constant 0 : i32
    return %arg0, %arg1, %c0_i32 : i32, i32, i32
  }
}

module attributes {stable_mosaic.version = 11 : i64} {
  func.func @_spatial_conv_kernel(%arg0: i32, %arg1: i32, %arg2: memref<1x18x18x16xbf16, #tpu.memory_space<vmem>>, %arg3: memref<9x16x4xbf16, #tpu.memory_space<vmem>>, %arg4: memref<9x4x12xbf16, #tpu.memory_space<vmem>>, %arg5: memref<1x4xf32, #tpu.memory_space<vmem>>, %arg6: memref<1x128x4xf32, #tpu.memory_space<vmem>>, %arg7: memref<1x128x4xf32, #tpu.memory_space<vmem>>, %arg8: memref<1x128x12xf32, #tpu.memory_space<vmem>>) attributes {dimension_semantics = [#tpu.dimension_semantics<parallel>, #tpu.dimension_semantics<parallel>], iteration_bounds = array<i64: 2, 2>, scalar_prefetch = 0 : i64, scratch_operands = 0 : i64, tpu.core_type = #tpu.core_type<tc>, window_params = [{transform_indices = @transform_0, window_bounds = array<i64: 1, 18, 18, 16>}, {pipeline_mode = #tpu.pipeline_mode<synchronous>, transform_indices = @transform_1, window_bounds = array<i64: 9, 16, 4>}, {pipeline_mode = #tpu.pipeline_mode<synchronous>, transform_indices = @transform_2, window_bounds = array<i64: 9, 4, 12>}, {pipeline_mode = #tpu.pipeline_mode<synchronous>, transform_indices = @transform_3, window_bounds = array<i64: 1, 4>}, {transform_indices = @transform_4, window_bounds = array<i64: 1, 128, 4>}, {transform_indices = @transform_5, window_bounds = array<i64: 1, 128, 4>}, {transform_indices = @transform_6, window_bounds = array<i64: 1, 128, 12>}]} {
    %c8_i32 = arith.constant 8 : i32
    %0 = arith.muli %arg1, %c8_i32 : i32
    %1 = tpu.assume_multiple %0, 8 : i32
    %c0 = arith.constant 0 : index
    %2 = arith.index_cast %1 : i32 to index
    %c0_0 = arith.constant 0 : index
    %c0_1 = arith.constant 0 : index
    %3 = vector.load %arg2[%c0, %2, %c0_0, %c0_1] : memref<1x18x18x16xbf16, #tpu.memory_space<vmem>>, vector<1x10x18x16xbf16>
    %4 = vector.shape_cast %3 : vector<1x10x18x16xbf16> to vector<10x18x16xbf16>
    %cst = arith.constant 0.000000e+00 : f32
    %5 = vector.broadcast %cst : f32 to vector<128x4xf32>
    %cst_2 = arith.constant 0.000000e+00 : f32
    %6 = vector.broadcast %cst_2 : f32 to vector<128x12xf32>
    %7 = vector.extract_strided_slice %4 {offsets = [0, 0, 0], sizes = [8, 18, 16], strides = [1, 1, 1]} : vector<10x18x16xbf16> to vector<8x18x16xbf16>
    %8 = vector.extract_strided_slice %7 {offsets = [0, 0, 0], sizes = [8, 16, 16], strides = [1, 1, 1]} : vector<8x18x16xbf16> to vector<8x16x16xbf16>
    %9 = vector.shape_cast %8 : vector<8x16x16xbf16> to vector<128x16xbf16>
    %c0_3 = arith.constant 0 : index
    %c0_4 = arith.constant 0 : index
    %c0_5 = arith.constant 0 : index
    %10 = vector.load %arg3[%c0_3, %c0_4, %c0_5] : memref<9x16x4xbf16, #tpu.memory_space<vmem>>, vector<1x16x4xbf16>
    %11 = vector.shape_cast %10 : vector<1x16x4xbf16> to vector<16x4xbf16>
    %cst_6 = arith.constant dense<0.000000e+00> : vector<128x4xf32>
    %12 = tpu.matmul %9, %11, %cst_6 {dimension_numbers = #tpu.dot_dimension_numbers<[1], [0], [0], [1], [0, 0, 1, 1], [], []>} : vector<128x16xbf16>, vector<16x4xbf16>, vector<128x4xf32> -> vector<128x4xf32>
    %13 = arith.addf %5, %12 : vector<128x4xf32>
    %14 = vector.extract_strided_slice %9 {offsets = [0, 0], sizes = [128, 4], strides = [1, 1]} : vector<128x16xbf16> to vector<128x4xbf16>
    %c0_7 = arith.constant 0 : index
    %c0_8 = arith.constant 0 : index
    %c0_9 = arith.constant 0 : index
    %15 = vector.load %arg4[%c0_7, %c0_8, %c0_9] : memref<9x4x12xbf16, #tpu.memory_space<vmem>>, vector<1x4x12xbf16>
    %16 = vector.shape_cast %15 : vector<1x4x12xbf16> to vector<4x12xbf16>
    %cst_10 = arith.constant dense<0.000000e+00> : vector<128x12xf32>
    %17 = tpu.matmul %14, %16, %cst_10 {dimension_numbers = #tpu.dot_dimension_numbers<[1], [0], [0], [1], [0, 0, 1, 1], [], []>} : vector<128x4xbf16>, vector<4x12xbf16>, vector<128x12xf32> -> vector<128x12xf32>
    %18 = arith.addf %6, %17 : vector<128x12xf32>
    %19 = vector.extract_strided_slice %7 {offsets = [0, 1, 0], sizes = [8, 16, 16], strides = [1, 1, 1]} : vector<8x18x16xbf16> to vector<8x16x16xbf16>
    %20 = vector.shape_cast %19 : vector<8x16x16xbf16> to vector<128x16xbf16>
    %c1 = arith.constant 1 : index
    %c0_11 = arith.constant 0 : index
    %c0_12 = arith.constant 0 : index
    %21 = vector.load %arg3[%c1, %c0_11, %c0_12] : memref<9x16x4xbf16, #tpu.memory_space<vmem>>, vector<1x16x4xbf16>
    %22 = vector.shape_cast %21 : vector<1x16x4xbf16> to vector<16x4xbf16>
    %cst_13 = arith.constant dense<0.000000e+00> : vector<128x4xf32>
    %23 = tpu.matmul %20, %22, %cst_13 {dimension_numbers = #tpu.dot_dimension_numbers<[1], [0], [0], [1], [0, 0, 1, 1], [], []>} : vector<128x16xbf16>, vector<16x4xbf16>, vector<128x4xf32> -> vector<128x4xf32>
    %24 = arith.addf %13, %23 : vector<128x4xf32>
    %25 = vector.extract_strided_slice %20 {offsets = [0, 0], sizes = [128, 4], strides = [1, 1]} : vector<128x16xbf16> to vector<128x4xbf16>
    %c1_14 = arith.constant 1 : index
    %c0_15 = arith.constant 0 : index
    %c0_16 = arith.constant 0 : index
    %26 = vector.load %arg4[%c1_14, %c0_15, %c0_16] : memref<9x4x12xbf16, #tpu.memory_space<vmem>>, vector<1x4x12xbf16>
    %27 = vector.shape_cast %26 : vector<1x4x12xbf16> to vector<4x12xbf16>
    %cst_17 = arith.constant dense<0.000000e+00> : vector<128x12xf32>
    %28 = tpu.matmul %25, %27, %cst_17 {dimension_numbers = #tpu.dot_dimension_numbers<[1], [0], [0], [1], [0, 0, 1, 1], [], []>} : vector<128x4xbf16>, vector<4x12xbf16>, vector<128x12xf32> -> vector<128x12xf32>
    %29 = arith.addf %18, %28 : vector<128x12xf32>
    %30 = vector.extract_strided_slice %7 {offsets = [0, 2, 0], sizes = [8, 16, 16], strides = [1, 1, 1]} : vector<8x18x16xbf16> to vector<8x16x16xbf16>
    %31 = vector.shape_cast %30 : vector<8x16x16xbf16> to vector<128x16xbf16>
    %c2 = arith.constant 2 : index
    %c0_18 = arith.constant 0 : index
    %c0_19 = arith.constant 0 : index
    %32 = vector.load %arg3[%c2, %c0_18, %c0_19] : memref<9x16x4xbf16, #tpu.memory_space<vmem>>, vector<1x16x4xbf16>
    %33 = vector.shape_cast %32 : vector<1x16x4xbf16> to vector<16x4xbf16>
    %cst_20 = arith.constant dense<0.000000e+00> : vector<128x4xf32>
    %34 = tpu.matmul %31, %33, %cst_20 {dimension_numbers = #tpu.dot_dimension_numbers<[1], [0], [0], [1], [0, 0, 1, 1], [], []>} : vector<128x16xbf16>, vector<16x4xbf16>, vector<128x4xf32> -> vector<128x4xf32>
    %35 = arith.addf %24, %34 : vector<128x4xf32>
    %36 = vector.extract_strided_slice %31 {offsets = [0, 0], sizes = [128, 4], strides = [1, 1]} : vector<128x16xbf16> to vector<128x4xbf16>
    %c2_21 = arith.constant 2 : index
    %c0_22 = arith.constant 0 : index
    %c0_23 = arith.constant 0 : index
    %37 = vector.load %arg4[%c2_21, %c0_22, %c0_23] : memref<9x4x12xbf16, #tpu.memory_space<vmem>>, vector<1x4x12xbf16>
    %38 = vector.shape_cast %37 : vector<1x4x12xbf16> to vector<4x12xbf16>
    %cst_24 = arith.constant dense<0.000000e+00> : vector<128x12xf32>
    %39 = tpu.matmul %36, %38, %cst_24 {dimension_numbers = #tpu.dot_dimension_numbers<[1], [0], [0], [1], [0, 0, 1, 1], [], []>} : vector<128x4xbf16>, vector<4x12xbf16>, vector<128x12xf32> -> vector<128x12xf32>
    %40 = arith.addf %29, %39 : vector<128x12xf32>
    %41 = vector.extract_strided_slice %4 {offsets = [1, 0, 0], sizes = [8, 18, 16], strides = [1, 1, 1]} : vector<10x18x16xbf16> to vector<8x18x16xbf16>
    %42 = vector.extract_strided_slice %41 {offsets = [0, 0, 0], sizes = [8, 16, 16], strides = [1, 1, 1]} : vector<8x18x16xbf16> to vector<8x16x16xbf16>
    %43 = vector.shape_cast %42 : vector<8x16x16xbf16> to vector<128x16xbf16>
    %c3 = arith.constant 3 : index
    %c0_25 = arith.constant 0 : index
    %c0_26 = arith.constant 0 : index
    %44 = vector.load %arg3[%c3, %c0_25, %c0_26] : memref<9x16x4xbf16, #tpu.memory_space<vmem>>, vector<1x16x4xbf16>
    %45 = vector.shape_cast %44 : vector<1x16x4xbf16> to vector<16x4xbf16>
    %cst_27 = arith.constant dense<0.000000e+00> : vector<128x4xf32>
    %46 = tpu.matmul %43, %45, %cst_27 {dimension_numbers = #tpu.dot_dimension_numbers<[1], [0], [0], [1], [0, 0, 1, 1], [], []>} : vector<128x16xbf16>, vector<16x4xbf16>, vector<128x4xf32> -> vector<128x4xf32>
    %47 = arith.addf %35, %46 : vector<128x4xf32>
    %48 = vector.extract_strided_slice %43 {offsets = [0, 0], sizes = [128, 4], strides = [1, 1]} : vector<128x16xbf16> to vector<128x4xbf16>
    %c3_28 = arith.constant 3 : index
    %c0_29 = arith.constant 0 : index
    %c0_30 = arith.constant 0 : index
    %49 = vector.load %arg4[%c3_28, %c0_29, %c0_30] : memref<9x4x12xbf16, #tpu.memory_space<vmem>>, vector<1x4x12xbf16>
    %50 = vector.shape_cast %49 : vector<1x4x12xbf16> to vector<4x12xbf16>
    %cst_31 = arith.constant dense<0.000000e+00> : vector<128x12xf32>
    %51 = tpu.matmul %48, %50, %cst_31 {dimension_numbers = #tpu.dot_dimension_numbers<[1], [0], [0], [1], [0, 0, 1, 1], [], []>} : vector<128x4xbf16>, vector<4x12xbf16>, vector<128x12xf32> -> vector<128x12xf32>
    %52 = arith.addf %40, %51 : vector<128x12xf32>
    %53 = vector.extract_strided_slice %41 {offsets = [0, 1, 0], sizes = [8, 16, 16], strides = [1, 1, 1]} : vector<8x18x16xbf16> to vector<8x16x16xbf16>
    %54 = vector.shape_cast %53 : vector<8x16x16xbf16> to vector<128x16xbf16>
    %c4 = arith.constant 4 : index
    %c0_32 = arith.constant 0 : index
    %c0_33 = arith.constant 0 : index
    %55 = vector.load %arg3[%c4, %c0_32, %c0_33] : memref<9x16x4xbf16, #tpu.memory_space<vmem>>, vector<1x16x4xbf16>
    %56 = vector.shape_cast %55 : vector<1x16x4xbf16> to vector<16x4xbf16>
    %cst_34 = arith.constant dense<0.000000e+00> : vector<128x4xf32>
    %57 = tpu.matmul %54, %56, %cst_34 {dimension_numbers = #tpu.dot_dimension_numbers<[1], [0], [0], [1], [0, 0, 1, 1], [], []>} : vector<128x16xbf16>, vector<16x4xbf16>, vector<128x4xf32> -> vector<128x4xf32>
    %58 = arith.addf %47, %57 : vector<128x4xf32>
    %59 = vector.extract_strided_slice %54 {offsets = [0, 0], sizes = [128, 4], strides = [1, 1]} : vector<128x16xbf16> to vector<128x4xbf16>
    %c4_35 = arith.constant 4 : index
    %c0_36 = arith.constant 0 : index
    %c0_37 = arith.constant 0 : index
    %60 = vector.load %arg4[%c4_35, %c0_36, %c0_37] : memref<9x4x12xbf16, #tpu.memory_space<vmem>>, vector<1x4x12xbf16>
    %61 = vector.shape_cast %60 : vector<1x4x12xbf16> to vector<4x12xbf16>
    %cst_38 = arith.constant dense<0.000000e+00> : vector<128x12xf32>
    %62 = tpu.matmul %59, %61, %cst_38 {dimension_numbers = #tpu.dot_dimension_numbers<[1], [0], [0], [1], [0, 0, 1, 1], [], []>} : vector<128x4xbf16>, vector<4x12xbf16>, vector<128x12xf32> -> vector<128x12xf32>
    %63 = arith.addf %52, %62 : vector<128x12xf32>
    %64 = vector.extract_strided_slice %41 {offsets = [0, 2, 0], sizes = [8, 16, 16], strides = [1, 1, 1]} : vector<8x18x16xbf16> to vector<8x16x16xbf16>
    %65 = vector.shape_cast %64 : vector<8x16x16xbf16> to vector<128x16xbf16>
    %c5 = arith.constant 5 : index
    %c0_39 = arith.constant 0 : index
    %c0_40 = arith.constant 0 : index
    %66 = vector.load %arg3[%c5, %c0_39, %c0_40] : memref<9x16x4xbf16, #tpu.memory_space<vmem>>, vector<1x16x4xbf16>
    %67 = vector.shape_cast %66 : vector<1x16x4xbf16> to vector<16x4xbf16>
    %cst_41 = arith.constant dense<0.000000e+00> : vector<128x4xf32>
    %68 = tpu.matmul %65, %67, %cst_41 {dimension_numbers = #tpu.dot_dimension_numbers<[1], [0], [0], [1], [0, 0, 1, 1], [], []>} : vector<128x16xbf16>, vector<16x4xbf16>, vector<128x4xf32> -> vector<128x4xf32>
    %69 = arith.addf %58, %68 : vector<128x4xf32>
    %70 = vector.extract_strided_slice %65 {offsets = [0, 0], sizes = [128, 4], strides = [1, 1]} : vector<128x16xbf16> to vector<128x4xbf16>
    %c5_42 = arith.constant 5 : index
    %c0_43 = arith.constant 0 : index
    %c0_44 = arith.constant 0 : index
    %71 = vector.load %arg4[%c5_42, %c0_43, %c0_44] : memref<9x4x12xbf16, #tpu.memory_space<vmem>>, vector<1x4x12xbf16>
    %72 = vector.shape_cast %71 : vector<1x4x12xbf16> to vector<4x12xbf16>
    %cst_45 = arith.constant dense<0.000000e+00> : vector<128x12xf32>
    %73 = tpu.matmul %70, %72, %cst_45 {dimension_numbers = #tpu.dot_dimension_numbers<[1], [0], [0], [1], [0, 0, 1, 1], [], []>} : vector<128x4xbf16>, vector<4x12xbf16>, vector<128x12xf32> -> vector<128x12xf32>
    %74 = arith.addf %63, %73 : vector<128x12xf32>
    %75 = vector.extract_strided_slice %4 {offsets = [2, 0, 0], sizes = [8, 18, 16], strides = [1, 1, 1]} : vector<10x18x16xbf16> to vector<8x18x16xbf16>
    %76 = vector.extract_strided_slice %75 {offsets = [0, 0, 0], sizes = [8, 16, 16], strides = [1, 1, 1]} : vector<8x18x16xbf16> to vector<8x16x16xbf16>
    %77 = vector.shape_cast %76 : vector<8x16x16xbf16> to vector<128x16xbf16>
    %c6 = arith.constant 6 : index
    %c0_46 = arith.constant 0 : index
    %c0_47 = arith.constant 0 : index
    %78 = vector.load %arg3[%c6, %c0_46, %c0_47] : memref<9x16x4xbf16, #tpu.memory_space<vmem>>, vector<1x16x4xbf16>
    %79 = vector.shape_cast %78 : vector<1x16x4xbf16> to vector<16x4xbf16>
    %cst_48 = arith.constant dense<0.000000e+00> : vector<128x4xf32>
    %80 = tpu.matmul %77, %79, %cst_48 {dimension_numbers = #tpu.dot_dimension_numbers<[1], [0], [0], [1], [0, 0, 1, 1], [], []>} : vector<128x16xbf16>, vector<16x4xbf16>, vector<128x4xf32> -> vector<128x4xf32>
    %81 = arith.addf %69, %80 : vector<128x4xf32>
    %82 = vector.extract_strided_slice %77 {offsets = [0, 0], sizes = [128, 4], strides = [1, 1]} : vector<128x16xbf16> to vector<128x4xbf16>
    %c6_49 = arith.constant 6 : index
    %c0_50 = arith.constant 0 : index
    %c0_51 = arith.constant 0 : index
    %83 = vector.load %arg4[%c6_49, %c0_50, %c0_51] : memref<9x4x12xbf16, #tpu.memory_space<vmem>>, vector<1x4x12xbf16>
    %84 = vector.shape_cast %83 : vector<1x4x12xbf16> to vector<4x12xbf16>
    %cst_52 = arith.constant dense<0.000000e+00> : vector<128x12xf32>
    %85 = tpu.matmul %82, %84, %cst_52 {dimension_numbers = #tpu.dot_dimension_numbers<[1], [0], [0], [1], [0, 0, 1, 1], [], []>} : vector<128x4xbf16>, vector<4x12xbf16>, vector<128x12xf32> -> vector<128x12xf32>
    %86 = arith.addf %74, %85 : vector<128x12xf32>
    %87 = vector.extract_strided_slice %75 {offsets = [0, 1, 0], sizes = [8, 16, 16], strides = [1, 1, 1]} : vector<8x18x16xbf16> to vector<8x16x16xbf16>
    %88 = vector.shape_cast %87 : vector<8x16x16xbf16> to vector<128x16xbf16>
    %c7 = arith.constant 7 : index
    %c0_53 = arith.constant 0 : index
    %c0_54 = arith.constant 0 : index
    %89 = vector.load %arg3[%c7, %c0_53, %c0_54] : memref<9x16x4xbf16, #tpu.memory_space<vmem>>, vector<1x16x4xbf16>
    %90 = vector.shape_cast %89 : vector<1x16x4xbf16> to vector<16x4xbf16>
    %cst_55 = arith.constant dense<0.000000e+00> : vector<128x4xf32>
    %91 = tpu.matmul %88, %90, %cst_55 {dimension_numbers = #tpu.dot_dimension_numbers<[1], [0], [0], [1], [0, 0, 1, 1], [], []>} : vector<128x16xbf16>, vector<16x4xbf16>, vector<128x4xf32> -> vector<128x4xf32>
    %92 = arith.addf %81, %91 : vector<128x4xf32>
    %93 = vector.extract_strided_slice %88 {offsets = [0, 0], sizes = [128, 4], strides = [1, 1]} : vector<128x16xbf16> to vector<128x4xbf16>
    %c7_56 = arith.constant 7 : index
    %c0_57 = arith.constant 0 : index
    %c0_58 = arith.constant 0 : index
    %94 = vector.load %arg4[%c7_56, %c0_57, %c0_58] : memref<9x4x12xbf16, #tpu.memory_space<vmem>>, vector<1x4x12xbf16>
    %95 = vector.shape_cast %94 : vector<1x4x12xbf16> to vector<4x12xbf16>
    %cst_59 = arith.constant dense<0.000000e+00> : vector<128x12xf32>
    %96 = tpu.matmul %93, %95, %cst_59 {dimension_numbers = #tpu.dot_dimension_numbers<[1], [0], [0], [1], [0, 0, 1, 1], [], []>} : vector<128x4xbf16>, vector<4x12xbf16>, vector<128x12xf32> -> vector<128x12xf32>
    %97 = arith.addf %86, %96 : vector<128x12xf32>
    %98 = vector.extract_strided_slice %75 {offsets = [0, 2, 0], sizes = [8, 16, 16], strides = [1, 1, 1]} : vector<8x18x16xbf16> to vector<8x16x16xbf16>
    %99 = vector.shape_cast %98 : vector<8x16x16xbf16> to vector<128x16xbf16>
    %c8 = arith.constant 8 : index
    %c0_60 = arith.constant 0 : index
    %c0_61 = arith.constant 0 : index
    %100 = vector.load %arg3[%c8, %c0_60, %c0_61] : memref<9x16x4xbf16, #tpu.memory_space<vmem>>, vector<1x16x4xbf16>
    %101 = vector.shape_cast %100 : vector<1x16x4xbf16> to vector<16x4xbf16>
    %cst_62 = arith.constant dense<0.000000e+00> : vector<128x4xf32>
    %102 = tpu.matmul %99, %101, %cst_62 {dimension_numbers = #tpu.dot_dimension_numbers<[1], [0], [0], [1], [0, 0, 1, 1], [], []>} : vector<128x16xbf16>, vector<16x4xbf16>, vector<128x4xf32> -> vector<128x4xf32>
    %103 = arith.addf %92, %102 : vector<128x4xf32>
    %104 = vector.extract_strided_slice %99 {offsets = [0, 0], sizes = [128, 4], strides = [1, 1]} : vector<128x16xbf16> to vector<128x4xbf16>
    %c8_63 = arith.constant 8 : index
    %c0_64 = arith.constant 0 : index
    %c0_65 = arith.constant 0 : index
    %105 = vector.load %arg4[%c8_63, %c0_64, %c0_65] : memref<9x4x12xbf16, #tpu.memory_space<vmem>>, vector<1x4x12xbf16>
    %106 = vector.shape_cast %105 : vector<1x4x12xbf16> to vector<4x12xbf16>
    %cst_66 = arith.constant dense<0.000000e+00> : vector<128x12xf32>
    %107 = tpu.matmul %104, %106, %cst_66 {dimension_numbers = #tpu.dot_dimension_numbers<[1], [0], [0], [1], [0, 0, 1, 1], [], []>} : vector<128x4xbf16>, vector<4x12xbf16>, vector<128x12xf32> -> vector<128x12xf32>
    %108 = arith.addf %97, %107 : vector<128x12xf32>
    %c0_67 = arith.constant 0 : index
    %c0_68 = arith.constant 0 : index
    %109 = vector.load %arg5[%c0_67, %c0_68] : memref<1x4xf32, #tpu.memory_space<vmem>>, vector<1x4xf32>
    %110 = vector.broadcast %109 : vector<1x4xf32> to vector<128x4xf32>
    %111 = arith.addf %103, %110 : vector<128x4xf32>
    %cst_69 = arith.constant 0.000000e+00 : f32
    %112 = vector.broadcast %cst_69 : f32 to vector<128x4xf32>
    %113 = arith.maximumf %111, %112 : vector<128x4xf32>
    %c0_70 = arith.constant 0 : index
    %c0_71 = arith.constant 0 : index
    %c0_72 = arith.constant 0 : index
    %114 = vector.load %arg6[%c0_70, %c0_71, %c0_72] : memref<1x128x4xf32, #tpu.memory_space<vmem>>, vector<1x128x4xf32>
    %115 = vector.shape_cast %114 : vector<1x128x4xf32> to vector<128x4xf32>
    %116 = arith.addf %113, %115 : vector<128x4xf32>
    %c0_73 = arith.constant 0 : index
    %c0_74 = arith.constant 0 : index
    %c0_75 = arith.constant 0 : index
    %117 = vector.load %arg7[%c0_73, %c0_74, %c0_75] : memref<1x128x4xf32, #tpu.memory_space<vmem>>, vector<1x128x4xf32>
    %118 = vector.shape_cast %117 : vector<1x128x4xf32> to vector<128x4xf32>
    %119 = vector.shape_cast %116 : vector<128x4xf32> to vector<1x128x4xf32>
    tpu.vector_store %arg7[%c0_73, %c0_74, %c0_75], %119 {strides = array<i32>} : memref<1x128x4xf32, #tpu.memory_space<vmem>>, vector<1x128x4xf32>,
    %c0_76 = arith.constant 0 : index
    %c0_77 = arith.constant 0 : index
    %c0_78 = arith.constant 0 : index
    %120 = vector.load %arg8[%c0_76, %c0_77, %c0_78] : memref<1x128x12xf32, #tpu.memory_space<vmem>>, vector<1x128x12xf32>
    %121 = vector.shape_cast %120 : vector<1x128x12xf32> to vector<128x12xf32>
    %122 = vector.shape_cast %108 : vector<128x12xf32> to vector<1x128x12xf32>
    tpu.vector_store %arg8[%c0_76, %c0_77, %c0_78], %122 {strides = array<i32>} : memref<1x128x12xf32, #tpu.memory_space<vmem>>, vector<1x128x12xf32>,
    return
  }
  func.func @transform_0(%arg0: i32, %arg1: i32) -> (i32, i32, i32, i32) {
    %c0_i32 = arith.constant 0 : i32
    %c0_i32_0 = arith.constant 0 : i32
    %c0_i32_1 = arith.constant 0 : i32
    %c0_i32_2 = arith.constant 0 : i32
    return %arg0, %c0_i32, %c0_i32_0, %c0_i32_1 : i32, i32, i32, i32
  }
  func.func @transform_1(%arg0: i32, %arg1: i32) -> (i32, i32, i32) {
    %c0_i32 = arith.constant 0 : i32
    %c0_i32_0 = arith.constant 0 : i32
    %c0_i32_1 = arith.constant 0 : i32
    %c0_i32_2 = arith.constant 0 : i32
    return %c0_i32, %c0_i32_0, %c0_i32_1 : i32, i32, i32
  }
  func.func @transform_2(%arg0: i32, %arg1: i32) -> (i32, i32, i32) {
    %c0_i32 = arith.constant 0 : i32
    %c0_i32_0 = arith.constant 0 : i32
    %c0_i32_1 = arith.constant 0 : i32
    %c0_i32_2 = arith.constant 0 : i32
    return %c0_i32, %c0_i32_0, %c0_i32_1 : i32, i32, i32
  }
  func.func @transform_3(%arg0: i32, %arg1: i32) -> (i32, i32) {
    %c0_i32 = arith.constant 0 : i32
    %c0_i32_0 = arith.constant 0 : i32
    %c0_i32_1 = arith.constant 0 : i32
    return %c0_i32, %c0_i32_0 : i32, i32
  }
  func.func @transform_4(%arg0: i32, %arg1: i32) -> (i32, i32, i32) {
    %c0_i32 = arith.constant 0 : i32
    %c0_i32_0 = arith.constant 0 : i32
    return %arg0, %arg1, %c0_i32 : i32, i32, i32
  }
  func.func @transform_5(%arg0: i32, %arg1: i32) -> (i32, i32, i32) {
    %c0_i32 = arith.constant 0 : i32
    %c0_i32_0 = arith.constant 0 : i32
    return %arg0, %arg1, %c0_i32 : i32, i32, i32
  }
  func.func @transform_6(%arg0: i32, %arg1: i32) -> (i32, i32, i32) {
    %c0_i32 = arith.constant 0 : i32
    %c0_i32_0 = arith.constant 0 : i32
    return %arg0, %arg1, %c0_i32 : i32, i32, i32
  }
}

module attributes {stable_mosaic.version = 11 : i64} {
  func.func @_pointwise_kernel(%arg0: i32, %arg1: i32, %arg2: memref<1x128x6xf32, #tpu.memory_space<vmem>>, %arg3: memref<6x12xbf16, #tpu.memory_space<vmem>>, %arg4: memref<1x12xf32, #tpu.memory_space<vmem>>, %arg5: memref<1x128x6xf32, #tpu.memory_space<vmem>>, %arg6: memref<1x128x12xf32, #tpu.memory_space<vmem>>, %arg7: memref<1x128x12xf32, #tpu.memory_space<vmem>>, %arg8: memref<1x128x12xf32, #tpu.memory_space<vmem>>) attributes {dimension_semantics = [#tpu.dimension_semantics<parallel>, #tpu.dimension_semantics<parallel>], iteration_bounds = array<i64: 2, 2>, scalar_prefetch = 0 : i64, scratch_operands = 0 : i64, tpu.core_type = #tpu.core_type<tc>, window_params = [{transform_indices = @transform_0, window_bounds = array<i64: 1, 128, 6>}, {pipeline_mode = #tpu.pipeline_mode<synchronous>, transform_indices = @transform_1, window_bounds = array<i64: 6, 12>}, {pipeline_mode = #tpu.pipeline_mode<synchronous>, transform_indices = @transform_2, window_bounds = array<i64: 1, 12>}, {transform_indices = @transform_3, window_bounds = array<i64: 1, 128, 6>}, {transform_indices = @transform_4, window_bounds = array<i64: 1, 128, 12>}, {transform_indices = @transform_5, window_bounds = array<i64: 1, 128, 12>}, {transform_indices = @transform_6, window_bounds = array<i64: 1, 128, 12>}]} {
    %c0 = arith.constant 0 : index
    %c0_0 = arith.constant 0 : index
    %c0_1 = arith.constant 0 : index
    %0 = vector.load %arg2[%c0, %c0_0, %c0_1] : memref<1x128x6xf32, #tpu.memory_space<vmem>>, vector<1x128x6xf32>
    %1 = vector.shape_cast %0 : vector<1x128x6xf32> to vector<128x6xf32>
    %c0_2 = arith.constant 0 : index
    %c0_3 = arith.constant 0 : index
    %c0_4 = arith.constant 0 : index
    %2 = vector.load %arg5[%c0_2, %c0_3, %c0_4] : memref<1x128x6xf32, #tpu.memory_space<vmem>>, vector<1x128x6xf32>
    %3 = vector.shape_cast %2 : vector<1x128x6xf32> to vector<128x6xf32>
    %4 = arith.addf %1, %3 : vector<128x6xf32>
    %5 = arith.truncf %4 : vector<128x6xf32> to vector<128x6xbf16>
    %c0_5 = arith.constant 0 : index
    %c0_6 = arith.constant 0 : index
    %6 = vector.load %arg3[%c0_5, %c0_6] : memref<6x12xbf16, #tpu.memory_space<vmem>>, vector<6x12xbf16>
    %cst = arith.constant dense<0.000000e+00> : vector<128x12xf32>
    %7 = tpu.matmul %5, %6, %cst {dimension_numbers = #tpu.dot_dimension_numbers<[1], [0], [0], [1], [0, 0, 1, 1], [], []>} : vector<128x6xbf16>, vector<6x12xbf16>, vector<128x12xf32> -> vector<128x12xf32>
    %c0_7 = arith.constant 0 : index
    %c0_8 = arith.constant 0 : index
    %8 = vector.load %arg4[%c0_7, %c0_8] : memref<1x12xf32, #tpu.memory_space<vmem>>, vector<1x12xf32>
    %9 = vector.broadcast %8 : vector<1x12xf32> to vector<128x12xf32>
    %10 = arith.addf %7, %9 : vector<128x12xf32>
    %c0_9 = arith.constant 0 : index
    %c0_10 = arith.constant 0 : index
    %c0_11 = arith.constant 0 : index
    %11 = vector.load %arg6[%c0_9, %c0_10, %c0_11] : memref<1x128x12xf32, #tpu.memory_space<vmem>>, vector<1x128x12xf32>
    %12 = vector.shape_cast %11 : vector<1x128x12xf32> to vector<128x12xf32>
    %13 = arith.addf %10, %12 : vector<128x12xf32>
    %cst_12 = arith.constant 0.000000e+00 : f32
    %14 = vector.broadcast %cst_12 : f32 to vector<128x12xf32>
    %15 = arith.maximumf %13, %14 : vector<128x12xf32>
    %c0_13 = arith.constant 0 : index
    %c0_14 = arith.constant 0 : index
    %c0_15 = arith.constant 0 : index
    %16 = vector.load %arg7[%c0_13, %c0_14, %c0_15] : memref<1x128x12xf32, #tpu.memory_space<vmem>>, vector<1x128x12xf32>
    %17 = vector.shape_cast %16 : vector<1x128x12xf32> to vector<128x12xf32>
    %18 = arith.addf %15, %17 : vector<128x12xf32>
    %c0_16 = arith.constant 0 : index
    %c0_17 = arith.constant 0 : index
    %c0_18 = arith.constant 0 : index
    %19 = vector.load %arg8[%c0_16, %c0_17, %c0_18] : memref<1x128x12xf32, #tpu.memory_space<vmem>>, vector<1x128x12xf32>
    %20 = vector.shape_cast %19 : vector<1x128x12xf32> to vector<128x12xf32>
    %21 = vector.shape_cast %18 : vector<128x12xf32> to vector<1x128x12xf32>
    tpu.vector_store %arg8[%c0_16, %c0_17, %c0_18], %21 {strides = array<i32>} : memref<1x128x12xf32, #tpu.memory_space<vmem>>, vector<1x128x12xf32>,
    return
  }
  func.func @transform_0(%arg0: i32, %arg1: i32) -> (i32, i32, i32) {
    %c0_i32 = arith.constant 0 : i32
    %c0_i32_0 = arith.constant 0 : i32
    return %arg0, %arg1, %c0_i32 : i32, i32, i32
  }
  func.func @transform_1(%arg0: i32, %arg1: i32) -> (i32, i32) {
    %c0_i32 = arith.constant 0 : i32
    %c0_i32_0 = arith.constant 0 : i32
    %c0_i32_1 = arith.constant 0 : i32
    return %c0_i32, %c0_i32_0 : i32, i32
  }
  func.func @transform_2(%arg0: i32, %arg1: i32) -> (i32, i32) {
    %c0_i32 = arith.constant 0 : i32
    %c0_i32_0 = arith.constant 0 : i32
    %c0_i32_1 = arith.constant 0 : i32
    return %c0_i32, %c0_i32_0 : i32, i32
  }
  func.func @transform_3(%arg0: i32, %arg1: i32) -> (i32, i32, i32) {
    %c0_i32 = arith.constant 0 : i32
    %c0_i32_0 = arith.constant 0 : i32
    return %arg0, %arg1, %c0_i32 : i32, i32, i32
  }
  func.func @transform_4(%arg0: i32, %arg1: i32) -> (i32, i32, i32) {
    %c0_i32 = arith.constant 0 : i32
    %c0_i32_0 = arith.constant 0 : i32
    return %arg0, %arg1, %c0_i32 : i32, i32, i32
  }
  func.func @transform_5(%arg0: i32, %arg1: i32) -> (i32, i32, i32) {
    %c0_i32 = arith.constant 0 : i32
    %c0_i32_0 = arith.constant 0 : i32
    return %arg0, %arg1, %c0_i32 : i32, i32, i32
  }
  func.func @transform_6(%arg0: i32, %arg1: i32) -> (i32, i32, i32) {
    %c0_i32 = arith.constant 0 : i32
    %c0_i32_0 = arith.constant 0 : i32
    return %arg0, %arg1, %c0_i32 : i32, i32, i32
  }
}

</mosaic_0001>

<llo_original>
// kernel: ffc_resnet_block_forward.9
$region0: #{ffc_resnet_block_forward.9}
  #allocation0 [shape = 'u32[]', space=smem, size = 0x4, offset = 0x4, fixed_abs, tag = 'smem constant byte address 0x4 - core index']
  #allocation1 [shape = 'u32[144,128]{1,0:T(1,128)}', space=vmem, size = 0x12000, scoped, tag = 'internal scratch']
  %s0 = inlined_call_operand.vmem [shape: f32[2,256,12], index: 0, kind: input, shape index: {}]
  %s1 = inlined_call_operand.vmem [shape: bf16[12,6], index: 1, kind: input, shape index: {}]
  %s2 = inlined_call_operand.vmem [shape: f32[1,6], index: 2, kind: input, shape index: {}]
  %s3 = inlined_call_operand.vmem [shape: f32[2,256,6], index: 3, kind: output, shape index: {}]
  %s4 = sld [smem:[#allocation0]]
  $region45: #{ffc_resnet_block_forward.9} parent=0
    _
  %s6 = ssub.s32 1, %s4
  %s7 = scalar_select 0, %s6, %s4
  loop: start=0, step=1, limit=6
  $region2: #{ffc_resnet_block_forward.9} parent=0 // loop_pre_header
    _
  $region3: #{ffc_resnet_block_forward.9} parent=0 // loop_header
    %s9 = sphi 0, %s13
    %p10 = scmp.ge.s32.totalorder %s9, 6
    %s16 = sphi 0, %s28
    %s17 = sphi 0, %s24
    %s18 = sphi 0, %s16
    %s19 = sphi 0, %s17
    %s20 = sphi 0, %s18
    %s21 = sphi 0, %s19
    %s33 = sphi 0, %s35
    %s36 = sphi 0, %s33
    %s37 = sphi 0, %s36
    %s53 = sphi 0, %s37
    %s57 = sphi 0, %s57
    %s59 = sphi 0, %s57
    %s60 = sphi 0, %s59
    %s74 = sphi 0, %s60
    %s78 = sphi 0, %s78
    %s80 = sphi 0, %s78
    %s81 = sphi 0, %s80
    %s95 = sphi 0, %s81
    %s103 = sphi 0, %s105
    %s106 = sphi 0, %s103
    %s107 = sphi 0, %s106
    %s123 = sphi 0, %s107
  $region4: #{ffc_resnet_block_forward.9} parent=0 // loop_header_branch
    %12 = sbr.rel (%p10) target = $region8
  $region5: #{ffc_resnet_block_forward.9} parent=0 // loop_body
    %s14 = ssub.s32 %s9, 1
    %s15 = ssub.s32 %s9, 2
    %s22 = sadd.s32 1, %s17
    %p23 = scmp.ge.s32.totalorder %s22, 2
    %s24 = scalar_select %p23, 0, %s22
    %s25 = sadd.s32 1, %s16
    %s26 = scalar_select %p23, %s25, %s16
    %p27 = scmp.ge.s32.totalorder %s26, 2
    %s28 = scalar_select %p27, 0, %s26
    %s29 = ssub.s32 %s16, %s28
    %s30 = ssub.s32 %s17, %s24
    %s31 = sor.u32 %s29, %s30
    %p32 = scmp.eq.s32.totalorder %s31, 0
    %s34 = sadd.s32 %s33, 1
    %s35 = scalar_select %p32, %s33, %s34
    %p38 = pneg %p32
    %p39 = scmp.eq.s32.totalorder %s9, 3
    %p40 = por %p38, %p39
    %p41 = scmp.ne.s32.totalorder %s33, %s36
    %p42 = scmp.eq.s32.totalorder %s9, 0
    %p43 = por %p41, %p42
    %p44 = scmp.ne.s32.totalorder %s33, %s36
    %p45 = scmp.eq.s32.totalorder %s14, 3
    %p46 = por %p44, %p45
    %p47 = scmp.ne.s32.totalorder %s36, %s37
    %p48 = scmp.eq.s32.totalorder %s14, 0
    %p49 = por %p47, %p48
    %p50 = scmp.ne.s32.totalorder %s36, %s37
    %p51 = scmp.eq.s32.totalorder %s15, 3
    %p52 = por %p50, %p51
    %p54 = scmp.ne.s32.totalorder %s37, %s53
    %p55 = scmp.eq.s32.totalorder %s15, 0
    %p56 = por %p54, %p55
    %s58 = sadd.s32 %s57, 1
    %p61 = scmp.eq.s32.totalorder %s9, 3
    %p62 = scmp.ne.s32.totalorder %s57, %s59
    %p63 = scmp.eq.s32.totalorder %s9, 0
    %p64 = por %p62, %p63
    %p65 = scmp.ne.s32.totalorder %s57, %s59
    %p66 = scmp.eq.s32.totalorder %s14, 3
    %p67 = por %p65, %p66
    %p68 = scmp.ne.s32.totalorder %s59, %s60
    %p69 = scmp.eq.s32.totalorder %s14, 0
    %p70 = por %p68, %p69
    %p71 = scmp.ne.s32.totalorder %s59, %s60
    %p72 = scmp.eq.s32.totalorder %s15, 3
    %p73 = por %p71, %p72
    %p75 = scmp.ne.s32.totalorder %s60, %s74
    %p76 = scmp.eq.s32.totalorder %s15, 0
    %p77 = por %p75, %p76
    %s79 = sadd.s32 %s78, 1
    %p82 = scmp.eq.s32.totalorder %s9, 3
    %p83 = scmp.ne.s32.totalorder %s78, %s80
    %p84 = scmp.eq.s32.totalorder %s9, 0
    %p85 = por %p83, %p84
    %p86 = scmp.ne.s32.totalorder %s78, %s80
    %p87 = scmp.eq.s32.totalorder %s14, 3
    %p88 = por %p86, %p87
    %p89 = scmp.ne.s32.totalorder %s80, %s81
    %p90 = scmp.eq.s32.totalorder %s14, 0
    %p91 = por %p89, %p90
    %p92 = scmp.ne.s32.totalorder %s80, %s81
    %p93 = scmp.eq.s32.totalorder %s15, 3
    %p94 = por %p92, %p93
    %p96 = scmp.ne.s32.totalorder %s81, %s95
    %p97 = scmp.eq.s32.totalorder %s15, 0
    %p98 = por %p96, %p97
    %s99 = ssub.s32 %s16, %s28
    %s100 = ssub.s32 %s17, %s24
    %s101 = sor.u32 %s99, %s100
    %p102 = scmp.eq.s32.totalorder %s101, 0
    %s104 = sadd.s32 %s103, 1
    %s105 = scalar_select %p102, %s103, %s104
    %p108 = pneg %p102
    %p109 = scmp.eq.s32.totalorder %s9, 3
    %p110 = por %p108, %p109
    %p111 = scmp.ne.s32.totalorder %s103, %s106
    %p112 = scmp.eq.s32.totalorder %s9, 0
    %p113 = por %p111, %p112
    %p114 = scmp.ne.s32.totalorder %s103, %s106
    %p115 = scmp.eq.s32.totalorder %s14, 3
    %p116 = por %p114, %p115
    %p117 = scmp.ne.s32.totalorder %s106, %s107
    %p118 = scmp.eq.s32.totalorder %s14, 0
    %p119 = por %p117, %p118
    %p120 = scmp.ne.s32.totalorder %s106, %s107
    %p121 = scmp.eq.s32.totalorder %s15, 3
    %p122 = por %p120, %p121
    %p124 = scmp.ne.s32.totalorder %s107, %s123
    %p125 = scmp.eq.s32.totalorder %s15, 0
    %p126 = por %p124, %p125
    %p127 = scmp.le.s32.totalorder 1, %s9
    %p128 = scmp.lt.s32.totalorder %s9, 5
    %p129 = pnand %p127, %p128
    %p130 = pneg %p129
    // Predicated region
    $region9: #{ffc_resnet_block_forward.9} parent=5 // pred_check
      _
    $region10: #{ffc_resnet_block_forward.9} parent=5 // pred_check_branch
      %132 = sbr.rel (%p129) target = $region12
    $region11: #{ffc_resnet_block_forward.9} parent=5 // pred_region
      %s133 = ssub.s32 %s9, 1
      // Predicated region
      $region13: #{ffc_resnet_block_forward.9} parent=11 // pred_check
        %p134 = pneg %p70
      $region14: #{ffc_resnet_block_forward.9} parent=11 // pred_check_branch
        %136 = sbr.rel (%p134) target = $region16
      $region15: #{ffc_resnet_block_forward.9} parent=11 // pred_region
        _
      $region16: #{ffc_resnet_block_forward.9} parent=11 // pred_fallthru
        _
      // Predicated region
      $region17: #{ffc_resnet_block_forward.9} parent=11 // pred_check
        %p137 = pneg %p91
      $region18: #{ffc_resnet_block_forward.9} parent=11 // pred_check_branch
        %139 = sbr.rel (%p137) target = $region20
      $region19: #{ffc_resnet_block_forward.9} parent=11 // pred_region
        _
      $region20: #{ffc_resnet_block_forward.9} parent=11 // pred_fallthru
        _
    $region12: #{ffc_resnet_block_forward.9} parent=5 // pred_fallthru
      _
    %p140 = scmp.lt.s32.totalorder %s9, 4
    // Predicated region
    $region21: #{ffc_resnet_block_forward.9} parent=5 // pred_check
      %p141 = pneg %p140
    $region22: #{ffc_resnet_block_forward.9} parent=5 // pred_check_branch
      %143 = sbr.rel (%p141) target = $region24
    $region23: #{ffc_resnet_block_forward.9} parent=5 // pred_region
      // Predicated region
      $region25: #{ffc_resnet_block_forward.9} parent=23 // pred_check
        %p144 = pneg %p43
      $region26: #{ffc_resnet_block_forward.9} parent=23 // pred_check_branch
        %146 = sbr.rel (%p144) target = $region28
      $region27: #{ffc_resnet_block_forward.9} parent=23 // pred_region
        %s147 = smul.u32 16, %s17
        %p148 = scmp.lt.s32.totalorder %s16, 1
        %s149 = scalar_select %p148, %s16, 1
        %p150 = scmp.lt.s32.totalorder %s147, 31
        %s151 = scalar_select %p150, %s147, 31
        %s152 = smul.addr %s149, 32
        %s153 = sadd.s32 %s151, %s152
        %s154 = smul.addr %s153, 8
        %s155 = scalar_lea.vmem %s0, %s154
        %s156 = smul.u32 16, %s17
      $region28: #{ffc_resnet_block_forward.9} parent=23 // pred_fallthru
        _
    $region24: #{ffc_resnet_block_forward.9} parent=5 // pred_fallthru
      _
    %p157 = scmp.le.s32.totalorder 1, %s9
    %p158 = scmp.lt.s32.totalorder %s9, 5
    %p159 = pnand %p157, %p158
    %p160 = pneg %p159
    // Predicated region
    $region29: #{ffc_resnet_block_forward.9} parent=5 // pred_check
      _
    $region30: #{ffc_resnet_block_forward.9} parent=5 // pred_check_branch
      %162 = sbr.rel (%p159) target = $region32
    $region31: #{ffc_resnet_block_forward.9} parent=5 // pred_region
      %s163 = ssub.s32 %s9, 1
      %s164 = smul.u32 16, %s19
      %p165 = scmp.lt.s32.totalorder %s18, 1
      %s166 = scalar_select %p165, %s18, 1
      %p167 = scmp.lt.s32.totalorder %s164, 31
      %s168 = scalar_select %p167, %s164, 31
      %s169 = smul.addr %s166, 32
      %s170 = sadd.s32 %s168, %s169
      %s171 = smul.addr %s170, 8
      %s172 = scalar_lea.vmem %s0, %s171
      %p173 = pneg %p49
      %p174 = pneg %p46
      %p175 = pneg %p70
      %p176 = pneg %p67
      %p177 = pneg %p91
      %p178 = pneg %p88
      %p179 = pneg %p119
      %p180 = pneg %p116
      %s181 = smul.u32 16, %s19
      %p182 = scmp.lt.s32.totalorder %s18, 1
      %s183 = scalar_select %p182, %s18, 1
      %p184 = scmp.lt.s32.totalorder %s181, 31
      %s185 = scalar_select %p184, %s181, 31
      %s186 = smul.addr %s183, 32
      %s187 = sadd.s32 %s185, %s186
      %s188 = smul.addr %s187, 8
      %s189 = scalar_lea.vmem %s3, %s188
      %s190 = smul.u32 16, %s19
      %p191 = scmp.lt.s32.totalorder %s18, 1
      %s192 = scalar_select %p191, %s18, 1
      %p193 = scmp.lt.s32.totalorder %s190, 31
      %s194 = scalar_select %p193, %s190, 31
      %s195 = smul.addr %s192, 32
      %s196 = sadd.s32 %s194, %s195
      %s197 = smul.addr %s196, 8
      %s198 = scalar_lea.vmem %s0, %s197
      %s199 = smul.u32 16, %s19
      %s200 = smul.u32 16, %s19
      %p201 = scmp.lt.s32.totalorder %s18, 1
      %s202 = scalar_select %p201, %s18, 1
      %p203 = scmp.lt.s32.totalorder %s200, 31
      %s204 = scalar_select %p203, %s200, 31
      %s205 = smul.addr %s202, 32
      %s206 = sadd.s32 %s204, %s205
      %s207 = smul.addr %s206, 8
      %s208 = scalar_lea.vmem %s3, %s207
      %s209 = smul.u32 16, %s19
      %v211 = vld [vmem:[%s198] sm:$0xff]
      %v212 = vld [vmem:[%s198 + $0x8] sm:$0xff]
      %v213 = vld [vmem:[%s198 + $0x10] sm:$0xff]
      %v214 = vld [vmem:[%s198 + $0x18] sm:$0xff]
      %v215 = vld [vmem:[%s198 + $0x20] sm:$0xff]
      %v216 = vld [vmem:[%s198 + $0x28] sm:$0xff]
      %v217 = vld [vmem:[%s198 + $0x30] sm:$0xff]
      %v218 = vld [vmem:[%s198 + $0x38] sm:$0xff]
      %v219 = vld [vmem:[%s198 + $0x40] sm:$0xff]
      %v220 = vld [vmem:[%s198 + $0x48] sm:$0xff]
      %v221 = vld [vmem:[%s198 + $0x50] sm:$0xff]
      %v222 = vld [vmem:[%s198 + $0x58] sm:$0xff]
      %v223 = vld [vmem:[%s198 + $0x60] sm:$0xff]
      %v224 = vld [vmem:[%s198 + $0x68] sm:$0xff]
      %v225 = vld [vmem:[%s198 + $0x70] sm:$0xff]
      %v226 = vld [vmem:[%s198 + $0x78] sm:$0xff]
      %v227 = vpack.c.bf16 %v212, %v211
      %v228 = vpack.c.bf16 %v214, %v213
      %v229 = vpack.c.bf16 %v216, %v215
      %v230 = vpack.c.bf16 %v218, %v217
      %v231 = vpack.c.bf16 %v220, %v219
      %v232 = vpack.c.bf16 %v222, %v221
      %v233 = vpack.c.bf16 %v224, %v223
      %v234 = vpack.c.bf16 %v226, %v225
      %v235 = vld [vmem:[%s1] sm:$0xf]
      %v236 = vld [vmem:[%s1 + $0x4] sm:$0x3]
      %v237 = vld [vmem:[%s2] sm:$0x1]
      %v239 = vlaneseq
      %v240 = vshrl.u32 %v239, 7
      %v241 = vsub.s32 0, %v240
      %v242 = vrot.slane %v237, %v241
      %v246 = vunpack.c.l.b16 %v235
      %v247 = vunpack.c.l.b16 %v236
      %v248 = vpack.c.b16 %v247, %v246
      %vm249 = vcmask 97280
      %v251 = vsel %vm249, %v227, 0
      %v254 = vsel %vm249, %v228, 0
      %v257 = vsel %vm249, %v229, 0
      %v260 = vsel %vm249, %v230, 0
      %v263 = vsel %vm249, %v231, 0
      %v266 = vsel %vm249, %v232, 0
      %v269 = vsel %vm249, %v233, 0
      %v272 = vsel %vm249, %v234, 0
      %vm274 = vcmask 1045504
      %v276 = vsel %vm274, %v248, 0
      %278 = vmatprep.subr.bf16.mxu0 0
      %279 = vmatpush1.bf16.msra.mxu0 0
      %280 = vmatprep.subr.bf16.mxu0 0
      %281 = vmatpush1.bf16.msra.mxu0 0
      %282 = vmatprep.subr.bf16.mxu0 0
      %283 = vmatpush1.bf16.msra.mxu0 0
      %284 = vmatprep.subr.bf16.mxu0 0
      %285 = vmatpush1.bf16.msra.mxu0 0
      %286 = vmatprep.subr.bf16.mxu0 0
      %287 = vmatpush1.bf16.msra.mxu0 0
      %288 = vmatprep.subr.bf16.mxu0 0
      %289 = vmatpush1.bf16.msra.mxu0 0
      %290 = vmatprep.subr.bf16.mxu0 0
      %291 = vmatpush1.bf16.msra.mxu0 0
      %292 = vmatprep.subr.bf16.mxu0 0
      %293 = vmatpush1.bf16.msra.mxu0 %v276
      %294 = vmatprep.subr.bf16.mxu0 0
      %295 = vmatpush2.bf16.msra.mxu0 0
      %296 = vmatprep.subr.bf16.mxu0 0
      %297 = vmatpush2.bf16.msra.mxu0 0
      %298 = vmatprep.subr.bf16.mxu0 0
      %299 = vmatpush2.bf16.msra.mxu0 0
      %300 = vmatprep.subr.bf16.mxu0 0
      %301 = vmatpush2.bf16.msra.mxu0 0
      %302 = vmatprep.subr.bf16.mxu0 0
      %303 = vmatpush2.bf16.msra.mxu0 0
      %304 = vmatprep.subr.bf16.mxu0 0
      %305 = vmatpush2.bf16.msra.mxu0 0
      %306 = vmatprep.subr.bf16.mxu0 0
      %307 = vmatpush2.bf16.msra.mxu0 0
      %308 = vmatprep.subr.bf16.mxu0 0
      %309 = vmatpush2.bf16.msra.mxu0 0
      %310 = vmatprep.mubr.bf16.mxu0 0
      %311 = vmatmul.mubr.bf16.gmra.mxu0 %v251
      %v312 = vpop.f32.mrf.mxu0
      %v313 = vadd.f32 %v242, %v312
      %v314 = vpop.f32.mrf.mxu0
      %v315 = vpop.f32.mrf.mxu0
      %v316 = vadd.f32 %v242, %v315
      %v317 = vpop.f32.mrf.mxu0
      %318 = vmatprep.mubr.bf16.mxu0 0
      %319 = vmatmul.mubr.bf16.gmra.mxu0 %v254
      %v320 = vpop.f32.mrf.mxu0
      %v321 = vadd.f32 %v242, %v320
      %v322 = vpop.f32.mrf.mxu0
      %v323 = vpop.f32.mrf.mxu0
      %v324 = vadd.f32 %v242, %v323
      %v325 = vpop.f32.mrf.mxu0
      %326 = vmatprep.mubr.bf16.mxu0 0
      %327 = vmatmul.mubr.bf16.gmra.mxu0 %v257
      %v328 = vpop.f32.mrf.mxu0
      %v329 = vadd.f32 %v242, %v328
      %v330 = vpop.f32.mrf.mxu0
      %v331 = vpop.f32.mrf.mxu0
      %v332 = vadd.f32 %v242, %v331
      %v333 = vpop.f32.mrf.mxu0
      %334 = vmatprep.mubr.bf16.mxu0 0
      %335 = vmatmul.mubr.bf16.gmra.mxu0 %v260
      %v336 = vpop.f32.mrf.mxu0
      %v337 = vadd.f32 %v242, %v336
      %v338 = vpop.f32.mrf.mxu0
      %v339 = vpop.f32.mrf.mxu0
      %v340 = vadd.f32 %v242, %v339
      %v341 = vpop.f32.mrf.mxu0
      %342 = vmatprep.mubr.bf16.mxu0 0
      %343 = vmatmul.mubr.bf16.gmra.mxu0 %v263
      %v344 = vpop.f32.mrf.mxu0
      %v345 = vadd.f32 %v242, %v344
      %v346 = vpop.f32.mrf.mxu0
      %v347 = vpop.f32.mrf.mxu0
      %v348 = vadd.f32 %v242, %v347
      %v349 = vpop.f32.mrf.mxu0
      %350 = vmatprep.mubr.bf16.mxu0 0
      %351 = vmatmul.mubr.bf16.gmra.mxu0 %v266
      %v352 = vpop.f32.mrf.mxu0
      %v353 = vadd.f32 %v242, %v352
      %v354 = vpop.f32.mrf.mxu0
      %v355 = vpop.f32.mrf.mxu0
      %v356 = vadd.f32 %v242, %v355
      %v357 = vpop.f32.mrf.mxu0
      %358 = vmatprep.mubr.bf16.mxu0 0
      %359 = vmatmul.mubr.bf16.gmra.mxu0 %v269
      %v360 = vpop.f32.mrf.mxu0
      %v361 = vadd.f32 %v242, %v360
      %v362 = vpop.f32.mrf.mxu0
      %v363 = vpop.f32.mrf.mxu0
      %v364 = vadd.f32 %v242, %v363
      %v365 = vpop.f32.mrf.mxu0
      %366 = vmatprep.mubr.bf16.mxu0 0
      %367 = vmatmul.mubr.bf16.gmra.mxu0 %v272
      %v368 = vpop.f32.mrf.mxu0
      %v369 = vadd.f32 %v242, %v368
      %v370 = vpop.f32.mrf.mxu0
      %v371 = vpop.f32.mrf.mxu0
      %v372 = vadd.f32 %v242, %v371
      %v373 = vpop.f32.mrf.mxu0
      %374 = vdwg.mxu0
      %v375 = vmax.f32 %v313, 0.0
      %v376 = vmax.f32 %v316, 0.0
      %v377 = vmax.f32 %v321, 0.0
      %v378 = vmax.f32 %v324, 0.0
      %v379 = vmax.f32 %v329, 0.0
      %v380 = vmax.f32 %v332, 0.0
      %v381 = vmax.f32 %v337, 0.0
      %v382 = vmax.f32 %v340, 0.0
      %v383 = vmax.f32 %v345, 0.0
      %v384 = vmax.f32 %v348, 0.0
      %v385 = vmax.f32 %v353, 0.0
      %v386 = vmax.f32 %v356, 0.0
      %v387 = vmax.f32 %v361, 0.0
      %v388 = vmax.f32 %v364, 0.0
      %v389 = vmax.f32 %v369, 0.0
      %v390 = vmax.f32 %v372, 0.0
      %vm391 = vcmask 48128
      %392 = vst.msk [vmem:[%s208] sm:$0xff] %vm391, %v375
      %393 = vst.msk [vmem:[%s208 + $0x8] sm:$0xff] %vm391, %v376
      %394 = vst.msk [vmem:[%s208 + $0x10] sm:$0xff] %vm391, %v377
      %395 = vst.msk [vmem:[%s208 + $0x18] sm:$0xff] %vm391, %v378
      %396 = vst.msk [vmem:[%s208 + $0x20] sm:$0xff] %vm391, %v379
      %397 = vst.msk [vmem:[%s208 + $0x28] sm:$0xff] %vm391, %v380
      %398 = vst.msk [vmem:[%s208 + $0x30] sm:$0xff] %vm391, %v381
      %399 = vst.msk [vmem:[%s208 + $0x38] sm:$0xff] %vm391, %v382
      %400 = vst.msk [vmem:[%s208 + $0x40] sm:$0xff] %vm391, %v383
      %401 = vst.msk [vmem:[%s208 + $0x48] sm:$0xff] %vm391, %v384
      %402 = vst.msk [vmem:[%s208 + $0x50] sm:$0xff] %vm391, %v385
      %403 = vst.msk [vmem:[%s208 + $0x58] sm:$0xff] %vm391, %v386
      %404 = vst.msk [vmem:[%s208 + $0x60] sm:$0xff] %vm391, %v387
      %405 = vst.msk [vmem:[%s208 + $0x68] sm:$0xff] %vm391, %v388
      %406 = vst.msk [vmem:[%s208 + $0x70] sm:$0xff] %vm391, %v389
      %407 = vst.msk [vmem:[%s208 + $0x78] sm:$0xff] %vm391, %v390
      %s408 = smul.u32 16, %s19
      %p409 = scmp.lt.s32.totalorder %s18, 1
      %s410 = scalar_select %p409, %s18, 1
      %p411 = scmp.lt.s32.totalorder %s408, 31
      %s412 = scalar_select %p411, %s408, 31
      %s413 = smul.addr %s410, 32
      %s414 = sadd.s32 %s412, %s413
      %s415 = smul.addr %s414, 8
      %s416 = scalar_lea.vmem %s3, %s415
      // Predicated region
      $region33: #{ffc_resnet_block_forward.9} parent=31 // pred_check
        %p417 = pneg %p116
      $region34: #{ffc_resnet_block_forward.9} parent=31 // pred_check_branch
        %419 = sbr.rel (%p417) target = $region36
      $region35: #{ffc_resnet_block_forward.9} parent=31 // pred_region
        %s420 = smul.u32 16, %s19
      $region36: #{ffc_resnet_block_forward.9} parent=31 // pred_fallthru
        _
    $region32: #{ffc_resnet_block_forward.9} parent=5 // pred_fallthru
      _
    %p421 = scmp.le.s32.totalorder 2, %s9
    // Predicated region
    $region37: #{ffc_resnet_block_forward.9} parent=5 // pred_check
      %p422 = pneg %p421
    $region38: #{ffc_resnet_block_forward.9} parent=5 // pred_check_branch
      %424 = sbr.rel (%p422) target = $region40
    $region39: #{ffc_resnet_block_forward.9} parent=5 // pred_region
      %s425 = ssub.s32 %s9, 2
      // Predicated region
      $region41: #{ffc_resnet_block_forward.9} parent=39 // pred_check
        %p426 = pneg %p122
      $region42: #{ffc_resnet_block_forward.9} parent=39 // pred_check_branch
        %428 = sbr.rel (%p426) target = $region44
      $region43: #{ffc_resnet_block_forward.9} parent=39 // pred_region
        %s429 = smul.u32 16, %s21
        %p430 = scmp.lt.s32.totalorder %s20, 1
        %s431 = scalar_select %p430, %s20, 1
        %p432 = scmp.lt.s32.totalorder %s429, 31
        %s433 = scalar_select %p432, %s429, 31
        %s434 = smul.addr %s431, 32
        %s435 = sadd.s32 %s433, %s434
        %s436 = smul.addr %s435, 8
        %s437 = scalar_lea.vmem %s3, %s436
      $region44: #{ffc_resnet_block_forward.9} parent=39 // pred_fallthru
        _
    $region40: #{ffc_resnet_block_forward.9} parent=5 // pred_fallthru
      _
  $region6: #{ffc_resnet_block_forward.9} parent=0 // loop_footer
    %s13 = sadd.s32 1, %s9
  $region7: #{ffc_resnet_block_forward.9} parent=0 // loop_footer_branch
    %8 = sbr.rel target = $region3
  $region8: #{ffc_resnet_block_forward.9} parent=0 // loop_exit
    _

// kernel: ffc_resnet_block_forward.10
$region0: #{ffc_resnet_block_forward.10}
  #allocation0 [shape = 'u32[]', space=smem, size = 0x4, offset = 0x4, fixed_abs, tag = 'smem constant byte address 0x4 - core index']
  #allocation1 [shape = 'u32[144,128]{1,0:T(1,128)}', space=vmem, size = 0x12000, scoped, tag = 'internal scratch']
  %s0 = inlined_call_operand.vmem [shape: f32[2,144,12], index: 0, kind: input, shape index: {}]
  %s1 = inlined_call_operand.vmem [shape: bf16[12,12], index: 1, kind: input, shape index: {}]
  %s2 = inlined_call_operand.vmem [shape: f32[1,12], index: 2, kind: input, shape index: {}]
  %s3 = inlined_call_operand.vmem [shape: f32[2,144,12], index: 3, kind: output, shape index: {}]
  %s4 = sld [smem:[#allocation0]]
  $region45: #{ffc_resnet_block_forward.10} parent=0
    _
  %s6 = ssub.s32 1, %s4
  %s7 = scalar_select 0, %s6, %s4
  loop: start=0, step=1, limit=6
  $region2: #{ffc_resnet_block_forward.10} parent=0 // loop_pre_header
    _
  $region3: #{ffc_resnet_block_forward.10} parent=0 // loop_header
    %s9 = sphi 0, %s13
    %p10 = scmp.ge.s32.totalorder %s9, 6
    %s16 = sphi 0, %s28
    %s17 = sphi 0, %s24
    %s18 = sphi 0, %s16
    %s19 = sphi 0, %s17
    %s20 = sphi 0, %s18
    %s21 = sphi 0, %s19
    %s33 = sphi 0, %s35
    %s36 = sphi 0, %s33
    %s37 = sphi 0, %s36
    %s53 = sphi 0, %s37
    %s57 = sphi 0, %s57
    %s59 = sphi 0, %s57
    %s60 = sphi 0, %s59
    %s74 = sphi 0, %s60
    %s78 = sphi 0, %s78
    %s80 = sphi 0, %s78
    %s81 = sphi 0, %s80
    %s95 = sphi 0, %s81
    %s103 = sphi 0, %s105
    %s106 = sphi 0, %s103
    %s107 = sphi 0, %s106
    %s123 = sphi 0, %s107
  $region4: #{ffc_resnet_block_forward.10} parent=0 // loop_header_branch
    %12 = sbr.rel (%p10) target = $region8
  $region5: #{ffc_resnet_block_forward.10} parent=0 // loop_body
    %s14 = ssub.s32 %s9, 1
    %s15 = ssub.s32 %s9, 2
    %s22 = sadd.s32 1, %s17
    %p23 = scmp.ge.s32.totalorder %s22, 2
    %s24 = scalar_select %p23, 0, %s22
    %s25 = sadd.s32 1, %s16
    %s26 = scalar_select %p23, %s25, %s16
    %p27 = scmp.ge.s32.totalorder %s26, 2
    %s28 = scalar_select %p27, 0, %s26
    %s29 = ssub.s32 %s16, %s28
    %s30 = ssub.s32 %s17, %s24
    %s31 = sor.u32 %s29, %s30
    %p32 = scmp.eq.s32.totalorder %s31, 0
    %s34 = sadd.s32 %s33, 1
    %s35 = scalar_select %p32, %s33, %s34
    %p38 = pneg %p32
    %p39 = scmp.eq.s32.totalorder %s9, 3
    %p40 = por %p38, %p39
    %p41 = scmp.ne.s32.totalorder %s33, %s36
    %p42 = scmp.eq.s32.totalorder %s9, 0
    %p43 = por %p41, %p42
    %p44 = scmp.ne.s32.totalorder %s33, %s36
    %p45 = scmp.eq.s32.totalorder %s14, 3
    %p46 = por %p44, %p45
    %p47 = scmp.ne.s32.totalorder %s36, %s37
    %p48 = scmp.eq.s32.totalorder %s14, 0
    %p49 = por %p47, %p48
    %p50 = scmp.ne.s32.totalorder %s36, %s37
    %p51 = scmp.eq.s32.totalorder %s15, 3
    %p52 = por %p50, %p51
    %p54 = scmp.ne.s32.totalorder %s37, %s53
    %p55 = scmp.eq.s32.totalorder %s15, 0
    %p56 = por %p54, %p55
    %s58 = sadd.s32 %s57, 1
    %p61 = scmp.eq.s32.totalorder %s9, 3
    %p62 = scmp.ne.s32.totalorder %s57, %s59
    %p63 = scmp.eq.s32.totalorder %s9, 0
    %p64 = por %p62, %p63
    %p65 = scmp.ne.s32.totalorder %s57, %s59
    %p66 = scmp.eq.s32.totalorder %s14, 3
    %p67 = por %p65, %p66
    %p68 = scmp.ne.s32.totalorder %s59, %s60
    %p69 = scmp.eq.s32.totalorder %s14, 0
    %p70 = por %p68, %p69
    %p71 = scmp.ne.s32.totalorder %s59, %s60
    %p72 = scmp.eq.s32.totalorder %s15, 3
    %p73 = por %p71, %p72
    %p75 = scmp.ne.s32.totalorder %s60, %s74
    %p76 = scmp.eq.s32.totalorder %s15, 0
    %p77 = por %p75, %p76
    %s79 = sadd.s32 %s78, 1
    %p82 = scmp.eq.s32.totalorder %s9, 3
    %p83 = scmp.ne.s32.totalorder %s78, %s80
    %p84 = scmp.eq.s32.totalorder %s9, 0
    %p85 = por %p83, %p84
    %p86 = scmp.ne.s32.totalorder %s78, %s80
    %p87 = scmp.eq.s32.totalorder %s14, 3
    %p88 = por %p86, %p87
    %p89 = scmp.ne.s32.totalorder %s80, %s81
    %p90 = scmp.eq.s32.totalorder %s14, 0
    %p91 = por %p89, %p90
    %p92 = scmp.ne.s32.totalorder %s80, %s81
    %p93 = scmp.eq.s32.totalorder %s15, 3
    %p94 = por %p92, %p93
    %p96 = scmp.ne.s32.totalorder %s81, %s95
    %p97 = scmp.eq.s32.totalorder %s15, 0
    %p98 = por %p96, %p97
    %s99 = ssub.s32 %s16, %s28
    %s100 = ssub.s32 %s17, %s24
    %s101 = sor.u32 %s99, %s100
    %p102 = scmp.eq.s32.totalorder %s101, 0
    %s104 = sadd.s32 %s103, 1
    %s105 = scalar_select %p102, %s103, %s104
    %p108 = pneg %p102
    %p109 = scmp.eq.s32.totalorder %s9, 3
    %p110 = por %p108, %p109
    %p111 = scmp.ne.s32.totalorder %s103, %s106
    %p112 = scmp.eq.s32.totalorder %s9, 0
    %p113 = por %p111, %p112
    %p114 = scmp.ne.s32.totalorder %s103, %s106
    %p115 = scmp.eq.s32.totalorder %s14, 3
    %p116 = por %p114, %p115
    %p117 = scmp.ne.s32.totalorder %s106, %s107
    %p118 = scmp.eq.s32.totalorder %s14, 0
    %p119 = por %p117, %p118
    %p120 = scmp.ne.s32.totalorder %s106, %s107
    %p121 = scmp.eq.s32.totalorder %s15, 3
    %p122 = por %p120, %p121
    %p124 = scmp.ne.s32.totalorder %s107, %s123
    %p125 = scmp.eq.s32.totalorder %s15, 0
    %p126 = por %p124, %p125
    %p127 = scmp.le.s32.totalorder 1, %s9
    %p128 = scmp.lt.s32.totalorder %s9, 5
    %p129 = pnand %p127, %p128
    %p130 = pneg %p129
    // Predicated region
    $region9: #{ffc_resnet_block_forward.10} parent=5 // pred_check
      _
    $region10: #{ffc_resnet_block_forward.10} parent=5 // pred_check_branch
      %132 = sbr.rel (%p129) target = $region12
    $region11: #{ffc_resnet_block_forward.10} parent=5 // pred_region
      %s133 = ssub.s32 %s9, 1
      // Predicated region
      $region13: #{ffc_resnet_block_forward.10} parent=11 // pred_check
        %p134 = pneg %p70
      $region14: #{ffc_resnet_block_forward.10} parent=11 // pred_check_branch
        %136 = sbr.rel (%p134) target = $region16
      $region15: #{ffc_resnet_block_forward.10} parent=11 // pred_region
        _
      $region16: #{ffc_resnet_block_forward.10} parent=11 // pred_fallthru
        _
      // Predicated region
      $region17: #{ffc_resnet_block_forward.10} parent=11 // pred_check
        %p137 = pneg %p91
      $region18: #{ffc_resnet_block_forward.10} parent=11 // pred_check_branch
        %139 = sbr.rel (%p137) target = $region20
      $region19: #{ffc_resnet_block_forward.10} parent=11 // pred_region
        _
      $region20: #{ffc_resnet_block_forward.10} parent=11 // pred_fallthru
        _
    $region12: #{ffc_resnet_block_forward.10} parent=5 // pred_fallthru
      _
    %p140 = scmp.lt.s32.totalorder %s9, 4
    // Predicated region
    $region21: #{ffc_resnet_block_forward.10} parent=5 // pred_check
      %p141 = pneg %p140
    $region22: #{ffc_resnet_block_forward.10} parent=5 // pred_check_branch
      %143 = sbr.rel (%p141) target = $region24
    $region23: #{ffc_resnet_block_forward.10} parent=5 // pred_region
      // Predicated region
      $region25: #{ffc_resnet_block_forward.10} parent=23 // pred_check
        %p144 = pneg %p43
      $region26: #{ffc_resnet_block_forward.10} parent=23 // pred_check_branch
        %146 = sbr.rel (%p144) target = $region28
      $region27: #{ffc_resnet_block_forward.10} parent=23 // pred_region
        %s147 = smul.u32 9, %s17
        %p148 = scmp.lt.s32.totalorder %s16, 1
        %s149 = scalar_select %p148, %s16, 1
        %p150 = scmp.lt.s32.totalorder %s147, 17
        %s151 = scalar_select %p150, %s147, 17
        %s152 = smul.addr %s149, 18
        %s153 = sadd.s32 %s151, %s152
        %s154 = smul.addr %s153, 8
        %s155 = scalar_lea.vmem %s0, %s154
        %s156 = smul.u32 9, %s17
      $region28: #{ffc_resnet_block_forward.10} parent=23 // pred_fallthru
        _
    $region24: #{ffc_resnet_block_forward.10} parent=5 // pred_fallthru
      _
    %p157 = scmp.le.s32.totalorder 1, %s9
    %p158 = scmp.lt.s32.totalorder %s9, 5
    %p159 = pnand %p157, %p158
    %p160 = pneg %p159
    // Predicated region
    $region29: #{ffc_resnet_block_forward.10} parent=5 // pred_check
      _
    $region30: #{ffc_resnet_block_forward.10} parent=5 // pred_check_branch
      %162 = sbr.rel (%p159) target = $region32
    $region31: #{ffc_resnet_block_forward.10} parent=5 // pred_region
      %s163 = ssub.s32 %s9, 1
      %s164 = smul.u32 9, %s19
      %p165 = scmp.lt.s32.totalorder %s18, 1
      %s166 = scalar_select %p165, %s18, 1
      %p167 = scmp.lt.s32.totalorder %s164, 17
      %s168 = scalar_select %p167, %s164, 17
      %s169 = smul.addr %s166, 18
      %s170 = sadd.s32 %s168, %s169
      %s171 = smul.addr %s170, 8
      %s172 = scalar_lea.vmem %s0, %s171
      %p173 = pneg %p49
      %p174 = pneg %p46
      %p175 = pneg %p70
      %p176 = pneg %p67
      %p177 = pneg %p91
      %p178 = pneg %p88
      %p179 = pneg %p119
      %p180 = pneg %p116
      %s181 = smul.u32 9, %s19
      %p182 = scmp.lt.s32.totalorder %s18, 1
      %s183 = scalar_select %p182, %s18, 1
      %p184 = scmp.lt.s32.totalorder %s181, 17
      %s185 = scalar_select %p184, %s181, 17
      %s186 = smul.addr %s183, 18
      %s187 = sadd.s32 %s185, %s186
      %s188 = smul.addr %s187, 8
      %s189 = scalar_lea.vmem %s3, %s188
      %s190 = smul.u32 9, %s19
      %p191 = scmp.lt.s32.totalorder %s18, 1
      %s192 = scalar_select %p191, %s18, 1
      %p193 = scmp.lt.s32.totalorder %s190, 17
      %s194 = scalar_select %p193, %s190, 17
      %s195 = smul.addr %s192, 18
      %s196 = sadd.s32 %s194, %s195
      %s197 = smul.addr %s196, 8
      %s198 = scalar_lea.vmem %s0, %s197
      %s199 = smul.u32 9, %s19
      %s200 = smul.u32 9, %s19
      %p201 = scmp.lt.s32.totalorder %s18, 1
      %s202 = scalar_select %p201, %s18, 1
      %p203 = scmp.lt.s32.totalorder %s200, 17
      %s204 = scalar_select %p203, %s200, 17
      %s205 = smul.addr %s202, 18
      %s206 = sadd.s32 %s204, %s205
      %s207 = smul.addr %s206, 8
      %s208 = scalar_lea.vmem %s3, %s207
      %s209 = smul.u32 9, %s19
      %v211 = vld [vmem:[%s198] sm:$0xff]
      %v212 = vld [vmem:[%s198 + $0x8] sm:$0xff]
      %v213 = vld [vmem:[%s198 + $0x10] sm:$0xff]
      %v214 = vld [vmem:[%s198 + $0x18] sm:$0xff]
      %v215 = vld [vmem:[%s198 + $0x20] sm:$0xff]
      %v216 = vld [vmem:[%s198 + $0x28] sm:$0xff]
      %v217 = vld [vmem:[%s198 + $0x30] sm:$0xff]
      %v218 = vld [vmem:[%s198 + $0x38] sm:$0xff]
      %v219 = vld [vmem:[%s198 + $0x40] sm:$0xff]
      %v220 = vpack.c.bf16 %v212, %v211
      %v221 = vpack.c.bf16 %v214, %v213
      %v222 = vpack.c.bf16 %v216, %v215
      %v223 = vpack.c.bf16 %v218, %v217
      %v224 = vpack.c.bf16 %v219, %v219
      %v225 = vld [vmem:[%s1] sm:$0xf]
      %v226 = vld [vmem:[%s1 + $0x4] sm:$0x3]
      %v227 = vld [vmem:[%s2] sm:$0x1]
      %v229 = vlaneseq
      %v230 = vshrl.u32 %v229, 7
      %v231 = vsub.s32 0, %v230
      %v232 = vrot.slane %v227, %v231
      %v236 = vunpack.c.l.b16 %v225
      %v237 = vunpack.c.l.b16 %v226
      %v238 = vpack.c.b16 %v237, %v236
      %vm239 = vcmask 97280
      %v241 = vsel %vm239, %v220, 0
      %v244 = vsel %vm239, %v221, 0
      %v247 = vsel %vm239, %v222, 0
      %v250 = vsel %vm239, %v223, 0
      %v253 = vsel %vm239, %v224, 0
      %vm255 = vcmask 1045504
      %v257 = vsel %vm255, %v238, 0
      %259 = vmatprep.subr.bf16.mxu0 0
      %260 = vmatpush1.bf16.msra.mxu0 0
      %261 = vmatprep.subr.bf16.mxu0 0
      %262 = vmatpush1.bf16.msra.mxu0 0
      %263 = vmatprep.subr.bf16.mxu0 0
      %264 = vmatpush1.bf16.msra.mxu0 0
      %265 = vmatprep.subr.bf16.mxu0 0
      %266 = vmatpush1.bf16.msra.mxu0 0
      %267 = vmatprep.subr.bf16.mxu0 0
      %268 = vmatpush1.bf16.msra.mxu0 0
      %269 = vmatprep.subr.bf16.mxu0 0
      %270 = vmatpush1.bf16.msra.mxu0 0
      %271 = vmatprep.subr.bf16.mxu0 0
      %272 = vmatpush1.bf16.msra.mxu0 0
      %273 = vmatprep.subr.bf16.mxu0 0
      %274 = vmatpush1.bf16.msra.mxu0 %v257
      %275 = vmatprep.subr.bf16.mxu0 0
      %276 = vmatpush2.bf16.msra.mxu0 0
      %277 = vmatprep.subr.bf16.mxu0 0
      %278 = vmatpush2.bf16.msra.mxu0 0
      %279 = vmatprep.subr.bf16.mxu0 0
      %280 = vmatpush2.bf16.msra.mxu0 0
      %281 = vmatprep.subr.bf16.mxu0 0
      %282 = vmatpush2.bf16.msra.mxu0 0
      %283 = vmatprep.subr.bf16.mxu0 0
      %284 = vmatpush2.bf16.msra.mxu0 0
      %285 = vmatprep.subr.bf16.mxu0 0
      %286 = vmatpush2.bf16.msra.mxu0 0
      %287 = vmatprep.subr.bf16.mxu0 0
      %288 = vmatpush2.bf16.msra.mxu0 0
      %289 = vmatprep.subr.bf16.mxu0 0
      %290 = vmatpush2.bf16.msra.mxu0 0
      %291 = vmatprep.mubr.bf16.mxu0 0
      %292 = vmatmul.mubr.bf16.gmra.mxu0 %v241
      %v293 = vpop.f32.mrf.mxu0
      %v294 = vadd.f32 %v232, %v293
      %v295 = vpop.f32.mrf.mxu0
      %v296 = vpop.f32.mrf.mxu0
      %v297 = vadd.f32 %v232, %v296
      %v298 = vpop.f32.mrf.mxu0
      %299 = vmatprep.mubr.bf16.mxu0 0
      %300 = vmatmul.mubr.bf16.gmra.mxu0 %v244
      %v301 = vpop.f32.mrf.mxu0
      %v302 = vadd.f32 %v232, %v301
      %v303 = vpop.f32.mrf.mxu0
      %v304 = vpop.f32.mrf.mxu0
      %v305 = vadd.f32 %v232, %v304
      %v306 = vpop.f32.mrf.mxu0
      %307 = vmatprep.mubr.bf16.mxu0 0
      %308 = vmatmul.mubr.bf16.gmra.mxu0 %v247
      %v309 = vpop.f32.mrf.mxu0
      %v310 = vadd.f32 %v232, %v309
      %v311 = vpop.f32.mrf.mxu0
      %v312 = vpop.f32.mrf.mxu0
      %v313 = vadd.f32 %v232, %v312
      %v314 = vpop.f32.mrf.mxu0
      %315 = vmatprep.mubr.bf16.mxu0 0
      %316 = vmatmul.mubr.bf16.gmra.mxu0 %v250
      %v317 = vpop.f32.mrf.mxu0
      %v318 = vadd.f32 %v232, %v317
      %v319 = vpop.f32.mrf.mxu0
      %v320 = vpop.f32.mrf.mxu0
      %v321 = vadd.f32 %v232, %v320
      %v322 = vpop.f32.mrf.mxu0
      %323 = vmatprep.mubr.bf16.mxu0 0
      %324 = vmatmul.mubr.bf16.gmra.mxu0 %v253
      %v325 = vpop.f32.mrf.mxu0
      %v326 = vadd.f32 %v232, %v325
      %v327 = vpop.f32.mrf.mxu0
      %v328 = vpop.f32.mrf.mxu0
      %v329 = vpop.f32.mrf.mxu0
      %330 = vdwg.mxu0
      %v331 = vmax.f32 %v294, 0.0
      %v332 = vmax.f32 %v297, 0.0
      %v333 = vmax.f32 %v302, 0.0
      %v334 = vmax.f32 %v305, 0.0
      %v335 = vmax.f32 %v310, 0.0
      %v336 = vmax.f32 %v313, 0.0
      %v337 = vmax.f32 %v318, 0.0
      %v338 = vmax.f32 %v321, 0.0
      %v339 = vmax.f32 %v326, 0.0
      %340 = vst.msk [vmem:[%s208] sm:$0xff] %vm239, %v331
      %341 = vst.msk [vmem:[%s208 + $0x8] sm:$0xff] %vm239, %v332
      %342 = vst.msk [vmem:[%s208 + $0x10] sm:$0xff] %vm239, %v333
      %343 = vst.msk [vmem:[%s208 + $0x18] sm:$0xff] %vm239, %v334
      %344 = vst.msk [vmem:[%s208 + $0x20] sm:$0xff] %vm239, %v335
      %345 = vst.msk [vmem:[%s208 + $0x28] sm:$0xff] %vm239, %v336
      %346 = vst.msk [vmem:[%s208 + $0x30] sm:$0xff] %vm239, %v337
      %347 = vst.msk [vmem:[%s208 + $0x38] sm:$0xff] %vm239, %v338
      %348 = vst.msk [vmem:[%s208 + $0x40] sm:$0xff] %vm239, %v339
      %s349 = smul.u32 9, %s19
      %p350 = scmp.lt.s32.totalorder %s18, 1
      %s351 = scalar_select %p350, %s18, 1
      %p352 = scmp.lt.s32.totalorder %s349, 17
      %s353 = scalar_select %p352, %s349, 17
      %s354 = smul.addr %s351, 18
      %s355 = sadd.s32 %s353, %s354
      %s356 = smul.addr %s355, 8
      %s357 = scalar_lea.vmem %s3, %s356
      // Predicated region
      $region33: #{ffc_resnet_block_forward.10} parent=31 // pred_check
        %p358 = pneg %p116
      $region34: #{ffc_resnet_block_forward.10} parent=31 // pred_check_branch
        %360 = sbr.rel (%p358) target = $region36
      $region35: #{ffc_resnet_block_forward.10} parent=31 // pred_region
        %s361 = smul.u32 9, %s19
      $region36: #{ffc_resnet_block_forward.10} parent=31 // pred_fallthru
        _
    $region32: #{ffc_resnet_block_forward.10} parent=5 // pred_fallthru
      _
    %p362 = scmp.le.s32.totalorder 2, %s9
    // Predicated region
    $region37: #{ffc_resnet_block_forward.10} parent=5 // pred_check
      %p363 = pneg %p362
    $region38: #{ffc_resnet_block_forward.10} parent=5 // pred_check_branch
      %365 = sbr.rel (%p363) target = $region40
    $region39: #{ffc_resnet_block_forward.10} parent=5 // pred_region
      %s366 = ssub.s32 %s9, 2
      // Predicated region
      $region41: #{ffc_resnet_block_forward.10} parent=39 // pred_check
        %p367 = pneg %p122
      $region42: #{ffc_resnet_block_forward.10} parent=39 // pred_check_branch
        %369 = sbr.rel (%p367) target = $region44
      $region43: #{ffc_resnet_block_forward.10} parent=39 // pred_region
        %s370 = smul.u32 9, %s21
        %p371 = scmp.lt.s32.totalorder %s20, 1
        %s372 = scalar_select %p371, %s20, 1
        %p373 = scmp.lt.s32.totalorder %s370, 17
        %s374 = scalar_select %p373, %s370, 17
        %s375 = smul.addr %s372, 18
        %s376 = sadd.s32 %s374, %s375
        %s377 = smul.addr %s376, 8
        %s378 = scalar_lea.vmem %s3, %s377
      $region44: #{ffc_resnet_block_forward.10} parent=39 // pred_fallthru
        _
    $region40: #{ffc_resnet_block_forward.10} parent=5 // pred_fallthru
      _
  $region6: #{ffc_resnet_block_forward.10} parent=0 // loop_footer
    %s13 = sadd.s32 1, %s9
  $region7: #{ffc_resnet_block_forward.10} parent=0 // loop_footer_branch
    %8 = sbr.rel target = $region3
  $region8: #{ffc_resnet_block_forward.10} parent=0 // loop_exit
    _

// kernel: reverse.5
$region0: #{reverse.5}
  %s0 = inlined_call_operand.vmem [shape: f32[2,6,16,7], index: 0, kind: input, shape index: {}]
  %s1 = inlined_call_operand.vmem [shape: f32[2,6,16,7], index: 1, kind: output, shape index: {}]
  $region1: #{reverse.5} parent=0
    #allocation0 [shape = 'u8[98304]{0}', space=vmem, size = 0x18000, scoped, tag = 'operand span for operand 0']
    #allocation1 [shape = 'u8[49152]{0}', space=vmem, size = 0xc000, scoped, tag = 'operand span for operand 1']
    %s2 = scalar_lea.vmem [#allocation0], 8
    // Predicated region
    $region2: #{reverse.5} parent=1 // pred_check
      _
    $region3: #{reverse.5} parent=1 // pred_check_branch
      %4 = sbr.rel (0) target = $region5
    $region4: #{reverse.5} parent=1 // pred_region
      // Predicated region
      $region6: #{reverse.5} parent=4 // pred_check
        _
      $region7: #{reverse.5} parent=4 // pred_check_branch
        %6 = sbr.rel (0) target = $region9
      $region8: #{reverse.5} parent=4 // pred_region
        // Predicated region
        $region21: #{reverse.5} parent=8 // pred_check
          _
        $region22: #{reverse.5} parent=8 // pred_check_branch
          %44 = sbr.rel (0) target = $region24
        $region23: #{reverse.5} parent=8 // pred_region
          loop: start=0, step=1, limit=1
          $region25: #{reverse.5} parent=23 // loop_pre_header
            _
          $region26: #{reverse.5} parent=23 // loop_header
            %s46 = sphi 0, %s50
            %p47 = scmp.ge.s32.totalorder %s46, 1
            %s51 = sphi %s0, %s0
            %s52 = sphi %s2, %s2
          $region27: #{reverse.5} parent=23 // loop_header_branch
            %49 = sbr.rel (%p47) target = $region31
          $region28: #{reverse.5} parent=23 // loop_body
            %v53 = vld [vmem:[%s51] sm:$0xff]
            %54 = vst [vmem:[%s52] sm:$0xff] %v53
            %v55 = vld [vmem:[%s51 + $0x8] sm:$0xff]
            %56 = vst [vmem:[%s52 + $0x10] sm:$0xff] %v55
            %v57 = vld [vmem:[%s51 + $0x10] sm:$0xff]
            %58 = vst [vmem:[%s52 + $0x20] sm:$0xff] %v57
            %v59 = vld [vmem:[%s51 + $0x18] sm:$0xff]
            %60 = vst [vmem:[%s52 + $0x30] sm:$0xff] %v59
            %v61 = vld [vmem:[%s51 + $0x20] sm:$0xff]
            %62 = vst [vmem:[%s52 + $0x40] sm:$0xff] %v61
            %v63 = vld [vmem:[%s51 + $0x28] sm:$0xff]
            %64 = vst [vmem:[%s52 + $0x50] sm:$0xff] %v63
            %v65 = vld [vmem:[%s51 + $0x30] sm:$0xff]
            %66 = vst [vmem:[%s52 + $0x60] sm:$0xff] %v65
            %v67 = vld [vmem:[%s51 + $0x38] sm:$0xff]
            %68 = vst [vmem:[%s52 + $0x70] sm:$0xff] %v67
            %v69 = vld [vmem:[%s51 + $0x40] sm:$0xff]
            %70 = vst [vmem:[%s52 + $0x80] sm:$0xff] %v69
            %v71 = vld [vmem:[%s51 + $0x48] sm:$0xff]
            %72 = vst [vmem:[%s52 + $0x90] sm:$0xff] %v71
            %v73 = vld [vmem:[%s51 + $0x50] sm:$0xff]
            %74 = vst [vmem:[%s52 + $0xa0] sm:$0xff] %v73
            %v75 = vld [vmem:[%s51 + $0x58] sm:$0xff]
            %76 = vst [vmem:[%s52 + $0xb0] sm:$0xff] %v75
          $region29: #{reverse.5} parent=23 // loop_footer
            %s50 = sadd.s32 1, %s46
          $region30: #{reverse.5} parent=23 // loop_footer_branch
            %45 = sbr.rel target = $region26
          $region31: #{reverse.5} parent=23 // loop_exit
            _
        $region24: #{reverse.5} parent=8 // pred_fallthru
          _
        // Predicated region
        $region32: #{reverse.5} parent=8 // pred_check
          _
        $region33: #{reverse.5} parent=8 // pred_check_branch
          %78 = sbr.rel target = $region35
        $region34: #{reverse.5} parent=8 // pred_region
          _
        $region35: #{reverse.5} parent=8 // pred_fallthru
          _
      $region9: #{reverse.5} parent=4 // pred_fallthru
        _
      // Predicated region
      $region10: #{reverse.5} parent=4 // pred_check
        _
      $region11: #{reverse.5} parent=4 // pred_check_branch
        %8 = sbr.rel target = $region13
      $region12: #{reverse.5} parent=4 // pred_region
        %s10 = ssub.s32 256, 1
        loop: start=0, step=1, limit=1
        $region14: #{reverse.5} parent=12 // loop_pre_header
          _
        $region15: #{reverse.5} parent=12 // loop_header
          %s12 = sphi 0, %s16
          %p13 = scmp.ge.s32.totalorder %s12, 1
          %s17 = sphi %s0, %s0
          %s18 = sphi %s2, %s2
        $region16: #{reverse.5} parent=12 // loop_header_branch
          %15 = sbr.rel (%p13) target = $region20
        $region17: #{reverse.5} parent=12 // loop_body
          %v19 = vld [vmem:[%s17] sm:%s10]
          %20 = vst [vmem:[%s18] sm:%s10] %v19
          %v21 = vld [vmem:[%s17 + $0x8] sm:%s10]
          %22 = vst [vmem:[%s18 + $0x10] sm:%s10] %v21
          %v23 = vld [vmem:[%s17 + $0x10] sm:%s10]
          %24 = vst [vmem:[%s18 + $0x20] sm:%s10] %v23
          %v25 = vld [vmem:[%s17 + $0x18] sm:%s10]
          %26 = vst [vmem:[%s18 + $0x30] sm:%s10] %v25
          %v27 = vld [vmem:[%s17 + $0x20] sm:%s10]
          %28 = vst [vmem:[%s18 + $0x40] sm:%s10] %v27
          %v29 = vld [vmem:[%s17 + $0x28] sm:%s10]
          %30 = vst [vmem:[%s18 + $0x50] sm:%s10] %v29
          %v31 = vld [vmem:[%s17 + $0x30] sm:%s10]
          %32 = vst [vmem:[%s18 + $0x60] sm:%s10] %v31
          %v33 = vld [vmem:[%s17 + $0x38] sm:%s10]
          %34 = vst [vmem:[%s18 + $0x70] sm:%s10] %v33
          %v35 = vld [vmem:[%s17 + $0x40] sm:%s10]
          %36 = vst [vmem:[%s18 + $0x80] sm:%s10] %v35
          %v37 = vld [vmem:[%s17 + $0x48] sm:%s10]
          %38 = vst [vmem:[%s18 + $0x90] sm:%s10] %v37
          %v39 = vld [vmem:[%s17 + $0x50] sm:%s10]
          %40 = vst [vmem:[%s18 + $0xa0] sm:%s10] %v39
          %v41 = vld [vmem:[%s17 + $0x58] sm:%s10]
          %42 = vst [vmem:[%s18 + $0xb0] sm:%s10] %v41
        $region18: #{reverse.5} parent=12 // loop_footer
          %s16 = sadd.s32 1, %s12
        $region19: #{reverse.5} parent=12 // loop_footer_branch
          %11 = sbr.rel target = $region15
        $region20: #{reverse.5} parent=12 // loop_exit
          _
      $region13: #{reverse.5} parent=4 // pred_fallthru
        _
    $region5: #{reverse.5} parent=1 // pred_fallthru
      _
    %79 = vnop
    %s80 = scalar_lea.vmem [#allocation0], 7
    %v81 = vld [vmem:[%s80] ss:$-1 sm:$0xff]
    %v82 = vrot.slane %v81, 1
    %83 = vst [vmem:[#allocation1] sm:$0xff] %v82
    %s84 = scalar_lea.vmem [#allocation0], 8
    %s85 = scalar_lea.vmem %s84, 7 [#allocation0]
    %v86 = vld [vmem:[%s85] ss:$-1 sm:$0xff]
    %v87 = vrot.slane %v86, 1
    %v88 = vlaneseq
    %v89 = vshrl.u32 %v88, 7
    %vm90 = vcmp.lt.s32.totalorder %v89, 7
    %91 = vst.msk [vmem:[#allocation1] sm:$0xff] %vm90, %v87
    %s92 = scalar_lea.vmem [#allocation1], 8
    %s93 = scalar_lea.vmem [#allocation0], 16
    %s94 = scalar_lea.vmem %s93, 7 [#allocation0]
    %v95 = vld [vmem:[%s94] ss:$-1 sm:$0xff]
    %v96 = vrot.slane %v95, 1
    %97 = vst [vmem:[%s92] sm:$0xff] %v96
    %s98 = scalar_lea.vmem %s93, 8 [#allocation0]
    %s99 = scalar_lea.vmem %s98, 7 [#allocation0]
    %v100 = vld [vmem:[%s99] ss:$-1 sm:$0xff]
    %v101 = vrot.slane %v100, 1
    %v102 = vlaneseq
    %v103 = vshrl.u32 %v102, 7
    %vm104 = vcmp.lt.s32.totalorder %v103, 7
    %105 = vst.msk [vmem:[%s92] sm:$0xff] %vm104, %v101
    %s106 = scalar_lea.vmem [#allocation1], 16
    %s107 = scalar_lea.vmem [#allocation0], 32
    %s108 = scalar_lea.vmem %s107, 7 [#allocation0]
    %v109 = vld [vmem:[%s108] ss:$-1 sm:$0xff]
    %v110 = vrot.slane %v109, 1
    %111 = vst [vmem:[%s106] sm:$0xff] %v110
    %s112 = scalar_lea.vmem %s107, 8 [#allocation0]
    %s113 = scalar_lea.vmem %s112, 7 [#allocation0]
    %v114 = vld [vmem:[%s113] ss:$-1 sm:$0xff]
    %v115 = vrot.slane %v114, 1
    %v116 = vlaneseq
    %v117 = vshrl.u32 %v116, 7
    %vm118 = vcmp.lt.s32.totalorder %v117, 7
    %119 = vst.msk [vmem:[%s106] sm:$0xff] %vm118, %v115
    %s120 = scalar_lea.vmem [#allocation1], 24
    %s121 = scalar_lea.vmem [#allocation0], 48
    %s122 = scalar_lea.vmem %s121, 7 [#allocation0]
    %v123 = vld [vmem:[%s122] ss:$-1 sm:$0xff]
    %v124 = vrot.slane %v123, 1
    %125 = vst [vmem:[%s120] sm:$0xff] %v124
    %s126 = scalar_lea.vmem %s121, 8 [#allocation0]
    %s127 = scalar_lea.vmem %s126, 7 [#allocation0]
    %v128 = vld [vmem:[%s127] ss:$-1 sm:$0xff]
    %v129 = vrot.slane %v128, 1
    %v130 = vlaneseq
    %v131 = vshrl.u32 %v130, 7
    %vm132 = vcmp.lt.s32.totalorder %v131, 7
    %133 = vst.msk [vmem:[%s120] sm:$0xff] %vm132, %v129
    %s134 = scalar_lea.vmem [#allocation1], 32
    %s135 = scalar_lea.vmem [#allocation0], 64
    %s136 = scalar_lea.vmem %s135, 7 [#allocation0]
    %v137 = vld [vmem:[%s136] ss:$-1 sm:$0xff]
    %v138 = vrot.slane %v137, 1
    %139 = vst [vmem:[%s134] sm:$0xff] %v138
    %s140 = scalar_lea.vmem %s135, 8 [#allocation0]
    %s141 = scalar_lea.vmem %s140, 7 [#allocation0]
    %v142 = vld [vmem:[%s141] ss:$-1 sm:$0xff]
    %v143 = vrot.slane %v142, 1
    %v144 = vlaneseq
    %v145 = vshrl.u32 %v144, 7
    %vm146 = vcmp.lt.s32.totalorder %v145, 7
    %147 = vst.msk [vmem:[%s134] sm:$0xff] %vm146, %v143
    %s148 = scalar_lea.vmem [#allocation1], 40
    %s149 = scalar_lea.vmem [#allocation0], 80
    %s150 = scalar_lea.vmem %s149, 7 [#allocation0]
    %v151 = vld [vmem:[%s150] ss:$-1 sm:$0xff]
    %v152 = vrot.slane %v151, 1
    %153 = vst [vmem:[%s148] sm:$0xff] %v152
    %s154 = scalar_lea.vmem %s149, 8 [#allocation0]
    %s155 = scalar_lea.vmem %s154, 7 [#allocation0]
    %v156 = vld [vmem:[%s155] ss:$-1 sm:$0xff]
    %v157 = vrot.slane %v156, 1
    %v158 = vlaneseq
    %v159 = vshrl.u32 %v158, 7
    %vm160 = vcmp.lt.s32.totalorder %v159, 7
    %161 = vst.msk [vmem:[%s148] sm:$0xff] %vm160, %v157
    %s162 = scalar_lea.vmem [#allocation1], 48
    %s163 = scalar_lea.vmem [#allocation0], 96
    %s164 = scalar_lea.vmem %s163, 7 [#allocation0]
    %v165 = vld [vmem:[%s164] ss:$-1 sm:$0xff]
    %v166 = vrot.slane %v165, 1
    %167 = vst [vmem:[%s162] sm:$0xff] %v166
    %s168 = scalar_lea.vmem %s163, 8 [#allocation0]
    %s169 = scalar_lea.vmem %s168, 7 [#allocation0]
    %v170 = vld [vmem:[%s169] ss:$-1 sm:$0xff]
    %v171 = vrot.slane %v170, 1
    %v172 = vlaneseq
    %v173 = vshrl.u32 %v172, 7
    %vm174 = vcmp.lt.s32.totalorder %v173, 7
    %175 = vst.msk [vmem:[%s162] sm:$0xff] %vm174, %v171
    %s176 = scalar_lea.vmem [#allocation1], 56
    %s177 = scalar_lea.vmem [#allocation0], 112
    %s178 = scalar_lea.vmem %s177, 7 [#allocation0]
    %v179 = vld [vmem:[%s178] ss:$-1 sm:$0xff]
    %v180 = vrot.slane %v179, 1
    %181 = vst [vmem:[%s176] sm:$0xff] %v180
    %s182 = scalar_lea.vmem %s177, 8 [#allocation0]
    %s183 = scalar_lea.vmem %s182, 7 [#allocation0]
    %v184 = vld [vmem:[%s183] ss:$-1 sm:$0xff]
    %v185 = vrot.slane %v184, 1
    %v186 = vlaneseq
    %v187 = vshrl.u32 %v186, 7
    %vm188 = vcmp.lt.s32.totalorder %v187, 7
    %189 = vst.msk [vmem:[%s176] sm:$0xff] %vm188, %v185
    %s190 = scalar_lea.vmem [#allocation1], 64
    %s191 = scalar_lea.vmem [#allocation0], 128
    %s192 = scalar_lea.vmem %s191, 7 [#allocation0]
    %v193 = vld [vmem:[%s192] ss:$-1 sm:$0xff]
    %v194 = vrot.slane %v193, 1
    %195 = vst [vmem:[%s190] sm:$0xff] %v194
    %s196 = scalar_lea.vmem %s191, 8 [#allocation0]
    %s197 = scalar_lea.vmem %s196, 7 [#allocation0]
    %v198 = vld [vmem:[%s197] ss:$-1 sm:$0xff]
    %v199 = vrot.slane %v198, 1
    %v200 = vlaneseq
    %v201 = vshrl.u32 %v200, 7
    %vm202 = vcmp.lt.s32.totalorder %v201, 7
    %203 = vst.msk [vmem:[%s190] sm:$0xff] %vm202, %v199
    %s204 = scalar_lea.vmem [#allocation1], 72
    %s205 = scalar_lea.vmem [#allocation0], 144
    %s206 = scalar_lea.vmem %s205, 7 [#allocation0]
    %v207 = vld [vmem:[%s206] ss:$-1 sm:$0xff]
    %v208 = vrot.slane %v207, 1
    %209 = vst [vmem:[%s204] sm:$0xff] %v208
    %s210 = scalar_lea.vmem %s205, 8 [#allocation0]
    %s211 = scalar_lea.vmem %s210, 7 [#allocation0]
    %v212 = vld [vmem:[%s211] ss:$-1 sm:$0xff]
    %v213 = vrot.slane %v212, 1
    %v214 = vlaneseq
    %v215 = vshrl.u32 %v214, 7
    %vm216 = vcmp.lt.s32.totalorder %v215, 7
    %217 = vst.msk [vmem:[%s204] sm:$0xff] %vm216, %v213
    %s218 = scalar_lea.vmem [#allocation1], 80
    %s219 = scalar_lea.vmem [#allocation0], 160
    %s220 = scalar_lea.vmem %s219, 7 [#allocation0]
    %v221 = vld [vmem:[%s220] ss:$-1 sm:$0xff]
    %v222 = vrot.slane %v221, 1
    %223 = vst [vmem:[%s218] sm:$0xff] %v222
    %s224 = scalar_lea.vmem %s219, 8 [#allocation0]
    %s225 = scalar_lea.vmem %s224, 7 [#allocation0]
    %v226 = vld [vmem:[%s225] ss:$-1 sm:$0xff]
    %v227 = vrot.slane %v226, 1
    %v228 = vlaneseq
    %v229 = vshrl.u32 %v228, 7
    %vm230 = vcmp.lt.s32.totalorder %v229, 7
    %231 = vst.msk [vmem:[%s218] sm:$0xff] %vm230, %v227
    %s232 = scalar_lea.vmem [#allocation1], 88
    %s233 = scalar_lea.vmem [#allocation0], 176
    %s234 = scalar_lea.vmem %s233, 7 [#allocation0]
    %v235 = vld [vmem:[%s234] ss:$-1 sm:$0xff]
    %v236 = vrot.slane %v235, 1
    %237 = vst [vmem:[%s232] sm:$0xff] %v236
    %s238 = scalar_lea.vmem %s233, 8 [#allocation0]
    %s239 = scalar_lea.vmem %s238, 7 [#allocation0]
    %v240 = vld [vmem:[%s239] ss:$-1 sm:$0xff]
    %v241 = vrot.slane %v240, 1
    %v242 = vlaneseq
    %v243 = vshrl.u32 %v242, 7
    %vm244 = vcmp.lt.s32.totalorder %v243, 7
    %245 = vst.msk [vmem:[%s232] sm:$0xff] %vm244, %v241
    // Predicated region
    $region36: #{reverse.5} parent=1 // pred_check
      _
    $region37: #{reverse.5} parent=1 // pred_check_branch
      %247 = sbr.rel (0) target = $region39
    $region38: #{reverse.5} parent=1 // pred_region
      // Predicated region
      $region40: #{reverse.5} parent=38 // pred_check
        _
      $region41: #{reverse.5} parent=38 // pred_check_branch
        %249 = sbr.rel (0) target = $region43
      $region42: #{reverse.5} parent=38 // pred_region
        // Predicated region
        $region55: #{reverse.5} parent=42 // pred_check
          _
        $region56: #{reverse.5} parent=42 // pred_check_branch
          %287 = sbr.rel (0) target = $region58
        $region57: #{reverse.5} parent=42 // pred_region
          loop: start=0, step=1, limit=1
          $region59: #{reverse.5} parent=57 // loop_pre_header
            _
          $region60: #{reverse.5} parent=57 // loop_header
            %s289 = sphi 0, %s293
            %p290 = scmp.ge.s32.totalorder %s289, 1
            %s294 = sphi [#allocation1], [#allocation1]
            %s295 = sphi %s1, %s1
          $region61: #{reverse.5} parent=57 // loop_header_branch
            %292 = sbr.rel (%p290) target = $region65
          $region62: #{reverse.5} parent=57 // loop_body
            %v296 = vld [vmem:[%s294] sm:$0xff]
            %297 = vst [vmem:[%s295] sm:$0xff] %v296
            %v298 = vld [vmem:[%s294 + $0x8] sm:$0xff]
            %299 = vst [vmem:[%s295 + $0x8] sm:$0xff] %v298
            %v300 = vld [vmem:[%s294 + $0x10] sm:$0xff]
            %301 = vst [vmem:[%s295 + $0x10] sm:$0xff] %v300
            %v302 = vld [vmem:[%s294 + $0x18] sm:$0xff]
            %303 = vst [vmem:[%s295 + $0x18] sm:$0xff] %v302
            %v304 = vld [vmem:[%s294 + $0x20] sm:$0xff]
            %305 = vst [vmem:[%s295 + $0x20] sm:$0xff] %v304
            %v306 = vld [vmem:[%s294 + $0x28] sm:$0xff]
            %307 = vst [vmem:[%s295 + $0x28] sm:$0xff] %v306
            %v308 = vld [vmem:[%s294 + $0x30] sm:$0xff]
            %309 = vst [vmem:[%s295 + $0x30] sm:$0xff] %v308
            %v310 = vld [vmem:[%s294 + $0x38] sm:$0xff]
            %311 = vst [vmem:[%s295 + $0x38] sm:$0xff] %v310
            %v312 = vld [vmem:[%s294 + $0x40] sm:$0xff]
            %313 = vst [vmem:[%s295 + $0x40] sm:$0xff] %v312
            %v314 = vld [vmem:[%s294 + $0x48] sm:$0xff]
            %315 = vst [vmem:[%s295 + $0x48] sm:$0xff] %v314
            %v316 = vld [vmem:[%s294 + $0x50] sm:$0xff]
            %317 = vst [vmem:[%s295 + $0x50] sm:$0xff] %v316
            %v318 = vld [vmem:[%s294 + $0x58] sm:$0xff]
            %319 = vst [vmem:[%s295 + $0x58] sm:$0xff] %v318
          $region63: #{reverse.5} parent=57 // loop_footer
            %s293 = sadd.s32 1, %s289
          $region64: #{reverse.5} parent=57 // loop_footer_branch
            %288 = sbr.rel target = $region60
          $region65: #{reverse.5} parent=57 // loop_exit
            _
        $region58: #{reverse.5} parent=42 // pred_fallthru
          _
        // Predicated region
        $region66: #{reverse.5} parent=42 // pred_check
          _
        $region67: #{reverse.5} parent=42 // pred_check_branch
          %321 = sbr.rel target = $region69
        $region68: #{reverse.5} parent=42 // pred_region
          _
        $region69: #{reverse.5} parent=42 // pred_fallthru
          _
      $region43: #{reverse.5} parent=38 // pred_fallthru
        _
      // Predicated region
      $region44: #{reverse.5} parent=38 // pred_check
        _
      $region45: #{reverse.5} parent=38 // pred_check_branch
        %251 = sbr.rel target = $region47
      $region46: #{reverse.5} parent=38 // pred_region
        %s253 = ssub.s32 256, 1
        loop: start=0, step=1, limit=1
        $region48: #{reverse.5} parent=46 // loop_pre_header
          _
        $region49: #{reverse.5} parent=46 // loop_header
          %s255 = sphi 0, %s259
          %p256 = scmp.ge.s32.totalorder %s255, 1
          %s260 = sphi [#allocation1], [#allocation1]
          %s261 = sphi %s1, %s1
        $region50: #{reverse.5} parent=46 // loop_header_branch
          %258 = sbr.rel (%p256) target = $region54
        $region51: #{reverse.5} parent=46 // loop_body
          %v262 = vld [vmem:[%s260] sm:%s253]
          %263 = vst [vmem:[%s261] sm:%s253] %v262
          %v264 = vld [vmem:[%s260 + $0x8] sm:%s253]
          %265 = vst [vmem:[%s261 + $0x8] sm:%s253] %v264
          %v266 = vld [vmem:[%s260 + $0x10] sm:%s253]
          %267 = vst [vmem:[%s261 + $0x10] sm:%s253] %v266
          %v268 = vld [vmem:[%s260 + $0x18] sm:%s253]
          %269 = vst [vmem:[%s261 + $0x18] sm:%s253] %v268
          %v270 = vld [vmem:[%s260 + $0x20] sm:%s253]
          %271 = vst [vmem:[%s261 + $0x20] sm:%s253] %v270
          %v272 = vld [vmem:[%s260 + $0x28] sm:%s253]
          %273 = vst [vmem:[%s261 + $0x28] sm:%s253] %v272
          %v274 = vld [vmem:[%s260 + $0x30] sm:%s253]
          %275 = vst [vmem:[%s261 + $0x30] sm:%s253] %v274
          %v276 = vld [vmem:[%s260 + $0x38] sm:%s253]
          %277 = vst [vmem:[%s261 + $0x38] sm:%s253] %v276
          %v278 = vld [vmem:[%s260 + $0x40] sm:%s253]
          %279 = vst [vmem:[%s261 + $0x40] sm:%s253] %v278
          %v280 = vld [vmem:[%s260 + $0x48] sm:%s253]
          %281 = vst [vmem:[%s261 + $0x48] sm:%s253] %v280
          %v282 = vld [vmem:[%s260 + $0x50] sm:%s253]
          %283 = vst [vmem:[%s261 + $0x50] sm:%s253] %v282
          %v284 = vld [vmem:[%s260 + $0x58] sm:%s253]
          %285 = vst [vmem:[%s261 + $0x58] sm:%s253] %v284
        $region52: #{reverse.5} parent=46 // loop_footer
          %s259 = sadd.s32 1, %s255
        $region53: #{reverse.5} parent=46 // loop_footer_branch
          %254 = sbr.rel target = $region49
        $region54: #{reverse.5} parent=46 // loop_exit
          _
      $region47: #{reverse.5} parent=38 // pred_fallthru
        _
    $region39: #{reverse.5} parent=1 // pred_fallthru
      _
    %322 = vnop

// kernel: ffc_resnet_block_forward.11
$region0: #{ffc_resnet_block_forward.11}
  #allocation0 [shape = 'u32[]', space=smem, size = 0x4, offset = 0x4, fixed_abs, tag = 'smem constant byte address 0x4 - core index']
  #allocation1 [shape = 'u32[144,128]{1,0:T(1,128)}', space=vmem, size = 0x12000, scoped, tag = 'internal scratch']
  %s0 = inlined_call_operand.vmem [shape: f32[2,256,6], index: 0, kind: input, shape index: {}]
  %s1 = inlined_call_operand.vmem [shape: bf16[6,12], index: 1, kind: input, shape index: {}]
  %s2 = inlined_call_operand.vmem [shape: f32[1,12], index: 2, kind: input, shape index: {}]
  %s3 = inlined_call_operand.vmem [shape: f32[2,256,6], index: 3, kind: input, shape index: {}]
  %s4 = inlined_call_operand.vmem [shape: f32[2,256,12], index: 4, kind: input, shape index: {}]
  %s5 = inlined_call_operand.vmem [shape: f32[2,256,12], index: 5, kind: output, shape index: {}]
  %s6 = sld [smem:[#allocation0]]
  $region53: #{ffc_resnet_block_forward.11} parent=0
    _
  %s8 = ssub.s32 1, %s6
  %s9 = scalar_select 0, %s8, %s6
  loop: start=0, step=1, limit=6
  $region2: #{ffc_resnet_block_forward.11} parent=0 // loop_pre_header
    _
  $region3: #{ffc_resnet_block_forward.11} parent=0 // loop_header
    %s11 = sphi 0, %s15
    %p12 = scmp.ge.s32.totalorder %s11, 6
    %s18 = sphi 0, %s30
    %s19 = sphi 0, %s26
    %s20 = sphi 0, %s18
    %s21 = sphi 0, %s19
    %s22 = sphi 0, %s20
    %s23 = sphi 0, %s21
    %s35 = sphi 0, %s37
    %s38 = sphi 0, %s35
    %s39 = sphi 0, %s38
    %s55 = sphi 0, %s39
    %s59 = sphi 0, %s59
    %s61 = sphi 0, %s59
    %s62 = sphi 0, %s61
    %s76 = sphi 0, %s62
    %s80 = sphi 0, %s80
    %s82 = sphi 0, %s80
    %s83 = sphi 0, %s82
    %s97 = sphi 0, %s83
    %s105 = sphi 0, %s107
    %s108 = sphi 0, %s105
    %s109 = sphi 0, %s108
    %s125 = sphi 0, %s109
    %s133 = sphi 0, %s135
    %s136 = sphi 0, %s133
    %s137 = sphi 0, %s136
    %s153 = sphi 0, %s137
    %s161 = sphi 0, %s163
    %s164 = sphi 0, %s161
    %s165 = sphi 0, %s164
    %s181 = sphi 0, %s165
  $region4: #{ffc_resnet_block_forward.11} parent=0 // loop_header_branch
    %14 = sbr.rel (%p12) target = $region8
  $region5: #{ffc_resnet_block_forward.11} parent=0 // loop_body
    %s16 = ssub.s32 %s11, 1
    %s17 = ssub.s32 %s11, 2
    %s24 = sadd.s32 1, %s19
    %p25 = scmp.ge.s32.totalorder %s24, 2
    %s26 = scalar_select %p25, 0, %s24
    %s27 = sadd.s32 1, %s18
    %s28 = scalar_select %p25, %s27, %s18
    %p29 = scmp.ge.s32.totalorder %s28, 2
    %s30 = scalar_select %p29, 0, %s28
    %s31 = ssub.s32 %s18, %s30
    %s32 = ssub.s32 %s19, %s26
    %s33 = sor.u32 %s31, %s32
    %p34 = scmp.eq.s32.totalorder %s33, 0
    %s36 = sadd.s32 %s35, 1
    %s37 = scalar_select %p34, %s35, %s36
    %p40 = pneg %p34
    %p41 = scmp.eq.s32.totalorder %s11, 3
    %p42 = por %p40, %p41
    %p43 = scmp.ne.s32.totalorder %s35, %s38
    %p44 = scmp.eq.s32.totalorder %s11, 0
    %p45 = por %p43, %p44
    %p46 = scmp.ne.s32.totalorder %s35, %s38
    %p47 = scmp.eq.s32.totalorder %s16, 3
    %p48 = por %p46, %p47
    %p49 = scmp.ne.s32.totalorder %s38, %s39
    %p50 = scmp.eq.s32.totalorder %s16, 0
    %p51 = por %p49, %p50
    %p52 = scmp.ne.s32.totalorder %s38, %s39
    %p53 = scmp.eq.s32.totalorder %s17, 3
    %p54 = por %p52, %p53
    %p56 = scmp.ne.s32.totalorder %s39, %s55
    %p57 = scmp.eq.s32.totalorder %s17, 0
    %p58 = por %p56, %p57
    %s60 = sadd.s32 %s59, 1
    %p63 = scmp.eq.s32.totalorder %s11, 3
    %p64 = scmp.ne.s32.totalorder %s59, %s61
    %p65 = scmp.eq.s32.totalorder %s11, 0
    %p66 = por %p64, %p65
    %p67 = scmp.ne.s32.totalorder %s59, %s61
    %p68 = scmp.eq.s32.totalorder %s16, 3
    %p69 = por %p67, %p68
    %p70 = scmp.ne.s32.totalorder %s61, %s62
    %p71 = scmp.eq.s32.totalorder %s16, 0
    %p72 = por %p70, %p71
    %p73 = scmp.ne.s32.totalorder %s61, %s62
    %p74 = scmp.eq.s32.totalorder %s17, 3
    %p75 = por %p73, %p74
    %p77 = scmp.ne.s32.totalorder %s62, %s76
    %p78 = scmp.eq.s32.totalorder %s17, 0
    %p79 = por %p77, %p78
    %s81 = sadd.s32 %s80, 1
    %p84 = scmp.eq.s32.totalorder %s11, 3
    %p85 = scmp.ne.s32.totalorder %s80, %s82
    %p86 = scmp.eq.s32.totalorder %s11, 0
    %p87 = por %p85, %p86
    %p88 = scmp.ne.s32.totalorder %s80, %s82
    %p89 = scmp.eq.s32.totalorder %s16, 3
    %p90 = por %p88, %p89
    %p91 = scmp.ne.s32.totalorder %s82, %s83
    %p92 = scmp.eq.s32.totalorder %s16, 0
    %p93 = por %p91, %p92
    %p94 = scmp.ne.s32.totalorder %s82, %s83
    %p95 = scmp.eq.s32.totalorder %s17, 3
    %p96 = por %p94, %p95
    %p98 = scmp.ne.s32.totalorder %s83, %s97
    %p99 = scmp.eq.s32.totalorder %s17, 0
    %p100 = por %p98, %p99
    %s101 = ssub.s32 %s18, %s30
    %s102 = ssub.s32 %s19, %s26
    %s103 = sor.u32 %s101, %s102
    %p104 = scmp.eq.s32.totalorder %s103, 0
    %s106 = sadd.s32 %s105, 1
    %s107 = scalar_select %p104, %s105, %s106
    %p110 = pneg %p104
    %p111 = scmp.eq.s32.totalorder %s11, 3
    %p112 = por %p110, %p111
    %p113 = scmp.ne.s32.totalorder %s105, %s108
    %p114 = scmp.eq.s32.totalorder %s11, 0
    %p115 = por %p113, %p114
    %p116 = scmp.ne.s32.totalorder %s105, %s108
    %p117 = scmp.eq.s32.totalorder %s16, 3
    %p118 = por %p116, %p117
    %p119 = scmp.ne.s32.totalorder %s108, %s109
    %p120 = scmp.eq.s32.totalorder %s16, 0
    %p121 = por %p119, %p120
    %p122 = scmp.ne.s32.totalorder %s108, %s109
    %p123 = scmp.eq.s32.totalorder %s17, 3
    %p124 = por %p122, %p123
    %p126 = scmp.ne.s32.totalorder %s109, %s125
    %p127 = scmp.eq.s32.totalorder %s17, 0
    %p128 = por %p126, %p127
    %s129 = ssub.s32 %s18, %s30
    %s130 = ssub.s32 %s19, %s26
    %s131 = sor.u32 %s129, %s130
    %p132 = scmp.eq.s32.totalorder %s131, 0
    %s134 = sadd.s32 %s133, 1
    %s135 = scalar_select %p132, %s133, %s134
    %p138 = pneg %p132
    %p139 = scmp.eq.s32.totalorder %s11, 3
    %p140 = por %p138, %p139
    %p141 = scmp.ne.s32.totalorder %s133, %s136
    %p142 = scmp.eq.s32.totalorder %s11, 0
    %p143 = por %p141, %p142
    %p144 = scmp.ne.s32.totalorder %s133, %s136
    %p145 = scmp.eq.s32.totalorder %s16, 3
    %p146 = por %p144, %p145
    %p147 = scmp.ne.s32.totalorder %s136, %s137
    %p148 = scmp.eq.s32.totalorder %s16, 0
    %p149 = por %p147, %p148
    %p150 = scmp.ne.s32.totalorder %s136, %s137
    %p151 = scmp.eq.s32.totalorder %s17, 3
    %p152 = por %p150, %p151
    %p154 = scmp.ne.s32.totalorder %s137, %s153
    %p155 = scmp.eq.s32.totalorder %s17, 0
    %p156 = por %p154, %p155
    %s157 = ssub.s32 %s18, %s30
    %s158 = ssub.s32 %s19, %s26
    %s159 = sor.u32 %s157, %s158
    %p160 = scmp.eq.s32.totalorder %s159, 0
    %s162 = sadd.s32 %s161, 1
    %s163 = scalar_select %p160, %s161, %s162
    %p166 = pneg %p160
    %p167 = scmp.eq.s32.totalorder %s11, 3
    %p168 = por %p166, %p167
    %p169 = scmp.ne.s32.totalorder %s161, %s164
    %p170 = scmp.eq.s32.totalorder %s11, 0
    %p171 = por %p169, %p170
    %p172 = scmp.ne.s32.totalorder %s161, %s164
    %p173 = scmp.eq.s32.totalorder %s16, 3
    %p174 = por %p172, %p173
    %p175 = scmp.ne.s32.totalorder %s164, %s165
    %p176 = scmp.eq.s32.totalorder %s16, 0
    %p177 = por %p175, %p176
    %p178 = scmp.ne.s32.totalorder %s164, %s165
    %p179 = scmp.eq.s32.totalorder %s17, 3
    %p180 = por %p178, %p179
    %p182 = scmp.ne.s32.totalorder %s165, %s181
    %p183 = scmp.eq.s32.totalorder %s17, 0
    %p184 = por %p182, %p183
    %p185 = scmp.le.s32.totalorder 1, %s11
    %p186 = scmp.lt.s32.totalorder %s11, 5
    %p187 = pnand %p185, %p186
    %p188 = pneg %p187
    // Predicated region
    $region9: #{ffc_resnet_block_forward.11} parent=5 // pred_check
      _
    $region10: #{ffc_resnet_block_forward.11} parent=5 // pred_check_branch
      %190 = sbr.rel (%p187) target = $region12
    $region11: #{ffc_resnet_block_forward.11} parent=5 // pred_region
      %s191 = ssub.s32 %s11, 1
      // Predicated region
      $region13: #{ffc_resnet_block_forward.11} parent=11 // pred_check
        %p192 = pneg %p72
      $region14: #{ffc_resnet_block_forward.11} parent=11 // pred_check_branch
        %194 = sbr.rel (%p192) target = $region16
      $region15: #{ffc_resnet_block_forward.11} parent=11 // pred_region
        _
      $region16: #{ffc_resnet_block_forward.11} parent=11 // pred_fallthru
        _
      // Predicated region
      $region17: #{ffc_resnet_block_forward.11} parent=11 // pred_check
        %p195 = pneg %p93
      $region18: #{ffc_resnet_block_forward.11} parent=11 // pred_check_branch
        %197 = sbr.rel (%p195) target = $region20
      $region19: #{ffc_resnet_block_forward.11} parent=11 // pred_region
        _
      $region20: #{ffc_resnet_block_forward.11} parent=11 // pred_fallthru
        _
    $region12: #{ffc_resnet_block_forward.11} parent=5 // pred_fallthru
      _
    %p198 = scmp.lt.s32.totalorder %s11, 4
    // Predicated region
    $region21: #{ffc_resnet_block_forward.11} parent=5 // pred_check
      %p199 = pneg %p198
    $region22: #{ffc_resnet_block_forward.11} parent=5 // pred_check_branch
      %201 = sbr.rel (%p199) target = $region24
    $region23: #{ffc_resnet_block_forward.11} parent=5 // pred_region
      // Predicated region
      $region25: #{ffc_resnet_block_forward.11} parent=23 // pred_check
        %p202 = pneg %p45
      $region26: #{ffc_resnet_block_forward.11} parent=23 // pred_check_branch
        %204 = sbr.rel (%p202) target = $region28
      $region27: #{ffc_resnet_block_forward.11} parent=23 // pred_region
        %s205 = smul.u32 16, %s19
        %p206 = scmp.lt.s32.totalorder %s18, 1
        %s207 = scalar_select %p206, %s18, 1
        %p208 = scmp.lt.s32.totalorder %s205, 31
        %s209 = scalar_select %p208, %s205, 31
        %s210 = smul.addr %s207, 32
        %s211 = sadd.s32 %s209, %s210
        %s212 = smul.addr %s211, 8
        %s213 = scalar_lea.vmem %s0, %s212
        %s214 = smul.u32 16, %s19
      $region28: #{ffc_resnet_block_forward.11} parent=23 // pred_fallthru
        _
      // Predicated region
      $region29: #{ffc_resnet_block_forward.11} parent=23 // pred_check
        %p215 = pneg %p115
      $region30: #{ffc_resnet_block_forward.11} parent=23 // pred_check_branch
        %217 = sbr.rel (%p215) target = $region32
      $region31: #{ffc_resnet_block_forward.11} parent=23 // pred_region
        %s218 = smul.u32 16, %s19
        %p219 = scmp.lt.s32.totalorder %s18, 1
        %s220 = scalar_select %p219, %s18, 1
        %p221 = scmp.lt.s32.totalorder %s218, 31
        %s222 = scalar_select %p221, %s218, 31
        %s223 = smul.addr %s220, 32
        %s224 = sadd.s32 %s222, %s223
        %s225 = smul.addr %s224, 8
        %s226 = scalar_lea.vmem %s3, %s225
        %s227 = smul.u32 16, %s19
      $region32: #{ffc_resnet_block_forward.11} parent=23 // pred_fallthru
        _
      // Predicated region
      $region33: #{ffc_resnet_block_forward.11} parent=23 // pred_check
        %p228 = pneg %p143
      $region34: #{ffc_resnet_block_forward.11} parent=23 // pred_check_branch
        %230 = sbr.rel (%p228) target = $region36
      $region35: #{ffc_resnet_block_forward.11} parent=23 // pred_region
        %s231 = smul.u32 16, %s19
        %p232 = scmp.lt.s32.totalorder %s18, 1
        %s233 = scalar_select %p232, %s18, 1
        %p234 = scmp.lt.s32.totalorder %s231, 31
        %s235 = scalar_select %p234, %s231, 31
        %s236 = smul.addr %s233, 32
        %s237 = sadd.s32 %s235, %s236
        %s238 = smul.addr %s237, 8
        %s239 = scalar_lea.vmem %s4, %s238
        %s240 = smul.u32 16, %s19
      $region36: #{ffc_resnet_block_forward.11} parent=23 // pred_fallthru
        _
    $region24: #{ffc_resnet_block_forward.11} parent=5 // pred_fallthru
      _
    %p241 = scmp.le.s32.totalorder 1, %s11
    %p242 = scmp.lt.s32.totalorder %s11, 5
    %p243 = pnand %p241, %p242
    %p244 = pneg %p243
    // Predicated region
    $region37: #{ffc_resnet_block_forward.11} parent=5 // pred_check
      _
    $region38: #{ffc_resnet_block_forward.11} parent=5 // pred_check_branch
      %246 = sbr.rel (%p243) target = $region40
    $region39: #{ffc_resnet_block_forward.11} parent=5 // pred_region
      %s247 = ssub.s32 %s11, 1
      %s248 = smul.u32 16, %s21
      %p249 = scmp.lt.s32.totalorder %s20, 1
      %s250 = scalar_select %p249, %s20, 1
      %p251 = scmp.lt.s32.totalorder %s248, 31
      %s252 = scalar_select %p251, %s248, 31
      %s253 = smul.addr %s250, 32
      %s254 = sadd.s32 %s252, %s253
      %s255 = smul.addr %s254, 8
      %s256 = scalar_lea.vmem %s0, %s255
      %p257 = pneg %p51
      %p258 = pneg %p48
      %p259 = pneg %p72
      %p260 = pneg %p69
      %p261 = pneg %p93
      %p262 = pneg %p90
      %s263 = smul.u32 16, %s21
      %p264 = scmp.lt.s32.totalorder %s20, 1
      %s265 = scalar_select %p264, %s20, 1
      %p266 = scmp.lt.s32.totalorder %s263, 31
      %s267 = scalar_select %p266, %s263, 31
      %s268 = smul.addr %s265, 32
      %s269 = sadd.s32 %s267, %s268
      %s270 = smul.addr %s269, 8
      %s271 = scalar_lea.vmem %s3, %s270
      %p272 = pneg %p121
      %p273 = pneg %p118
      %s274 = smul.u32 16, %s21
      %p275 = scmp.lt.s32.totalorder %s20, 1
      %s276 = scalar_select %p275, %s20, 1
      %p277 = scmp.lt.s32.totalorder %s274, 31
      %s278 = scalar_select %p277, %s274, 31
      %s279 = smul.addr %s276, 32
      %s280 = sadd.s32 %s278, %s279
      %s281 = smul.addr %s280, 8
      %s282 = scalar_lea.vmem %s4, %s281
      %p283 = pneg %p149
      %p284 = pneg %p146
      %p285 = pneg %p177
      %p286 = pneg %p174
      %s287 = smul.u32 16, %s21
      %p288 = scmp.lt.s32.totalorder %s20, 1
      %s289 = scalar_select %p288, %s20, 1
      %p290 = scmp.lt.s32.totalorder %s287, 31
      %s291 = scalar_select %p290, %s287, 31
      %s292 = smul.addr %s289, 32
      %s293 = sadd.s32 %s291, %s292
      %s294 = smul.addr %s293, 8
      %s295 = scalar_lea.vmem %s5, %s294
      %s296 = smul.u32 16, %s21
      %p297 = scmp.lt.s32.totalorder %s20, 1
      %s298 = scalar_select %p297, %s20, 1
      %p299 = scmp.lt.s32.totalorder %s296, 31
      %s300 = scalar_select %p299, %s296, 31
      %s301 = smul.addr %s298, 32
      %s302 = sadd.s32 %s300, %s301
      %s303 = smul.addr %s302, 8
      %s304 = scalar_lea.vmem %s0, %s303
      %s305 = smul.u32 16, %s21
      %s306 = smul.u32 16, %s21
      %p307 = scmp.lt.s32.totalorder %s20, 1
      %s308 = scalar_select %p307, %s20, 1
      %p309 = scmp.lt.s32.totalorder %s306, 31
      %s310 = scalar_select %p309, %s306, 31
      %s311 = smul.addr %s308, 32
      %s312 = sadd.s32 %s310, %s311
      %s313 = smul.addr %s312, 8
      %s314 = scalar_lea.vmem %s3, %s313
      %s315 = smul.u32 16, %s21
      %s316 = smul.u32 16, %s21
      %p317 = scmp.lt.s32.totalorder %s20, 1
      %s318 = scalar_select %p317, %s20, 1
      %p319 = scmp.lt.s32.totalorder %s316, 31
      %s320 = scalar_select %p319, %s316, 31
      %s321 = smul.addr %s318, 32
      %s322 = sadd.s32 %s320, %s321
      %s323 = smul.addr %s322, 8
      %s324 = scalar_lea.vmem %s4, %s323
      %s325 = smul.u32 16, %s21
      %s326 = smul.u32 16, %s21
      %p327 = scmp.lt.s32.totalorder %s20, 1
      %s328 = scalar_select %p327, %s20, 1
      %p329 = scmp.lt.s32.totalorder %s326, 31
      %s330 = scalar_select %p329, %s326, 31
      %s331 = smul.addr %s328, 32
      %s332 = sadd.s32 %s330, %s331
      %s333 = smul.addr %s332, 8
      %s334 = scalar_lea.vmem %s5, %s333
      %s335 = smul.u32 16, %s21
      %v337 = vld [vmem:[%s304] sm:$0xff]
      %v338 = vld [vmem:[%s304 + $0x8] sm:$0xff]
      %v339 = vld [vmem:[%s304 + $0x10] sm:$0xff]
      %v340 = vld [vmem:[%s304 + $0x18] sm:$0xff]
      %v341 = vld [vmem:[%s304 + $0x20] sm:$0xff]
      %v342 = vld [vmem:[%s304 + $0x28] sm:$0xff]
      %v343 = vld [vmem:[%s304 + $0x30] sm:$0xff]
      %v344 = vld [vmem:[%s304 + $0x38] sm:$0xff]
      %v345 = vld [vmem:[%s304 + $0x40] sm:$0xff]
      %v346 = vld [vmem:[%s304 + $0x48] sm:$0xff]
      %v347 = vld [vmem:[%s304 + $0x50] sm:$0xff]
      %v348 = vld [vmem:[%s304 + $0x58] sm:$0xff]
      %v349 = vld [vmem:[%s304 + $0x60] sm:$0xff]
      %v350 = vld [vmem:[%s304 + $0x68] sm:$0xff]
      %v351 = vld [vmem:[%s304 + $0x70] sm:$0xff]
      %v352 = vld [vmem:[%s304 + $0x78] sm:$0xff]
      %v353 = vld [vmem:[%s314] sm:$0xff]
      %v354 = vld [vmem:[%s314 + $0x8] sm:$0xff]
      %v355 = vld [vmem:[%s314 + $0x10] sm:$0xff]
      %v356 = vld [vmem:[%s314 + $0x18] sm:$0xff]
      %v357 = vld [vmem:[%s314 + $0x20] sm:$0xff]
      %v358 = vld [vmem:[%s314 + $0x28] sm:$0xff]
      %v359 = vld [vmem:[%s314 + $0x30] sm:$0xff]
      %v360 = vld [vmem:[%s314 + $0x38] sm:$0xff]
      %v361 = vld [vmem:[%s314 + $0x40] sm:$0xff]
      %v362 = vld [vmem:[%s314 + $0x48] sm:$0xff]
      %v363 = vld [vmem:[%s314 + $0x50] sm:$0xff]
      %v364 = vld [vmem:[%s314 + $0x58] sm:$0xff]
      %v365 = vld [vmem:[%s314 + $0x60] sm:$0xff]
      %v366 = vld [vmem:[%s314 + $0x68] sm:$0xff]
      %v367 = vld [vmem:[%s314 + $0x70] sm:$0xff]
      %v368 = vld [vmem:[%s314 + $0x78] sm:$0xff]
      %v369 = vadd.f32 %v337, %v353
      %v370 = vadd.f32 %v338, %v354
      %v371 = vadd.f32 %v339, %v355
      %v372 = vadd.f32 %v340, %v356
      %v373 = vadd.f32 %v341, %v357
      %v374 = vadd.f32 %v342, %v358
      %v375 = vadd.f32 %v343, %v359
      %v376 = vadd.f32 %v344, %v360
      %v377 = vadd.f32 %v345, %v361
      %v378 = vadd.f32 %v346, %v362
      %v379 = vadd.f32 %v347, %v363
      %v380 = vadd.f32 %v348, %v364
      %v381 = vadd.f32 %v349, %v365
      %v382 = vadd.f32 %v350, %v366
      %v383 = vadd.f32 %v351, %v367
      %v384 = vadd.f32 %v352, %v368
      %v385 = vpack.c.bf16 %v370, %v369
      %v386 = vpack.c.bf16 %v372, %v371
      %v387 = vpack.c.bf16 %v374, %v373
      %v388 = vpack.c.bf16 %v376, %v375
      %v389 = vpack.c.bf16 %v378, %v377
      %v390 = vpack.c.bf16 %v380, %v379
      %v391 = vpack.c.bf16 %v382, %v381
      %v392 = vpack.c.bf16 %v384, %v383
      %v393 = vld [vmem:[%s1] sm:$0x7]
      %v394 = vld [vmem:[%s2] sm:$0x1]
      %v396 = vlaneseq
      %v397 = vshrl.u32 %v396, 7
      %v398 = vsub.s32 0, %v397
      %v399 = vrot.slane %v394, %v398
      %vm401 = vcmask 48128
      %v403 = vsel %vm401, %v385, 0
      %v406 = vsel %vm401, %v386, 0
      %v409 = vsel %vm401, %v387, 0
      %v412 = vsel %vm401, %v388, 0
      %v415 = vsel %vm401, %v389, 0
      %v418 = vsel %vm401, %v390, 0
      %v421 = vsel %vm401, %v391, 0
      %v424 = vsel %vm401, %v392, 0
      %vm426 = vcmask 1042432
      %v428 = vsel %vm426, %v393, 0
      %430 = vmatprep.subr.bf16.mxu0 0
      %431 = vmatpush1.bf16.msra.mxu0 0
      %432 = vmatprep.subr.bf16.mxu0 0
      %433 = vmatpush1.bf16.msra.mxu0 0
      %434 = vmatprep.subr.bf16.mxu0 0
      %435 = vmatpush1.bf16.msra.mxu0 0
      %436 = vmatprep.subr.bf16.mxu0 0
      %437 = vmatpush1.bf16.msra.mxu0 0
      %438 = vmatprep.subr.bf16.mxu0 0
      %439 = vmatpush1.bf16.msra.mxu0 0
      %440 = vmatprep.subr.bf16.mxu0 0
      %441 = vmatpush1.bf16.msra.mxu0 0
      %442 = vmatprep.subr.bf16.mxu0 0
      %443 = vmatpush1.bf16.msra.mxu0 0
      %444 = vmatprep.subr.bf16.mxu0 0
      %445 = vmatpush1.bf16.msra.mxu0 %v428
      %446 = vmatprep.subr.bf16.mxu0 0
      %447 = vmatpush2.bf16.msra.mxu0 0
      %448 = vmatprep.subr.bf16.mxu0 0
      %449 = vmatpush2.bf16.msra.mxu0 0
      %450 = vmatprep.subr.bf16.mxu0 0
      %451 = vmatpush2.bf16.msra.mxu0 0
      %452 = vmatprep.subr.bf16.mxu0 0
      %453 = vmatpush2.bf16.msra.mxu0 0
      %454 = vmatprep.subr.bf16.mxu0 0
      %455 = vmatpush2.bf16.msra.mxu0 0
      %456 = vmatprep.subr.bf16.mxu0 0
      %457 = vmatpush2.bf16.msra.mxu0 0
      %458 = vmatprep.subr.bf16.mxu0 0
      %459 = vmatpush2.bf16.msra.mxu0 0
      %460 = vmatprep.subr.bf16.mxu0 0
      %461 = vmatpush2.bf16.msra.mxu0 0
      %462 = vmatprep.mubr.bf16.mxu0 0
      %463 = vmatmul.mubr.bf16.gmra.mxu0 %v403
      %v464 = vpop.f32.mrf.mxu0
      %v465 = vadd.f32 %v399, %v464
      %v466 = vpop.f32.mrf.mxu0
      %v467 = vpop.f32.mrf.mxu0
      %v468 = vadd.f32 %v399, %v467
      %v469 = vpop.f32.mrf.mxu0
      %470 = vmatprep.mubr.bf16.mxu0 0
      %471 = vmatmul.mubr.bf16.gmra.mxu0 %v406
      %v472 = vpop.f32.mrf.mxu0
      %v473 = vadd.f32 %v399, %v472
      %v474 = vpop.f32.mrf.mxu0
      %v475 = vpop.f32.mrf.mxu0
      %v476 = vadd.f32 %v399, %v475
      %v477 = vpop.f32.mrf.mxu0
      %478 = vmatprep.mubr.bf16.mxu0 0
      %479 = vmatmul.mubr.bf16.gmra.mxu0 %v409
      %v480 = vpop.f32.mrf.mxu0
      %v481 = vadd.f32 %v399, %v480
      %v482 = vpop.f32.mrf.mxu0
      %v483 = vpop.f32.mrf.mxu0
      %v484 = vadd.f32 %v399, %v483
      %v485 = vpop.f32.mrf.mxu0
      %486 = vmatprep.mubr.bf16.mxu0 0
      %487 = vmatmul.mubr.bf16.gmra.mxu0 %v412
      %v488 = vpop.f32.mrf.mxu0
      %v489 = vadd.f32 %v399, %v488
      %v490 = vpop.f32.mrf.mxu0
      %v491 = vpop.f32.mrf.mxu0
      %v492 = vadd.f32 %v399, %v491
      %v493 = vpop.f32.mrf.mxu0
      %494 = vmatprep.mubr.bf16.mxu0 0
      %495 = vmatmul.mubr.bf16.gmra.mxu0 %v415
      %v496 = vpop.f32.mrf.mxu0
      %v497 = vadd.f32 %v399, %v496
      %v498 = vpop.f32.mrf.mxu0
      %v499 = vpop.f32.mrf.mxu0
      %v500 = vadd.f32 %v399, %v499
      %v501 = vpop.f32.mrf.mxu0
      %502 = vmatprep.mubr.bf16.mxu0 0
      %503 = vmatmul.mubr.bf16.gmra.mxu0 %v418
      %v504 = vpop.f32.mrf.mxu0
      %v505 = vadd.f32 %v399, %v504
      %v506 = vpop.f32.mrf.mxu0
      %v507 = vpop.f32.mrf.mxu0
      %v508 = vadd.f32 %v399, %v507
      %v509 = vpop.f32.mrf.mxu0
      %510 = vmatprep.mubr.bf16.mxu0 0
      %511 = vmatmul.mubr.bf16.gmra.mxu0 %v421
      %v512 = vpop.f32.mrf.mxu0
      %v513 = vadd.f32 %v399, %v512
      %v514 = vpop.f32.mrf.mxu0
      %v515 = vpop.f32.mrf.mxu0
      %v516 = vadd.f32 %v399, %v515
      %v517 = vpop.f32.mrf.mxu0
      %518 = vmatprep.mubr.bf16.mxu0 0
      %519 = vmatmul.mubr.bf16.gmra.mxu0 %v424
      %v520 = vpop.f32.mrf.mxu0
      %v521 = vadd.f32 %v399, %v520
      %v522 = vpop.f32.mrf.mxu0
      %v523 = vpop.f32.mrf.mxu0
      %v524 = vadd.f32 %v399, %v523
      %v525 = vpop.f32.mrf.mxu0
      %526 = vdwg.mxu0
      %v527 = vld [vmem:[%s324] sm:$0xff]
      %v528 = vld [vmem:[%s324 + $0x8] sm:$0xff]
      %v529 = vld [vmem:[%s324 + $0x10] sm:$0xff]
      %v530 = vld [vmem:[%s324 + $0x18] sm:$0xff]
      %v531 = vld [vmem:[%s324 + $0x20] sm:$0xff]
      %v532 = vld [vmem:[%s324 + $0x28] sm:$0xff]
      %v533 = vld [vmem:[%s324 + $0x30] sm:$0xff]
      %v534 = vld [vmem:[%s324 + $0x38] sm:$0xff]
      %v535 = vld [vmem:[%s324 + $0x40] sm:$0xff]
      %v536 = vld [vmem:[%s324 + $0x48] sm:$0xff]
      %v537 = vld [vmem:[%s324 + $0x50] sm:$0xff]
      %v538 = vld [vmem:[%s324 + $0x58] sm:$0xff]
      %v539 = vld [vmem:[%s324 + $0x60] sm:$0xff]
      %v540 = vld [vmem:[%s324 + $0x68] sm:$0xff]
      %v541 = vld [vmem:[%s324 + $0x70] sm:$0xff]
      %v542 = vld [vmem:[%s324 + $0x78] sm:$0xff]
      %v543 = vadd.f32 %v465, %v527
      %v544 = vadd.f32 %v468, %v528
      %v545 = vadd.f32 %v473, %v529
      %v546 = vadd.f32 %v476, %v530
      %v547 = vadd.f32 %v481, %v531
      %v548 = vadd.f32 %v484, %v532
      %v549 = vadd.f32 %v489, %v533
      %v550 = vadd.f32 %v492, %v534
      %v551 = vadd.f32 %v497, %v535
      %v552 = vadd.f32 %v500, %v536
      %v553 = vadd.f32 %v505, %v537
      %v554 = vadd.f32 %v508, %v538
      %v555 = vadd.f32 %v513, %v539
      %v556 = vadd.f32 %v516, %v540
      %v557 = vadd.f32 %v521, %v541
      %v558 = vadd.f32 %v524, %v542
      %v559 = vmax.f32 %v543, 0.0
      %v560 = vmax.f32 %v544, 0.0
      %v561 = vmax.f32 %v545, 0.0
      %v562 = vmax.f32 %v546, 0.0
      %v563 = vmax.f32 %v547, 0.0
      %v564 = vmax.f32 %v548, 0.0
      %v565 = vmax.f32 %v549, 0.0
      %v566 = vmax.f32 %v550, 0.0
      %v567 = vmax.f32 %v551, 0.0
      %v568 = vmax.f32 %v552, 0.0
      %v569 = vmax.f32 %v553, 0.0
      %v570 = vmax.f32 %v554, 0.0
      %v571 = vmax.f32 %v555, 0.0
      %v572 = vmax.f32 %v556, 0.0
      %v573 = vmax.f32 %v557, 0.0
      %v574 = vmax.f32 %v558, 0.0
      %vm575 = vcmask 97280
      %576 = vst.msk [vmem:[%s334] sm:$0xff] %vm575, %v559
      %577 = vst.msk [vmem:[%s334 + $0x8] sm:$0xff] %vm575, %v560
      %578 = vst.msk [vmem:[%s334 + $0x10] sm:$0xff] %vm575, %v561
      %579 = vst.msk [vmem:[%s334 + $0x18] sm:$0xff] %vm575, %v562
      %580 = vst.msk [vmem:[%s334 + $0x20] sm:$0xff] %vm575, %v563
      %581 = vst.msk [vmem:[%s334 + $0x28] sm:$0xff] %vm575, %v564
      %582 = vst.msk [vmem:[%s334 + $0x30] sm:$0xff] %vm575, %v565
      %583 = vst.msk [vmem:[%s334 + $0x38] sm:$0xff] %vm575, %v566
      %584 = vst.msk [vmem:[%s334 + $0x40] sm:$0xff] %vm575, %v567
      %585 = vst.msk [vmem:[%s334 + $0x48] sm:$0xff] %vm575, %v568
      %586 = vst.msk [vmem:[%s334 + $0x50] sm:$0xff] %vm575, %v569
      %587 = vst.msk [vmem:[%s334 + $0x58] sm:$0xff] %vm575, %v570
      %588 = vst.msk [vmem:[%s334 + $0x60] sm:$0xff] %vm575, %v571
      %589 = vst.msk [vmem:[%s334 + $0x68] sm:$0xff] %vm575, %v572
      %590 = vst.msk [vmem:[%s334 + $0x70] sm:$0xff] %vm575, %v573
      %591 = vst.msk [vmem:[%s334 + $0x78] sm:$0xff] %vm575, %v574
      %s592 = smul.u32 16, %s21
      %p593 = scmp.lt.s32.totalorder %s20, 1
      %s594 = scalar_select %p593, %s20, 1
      %p595 = scmp.lt.s32.totalorder %s592, 31
      %s596 = scalar_select %p595, %s592, 31
      %s597 = smul.addr %s594, 32
      %s598 = sadd.s32 %s596, %s597
      %s599 = smul.addr %s598, 8
      %s600 = scalar_lea.vmem %s5, %s599
      // Predicated region
      $region41: #{ffc_resnet_block_forward.11} parent=39 // pred_check
        %p601 = pneg %p174
      $region42: #{ffc_resnet_block_forward.11} parent=39 // pred_check_branch
        %603 = sbr.rel (%p601) target = $region44
      $region43: #{ffc_resnet_block_forward.11} parent=39 // pred_region
        %s604 = smul.u32 16, %s21
      $region44: #{ffc_resnet_block_forward.11} parent=39 // pred_fallthru
        _
    $region40: #{ffc_resnet_block_forward.11} parent=5 // pred_fallthru
      _
    %p605 = scmp.le.s32.totalorder 2, %s11
    // Predicated region
    $region45: #{ffc_resnet_block_forward.11} parent=5 // pred_check
      %p606 = pneg %p605
    $region46: #{ffc_resnet_block_forward.11} parent=5 // pred_check_branch
      %608 = sbr.rel (%p606) target = $region48
    $region47: #{ffc_resnet_block_forward.11} parent=5 // pred_region
      %s609 = ssub.s32 %s11, 2
      // Predicated region
      $region49: #{ffc_resnet_block_forward.11} parent=47 // pred_check
        %p610 = pneg %p180
      $region50: #{ffc_resnet_block_forward.11} parent=47 // pred_check_branch
        %612 = sbr.rel (%p610) target = $region52
      $region51: #{ffc_resnet_block_forward.11} parent=47 // pred_region
        %s613 = smul.u32 16, %s23
        %p614 = scmp.lt.s32.totalorder %s22, 1
        %s615 = scalar_select %p614, %s22, 1
        %p616 = scmp.lt.s32.totalorder %s613, 31
        %s617 = scalar_select %p616, %s613, 31
        %s618 = smul.addr %s615, 32
        %s619 = sadd.s32 %s617, %s618
        %s620 = smul.addr %s619, 8
        %s621 = scalar_lea.vmem %s5, %s620
      $region52: #{ffc_resnet_block_forward.11} parent=47 // pred_fallthru
        _
    $region48: #{ffc_resnet_block_forward.11} parent=5 // pred_fallthru
      _
  $region6: #{ffc_resnet_block_forward.11} parent=0 // loop_footer
    %s15 = sadd.s32 1, %s11
  $region7: #{ffc_resnet_block_forward.11} parent=0 // loop_footer_branch
    %10 = sbr.rel target = $region3
  $region8: #{ffc_resnet_block_forward.11} parent=0 // loop_exit
    _

// kernel: ffc_resnet_block_forward.8
$region0: #{ffc_resnet_block_forward.8}
  #allocation0 [shape = 'u32[]', space=smem, size = 0x4, offset = 0x4, fixed_abs, tag = 'smem constant byte address 0x4 - core index']
  #allocation1 [shape = 'u32[144,128]{1,0:T(1,128)}', space=vmem, size = 0x12000, scoped, tag = 'internal scratch']
  %s0 = inlined_call_operand.vmem [shape: bf16[2,18,18,16], index: 0, kind: input, shape index: {}]
  %s1 = inlined_call_operand.vmem [shape: bf16[9,16,4], index: 1, kind: input, shape index: {}]
  %s2 = inlined_call_operand.vmem [shape: bf16[9,4,12], index: 2, kind: input, shape index: {}]
  %s3 = inlined_call_operand.vmem [shape: f32[1,4], index: 3, kind: input, shape index: {}]
  %s4 = inlined_call_operand.vmem [shape: f32[2,256,4], index: 4, kind: output, shape index: {0}]
  %s5 = inlined_call_operand.vmem [shape: f32[2,256,12], index: 5, kind: output, shape index: {1}]
  %6 = xla_tuple %s4, %s5
  %s7 = sld [smem:[#allocation0]]
  $region57: #{ffc_resnet_block_forward.8} parent=0
    _
  %s9 = ssub.s32 1, %s7
  %s10 = scalar_select 0, %s9, %s7
  loop: start=0, step=1, limit=6
  $region2: #{ffc_resnet_block_forward.8} parent=0 // loop_pre_header
    _
  $region3: #{ffc_resnet_block_forward.8} parent=0 // loop_header
    %s12 = sphi 0, %s16
    %p13 = scmp.ge.s32.totalorder %s12, 6
    %s19 = sphi 0, %s31
    %s20 = sphi 0, %s27
    %s21 = sphi 0, %s19
    %s22 = sphi 0, %s20
    %s23 = sphi 0, %s21
    %s24 = sphi 0, %s22
    %s34 = sphi 0, %s36
    %s37 = sphi 0, %s34
    %s38 = sphi 0, %s37
    %s54 = sphi 0, %s38
    %s58 = sphi 0, %s58
    %s60 = sphi 0, %s58
    %s61 = sphi 0, %s60
    %s75 = sphi 0, %s61
    %s79 = sphi 0, %s79
    %s81 = sphi 0, %s79
    %s82 = sphi 0, %s81
    %s96 = sphi 0, %s82
    %s100 = sphi 0, %s100
    %s102 = sphi 0, %s100
    %s103 = sphi 0, %s102
    %s117 = sphi 0, %s103
    %s125 = sphi 0, %s127
    %s128 = sphi 0, %s125
    %s129 = sphi 0, %s128
    %s145 = sphi 0, %s129
    %s153 = sphi 0, %s155
    %s156 = sphi 0, %s153
    %s157 = sphi 0, %s156
    %s173 = sphi 0, %s157
  $region4: #{ffc_resnet_block_forward.8} parent=0 // loop_header_branch
    %15 = sbr.rel (%p13) target = $region8
  $region5: #{ffc_resnet_block_forward.8} parent=0 // loop_body
    %s17 = ssub.s32 %s12, 1
    %s18 = ssub.s32 %s12, 2
    %s25 = sadd.s32 1, %s20
    %p26 = scmp.ge.s32.totalorder %s25, 2
    %s27 = scalar_select %p26, 0, %s25
    %s28 = sadd.s32 1, %s19
    %s29 = scalar_select %p26, %s28, %s19
    %p30 = scmp.ge.s32.totalorder %s29, 2
    %s31 = scalar_select %p30, 0, %s29
    %s32 = ssub.s32 %s19, %s31
    %p33 = scmp.eq.s32.totalorder %s32, 0
    %s35 = sadd.s32 %s34, 1
    %s36 = scalar_select %p33, %s34, %s35
    %p39 = pneg %p33
    %p40 = scmp.eq.s32.totalorder %s12, 3
    %p41 = por %p39, %p40
    %p42 = scmp.ne.s32.totalorder %s34, %s37
    %p43 = scmp.eq.s32.totalorder %s12, 0
    %p44 = por %p42, %p43
    %p45 = scmp.ne.s32.totalorder %s34, %s37
    %p46 = scmp.eq.s32.totalorder %s17, 3
    %p47 = por %p45, %p46
    %p48 = scmp.ne.s32.totalorder %s37, %s38
    %p49 = scmp.eq.s32.totalorder %s17, 0
    %p50 = por %p48, %p49
    %p51 = scmp.ne.s32.totalorder %s37, %s38
    %p52 = scmp.eq.s32.totalorder %s18, 3
    %p53 = por %p51, %p52
    %p55 = scmp.ne.s32.totalorder %s38, %s54
    %p56 = scmp.eq.s32.totalorder %s18, 0
    %p57 = por %p55, %p56
    %s59 = sadd.s32 %s58, 1
    %p62 = scmp.eq.s32.totalorder %s12, 3
    %p63 = scmp.ne.s32.totalorder %s58, %s60
    %p64 = scmp.eq.s32.totalorder %s12, 0
    %p65 = por %p63, %p64
    %p66 = scmp.ne.s32.totalorder %s58, %s60
    %p67 = scmp.eq.s32.totalorder %s17, 3
    %p68 = por %p66, %p67
    %p69 = scmp.ne.s32.totalorder %s60, %s61
    %p70 = scmp.eq.s32.totalorder %s17, 0
    %p71 = por %p69, %p70
    %p72 = scmp.ne.s32.totalorder %s60, %s61
    %p73 = scmp.eq.s32.totalorder %s18, 3
    %p74 = por %p72, %p73
    %p76 = scmp.ne.s32.totalorder %s61, %s75
    %p77 = scmp.eq.s32.totalorder %s18, 0
    %p78 = por %p76, %p77
    %s80 = sadd.s32 %s79, 1
    %p83 = scmp.eq.s32.totalorder %s12, 3
    %p84 = scmp.ne.s32.totalorder %s79, %s81
    %p85 = scmp.eq.s32.totalorder %s12, 0
    %p86 = por %p84, %p85
    %p87 = scmp.ne.s32.totalorder %s79, %s81
    %p88 = scmp.eq.s32.totalorder %s17, 3
    %p89 = por %p87, %p88
    %p90 = scmp.ne.s32.totalorder %s81, %s82
    %p91 = scmp.eq.s32.totalorder %s17, 0
    %p92 = por %p90, %p91
    %p93 = scmp.ne.s32.totalorder %s81, %s82
    %p94 = scmp.eq.s32.totalorder %s18, 3
    %p95 = por %p93, %p94
    %p97 = scmp.ne.s32.totalorder %s82, %s96
    %p98 = scmp.eq.s32.totalorder %s18, 0
    %p99 = por %p97, %p98
    %s101 = sadd.s32 %s100, 1
    %p104 = scmp.eq.s32.totalorder %s12, 3
    %p105 = scmp.ne.s32.totalorder %s100, %s102
    %p106 = scmp.eq.s32.totalorder %s12, 0
    %p107 = por %p105, %p106
    %p108 = scmp.ne.s32.totalorder %s100, %s102
    %p109 = scmp.eq.s32.totalorder %s17, 3
    %p110 = por %p108, %p109
    %p111 = scmp.ne.s32.totalorder %s102, %s103
    %p112 = scmp.eq.s32.totalorder %s17, 0
    %p113 = por %p111, %p112
    %p114 = scmp.ne.s32.totalorder %s102, %s103
    %p115 = scmp.eq.s32.totalorder %s18, 3
    %p116 = por %p114, %p115
    %p118 = scmp.ne.s32.totalorder %s103, %s117
    %p119 = scmp.eq.s32.totalorder %s18, 0
    %p120 = por %p118, %p119
    %s121 = ssub.s32 %s19, %s31
    %s122 = ssub.s32 %s20, %s27
    %s123 = sor.u32 %s121, %s122
    %p124 = scmp.eq.s32.totalorder %s123, 0
    %s126 = sadd.s32 %s125, 1
    %s127 = scalar_select %p124, %s125, %s126
    %p130 = pneg %p124
    %p131 = scmp.eq.s32.totalorder %s12, 3
    %p132 = por %p130, %p131
    %p133 = scmp.ne.s32.totalorder %s125, %s128
    %p134 = scmp.eq.s32.totalorder %s12, 0
    %p135 = por %p133, %p134
    %p136 = scmp.ne.s32.totalorder %s125, %s128
    %p137 = scmp.eq.s32.totalorder %s17, 3
    %p138 = por %p136, %p137
    %p139 = scmp.ne.s32.totalorder %s128, %s129
    %p140 = scmp.eq.s32.totalorder %s17, 0
    %p141 = por %p139, %p140
    %p142 = scmp.ne.s32.totalorder %s128, %s129
    %p143 = scmp.eq.s32.totalorder %s18, 3
    %p144 = por %p142, %p143
    %p146 = scmp.ne.s32.totalorder %s129, %s145
    %p147 = scmp.eq.s32.totalorder %s18, 0
    %p148 = por %p146, %p147
    %s149 = ssub.s32 %s19, %s31
    %s150 = ssub.s32 %s20, %s27
    %s151 = sor.u32 %s149, %s150
    %p152 = scmp.eq.s32.totalorder %s151, 0
    %s154 = sadd.s32 %s153, 1
    %s155 = scalar_select %p152, %s153, %s154
    %p158 = pneg %p152
    %p159 = scmp.eq.s32.totalorder %s12, 3
    %p160 = por %p158, %p159
    %p161 = scmp.ne.s32.totalorder %s153, %s156
    %p162 = scmp.eq.s32.totalorder %s12, 0
    %p163 = por %p161, %p162
    %p164 = scmp.ne.s32.totalorder %s153, %s156
    %p165 = scmp.eq.s32.totalorder %s17, 3
    %p166 = por %p164, %p165
    %p167 = scmp.ne.s32.totalorder %s156, %s157
    %p168 = scmp.eq.s32.totalorder %s17, 0
    %p169 = por %p167, %p168
    %p170 = scmp.ne.s32.totalorder %s156, %s157
    %p171 = scmp.eq.s32.totalorder %s18, 3
    %p172 = por %p170, %p171
    %p174 = scmp.ne.s32.totalorder %s157, %s173
    %p175 = scmp.eq.s32.totalorder %s18, 0
    %p176 = por %p174, %p175
    %p177 = scmp.le.s32.totalorder 1, %s12
    %p178 = scmp.lt.s32.totalorder %s12, 5
    %p179 = pnand %p177, %p178
    %p180 = pneg %p179
    // Predicated region
    $region9: #{ffc_resnet_block_forward.8} parent=5 // pred_check
      _
    $region10: #{ffc_resnet_block_forward.8} parent=5 // pred_check_branch
      %182 = sbr.rel (%p179) target = $region12
    $region11: #{ffc_resnet_block_forward.8} parent=5 // pred_region
      %s183 = ssub.s32 %s12, 1
      // Predicated region
      $region13: #{ffc_resnet_block_forward.8} parent=11 // pred_check
        %p184 = pneg %p71
      $region14: #{ffc_resnet_block_forward.8} parent=11 // pred_check_branch
        %186 = sbr.rel (%p184) target = $region16
      $region15: #{ffc_resnet_block_forward.8} parent=11 // pred_region
        _
      $region16: #{ffc_resnet_block_forward.8} parent=11 // pred_fallthru
        _
      // Predicated region
      $region17: #{ffc_resnet_block_forward.8} parent=11 // pred_check
        %p187 = pneg %p92
      $region18: #{ffc_resnet_block_forward.8} parent=11 // pred_check_branch
        %189 = sbr.rel (%p187) target = $region20
      $region19: #{ffc_resnet_block_forward.8} parent=11 // pred_region
        _
      $region20: #{ffc_resnet_block_forward.8} parent=11 // pred_fallthru
        _
      // Predicated region
      $region21: #{ffc_resnet_block_forward.8} parent=11 // pred_check
        %p190 = pneg %p113
      $region22: #{ffc_resnet_block_forward.8} parent=11 // pred_check_branch
        %192 = sbr.rel (%p190) target = $region24
      $region23: #{ffc_resnet_block_forward.8} parent=11 // pred_region
        _
      $region24: #{ffc_resnet_block_forward.8} parent=11 // pred_fallthru
        _
    $region12: #{ffc_resnet_block_forward.8} parent=5 // pred_fallthru
      _
    %p193 = scmp.lt.s32.totalorder %s12, 4
    // Predicated region
    $region25: #{ffc_resnet_block_forward.8} parent=5 // pred_check
      %p194 = pneg %p193
    $region26: #{ffc_resnet_block_forward.8} parent=5 // pred_check_branch
      %196 = sbr.rel (%p194) target = $region28
    $region27: #{ffc_resnet_block_forward.8} parent=5 // pred_region
      // Predicated region
      $region29: #{ffc_resnet_block_forward.8} parent=27 // pred_check
        %p197 = pneg %p44
      $region30: #{ffc_resnet_block_forward.8} parent=27 // pred_check_branch
        %199 = sbr.rel (%p197) target = $region32
      $region31: #{ffc_resnet_block_forward.8} parent=27 // pred_region
        %p200 = scmp.lt.s32.totalorder %s19, 1
        %s201 = scalar_select %p200, %s19, 1
        %s202 = smul.addr %s201, 54
        %s203 = smul.addr %s202, 4
        %s204 = scalar_lea.vmem %s0, %s203
      $region32: #{ffc_resnet_block_forward.8} parent=27 // pred_fallthru
        _
    $region28: #{ffc_resnet_block_forward.8} parent=5 // pred_fallthru
      _
    %p205 = scmp.le.s32.totalorder 1, %s12
    %p206 = scmp.lt.s32.totalorder %s12, 5
    %p207 = pnand %p205, %p206
    %p208 = pneg %p207
    // Predicated region
    $region33: #{ffc_resnet_block_forward.8} parent=5 // pred_check
      _
    $region34: #{ffc_resnet_block_forward.8} parent=5 // pred_check_branch
      %210 = sbr.rel (%p207) target = $region36
    $region35: #{ffc_resnet_block_forward.8} parent=5 // pred_region
      %s211 = ssub.s32 %s12, 1
      %p212 = scmp.lt.s32.totalorder %s21, 1
      %s213 = scalar_select %p212, %s21, 1
      %s214 = smul.addr %s213, 54
      %s215 = smul.addr %s214, 4
      %s216 = scalar_lea.vmem %s0, %s215
      %p217 = pneg %p50
      %p218 = pneg %p47
      %p219 = pneg %p71
      %p220 = pneg %p68
      %p221 = pneg %p92
      %p222 = pneg %p89
      %p223 = pneg %p113
      %p224 = pneg %p110
      %p225 = pneg %p141
      %p226 = pneg %p138
      %s227 = smul.u32 16, %s22
      %p228 = scmp.lt.s32.totalorder %s21, 1
      %s229 = scalar_select %p228, %s21, 1
      %p230 = scmp.lt.s32.totalorder %s227, 31
      %s231 = scalar_select %p230, %s227, 31
      %s232 = smul.addr %s229, 32
      %s233 = sadd.s32 %s231, %s232
      %s234 = smul.addr %s233, 8
      %s235 = scalar_lea.vmem %s4, %s234
      %p236 = pneg %p169
      %p237 = pneg %p166
      %s238 = smul.u32 16, %s22
      %p239 = scmp.lt.s32.totalorder %s21, 1
      %s240 = scalar_select %p239, %s21, 1
      %p241 = scmp.lt.s32.totalorder %s238, 31
      %s242 = scalar_select %p241, %s238, 31
      %s243 = smul.addr %s240, 32
      %s244 = sadd.s32 %s242, %s243
      %s245 = smul.addr %s244, 8
      %s246 = scalar_lea.vmem %s5, %s245
      %p247 = scmp.lt.s32.totalorder %s21, 1
      %s248 = scalar_select %p247, %s21, 1
      %s249 = smul.addr %s248, 54
      %s250 = smul.addr %s249, 4
      %s251 = scalar_lea.vmem %s0, %s250
      %s252 = smul.u32 16, %s22
      %p253 = scmp.lt.s32.totalorder %s21, 1
      %s254 = scalar_select %p253, %s21, 1
      %p255 = scmp.lt.s32.totalorder %s252, 31
      %s256 = scalar_select %p255, %s252, 31
      %s257 = smul.addr %s254, 32
      %s258 = sadd.s32 %s256, %s257
      %s259 = smul.addr %s258, 8
      %s260 = scalar_lea.vmem %s4, %s259
      %s261 = smul.u32 16, %s22
      %s262 = smul.u32 16, %s22
      %p263 = scmp.lt.s32.totalorder %s21, 1
      %s264 = scalar_select %p263, %s21, 1
      %p265 = scmp.lt.s32.totalorder %s262, 31
      %s266 = scalar_select %p265, %s262, 31
      %s267 = smul.addr %s264, 32
      %s268 = sadd.s32 %s266, %s267
      %s269 = smul.addr %s268, 8
      %s270 = scalar_lea.vmem %s5, %s269
      %s271 = smul.u32 16, %s22
      %s273 = smul.u32 %s22, 8
      %s274 = smul.u32 %s273, 3
      %s275 = smul.addr %s274, 4
      %s276 = scalar_lea.vmem %s251, %s275
      %v277 = vld [vmem:[%s276] sm:$0xf]
      %v278 = vld [vmem:[%s276 + $0x4] sm:$0xf]
      %v279 = vld [vmem:[%s276 + $0x8] sm:$0x1]
      %v280 = vld [vmem:[%s276 + $0xc] sm:$0xf]
      %v281 = vld [vmem:[%s276 + $0x10] sm:$0xf]
      %v282 = vld [vmem:[%s276 + $0x14] sm:$0x1]
      %v283 = vld [vmem:[%s276 + $0x18] sm:$0xf]
      %v284 = vld [vmem:[%s276 + $0x1c] sm:$0xf]
      %v285 = vld [vmem:[%s276 + $0x20] sm:$0x1]
      %v286 = vld [vmem:[%s276 + $0x24] sm:$0xf]
      %v287 = vld [vmem:[%s276 + $0x28] sm:$0xf]
      %v288 = vld [vmem:[%s276 + $0x2c] sm:$0x1]
      %v289 = vld [vmem:[%s276 + $0x30] sm:$0xf]
      %v290 = vld [vmem:[%s276 + $0x34] sm:$0xf]
      %v291 = vld [vmem:[%s276 + $0x38] sm:$0x1]
      %v292 = vld [vmem:[%s276 + $0x3c] sm:$0xf]
      %v293 = vld [vmem:[%s276 + $0x40] sm:$0xf]
      %v294 = vld [vmem:[%s276 + $0x44] sm:$0x1]
      %v295 = vld [vmem:[%s276 + $0x48] sm:$0xf]
      %v296 = vld [vmem:[%s276 + $0x4c] sm:$0xf]
      %v297 = vld [vmem:[%s276 + $0x50] sm:$0x1]
      %v298 = vld [vmem:[%s276 + $0x54] sm:$0xf]
      %v299 = vld [vmem:[%s276 + $0x58] sm:$0xf]
      %v300 = vld [vmem:[%s276 + $0x5c] sm:$0x1]
      %v301 = vld [vmem:[%s276 + $0x60] sm:$0xf]
      %v302 = vld [vmem:[%s276 + $0x64] sm:$0xf]
      %v303 = vld [vmem:[%s276 + $0x68] sm:$0x1]
      %v304 = vld [vmem:[%s276 + $0x6c] sm:$0xf]
      %v305 = vld [vmem:[%s276 + $0x70] sm:$0xf]
      %v306 = vld [vmem:[%s276 + $0x74] sm:$0x1]
      %v307 = vld [vmem:[%s1] sm:$0xf]
      %v308 = vld [vmem:[%s1 + $0x4] sm:$0xf]
      %v309 = vld [vmem:[%s2] sm:$0x3]
      %vm310 = vsmask.f32 3328
      %vm311 = vsmask.f32 7440
      %vm312 = vmor %vm310, %vm311
      %v314 = vshrl.u32 %v277, 16
      %v316 = vrot.slane %v314, 4
      %v317 = vshll.u32 %v277, 16
      %v319 = vrot.slane %v317, 5
      %v320 = vor.u32 %v316, %v319
      %v321 = vrot.slane %v320, 4
      %v323 = vshll.u32 %v278, 16
      %v325 = vrot.slane %v323, 5
      %v326 = vsel %vm312, %v321, %v325
      %v327 = vshrl.u32 %v278, 16
      %v329 = vrot.slane %v327, 4
      %v330 = vor.u32 %v329, %v325
      %v331 = vrot.slane %v330, 4
      %v333 = vshll.u32 %v279, 16
      %v335 = vrot.slane %v333, 5
      %v336 = vsel %vm312, %v331, %v335
      %v338 = vshrl.u32 %v280, 16
      %v340 = vrot.slane %v338, 4
      %v341 = vshll.u32 %v280, 16
      %v343 = vrot.slane %v341, 5
      %v344 = vor.u32 %v340, %v343
      %v345 = vrot.slane %v344, 4
      %v347 = vshll.u32 %v281, 16
      %v349 = vrot.slane %v347, 5
      %v350 = vsel %vm312, %v345, %v349
      %v351 = vshrl.u32 %v281, 16
      %v353 = vrot.slane %v351, 4
      %v354 = vor.u32 %v353, %v349
      %v355 = vrot.slane %v354, 4
      %v357 = vshll.u32 %v282, 16
      %v359 = vrot.slane %v357, 5
      %v360 = vsel %vm312, %v355, %v359
      %v362 = vshrl.u32 %v283, 16
      %v364 = vrot.slane %v362, 4
      %v365 = vshll.u32 %v283, 16
      %v367 = vrot.slane %v365, 5
      %v368 = vor.u32 %v364, %v367
      %v369 = vrot.slane %v368, 4
      %v371 = vshll.u32 %v284, 16
      %v373 = vrot.slane %v371, 5
      %v374 = vsel %vm312, %v369, %v373
      %v375 = vshrl.u32 %v284, 16
      %v377 = vrot.slane %v375, 4
      %v378 = vor.u32 %v377, %v373
      %v379 = vrot.slane %v378, 4
      %v381 = vshll.u32 %v285, 16
      %v383 = vrot.slane %v381, 5
      %v384 = vsel %vm312, %v379, %v383
      %v386 = vshrl.u32 %v286, 16
      %v388 = vrot.slane %v386, 4
      %v389 = vshll.u32 %v286, 16
      %v391 = vrot.slane %v389, 5
      %v392 = vor.u32 %v388, %v391
      %v393 = vrot.slane %v392, 4
      %v395 = vshll.u32 %v287, 16
      %v397 = vrot.slane %v395, 5
      %v398 = vsel %vm312, %v393, %v397
      %v399 = vshrl.u32 %v287, 16
      %v401 = vrot.slane %v399, 4
      %v402 = vor.u32 %v401, %v397
      %v403 = vrot.slane %v402, 4
      %v405 = vshll.u32 %v288, 16
      %v407 = vrot.slane %v405, 5
      %v408 = vsel %vm312, %v403, %v407
      %v410 = vshrl.u32 %v289, 16
      %v412 = vrot.slane %v410, 4
      %v413 = vshll.u32 %v289, 16
      %v415 = vrot.slane %v413, 5
      %v416 = vor.u32 %v412, %v415
      %v417 = vrot.slane %v416, 4
      %v419 = vshll.u32 %v290, 16
      %v421 = vrot.slane %v419, 5
      %v422 = vsel %vm312, %v417, %v421
      %v423 = vshrl.u32 %v290, 16
      %v425 = vrot.slane %v423, 4
      %v426 = vor.u32 %v425, %v421
      %v427 = vrot.slane %v426, 4
      %v429 = vshll.u32 %v291, 16
      %v431 = vrot.slane %v429, 5
      %v432 = vsel %vm312, %v427, %v431
      %v434 = vshrl.u32 %v292, 16
      %v436 = vrot.slane %v434, 4
      %v437 = vshll.u32 %v292, 16
      %v439 = vrot.slane %v437, 5
      %v440 = vor.u32 %v436, %v439
      %v441 = vrot.slane %v440, 4
      %v443 = vshll.u32 %v293, 16
      %v445 = vrot.slane %v443, 5
      %v446 = vsel %vm312, %v441, %v445
      %v447 = vshrl.u32 %v293, 16
      %v449 = vrot.slane %v447, 4
      %v450 = vor.u32 %v449, %v445
      %v451 = vrot.slane %v450, 4
      %v453 = vshll.u32 %v294, 16
      %v455 = vrot.slane %v453, 5
      %v456 = vsel %vm312, %v451, %v455
      %v458 = vshrl.u32 %v295, 16
      %v460 = vrot.slane %v458, 4
      %v461 = vshll.u32 %v295, 16
      %v463 = vrot.slane %v461, 5
      %v464 = vor.u32 %v460, %v463
      %v465 = vrot.slane %v464, 4
      %v467 = vshll.u32 %v296, 16
      %v469 = vrot.slane %v467, 5
      %v470 = vsel %vm312, %v465, %v469
      %v471 = vshrl.u32 %v296, 16
      %v473 = vrot.slane %v471, 4
      %v474 = vor.u32 %v473, %v469
      %v475 = vrot.slane %v474, 4
      %v477 = vshll.u32 %v297, 16
      %v479 = vrot.slane %v477, 5
      %v480 = vsel %vm312, %v475, %v479
      %v482 = vshrl.u32 %v298, 16
      %v484 = vrot.slane %v482, 4
      %v485 = vshll.u32 %v298, 16
      %v487 = vrot.slane %v485, 5
      %v488 = vor.u32 %v484, %v487
      %v489 = vrot.slane %v488, 4
      %v491 = vshll.u32 %v299, 16
      %v493 = vrot.slane %v491, 5
      %v494 = vsel %vm312, %v489, %v493
      %v495 = vshrl.u32 %v299, 16
      %v497 = vrot.slane %v495, 4
      %v498 = vor.u32 %v497, %v493
      %v499 = vrot.slane %v498, 4
      %v501 = vshll.u32 %v300, 16
      %v503 = vrot.slane %v501, 5
      %v504 = vsel %vm312, %v499, %v503
      %s505 = scalar_lea.vmem %s1, 8
      %v506 = vld [vmem:[%s505] sm:$0xf]
      %v507 = vld [vmem:[%s505 + $0x4] sm:$0xf]
      %v508 = vunpack.c.l.b16 %v326
      %v509 = vunpack.c.l.b16 %v336
      %v510 = vunpack.c.l.b16 %v350
      %v511 = vunpack.c.l.b16 %v360
      %v512 = vunpack.c.l.b16 %v374
      %v513 = vunpack.c.l.b16 %v384
      %v514 = vunpack.c.l.b16 %v398
      %v515 = vunpack.c.l.b16 %v408
      %v516 = vunpack.c.l.b16 %v422
      %v517 = vunpack.c.l.b16 %v432
      %v518 = vunpack.c.l.b16 %v446
      %v519 = vunpack.c.l.b16 %v456
      %v520 = vunpack.c.l.b16 %v470
      %v521 = vunpack.c.l.b16 %v480
      %v522 = vunpack.c.l.b16 %v494
      %v523 = vunpack.c.l.b16 %v504
      %v524 = vpack.c.b16 %v509, %v508
      %v525 = vpack.c.b16 %v511, %v510
      %v526 = vpack.c.b16 %v513, %v512
      %v527 = vpack.c.b16 %v515, %v514
      %v528 = vpack.c.b16 %v517, %v516
      %v529 = vpack.c.b16 %v519, %v518
      %v530 = vpack.c.b16 %v521, %v520
      %v531 = vpack.c.b16 %v523, %v522
      %v534 = vunpack.c.l.b16 %v506
      %v535 = vunpack.c.l.b16 %v507
      %v536 = vpack.c.b16 %v535, %v534
      %vm538 = vcmask 130048
      %v540 = vsel %vm538, %v524, 0
      %v543 = vsel %vm538, %v525, 0
      %v546 = vsel %vm538, %v526, 0
      %v549 = vsel %vm538, %v527, 0
      %v552 = vsel %vm538, %v528, 0
      %v555 = vsel %vm538, %v529, 0
      %v558 = vsel %vm538, %v530, 0
      %v561 = vsel %vm538, %v531, 0
      %563 = vmatprep.subr.bf16.mxu0 0
      %564 = vmatpush1.bf16.msra.mxu0 0
      %565 = vmatprep.subr.bf16.mxu0 0
      %566 = vmatpush1.bf16.msra.mxu0 0
      %567 = vmatprep.subr.bf16.mxu0 0
      %568 = vmatpush1.bf16.msra.mxu0 0
      %569 = vmatprep.subr.bf16.mxu0 0
      %570 = vmatpush1.bf16.msra.mxu0 0
      %571 = vmatprep.subr.bf16.mxu0 0
      %572 = vmatpush1.bf16.msra.mxu0 0
      %573 = vmatprep.subr.bf16.mxu0 0
      %574 = vmatpush1.bf16.msra.mxu0 0
      %575 = vmatprep.subr.bf16.mxu0 0
      %576 = vmatpush1.bf16.msra.mxu0 0
      %577 = vmatprep.subr.bf16.mxu0 0
      %578 = vmatpush1.bf16.msra.mxu0 %v536
      %579 = vmatprep.subr.bf16.mxu0 0
      %580 = vmatpush2.bf16.msra.mxu0 0
      %581 = vmatprep.subr.bf16.mxu0 0
      %582 = vmatpush2.bf16.msra.mxu0 0
      %583 = vmatprep.subr.bf16.mxu0 0
      %584 = vmatpush2.bf16.msra.mxu0 0
      %585 = vmatprep.subr.bf16.mxu0 0
      %586 = vmatpush2.bf16.msra.mxu0 0
      %587 = vmatprep.subr.bf16.mxu0 0
      %588 = vmatpush2.bf16.msra.mxu0 0
      %589 = vmatprep.subr.bf16.mxu0 0
      %590 = vmatpush2.bf16.msra.mxu0 0
      %591 = vmatprep.subr.bf16.mxu0 0
      %592 = vmatpush2.bf16.msra.mxu0 0
      %593 = vmatprep.subr.bf16.mxu0 0
      %594 = vmatpush2.bf16.msra.mxu0 0
      %595 = vmatprep.mubr.bf16.mxu0 0
      %596 = vmatmul.mubr.bf16.gmra.mxu0 %v540
      %v597 = vpop.f32.mrf.mxu0
      %v598 = vadd.f32 0.0, %v597
      %v599 = vpop.f32.mrf.mxu0
      %v600 = vpop.f32.mrf.mxu0
      %v601 = vadd.f32 0.0, %v600
      %v602 = vpop.f32.mrf.mxu0
      %603 = vmatprep.mubr.bf16.mxu0 0
      %604 = vmatmul.mubr.bf16.gmra.mxu0 %v543
      %v605 = vpop.f32.mrf.mxu0
      %v606 = vadd.f32 0.0, %v605
      %v607 = vpop.f32.mrf.mxu0
      %v608 = vpop.f32.mrf.mxu0
      %v609 = vadd.f32 0.0, %v608
      %v610 = vpop.f32.mrf.mxu0
      %611 = vmatprep.mubr.bf16.mxu0 0
      %612 = vmatmul.mubr.bf16.gmra.mxu0 %v546
      %v613 = vpop.f32.mrf.mxu0
      %v614 = vadd.f32 0.0, %v613
      %v615 = vpop.f32.mrf.mxu0
      %v616 = vpop.f32.mrf.mxu0
      %v617 = vadd.f32 0.0, %v616
      %v618 = vpop.f32.mrf.mxu0
      %619 = vmatprep.mubr.bf16.mxu0 0
      %620 = vmatmul.mubr.bf16.gmra.mxu0 %v549
      %v621 = vpop.f32.mrf.mxu0
      %v622 = vadd.f32 0.0, %v621
      %v623 = vpop.f32.mrf.mxu0
      %v624 = vpop.f32.mrf.mxu0
      %v625 = vadd.f32 0.0, %v624
      %v626 = vpop.f32.mrf.mxu0
      %627 = vmatprep.mubr.bf16.mxu0 0
      %628 = vmatmul.mubr.bf16.gmra.mxu0 %v552
      %v629 = vpop.f32.mrf.mxu0
      %v630 = vadd.f32 0.0, %v629
      %v631 = vpop.f32.mrf.mxu0
      %v632 = vpop.f32.mrf.mxu0
      %v633 = vadd.f32 0.0, %v632
      %v634 = vpop.f32.mrf.mxu0
      %635 = vmatprep.mubr.bf16.mxu0 0
      %636 = vmatmul.mubr.bf16.gmra.mxu0 %v555
      %v637 = vpop.f32.mrf.mxu0
      %v638 = vadd.f32 0.0, %v637
      %v639 = vpop.f32.mrf.mxu0
      %v640 = vpop.f32.mrf.mxu0
      %v641 = vadd.f32 0.0, %v640
      %v642 = vpop.f32.mrf.mxu0
      %643 = vmatprep.mubr.bf16.mxu0 0
      %644 = vmatmul.mubr.bf16.gmra.mxu0 %v558
      %v645 = vpop.f32.mrf.mxu0
      %v646 = vadd.f32 0.0, %v645
      %v647 = vpop.f32.mrf.mxu0
      %v648 = vpop.f32.mrf.mxu0
      %v649 = vadd.f32 0.0, %v648
      %v650 = vpop.f32.mrf.mxu0
      %651 = vmatprep.mubr.bf16.mxu0 0
      %652 = vmatmul.mubr.bf16.gmra.mxu0 %v561
      %v653 = vpop.f32.mrf.mxu0
      %v654 = vadd.f32 0.0, %v653
      %v655 = vpop.f32.mrf.mxu0
      %v656 = vpop.f32.mrf.mxu0
      %v657 = vadd.f32 0.0, %v656
      %v658 = vpop.f32.mrf.mxu0
      %659 = vdwg.mxu0
      %v676 = vunpack.c.l.b16 %v277
      %v677 = vunpack.c.l.b16 %v278
      %v678 = vunpack.c.l.b16 %v280
      %v679 = vunpack.c.l.b16 %v281
      %v680 = vunpack.c.l.b16 %v283
      %v681 = vunpack.c.l.b16 %v284
      %v682 = vunpack.c.l.b16 %v286
      %v683 = vunpack.c.l.b16 %v287
      %v684 = vunpack.c.l.b16 %v289
      %v685 = vunpack.c.l.b16 %v290
      %v686 = vunpack.c.l.b16 %v292
      %v687 = vunpack.c.l.b16 %v293
      %v688 = vunpack.c.l.b16 %v295
      %v689 = vunpack.c.l.b16 %v296
      %v690 = vunpack.c.l.b16 %v298
      %v691 = vunpack.c.l.b16 %v299
      %v692 = vpack.c.b16 %v677, %v676
      %v693 = vpack.c.b16 %v679, %v678
      %v694 = vpack.c.b16 %v681, %v680
      %v695 = vpack.c.b16 %v683, %v682
      %v696 = vpack.c.b16 %v685, %v684
      %v697 = vpack.c.b16 %v687, %v686
      %v698 = vpack.c.b16 %v689, %v688
      %v699 = vpack.c.b16 %v691, %v690
      %v702 = vunpack.c.l.b16 %v307
      %v703 = vunpack.c.l.b16 %v308
      %v704 = vpack.c.b16 %v703, %v702
      %v707 = vsel %vm538, %v692, 0
      %v710 = vsel %vm538, %v693, 0
      %v713 = vsel %vm538, %v694, 0
      %v716 = vsel %vm538, %v695, 0
      %v719 = vsel %vm538, %v696, 0
      %v722 = vsel %vm538, %v697, 0
      %v725 = vsel %vm538, %v698, 0
      %v728 = vsel %vm538, %v699, 0
      %730 = vmatprep.subr.bf16.mxu0 0
      %731 = vmatpush1.bf16.msra.mxu0 0
      %732 = vmatprep.subr.bf16.mxu0 0
      %733 = vmatpush1.bf16.msra.mxu0 0
      %734 = vmatprep.subr.bf16.mxu0 0
      %735 = vmatpush1.bf16.msra.mxu0 0
      %736 = vmatprep.subr.bf16.mxu0 0
      %737 = vmatpush1.bf16.msra.mxu0 0
      %738 = vmatprep.subr.bf16.mxu0 0
      %739 = vmatpush1.bf16.msra.mxu0 0
      %740 = vmatprep.subr.bf16.mxu0 0
      %741 = vmatpush1.bf16.msra.mxu0 0
      %742 = vmatprep.subr.bf16.mxu0 0
      %743 = vmatpush1.bf16.msra.mxu0 0
      %744 = vmatprep.subr.bf16.mxu0 0
      %745 = vmatpush1.bf16.msra.mxu0 %v704
      %746 = vmatprep.subr.bf16.mxu0 0
      %747 = vmatpush2.bf16.msra.mxu0 0
      %748 = vmatprep.subr.bf16.mxu0 0
      %749 = vmatpush2.bf16.msra.mxu0 0
      %750 = vmatprep.subr.bf16.mxu0 0
      %751 = vmatpush2.bf16.msra.mxu0 0
      %752 = vmatprep.subr.bf16.mxu0 0
      %753 = vmatpush2.bf16.msra.mxu0 0
      %754 = vmatprep.subr.bf16.mxu0 0
      %755 = vmatpush2.bf16.msra.mxu0 0
      %756 = vmatprep.subr.bf16.mxu0 0
      %757 = vmatpush2.bf16.msra.mxu0 0
      %758 = vmatprep.subr.bf16.mxu0 0
      %759 = vmatpush2.bf16.msra.mxu0 0
      %760 = vmatprep.subr.bf16.mxu0 0
      %761 = vmatpush2.bf16.msra.mxu0 0
      %762 = vmatprep.mubr.bf16.mxu0 0
      %763 = vmatmul.mubr.bf16.gmra.mxu0 %v707
      %v764 = vpop.f32.mrf.mxu0
      %v765 = vadd.f32 %v598, %v764
      %v766 = vpop.f32.mrf.mxu0
      %v767 = vpop.f32.mrf.mxu0
      %v768 = vadd.f32 %v601, %v767
      %v769 = vpop.f32.mrf.mxu0
      %770 = vmatprep.mubr.bf16.mxu0 0
      %771 = vmatmul.mubr.bf16.gmra.mxu0 %v710
      %v772 = vpop.f32.mrf.mxu0
      %v773 = vadd.f32 %v606, %v772
      %v774 = vpop.f32.mrf.mxu0
      %v775 = vpop.f32.mrf.mxu0
      %v776 = vadd.f32 %v609, %v775
      %v777 = vpop.f32.mrf.mxu0
      %778 = vmatprep.mubr.bf16.mxu0 0
      %779 = vmatmul.mubr.bf16.gmra.mxu0 %v713
      %v780 = vpop.f32.mrf.mxu0
      %v781 = vadd.f32 %v614, %v780
      %v782 = vpop.f32.mrf.mxu0
      %v783 = vpop.f32.mrf.mxu0
      %v784 = vadd.f32 %v617, %v783
      %v785 = vpop.f32.mrf.mxu0
      %786 = vmatprep.mubr.bf16.mxu0 0
      %787 = vmatmul.mubr.bf16.gmra.mxu0 %v716
      %v788 = vpop.f32.mrf.mxu0
      %v789 = vadd.f32 %v622, %v788
      %v790 = vpop.f32.mrf.mxu0
      %v791 = vpop.f32.mrf.mxu0
      %v792 = vadd.f32 %v625, %v791
      %v793 = vpop.f32.mrf.mxu0
      %794 = vmatprep.mubr.bf16.mxu0 0
      %795 = vmatmul.mubr.bf16.gmra.mxu0 %v719
      %v796 = vpop.f32.mrf.mxu0
      %v797 = vadd.f32 %v630, %v796
      %v798 = vpop.f32.mrf.mxu0
      %v799 = vpop.f32.mrf.mxu0
      %v800 = vadd.f32 %v633, %v799
      %v801 = vpop.f32.mrf.mxu0
      %802 = vmatprep.mubr.bf16.mxu0 0
      %803 = vmatmul.mubr.bf16.gmra.mxu0 %v722
      %v804 = vpop.f32.mrf.mxu0
      %v805 = vadd.f32 %v638, %v804
      %v806 = vpop.f32.mrf.mxu0
      %v807 = vpop.f32.mrf.mxu0
      %v808 = vadd.f32 %v641, %v807
      %v809 = vpop.f32.mrf.mxu0
      %810 = vmatprep.mubr.bf16.mxu0 0
      %811 = vmatmul.mubr.bf16.gmra.mxu0 %v725
      %v812 = vpop.f32.mrf.mxu0
      %v813 = vadd.f32 %v646, %v812
      %v814 = vpop.f32.mrf.mxu0
      %v815 = vpop.f32.mrf.mxu0
      %v816 = vadd.f32 %v649, %v815
      %v817 = vpop.f32.mrf.mxu0
      %818 = vmatprep.mubr.bf16.mxu0 0
      %819 = vmatmul.mubr.bf16.gmra.mxu0 %v728
      %v820 = vpop.f32.mrf.mxu0
      %v821 = vadd.f32 %v654, %v820
      %v822 = vpop.f32.mrf.mxu0
      %v823 = vpop.f32.mrf.mxu0
      %v824 = vadd.f32 %v657, %v823
      %v825 = vpop.f32.mrf.mxu0
      %826 = vdwg.mxu0
      %s827 = scalar_lea.vmem %s2, 2
      %v828 = vld [vmem:[%s827] sm:$0x3]
      %vm829 = vcmask 31744
      %v830 = vsel %vm829, %v524, 0
      %v832 = vsel %vm829, %v525, 0
      %v834 = vsel %vm829, %v526, 0
      %v836 = vsel %vm829, %v527, 0
      %v838 = vsel %vm829, %v528, 0
      %v840 = vsel %vm829, %v529, 0
      %v842 = vsel %vm829, %v530, 0
      %v844 = vsel %vm829, %v531, 0
      %vm846 = vcmask 1041408
      %v848 = vsel %vm846, %v828, 0
      %850 = vmatprep.subr.bf16.mxu0 0
      %851 = vmatpush1.bf16.msra.mxu0 0
      %852 = vmatprep.subr.bf16.mxu0 0
      %853 = vmatpush1.bf16.msra.mxu0 0
      %854 = vmatprep.subr.bf16.mxu0 0
      %855 = vmatpush1.bf16.msra.mxu0 0
      %856 = vmatprep.subr.bf16.mxu0 0
      %857 = vmatpush1.bf16.msra.mxu0 0
      %858 = vmatprep.subr.bf16.mxu0 0
      %859 = vmatpush1.bf16.msra.mxu0 0
      %860 = vmatprep.subr.bf16.mxu0 0
      %861 = vmatpush1.bf16.msra.mxu0 0
      %862 = vmatprep.subr.bf16.mxu0 0
      %863 = vmatpush1.bf16.msra.mxu0 0
      %864 = vmatprep.subr.bf16.mxu0 0
      %865 = vmatpush1.bf16.msra.mxu0 %v848
      %866 = vmatprep.subr.bf16.mxu0 0
      %867 = vmatpush2.bf16.msra.mxu0 0
      %868 = vmatprep.subr.bf16.mxu0 0
      %869 = vmatpush2.bf16.msra.mxu0 0
      %870 = vmatprep.subr.bf16.mxu0 0
      %871 = vmatpush2.bf16.msra.mxu0 0
      %872 = vmatprep.subr.bf16.mxu0 0
      %873 = vmatpush2.bf16.msra.mxu0 0
      %874 = vmatprep.subr.bf16.mxu0 0
      %875 = vmatpush2.bf16.msra.mxu0 0
      %876 = vmatprep.subr.bf16.mxu0 0
      %877 = vmatpush2.bf16.msra.mxu0 0
      %878 = vmatprep.subr.bf16.mxu0 0
      %879 = vmatpush2.bf16.msra.mxu0 0
      %880 = vmatprep.subr.bf16.mxu0 0
      %881 = vmatpush2.bf16.msra.mxu0 0
      %882 = vmatprep.mubr.bf16.mxu0 0
      %883 = vmatmul.mubr.bf16.gmra.mxu0 %v830
      %v884 = vpop.f32.mrf.mxu0
      %v885 = vadd.f32 0.0, %v884
      %v886 = vpop.f32.mrf.mxu0
      %v887 = vpop.f32.mrf.mxu0
      %v888 = vadd.f32 0.0, %v887
      %v889 = vpop.f32.mrf.mxu0
      %890 = vmatprep.mubr.bf16.mxu0 0
      %891 = vmatmul.mubr.bf16.gmra.mxu0 %v832
      %v892 = vpop.f32.mrf.mxu0
      %v893 = vadd.f32 0.0, %v892
      %v894 = vpop.f32.mrf.mxu0
      %v895 = vpop.f32.mrf.mxu0
      %v896 = vadd.f32 0.0, %v895
      %v897 = vpop.f32.mrf.mxu0
      %898 = vmatprep.mubr.bf16.mxu0 0
      %899 = vmatmul.mubr.bf16.gmra.mxu0 %v834
      %v900 = vpop.f32.mrf.mxu0
      %v901 = vadd.f32 0.0, %v900
      %v902 = vpop.f32.mrf.mxu0
      %v903 = vpop.f32.mrf.mxu0
      %v904 = vadd.f32 0.0, %v903
      %v905 = vpop.f32.mrf.mxu0
      %906 = vmatprep.mubr.bf16.mxu0 0
      %907 = vmatmul.mubr.bf16.gmra.mxu0 %v836
      %v908 = vpop.f32.mrf.mxu0
      %v909 = vadd.f32 0.0, %v908
      %v910 = vpop.f32.mrf.mxu0
      %v911 = vpop.f32.mrf.mxu0
      %v912 = vadd.f32 0.0, %v911
      %v913 = vpop.f32.mrf.mxu0
      %914 = vmatprep.mubr.bf16.mxu0 0
      %915 = vmatmul.mubr.bf16.gmra.mxu0 %v838
      %v916 = vpop.f32.mrf.mxu0
      %v917 = vadd.f32 0.0, %v916
      %v918 = vpop.f32.mrf.mxu0
      %v919 = vpop.f32.mrf.mxu0
      %v920 = vadd.f32 0.0, %v919
      %v921 = vpop.f32.mrf.mxu0
      %922 = vmatprep.mubr.bf16.mxu0 0
      %923 = vmatmul.mubr.bf16.gmra.mxu0 %v840
      %v924 = vpop.f32.mrf.mxu0
      %v925 = vadd.f32 0.0, %v924
      %v926 = vpop.f32.mrf.mxu0
      %v927 = vpop.f32.mrf.mxu0
      %v928 = vadd.f32 0.0, %v927
      %v929 = vpop.f32.mrf.mxu0
      %930 = vmatprep.mubr.bf16.mxu0 0
      %931 = vmatmul.mubr.bf16.gmra.mxu0 %v842
      %v932 = vpop.f32.mrf.mxu0
      %v933 = vadd.f32 0.0, %v932
      %v934 = vpop.f32.mrf.mxu0
      %v935 = vpop.f32.mrf.mxu0
      %v936 = vadd.f32 0.0, %v935
      %v937 = vpop.f32.mrf.mxu0
      %938 = vmatprep.mubr.bf16.mxu0 0
      %939 = vmatmul.mubr.bf16.gmra.mxu0 %v844
      %v940 = vpop.f32.mrf.mxu0
      %v941 = vadd.f32 0.0, %v940
      %v942 = vpop.f32.mrf.mxu0
      %v943 = vpop.f32.mrf.mxu0
      %v944 = vadd.f32 0.0, %v943
      %v945 = vpop.f32.mrf.mxu0
      %946 = vdwg.mxu0
      %v947 = vsel %vm829, %v692, 0
      %v949 = vsel %vm829, %v693, 0
      %v951 = vsel %vm829, %v694, 0
      %v953 = vsel %vm829, %v695, 0
      %v955 = vsel %vm829, %v696, 0
      %v957 = vsel %vm829, %v697, 0
      %v959 = vsel %vm829, %v698, 0
      %v961 = vsel %vm829, %v699, 0
      %v964 = vsel %vm846, %v309, 0
      %966 = vmatprep.subr.bf16.mxu0 0
      %967 = vmatpush1.bf16.msra.mxu0 0
      %968 = vmatprep.subr.bf16.mxu0 0
      %969 = vmatpush1.bf16.msra.mxu0 0
      %970 = vmatprep.subr.bf16.mxu0 0
      %971 = vmatpush1.bf16.msra.mxu0 0
      %972 = vmatprep.subr.bf16.mxu0 0
      %973 = vmatpush1.bf16.msra.mxu0 0
      %974 = vmatprep.subr.bf16.mxu0 0
      %975 = vmatpush1.bf16.msra.mxu0 0
      %976 = vmatprep.subr.bf16.mxu0 0
      %977 = vmatpush1.bf16.msra.mxu0 0
      %978 = vmatprep.subr.bf16.mxu0 0
      %979 = vmatpush1.bf16.msra.mxu0 0
      %980 = vmatprep.subr.bf16.mxu0 0
      %981 = vmatpush1.bf16.msra.mxu0 %v964
      %982 = vmatprep.subr.bf16.mxu0 0
      %983 = vmatpush2.bf16.msra.mxu0 0
      %984 = vmatprep.subr.bf16.mxu0 0
      %985 = vmatpush2.bf16.msra.mxu0 0
      %986 = vmatprep.subr.bf16.mxu0 0
      %987 = vmatpush2.bf16.msra.mxu0 0
      %988 = vmatprep.subr.bf16.mxu0 0
      %989 = vmatpush2.bf16.msra.mxu0 0
      %990 = vmatprep.subr.bf16.mxu0 0
      %991 = vmatpush2.bf16.msra.mxu0 0
      %992 = vmatprep.subr.bf16.mxu0 0
      %993 = vmatpush2.bf16.msra.mxu0 0
      %994 = vmatprep.subr.bf16.mxu0 0
      %995 = vmatpush2.bf16.msra.mxu0 0
      %996 = vmatprep.subr.bf16.mxu0 0
      %997 = vmatpush2.bf16.msra.mxu0 0
      %998 = vmatprep.mubr.bf16.mxu0 0
      %999 = vmatmul.mubr.bf16.gmra.mxu0 %v947
      %v1000 = vpop.f32.mrf.mxu0
      %v1001 = vadd.f32 %v885, %v1000
      %v1002 = vpop.f32.mrf.mxu0
      %v1003 = vpop.f32.mrf.mxu0
      %v1004 = vadd.f32 %v888, %v1003
      %v1005 = vpop.f32.mrf.mxu0
      %1006 = vmatprep.mubr.bf16.mxu0 0
      %1007 = vmatmul.mubr.bf16.gmra.mxu0 %v949
      %v1008 = vpop.f32.mrf.mxu0
      %v1009 = vadd.f32 %v893, %v1008
      %v1010 = vpop.f32.mrf.mxu0
      %v1011 = vpop.f32.mrf.mxu0
      %v1012 = vadd.f32 %v896, %v1011
      %v1013 = vpop.f32.mrf.mxu0
      %1014 = vmatprep.mubr.bf16.mxu0 0
      %1015 = vmatmul.mubr.bf16.gmra.mxu0 %v951
      %v1016 = vpop.f32.mrf.mxu0
      %v1017 = vadd.f32 %v901, %v1016
      %v1018 = vpop.f32.mrf.mxu0
      %v1019 = vpop.f32.mrf.mxu0
      %v1020 = vadd.f32 %v904, %v1019
      %v1021 = vpop.f32.mrf.mxu0
      %1022 = vmatprep.mubr.bf16.mxu0 0
      %1023 = vmatmul.mubr.bf16.gmra.mxu0 %v953
      %v1024 = vpop.f32.mrf.mxu0
      %v1025 = vadd.f32 %v909, %v1024
      %v1026 = vpop.f32.mrf.mxu0
      %v1027 = vpop.f32.mrf.mxu0
      %v1028 = vadd.f32 %v912, %v1027
      %v1029 = vpop.f32.mrf.mxu0
      %1030 = vmatprep.mubr.bf16.mxu0 0
      %1031 = vmatmul.mubr.bf16.gmra.mxu0 %v955
      %v1032 = vpop.f32.mrf.mxu0
      %v1033 = vadd.f32 %v917, %v1032
      %v1034 = vpop.f32.mrf.mxu0
      %v1035 = vpop.f32.mrf.mxu0
      %v1036 = vadd.f32 %v920, %v1035
      %v1037 = vpop.f32.mrf.mxu0
      %1038 = vmatprep.mubr.bf16.mxu0 0
      %1039 = vmatmul.mubr.bf16.gmra.mxu0 %v957
      %v1040 = vpop.f32.mrf.mxu0
      %v1041 = vadd.f32 %v925, %v1040
      %v1042 = vpop.f32.mrf.mxu0
      %v1043 = vpop.f32.mrf.mxu0
      %v1044 = vadd.f32 %v928, %v1043
      %v1045 = vpop.f32.mrf.mxu0
      %1046 = vmatprep.mubr.bf16.mxu0 0
      %1047 = vmatmul.mubr.bf16.gmra.mxu0 %v959
      %v1048 = vpop.f32.mrf.mxu0
      %v1049 = vadd.f32 %v933, %v1048
      %v1050 = vpop.f32.mrf.mxu0
      %v1051 = vpop.f32.mrf.mxu0
      %v1052 = vadd.f32 %v936, %v1051
      %v1053 = vpop.f32.mrf.mxu0
      %1054 = vmatprep.mubr.bf16.mxu0 0
      %1055 = vmatmul.mubr.bf16.gmra.mxu0 %v961
      %v1056 = vpop.f32.mrf.mxu0
      %v1057 = vadd.f32 %v941, %v1056
      %v1058 = vpop.f32.mrf.mxu0
      %v1059 = vpop.f32.mrf.mxu0
      %v1060 = vadd.f32 %v944, %v1059
      %v1061 = vpop.f32.mrf.mxu0
      %1062 = vdwg.mxu0
      %vm1071 = vcmask 1042432
      %vm1072 = vcmask 1046532
      %vm1073 = vmor %vm1071, %vm1072
      %v1074 = vrot.slane %v277, 5
      %v1075 = vrot.slane %v1074, 4
      %v1076 = vrot.slane %v278, 5
      %v1077 = vsel %vm1073, %v1075, %v1076
      %v1078 = vrot.slane %v1076, 4
      %v1079 = vrot.slane %v279, 5
      %v1080 = vsel %vm1073, %v1078, %v1079
      %v1081 = vrot.slane %v280, 5
      %v1082 = vrot.slane %v1081, 4
      %v1083 = vrot.slane %v281, 5
      %v1084 = vsel %vm1073, %v1082, %v1083
      %v1085 = vrot.slane %v1083, 4
      %v1086 = vrot.slane %v282, 5
      %v1087 = vsel %vm1073, %v1085, %v1086
      %v1088 = vrot.slane %v283, 5
      %v1089 = vrot.slane %v1088, 4
      %v1090 = vrot.slane %v284, 5
      %v1091 = vsel %vm1073, %v1089, %v1090
      %v1092 = vrot.slane %v1090, 4
      %v1093 = vrot.slane %v285, 5
      %v1094 = vsel %vm1073, %v1092, %v1093
      %v1095 = vrot.slane %v286, 5
      %v1096 = vrot.slane %v1095, 4
      %v1097 = vrot.slane %v287, 5
      %v1098 = vsel %vm1073, %v1096, %v1097
      %v1099 = vrot.slane %v1097, 4
      %v1100 = vrot.slane %v288, 5
      %v1101 = vsel %vm1073, %v1099, %v1100
      %v1102 = vrot.slane %v289, 5
      %v1103 = vrot.slane %v1102, 4
      %v1104 = vrot.slane %v290, 5
      %v1105 = vsel %vm1073, %v1103, %v1104
      %v1106 = vrot.slane %v1104, 4
      %v1107 = vrot.slane %v291, 5
      %v1108 = vsel %vm1073, %v1106, %v1107
      %v1109 = vrot.slane %v292, 5
      %v1110 = vrot.slane %v1109, 4
      %v1111 = vrot.slane %v293, 5
      %v1112 = vsel %vm1073, %v1110, %v1111
      %v1113 = vrot.slane %v1111, 4
      %v1114 = vrot.slane %v294, 5
      %v1115 = vsel %vm1073, %v1113, %v1114
      %v1116 = vrot.slane %v295, 5
      %v1117 = vrot.slane %v1116, 4
      %v1118 = vrot.slane %v296, 5
      %v1119 = vsel %vm1073, %v1117, %v1118
      %v1120 = vrot.slane %v1118, 4
      %v1121 = vrot.slane %v297, 5
      %v1122 = vsel %vm1073, %v1120, %v1121
      %v1123 = vrot.slane %v298, 5
      %v1124 = vrot.slane %v1123, 4
      %v1125 = vrot.slane %v299, 5
      %v1126 = vsel %vm1073, %v1124, %v1125
      %v1127 = vrot.slane %v1125, 4
      %v1128 = vrot.slane %v300, 5
      %v1129 = vsel %vm1073, %v1127, %v1128
      %s1130 = scalar_lea.vmem %s1, 16
      %v1131 = vld [vmem:[%s1130] sm:$0xf]
      %v1132 = vld [vmem:[%s1130 + $0x4] sm:$0xf]
      %v1133 = vunpack.c.l.b16 %v1077
      %v1134 = vunpack.c.l.b16 %v1080
      %v1135 = vunpack.c.l.b16 %v1084
      %v1136 = vunpack.c.l.b16 %v1087
      %v1137 = vunpack.c.l.b16 %v1091
      %v1138 = vunpack.c.l.b16 %v1094
      %v1139 = vunpack.c.l.b16 %v1098
      %v1140 = vunpack.c.l.b16 %v1101
      %v1141 = vunpack.c.l.b16 %v1105
      %v1142 = vunpack.c.l.b16 %v1108
      %v1143 = vunpack.c.l.b16 %v1112
      %v1144 = vunpack.c.l.b16 %v1115
      %v1145 = vunpack.c.l.b16 %v1119
      %v1146 = vunpack.c.l.b16 %v1122
      %v1147 = vunpack.c.l.b16 %v1126
      %v1148 = vunpack.c.l.b16 %v1129
      %v1149 = vpack.c.b16 %v1134, %v1133
      %v1150 = vpack.c.b16 %v1136, %v1135
      %v1151 = vpack.c.b16 %v1138, %v1137
      %v1152 = vpack.c.b16 %v1140, %v1139
      %v1153 = vpack.c.b16 %v1142, %v1141
      %v1154 = vpack.c.b16 %v1144, %v1143
      %v1155 = vpack.c.b16 %v1146, %v1145
      %v1156 = vpack.c.b16 %v1148, %v1147
      %v1159 = vunpack.c.l.b16 %v1131
      %v1160 = vunpack.c.l.b16 %v1132
      %v1161 = vpack.c.b16 %v1160, %v1159
      %v1164 = vsel %vm538, %v1149, 0
      %v1167 = vsel %vm538, %v1150, 0
      %v1170 = vsel %vm538, %v1151, 0
      %v1173 = vsel %vm538, %v1152, 0
      %v1176 = vsel %vm538, %v1153, 0
      %v1179 = vsel %vm538, %v1154, 0
      %v1182 = vsel %vm538, %v1155, 0
      %v1185 = vsel %vm538, %v1156, 0
      %1187 = vmatprep.subr.bf16.mxu0 0
      %1188 = vmatpush1.bf16.msra.mxu0 0
      %1189 = vmatprep.subr.bf16.mxu0 0
      %1190 = vmatpush1.bf16.msra.mxu0 0
      %1191 = vmatprep.subr.bf16.mxu0 0
      %1192 = vmatpush1.bf16.msra.mxu0 0
      %1193 = vmatprep.subr.bf16.mxu0 0
      %1194 = vmatpush1.bf16.msra.mxu0 0
      %1195 = vmatprep.subr.bf16.mxu0 0
      %1196 = vmatpush1.bf16.msra.mxu0 0
      %1197 = vmatprep.subr.bf16.mxu0 0
      %1198 = vmatpush1.bf16.msra.mxu0 0
      %1199 = vmatprep.subr.bf16.mxu0 0
      %1200 = vmatpush1.bf16.msra.mxu0 0
      %1201 = vmatprep.subr.bf16.mxu0 0
      %1202 = vmatpush1.bf16.msra.mxu0 %v1161
      %1203 = vmatprep.subr.bf16.mxu0 0
      %1204 = vmatpush2.bf16.msra.mxu0 0
      %1205 = vmatprep.subr.bf16.mxu0 0
      %1206 = vmatpush2.bf16.msra.mxu0 0
      %1207 = vmatprep.subr.bf16.mxu0 0
      %1208 = vmatpush2.bf16.msra.mxu0 0
      %1209 = vmatprep.subr.bf16.mxu0 0
      %1210 = vmatpush2.bf16.msra.mxu0 0
      %1211 = vmatprep.subr.bf16.mxu0 0
      %1212 = vmatpush2.bf16.msra.mxu0 0
      %1213 = vmatprep.subr.bf16.mxu0 0
      %1214 = vmatpush2.bf16.msra.mxu0 0
      %1215 = vmatprep.subr.bf16.mxu0 0
      %1216 = vmatpush2.bf16.msra.mxu0 0
      %1217 = vmatprep.subr.bf16.mxu0 0
      %1218 = vmatpush2.bf16.msra.mxu0 0
      %1219 = vmatprep.mubr.bf16.mxu0 0
      %1220 = vmatmul.mubr.bf16.gmra.mxu0 %v1164
      %v1221 = vpop.f32.mrf.mxu0
      %v1222 = vadd.f32 0.0, %v1221
      %v1223 = vpop.f32.mrf.mxu0
      %v1224 = vpop.f32.mrf.mxu0
      %v1225 = vadd.f32 0.0, %v1224
      %v1226 = vpop.f32.mrf.mxu0
      %1227 = vmatprep.mubr.bf16.mxu0 0
      %1228 = vmatmul.mubr.bf16.gmra.mxu0 %v1167
      %v1229 = vpop.f32.mrf.mxu0
      %v1230 = vadd.f32 0.0, %v1229
      %v1231 = vpop.f32.mrf.mxu0
      %v1232 = vpop.f32.mrf.mxu0
      %v1233 = vadd.f32 0.0, %v1232
      %v1234 = vpop.f32.mrf.mxu0
      %1235 = vmatprep.mubr.bf16.mxu0 0
      %1236 = vmatmul.mubr.bf16.gmra.mxu0 %v1170
      %v1237 = vpop.f32.mrf.mxu0
      %v1238 = vadd.f32 0.0, %v1237
      %v1239 = vpop.f32.mrf.mxu0
      %v1240 = vpop.f32.mrf.mxu0
      %v1241 = vadd.f32 0.0, %v1240
      %v1242 = vpop.f32.mrf.mxu0
      %1243 = vmatprep.mubr.bf16.mxu0 0
      %1244 = vmatmul.mubr.bf16.gmra.mxu0 %v1173
      %v1245 = vpop.f32.mrf.mxu0
      %v1246 = vadd.f32 0.0, %v1245
      %v1247 = vpop.f32.mrf.mxu0
      %v1248 = vpop.f32.mrf.mxu0
      %v1249 = vadd.f32 0.0, %v1248
      %v1250 = vpop.f32.mrf.mxu0
      %1251 = vmatprep.mubr.bf16.mxu0 0
      %1252 = vmatmul.mubr.bf16.gmra.mxu0 %v1176
      %v1253 = vpop.f32.mrf.mxu0
      %v1254 = vadd.f32 0.0, %v1253
      %v1255 = vpop.f32.mrf.mxu0
      %v1256 = vpop.f32.mrf.mxu0
      %v1257 = vadd.f32 0.0, %v1256
      %v1258 = vpop.f32.mrf.mxu0
      %1259 = vmatprep.mubr.bf16.mxu0 0
      %1260 = vmatmul.mubr.bf16.gmra.mxu0 %v1179
      %v1261 = vpop.f32.mrf.mxu0
      %v1262 = vadd.f32 0.0, %v1261
      %v1263 = vpop.f32.mrf.mxu0
      %v1264 = vpop.f32.mrf.mxu0
      %v1265 = vadd.f32 0.0, %v1264
      %v1266 = vpop.f32.mrf.mxu0
      %1267 = vmatprep.mubr.bf16.mxu0 0
      %1268 = vmatmul.mubr.bf16.gmra.mxu0 %v1182
      %v1269 = vpop.f32.mrf.mxu0
      %v1270 = vadd.f32 0.0, %v1269
      %v1271 = vpop.f32.mrf.mxu0
      %v1272 = vpop.f32.mrf.mxu0
      %v1273 = vadd.f32 0.0, %v1272
      %v1274 = vpop.f32.mrf.mxu0
      %1275 = vmatprep.mubr.bf16.mxu0 0
      %1276 = vmatmul.mubr.bf16.gmra.mxu0 %v1185
      %v1277 = vpop.f32.mrf.mxu0
      %v1278 = vadd.f32 0.0, %v1277
      %v1279 = vpop.f32.mrf.mxu0
      %v1280 = vpop.f32.mrf.mxu0
      %v1281 = vadd.f32 0.0, %v1280
      %v1282 = vpop.f32.mrf.mxu0
      %1283 = vdwg.mxu0
      %v1284 = vadd.f32 %v765, %v1222
      %v1285 = vadd.f32 %v768, %v1225
      %v1286 = vadd.f32 %v773, %v1230
      %v1287 = vadd.f32 %v776, %v1233
      %v1288 = vadd.f32 %v781, %v1238
      %v1289 = vadd.f32 %v784, %v1241
      %v1290 = vadd.f32 %v789, %v1246
      %v1291 = vadd.f32 %v792, %v1249
      %v1292 = vadd.f32 %v797, %v1254
      %v1293 = vadd.f32 %v800, %v1257
      %v1294 = vadd.f32 %v805, %v1262
      %v1295 = vadd.f32 %v808, %v1265
      %v1296 = vadd.f32 %v813, %v1270
      %v1297 = vadd.f32 %v816, %v1273
      %v1298 = vadd.f32 %v821, %v1278
      %v1299 = vadd.f32 %v824, %v1281
      %s1300 = scalar_lea.vmem %s2, 4
      %v1301 = vld [vmem:[%s1300] sm:$0x3]
      %v1302 = vsel %vm829, %v1149, 0
      %v1304 = vsel %vm829, %v1150, 0
      %v1306 = vsel %vm829, %v1151, 0
      %v1308 = vsel %vm829, %v1152, 0
      %v1310 = vsel %vm829, %v1153, 0
      %v1312 = vsel %vm829, %v1154, 0
      %v1314 = vsel %vm829, %v1155, 0
      %v1316 = vsel %vm829, %v1156, 0
      %v1319 = vsel %vm846, %v1301, 0
      %1321 = vmatprep.subr.bf16.mxu0 0
      %1322 = vmatpush1.bf16.msra.mxu0 0
      %1323 = vmatprep.subr.bf16.mxu0 0
      %1324 = vmatpush1.bf16.msra.mxu0 0
      %1325 = vmatprep.subr.bf16.mxu0 0
      %1326 = vmatpush1.bf16.msra.mxu0 0
      %1327 = vmatprep.subr.bf16.mxu0 0
      %1328 = vmatpush1.bf16.msra.mxu0 0
      %1329 = vmatprep.subr.bf16.mxu0 0
      %1330 = vmatpush1.bf16.msra.mxu0 0
      %1331 = vmatprep.subr.bf16.mxu0 0
      %1332 = vmatpush1.bf16.msra.mxu0 0
      %1333 = vmatprep.subr.bf16.mxu0 0
      %1334 = vmatpush1.bf16.msra.mxu0 0
      %1335 = vmatprep.subr.bf16.mxu0 0
      %1336 = vmatpush1.bf16.msra.mxu0 %v1319
      %1337 = vmatprep.subr.bf16.mxu0 0
      %1338 = vmatpush2.bf16.msra.mxu0 0
      %1339 = vmatprep.subr.bf16.mxu0 0
      %1340 = vmatpush2.bf16.msra.mxu0 0
      %1341 = vmatprep.subr.bf16.mxu0 0
      %1342 = vmatpush2.bf16.msra.mxu0 0
      %1343 = vmatprep.subr.bf16.mxu0 0
      %1344 = vmatpush2.bf16.msra.mxu0 0
      %1345 = vmatprep.subr.bf16.mxu0 0
      %1346 = vmatpush2.bf16.msra.mxu0 0
      %1347 = vmatprep.subr.bf16.mxu0 0
      %1348 = vmatpush2.bf16.msra.mxu0 0
      %1349 = vmatprep.subr.bf16.mxu0 0
      %1350 = vmatpush2.bf16.msra.mxu0 0
      %1351 = vmatprep.subr.bf16.mxu0 0
      %1352 = vmatpush2.bf16.msra.mxu0 0
      %1353 = vmatprep.mubr.bf16.mxu0 0
      %1354 = vmatmul.mubr.bf16.gmra.mxu0 %v1302
      %v1355 = vpop.f32.mrf.mxu0
      %v1356 = vadd.f32 0.0, %v1355
      %v1357 = vpop.f32.mrf.mxu0
      %v1358 = vpop.f32.mrf.mxu0
      %v1359 = vadd.f32 0.0, %v1358
      %v1360 = vpop.f32.mrf.mxu0
      %1361 = vmatprep.mubr.bf16.mxu0 0
      %1362 = vmatmul.mubr.bf16.gmra.mxu0 %v1304
      %v1363 = vpop.f32.mrf.mxu0
      %v1364 = vadd.f32 0.0, %v1363
      %v1365 = vpop.f32.mrf.mxu0
      %v1366 = vpop.f32.mrf.mxu0
      %v1367 = vadd.f32 0.0, %v1366
      %v1368 = vpop.f32.mrf.mxu0
      %1369 = vmatprep.mubr.bf16.mxu0 0
      %1370 = vmatmul.mubr.bf16.gmra.mxu0 %v1306
      %v1371 = vpop.f32.mrf.mxu0
      %v1372 = vadd.f32 0.0, %v1371
      %v1373 = vpop.f32.mrf.mxu0
      %v1374 = vpop.f32.mrf.mxu0
      %v1375 = vadd.f32 0.0, %v1374
      %v1376 = vpop.f32.mrf.mxu0
      %1377 = vmatprep.mubr.bf16.mxu0 0
      %1378 = vmatmul.mubr.bf16.gmra.mxu0 %v1308
      %v1379 = vpop.f32.mrf.mxu0
      %v1380 = vadd.f32 0.0, %v1379
      %v1381 = vpop.f32.mrf.mxu0
      %v1382 = vpop.f32.mrf.mxu0
      %v1383 = vadd.f32 0.0, %v1382
      %v1384 = vpop.f32.mrf.mxu0
      %1385 = vmatprep.mubr.bf16.mxu0 0
      %1386 = vmatmul.mubr.bf16.gmra.mxu0 %v1310
      %v1387 = vpop.f32.mrf.mxu0
      %v1388 = vadd.f32 0.0, %v1387
      %v1389 = vpop.f32.mrf.mxu0
      %v1390 = vpop.f32.mrf.mxu0
      %v1391 = vadd.f32 0.0, %v1390
      %v1392 = vpop.f32.mrf.mxu0
      %1393 = vmatprep.mubr.bf16.mxu0 0
      %1394 = vmatmul.mubr.bf16.gmra.mxu0 %v1312
      %v1395 = vpop.f32.mrf.mxu0
      %v1396 = vadd.f32 0.0, %v1395
      %v1397 = vpop.f32.mrf.mxu0
      %v1398 = vpop.f32.mrf.mxu0
      %v1399 = vadd.f32 0.0, %v1398
      %v1400 = vpop.f32.mrf.mxu0
      %1401 = vmatprep.mubr.bf16.mxu0 0
      %1402 = vmatmul.mubr.bf16.gmra.mxu0 %v1314
      %v1403 = vpop.f32.mrf.mxu0
      %v1404 = vadd.f32 0.0, %v1403
      %v1405 = vpop.f32.mrf.mxu0
      %v1406 = vpop.f32.mrf.mxu0
      %v1407 = vadd.f32 0.0, %v1406
      %v1408 = vpop.f32.mrf.mxu0
      %1409 = vmatprep.mubr.bf16.mxu0 0
      %1410 = vmatmul.mubr.bf16.gmra.mxu0 %v1316
      %v1411 = vpop.f32.mrf.mxu0
      %v1412 = vadd.f32 0.0, %v1411
      %v1413 = vpop.f32.mrf.mxu0
      %v1414 = vpop.f32.mrf.mxu0
      %v1415 = vadd.f32 0.0, %v1414
      %v1416 = vpop.f32.mrf.mxu0
      %1417 = vdwg.mxu0
      %v1418 = vadd.f32 %v1001, %v1356
      %v1419 = vadd.f32 %v1004, %v1359
      %v1420 = vadd.f32 %v1009, %v1364
      %v1421 = vadd.f32 %v1012, %v1367
      %v1422 = vadd.f32 %v1017, %v1372
      %v1423 = vadd.f32 %v1020, %v1375
      %v1424 = vadd.f32 %v1025, %v1380
      %v1425 = vadd.f32 %v1028, %v1383
      %v1426 = vadd.f32 %v1033, %v1388
      %v1427 = vadd.f32 %v1036, %v1391
      %v1428 = vadd.f32 %v1041, %v1396
      %v1429 = vadd.f32 %v1044, %v1399
      %v1430 = vadd.f32 %v1049, %v1404
      %v1431 = vadd.f32 %v1052, %v1407
      %v1432 = vadd.f32 %v1057, %v1412
      %v1433 = vadd.f32 %v1060, %v1415
      %s1434 = scalar_lea.vmem %s1, 24
      %v1435 = vld [vmem:[%s1434] sm:$0xf]
      %v1436 = vld [vmem:[%s1434 + $0x4] sm:$0xf]
      %v1439 = vunpack.c.l.b16 %v301
      %v1440 = vunpack.c.l.b16 %v302
      %v1441 = vpack.c.b16 %v1440, %v1439
      %v1444 = vunpack.c.l.b16 %v1435
      %v1445 = vunpack.c.l.b16 %v1436
      %v1446 = vpack.c.b16 %v1445, %v1444
      %v1449 = vsel %vm538, %v1441, 0
      %1451 = vmatprep.subr.bf16.mxu0 0
      %1452 = vmatpush1.bf16.msra.mxu0 0
      %1453 = vmatprep.subr.bf16.mxu0 0
      %1454 = vmatpush1.bf16.msra.mxu0 0
      %1455 = vmatprep.subr.bf16.mxu0 0
      %1456 = vmatpush1.bf16.msra.mxu0 0
      %1457 = vmatprep.subr.bf16.mxu0 0
      %1458 = vmatpush1.bf16.msra.mxu0 0
      %1459 = vmatprep.subr.bf16.mxu0 0
      %1460 = vmatpush1.bf16.msra.mxu0 0
      %1461 = vmatprep.subr.bf16.mxu0 0
      %1462 = vmatpush1.bf16.msra.mxu0 0
      %1463 = vmatprep.subr.bf16.mxu0 0
      %1464 = vmatpush1.bf16.msra.mxu0 0
      %1465 = vmatprep.subr.bf16.mxu0 0
      %1466 = vmatpush1.bf16.msra.mxu0 %v1446
      %1467 = vmatprep.subr.bf16.mxu0 0
      %1468 = vmatpush2.bf16.msra.mxu0 0
      %1469 = vmatprep.subr.bf16.mxu0 0
      %1470 = vmatpush2.bf16.msra.mxu0 0
      %1471 = vmatprep.subr.bf16.mxu0 0
      %1472 = vmatpush2.bf16.msra.mxu0 0
      %1473 = vmatprep.subr.bf16.mxu0 0
      %1474 = vmatpush2.bf16.msra.mxu0 0
      %1475 = vmatprep.subr.bf16.mxu0 0
      %1476 = vmatpush2.bf16.msra.mxu0 0
      %1477 = vmatprep.subr.bf16.mxu0 0
      %1478 = vmatpush2.bf16.msra.mxu0 0
      %1479 = vmatprep.subr.bf16.mxu0 0
      %1480 = vmatpush2.bf16.msra.mxu0 0
      %1481 = vmatprep.subr.bf16.mxu0 0
      %1482 = vmatpush2.bf16.msra.mxu0 0
      %1483 = vmatprep.mubr.bf16.mxu0 0
      %1484 = vmatmul.mubr.bf16.gmra.mxu0 %v710
      %v1485 = vpop.f32.mrf.mxu0
      %v1486 = vadd.f32 0.0, %v1485
      %v1487 = vpop.f32.mrf.mxu0
      %v1488 = vpop.f32.mrf.mxu0
      %v1489 = vadd.f32 0.0, %v1488
      %v1490 = vpop.f32.mrf.mxu0
      %1491 = vmatprep.mubr.bf16.mxu0 0
      %1492 = vmatmul.mubr.bf16.gmra.mxu0 %v713
      %v1493 = vpop.f32.mrf.mxu0
      %v1494 = vadd.f32 0.0, %v1493
      %v1495 = vpop.f32.mrf.mxu0
      %v1496 = vpop.f32.mrf.mxu0
      %v1497 = vadd.f32 0.0, %v1496
      %v1498 = vpop.f32.mrf.mxu0
      %1499 = vmatprep.mubr.bf16.mxu0 0
      %1500 = vmatmul.mubr.bf16.gmra.mxu0 %v716
      %v1501 = vpop.f32.mrf.mxu0
      %v1502 = vadd.f32 0.0, %v1501
      %v1503 = vpop.f32.mrf.mxu0
      %v1504 = vpop.f32.mrf.mxu0
      %v1505 = vadd.f32 0.0, %v1504
      %v1506 = vpop.f32.mrf.mxu0
      %1507 = vmatprep.mubr.bf16.mxu0 0
      %1508 = vmatmul.mubr.bf16.gmra.mxu0 %v719
      %v1509 = vpop.f32.mrf.mxu0
      %v1510 = vadd.f32 0.0, %v1509
      %v1511 = vpop.f32.mrf.mxu0
      %v1512 = vpop.f32.mrf.mxu0
      %v1513 = vadd.f32 0.0, %v1512
      %v1514 = vpop.f32.mrf.mxu0
      %1515 = vmatprep.mubr.bf16.mxu0 0
      %1516 = vmatmul.mubr.bf16.gmra.mxu0 %v722
      %v1517 = vpop.f32.mrf.mxu0
      %v1518 = vadd.f32 0.0, %v1517
      %v1519 = vpop.f32.mrf.mxu0
      %v1520 = vpop.f32.mrf.mxu0
      %v1521 = vadd.f32 0.0, %v1520
      %v1522 = vpop.f32.mrf.mxu0
      %1523 = vmatprep.mubr.bf16.mxu0 0
      %1524 = vmatmul.mubr.bf16.gmra.mxu0 %v725
      %v1525 = vpop.f32.mrf.mxu0
      %v1526 = vadd.f32 0.0, %v1525
      %v1527 = vpop.f32.mrf.mxu0
      %v1528 = vpop.f32.mrf.mxu0
      %v1529 = vadd.f32 0.0, %v1528
      %v1530 = vpop.f32.mrf.mxu0
      %1531 = vmatprep.mubr.bf16.mxu0 0
      %1532 = vmatmul.mubr.bf16.gmra.mxu0 %v728
      %v1533 = vpop.f32.mrf.mxu0
      %v1534 = vadd.f32 0.0, %v1533
      %v1535 = vpop.f32.mrf.mxu0
      %v1536 = vpop.f32.mrf.mxu0
      %v1537 = vadd.f32 0.0, %v1536
      %v1538 = vpop.f32.mrf.mxu0
      %1539 = vmatprep.mubr.bf16.mxu0 0
      %1540 = vmatmul.mubr.bf16.gmra.mxu0 %v1449
      %v1541 = vpop.f32.mrf.mxu0
      %v1542 = vadd.f32 0.0, %v1541
      %v1543 = vpop.f32.mrf.mxu0
      %v1544 = vpop.f32.mrf.mxu0
      %v1545 = vadd.f32 0.0, %v1544
      %v1546 = vpop.f32.mrf.mxu0
      %1547 = vdwg.mxu0
      %v1548 = vadd.f32 %v1284, %v1486
      %v1549 = vadd.f32 %v1285, %v1489
      %v1550 = vadd.f32 %v1286, %v1494
      %v1551 = vadd.f32 %v1287, %v1497
      %v1552 = vadd.f32 %v1288, %v1502
      %v1553 = vadd.f32 %v1289, %v1505
      %v1554 = vadd.f32 %v1290, %v1510
      %v1555 = vadd.f32 %v1291, %v1513
      %v1556 = vadd.f32 %v1292, %v1518
      %v1557 = vadd.f32 %v1293, %v1521
      %v1558 = vadd.f32 %v1294, %v1526
      %v1559 = vadd.f32 %v1295, %v1529
      %v1560 = vadd.f32 %v1296, %v1534
      %v1561 = vadd.f32 %v1297, %v1537
      %v1562 = vadd.f32 %v1298, %v1542
      %v1563 = vadd.f32 %v1299, %v1545
      %s1564 = scalar_lea.vmem %s2, 6
      %v1565 = vld [vmem:[%s1564] sm:$0x3]
      %v1566 = vsel %vm829, %v1441, 0
      %v1569 = vsel %vm846, %v1565, 0
      %1571 = vmatprep.subr.bf16.mxu0 0
      %1572 = vmatpush1.bf16.msra.mxu0 0
      %1573 = vmatprep.subr.bf16.mxu0 0
      %1574 = vmatpush1.bf16.msra.mxu0 0
      %1575 = vmatprep.subr.bf16.mxu0 0
      %1576 = vmatpush1.bf16.msra.mxu0 0
      %1577 = vmatprep.subr.bf16.mxu0 0
      %1578 = vmatpush1.bf16.msra.mxu0 0
      %1579 = vmatprep.subr.bf16.mxu0 0
      %1580 = vmatpush1.bf16.msra.mxu0 0
      %1581 = vmatprep.subr.bf16.mxu0 0
      %1582 = vmatpush1.bf16.msra.mxu0 0
      %1583 = vmatprep.subr.bf16.mxu0 0
      %1584 = vmatpush1.bf16.msra.mxu0 0
      %1585 = vmatprep.subr.bf16.mxu0 0
      %1586 = vmatpush1.bf16.msra.mxu0 %v1569
      %1587 = vmatprep.subr.bf16.mxu0 0
      %1588 = vmatpush2.bf16.msra.mxu0 0
      %1589 = vmatprep.subr.bf16.mxu0 0
      %1590 = vmatpush2.bf16.msra.mxu0 0
      %1591 = vmatprep.subr.bf16.mxu0 0
      %1592 = vmatpush2.bf16.msra.mxu0 0
      %1593 = vmatprep.subr.bf16.mxu0 0
      %1594 = vmatpush2.bf16.msra.mxu0 0
      %1595 = vmatprep.subr.bf16.mxu0 0
      %1596 = vmatpush2.bf16.msra.mxu0 0
      %1597 = vmatprep.subr.bf16.mxu0 0
      %1598 = vmatpush2.bf16.msra.mxu0 0
      %1599 = vmatprep.subr.bf16.mxu0 0
      %1600 = vmatpush2.bf16.msra.mxu0 0
      %1601 = vmatprep.subr.bf16.mxu0 0
      %1602 = vmatpush2.bf16.msra.mxu0 0
      %1603 = vmatprep.mubr.bf16.mxu0 0
      %1604 = vmatmul.mubr.bf16.gmra.mxu0 %v949
      %v1605 = vpop.f32.mrf.mxu0
      %v1606 = vadd.f32 0.0, %v1605
      %v1607 = vpop.f32.mrf.mxu0
      %v1608 = vpop.f32.mrf.mxu0
      %v1609 = vadd.f32 0.0, %v1608
      %v1610 = vpop.f32.mrf.mxu0
      %1611 = vmatprep.mubr.bf16.mxu0 0
      %1612 = vmatmul.mubr.bf16.gmra.mxu0 %v951
      %v1613 = vpop.f32.mrf.mxu0
      %v1614 = vadd.f32 0.0, %v1613
      %v1615 = vpop.f32.mrf.mxu0
      %v1616 = vpop.f32.mrf.mxu0
      %v1617 = vadd.f32 0.0, %v1616
      %v1618 = vpop.f32.mrf.mxu0
      %1619 = vmatprep.mubr.bf16.mxu0 0
      %1620 = vmatmul.mubr.bf16.gmra.mxu0 %v953
      %v1621 = vpop.f32.mrf.mxu0
      %v1622 = vadd.f32 0.0, %v1621
      %v1623 = vpop.f32.mrf.mxu0
      %v1624 = vpop.f32.mrf.mxu0
      %v1625 = vadd.f32 0.0, %v1624
      %v1626 = vpop.f32.mrf.mxu0
      %1627 = vmatprep.mubr.bf16.mxu0 0
      %1628 = vmatmul.mubr.bf16.gmra.mxu0 %v955
      %v1629 = vpop.f32.mrf.mxu0
      %v1630 = vadd.f32 0.0, %v1629
      %v1631 = vpop.f32.mrf.mxu0
      %v1632 = vpop.f32.mrf.mxu0
      %v1633 = vadd.f32 0.0, %v1632
      %v1634 = vpop.f32.mrf.mxu0
      %1635 = vmatprep.mubr.bf16.mxu0 0
      %1636 = vmatmul.mubr.bf16.gmra.mxu0 %v957
      %v1637 = vpop.f32.mrf.mxu0
      %v1638 = vadd.f32 0.0, %v1637
      %v1639 = vpop.f32.mrf.mxu0
      %v1640 = vpop.f32.mrf.mxu0
      %v1641 = vadd.f32 0.0, %v1640
      %v1642 = vpop.f32.mrf.mxu0
      %1643 = vmatprep.mubr.bf16.mxu0 0
      %1644 = vmatmul.mubr.bf16.gmra.mxu0 %v959
      %v1645 = vpop.f32.mrf.mxu0
      %v1646 = vadd.f32 0.0, %v1645
      %v1647 = vpop.f32.mrf.mxu0
      %v1648 = vpop.f32.mrf.mxu0
      %v1649 = vadd.f32 0.0, %v1648
      %v1650 = vpop.f32.mrf.mxu0
      %1651 = vmatprep.mubr.bf16.mxu0 0
      %1652 = vmatmul.mubr.bf16.gmra.mxu0 %v961
      %v1653 = vpop.f32.mrf.mxu0
      %v1654 = vadd.f32 0.0, %v1653
      %v1655 = vpop.f32.mrf.mxu0
      %v1656 = vpop.f32.mrf.mxu0
      %v1657 = vadd.f32 0.0, %v1656
      %v1658 = vpop.f32.mrf.mxu0
      %1659 = vmatprep.mubr.bf16.mxu0 0
      %1660 = vmatmul.mubr.bf16.gmra.mxu0 %v1566
      %v1661 = vpop.f32.mrf.mxu0
      %v1662 = vadd.f32 0.0, %v1661
      %v1663 = vpop.f32.mrf.mxu0
      %v1664 = vpop.f32.mrf.mxu0
      %v1665 = vadd.f32 0.0, %v1664
      %v1666 = vpop.f32.mrf.mxu0
      %1667 = vdwg.mxu0
      %v1668 = vadd.f32 %v1418, %v1606
      %v1669 = vadd.f32 %v1419, %v1609
      %v1670 = vadd.f32 %v1420, %v1614
      %v1671 = vadd.f32 %v1421, %v1617
      %v1672 = vadd.f32 %v1422, %v1622
      %v1673 = vadd.f32 %v1423, %v1625
      %v1674 = vadd.f32 %v1424, %v1630
      %v1675 = vadd.f32 %v1425, %v1633
      %v1676 = vadd.f32 %v1426, %v1638
      %v1677 = vadd.f32 %v1427, %v1641
      %v1678 = vadd.f32 %v1428, %v1646
      %v1679 = vadd.f32 %v1429, %v1649
      %v1680 = vadd.f32 %v1430, %v1654
      %v1681 = vadd.f32 %v1431, %v1657
      %v1682 = vadd.f32 %v1432, %v1662
      %v1683 = vadd.f32 %v1433, %v1665
      %v1685 = vshrl.u32 %v301, 16
      %v1687 = vrot.slane %v1685, 4
      %v1688 = vshll.u32 %v301, 16
      %v1690 = vrot.slane %v1688, 5
      %v1691 = vor.u32 %v1687, %v1690
      %v1692 = vrot.slane %v1691, 4
      %v1694 = vshll.u32 %v302, 16
      %v1696 = vrot.slane %v1694, 5
      %v1697 = vsel %vm312, %v1692, %v1696
      %v1698 = vshrl.u32 %v302, 16
      %v1700 = vrot.slane %v1698, 4
      %v1701 = vor.u32 %v1700, %v1696
      %v1702 = vrot.slane %v1701, 4
      %v1704 = vshll.u32 %v303, 16
      %v1706 = vrot.slane %v1704, 5
      %v1707 = vsel %vm312, %v1702, %v1706
      %s1708 = scalar_lea.vmem %s1, 32
      %v1709 = vld [vmem:[%s1708] sm:$0xf]
      %v1710 = vld [vmem:[%s1708 + $0x4] sm:$0xf]
      %v1711 = vunpack.c.l.b16 %v1697
      %v1712 = vunpack.c.l.b16 %v1707
      %v1713 = vpack.c.b16 %v1712, %v1711
      %v1716 = vunpack.c.l.b16 %v1709
      %v1717 = vunpack.c.l.b16 %v1710
      %v1718 = vpack.c.b16 %v1717, %v1716
      %v1721 = vsel %vm538, %v1713, 0
      %1723 = vmatprep.subr.bf16.mxu0 0
      %1724 = vmatpush1.bf16.msra.mxu0 0
      %1725 = vmatprep.subr.bf16.mxu0 0
      %1726 = vmatpush1.bf16.msra.mxu0 0
      %1727 = vmatprep.subr.bf16.mxu0 0
      %1728 = vmatpush1.bf16.msra.mxu0 0
      %1729 = vmatprep.subr.bf16.mxu0 0
      %1730 = vmatpush1.bf16.msra.mxu0 0
      %1731 = vmatprep.subr.bf16.mxu0 0
      %1732 = vmatpush1.bf16.msra.mxu0 0
      %1733 = vmatprep.subr.bf16.mxu0 0
      %1734 = vmatpush1.bf16.msra.mxu0 0
      %1735 = vmatprep.subr.bf16.mxu0 0
      %1736 = vmatpush1.bf16.msra.mxu0 0
      %1737 = vmatprep.subr.bf16.mxu0 0
      %1738 = vmatpush1.bf16.msra.mxu0 %v1718
      %1739 = vmatprep.subr.bf16.mxu0 0
      %1740 = vmatpush2.bf16.msra.mxu0 0
      %1741 = vmatprep.subr.bf16.mxu0 0
      %1742 = vmatpush2.bf16.msra.mxu0 0
      %1743 = vmatprep.subr.bf16.mxu0 0
      %1744 = vmatpush2.bf16.msra.mxu0 0
      %1745 = vmatprep.subr.bf16.mxu0 0
      %1746 = vmatpush2.bf16.msra.mxu0 0
      %1747 = vmatprep.subr.bf16.mxu0 0
      %1748 = vmatpush2.bf16.msra.mxu0 0
      %1749 = vmatprep.subr.bf16.mxu0 0
      %1750 = vmatpush2.bf16.msra.mxu0 0
      %1751 = vmatprep.subr.bf16.mxu0 0
      %1752 = vmatpush2.bf16.msra.mxu0 0
      %1753 = vmatprep.subr.bf16.mxu0 0
      %1754 = vmatpush2.bf16.msra.mxu0 0
      %1755 = vmatprep.mubr.bf16.mxu0 0
      %1756 = vmatmul.mubr.bf16.gmra.mxu0 %v543
      %v1757 = vpop.f32.mrf.mxu0
      %v1758 = vadd.f32 0.0, %v1757
      %v1759 = vpop.f32.mrf.mxu0
      %v1760 = vpop.f32.mrf.mxu0
      %v1761 = vadd.f32 0.0, %v1760
      %v1762 = vpop.f32.mrf.mxu0
      %1763 = vmatprep.mubr.bf16.mxu0 0
      %1764 = vmatmul.mubr.bf16.gmra.mxu0 %v546
      %v1765 = vpop.f32.mrf.mxu0
      %v1766 = vadd.f32 0.0, %v1765
      %v1767 = vpop.f32.mrf.mxu0
      %v1768 = vpop.f32.mrf.mxu0
      %v1769 = vadd.f32 0.0, %v1768
      %v1770 = vpop.f32.mrf.mxu0
      %1771 = vmatprep.mubr.bf16.mxu0 0
      %1772 = vmatmul.mubr.bf16.gmra.mxu0 %v549
      %v1773 = vpop.f32.mrf.mxu0
      %v1774 = vadd.f32 0.0, %v1773
      %v1775 = vpop.f32.mrf.mxu0
      %v1776 = vpop.f32.mrf.mxu0
      %v1777 = vadd.f32 0.0, %v1776
      %v1778 = vpop.f32.mrf.mxu0
      %1779 = vmatprep.mubr.bf16.mxu0 0
      %1780 = vmatmul.mubr.bf16.gmra.mxu0 %v552
      %v1781 = vpop.f32.mrf.mxu0
      %v1782 = vadd.f32 0.0, %v1781
      %v1783 = vpop.f32.mrf.mxu0
      %v1784 = vpop.f32.mrf.mxu0
      %v1785 = vadd.f32 0.0, %v1784
      %v1786 = vpop.f32.mrf.mxu0
      %1787 = vmatprep.mubr.bf16.mxu0 0
      %1788 = vmatmul.mubr.bf16.gmra.mxu0 %v555
      %v1789 = vpop.f32.mrf.mxu0
      %v1790 = vadd.f32 0.0, %v1789
      %v1791 = vpop.f32.mrf.mxu0
      %v1792 = vpop.f32.mrf.mxu0
      %v1793 = vadd.f32 0.0, %v1792
      %v1794 = vpop.f32.mrf.mxu0
      %1795 = vmatprep.mubr.bf16.mxu0 0
      %1796 = vmatmul.mubr.bf16.gmra.mxu0 %v558
      %v1797 = vpop.f32.mrf.mxu0
      %v1798 = vadd.f32 0.0, %v1797
      %v1799 = vpop.f32.mrf.mxu0
      %v1800 = vpop.f32.mrf.mxu0
      %v1801 = vadd.f32 0.0, %v1800
      %v1802 = vpop.f32.mrf.mxu0
      %1803 = vmatprep.mubr.bf16.mxu0 0
      %1804 = vmatmul.mubr.bf16.gmra.mxu0 %v561
      %v1805 = vpop.f32.mrf.mxu0
      %v1806 = vadd.f32 0.0, %v1805
      %v1807 = vpop.f32.mrf.mxu0
      %v1808 = vpop.f32.mrf.mxu0
      %v1809 = vadd.f32 0.0, %v1808
      %v1810 = vpop.f32.mrf.mxu0
      %1811 = vmatprep.mubr.bf16.mxu0 0
      %1812 = vmatmul.mubr.bf16.gmra.mxu0 %v1721
      %v1813 = vpop.f32.mrf.mxu0
      %v1814 = vadd.f32 0.0, %v1813
      %v1815 = vpop.f32.mrf.mxu0
      %v1816 = vpop.f32.mrf.mxu0
      %v1817 = vadd.f32 0.0, %v1816
      %v1818 = vpop.f32.mrf.mxu0
      %1819 = vdwg.mxu0
      %v1820 = vadd.f32 %v1548, %v1758
      %v1821 = vadd.f32 %v1549, %v1761
      %v1822 = vadd.f32 %v1550, %v1766
      %v1823 = vadd.f32 %v1551, %v1769
      %v1824 = vadd.f32 %v1552, %v1774
      %v1825 = vadd.f32 %v1553, %v1777
      %v1826 = vadd.f32 %v1554, %v1782
      %v1827 = vadd.f32 %v1555, %v1785
      %v1828 = vadd.f32 %v1556, %v1790
      %v1829 = vadd.f32 %v1557, %v1793
      %v1830 = vadd.f32 %v1558, %v1798
      %v1831 = vadd.f32 %v1559, %v1801
      %v1832 = vadd.f32 %v1560, %v1806
      %v1833 = vadd.f32 %v1561, %v1809
      %v1834 = vadd.f32 %v1562, %v1814
      %v1835 = vadd.f32 %v1563, %v1817
      %s1836 = scalar_lea.vmem %s2, 8
      %v1837 = vld [vmem:[%s1836] sm:$0x3]
      %v1838 = vsel %vm829, %v1713, 0
      %v1841 = vsel %vm846, %v1837, 0
      %1843 = vmatprep.subr.bf16.mxu0 0
      %1844 = vmatpush1.bf16.msra.mxu0 0
      %1845 = vmatprep.subr.bf16.mxu0 0
      %1846 = vmatpush1.bf16.msra.mxu0 0
      %1847 = vmatprep.subr.bf16.mxu0 0
      %1848 = vmatpush1.bf16.msra.mxu0 0
      %1849 = vmatprep.subr.bf16.mxu0 0
      %1850 = vmatpush1.bf16.msra.mxu0 0
      %1851 = vmatprep.subr.bf16.mxu0 0
      %1852 = vmatpush1.bf16.msra.mxu0 0
      %1853 = vmatprep.subr.bf16.mxu0 0
      %1854 = vmatpush1.bf16.msra.mxu0 0
      %1855 = vmatprep.subr.bf16.mxu0 0
      %1856 = vmatpush1.bf16.msra.mxu0 0
      %1857 = vmatprep.subr.bf16.mxu0 0
      %1858 = vmatpush1.bf16.msra.mxu0 %v1841
      %1859 = vmatprep.subr.bf16.mxu0 0
      %1860 = vmatpush2.bf16.msra.mxu0 0
      %1861 = vmatprep.subr.bf16.mxu0 0
      %1862 = vmatpush2.bf16.msra.mxu0 0
      %1863 = vmatprep.subr.bf16.mxu0 0
      %1864 = vmatpush2.bf16.msra.mxu0 0
      %1865 = vmatprep.subr.bf16.mxu0 0
      %1866 = vmatpush2.bf16.msra.mxu0 0
      %1867 = vmatprep.subr.bf16.mxu0 0
      %1868 = vmatpush2.bf16.msra.mxu0 0
      %1869 = vmatprep.subr.bf16.mxu0 0
      %1870 = vmatpush2.bf16.msra.mxu0 0
      %1871 = vmatprep.subr.bf16.mxu0 0
      %1872 = vmatpush2.bf16.msra.mxu0 0
      %1873 = vmatprep.subr.bf16.mxu0 0
      %1874 = vmatpush2.bf16.msra.mxu0 0
      %1875 = vmatprep.mubr.bf16.mxu0 0
      %1876 = vmatmul.mubr.bf16.gmra.mxu0 %v832
      %v1877 = vpop.f32.mrf.mxu0
      %v1878 = vadd.f32 0.0, %v1877
      %v1879 = vpop.f32.mrf.mxu0
      %v1880 = vpop.f32.mrf.mxu0
      %v1881 = vadd.f32 0.0, %v1880
      %v1882 = vpop.f32.mrf.mxu0
      %1883 = vmatprep.mubr.bf16.mxu0 0
      %1884 = vmatmul.mubr.bf16.gmra.mxu0 %v834
      %v1885 = vpop.f32.mrf.mxu0
      %v1886 = vadd.f32 0.0, %v1885
      %v1887 = vpop.f32.mrf.mxu0
      %v1888 = vpop.f32.mrf.mxu0
      %v1889 = vadd.f32 0.0, %v1888
      %v1890 = vpop.f32.mrf.mxu0
      %1891 = vmatprep.mubr.bf16.mxu0 0
      %1892 = vmatmul.mubr.bf16.gmra.mxu0 %v836
      %v1893 = vpop.f32.mrf.mxu0
      %v1894 = vadd.f32 0.0, %v1893
      %v1895 = vpop.f32.mrf.mxu0
      %v1896 = vpop.f32.mrf.mxu0
      %v1897 = vadd.f32 0.0, %v1896
      %v1898 = vpop.f32.mrf.mxu0
      %1899 = vmatprep.mubr.bf16.mxu0 0
      %1900 = vmatmul.mubr.bf16.gmra.mxu0 %v838
      %v1901 = vpop.f32.mrf.mxu0
      %v1902 = vadd.f32 0.0, %v1901
      %v1903 = vpop.f32.mrf.mxu0
      %v1904 = vpop.f32.mrf.mxu0
      %v1905 = vadd.f32 0.0, %v1904
      %v1906 = vpop.f32.mrf.mxu0
      %1907 = vmatprep.mubr.bf16.mxu0 0
      %1908 = vmatmul.mubr.bf16.gmra.mxu0 %v840
      %v1909 = vpop.f32.mrf.mxu0
      %v1910 = vadd.f32 0.0, %v1909
      %v1911 = vpop.f32.mrf.mxu0
      %v1912 = vpop.f32.mrf.mxu0
      %v1913 = vadd.f32 0.0, %v1912
      %v1914 = vpop.f32.mrf.mxu0
      %1915 = vmatprep.mubr.bf16.mxu0 0
      %1916 = vmatmul.mubr.bf16.gmra.mxu0 %v842
      %v1917 = vpop.f32.mrf.mxu0
      %v1918 = vadd.f32 0.0, %v1917
      %v1919 = vpop.f32.mrf.mxu0
      %v1920 = vpop.f32.mrf.mxu0
      %v1921 = vadd.f32 0.0, %v1920
      %v1922 = vpop.f32.mrf.mxu0
      %1923 = vmatprep.mubr.bf16.mxu0 0
      %1924 = vmatmul.mubr.bf16.gmra.mxu0 %v844
      %v1925 = vpop.f32.mrf.mxu0
      %v1926 = vadd.f32 0.0, %v1925
      %v1927 = vpop.f32.mrf.mxu0
      %v1928 = vpop.f32.mrf.mxu0
      %v1929 = vadd.f32 0.0, %v1928
      %v1930 = vpop.f32.mrf.mxu0
      %1931 = vmatprep.mubr.bf16.mxu0 0
      %1932 = vmatmul.mubr.bf16.gmra.mxu0 %v1838
      %v1933 = vpop.f32.mrf.mxu0
      %v1934 = vadd.f32 0.0, %v1933
      %v1935 = vpop.f32.mrf.mxu0
      %v1936 = vpop.f32.mrf.mxu0
      %v1937 = vadd.f32 0.0, %v1936
      %v1938 = vpop.f32.mrf.mxu0
      %1939 = vdwg.mxu0
      %v1940 = vadd.f32 %v1668, %v1878
      %v1941 = vadd.f32 %v1669, %v1881
      %v1942 = vadd.f32 %v1670, %v1886
      %v1943 = vadd.f32 %v1671, %v1889
      %v1944 = vadd.f32 %v1672, %v1894
      %v1945 = vadd.f32 %v1673, %v1897
      %v1946 = vadd.f32 %v1674, %v1902
      %v1947 = vadd.f32 %v1675, %v1905
      %v1948 = vadd.f32 %v1676, %v1910
      %v1949 = vadd.f32 %v1677, %v1913
      %v1950 = vadd.f32 %v1678, %v1918
      %v1951 = vadd.f32 %v1679, %v1921
      %v1952 = vadd.f32 %v1680, %v1926
      %v1953 = vadd.f32 %v1681, %v1929
      %v1954 = vadd.f32 %v1682, %v1934
      %v1955 = vadd.f32 %v1683, %v1937
      %v1957 = vrot.slane %v301, 5
      %v1958 = vrot.slane %v1957, 4
      %v1959 = vrot.slane %v302, 5
      %v1960 = vsel %vm1073, %v1958, %v1959
      %v1961 = vrot.slane %v1959, 4
      %v1962 = vrot.slane %v303, 5
      %v1963 = vsel %vm1073, %v1961, %v1962
      %s1964 = scalar_lea.vmem %s1, 40
      %v1965 = vld [vmem:[%s1964] sm:$0xf]
      %v1966 = vld [vmem:[%s1964 + $0x4] sm:$0xf]
      %v1967 = vunpack.c.l.b16 %v1960
      %v1968 = vunpack.c.l.b16 %v1963
      %v1969 = vpack.c.b16 %v1968, %v1967
      %v1972 = vunpack.c.l.b16 %v1965
      %v1973 = vunpack.c.l.b16 %v1966
      %v1974 = vpack.c.b16 %v1973, %v1972
      %v1977 = vsel %vm538, %v1969, 0
      %1979 = vmatprep.subr.bf16.mxu0 0
      %1980 = vmatpush1.bf16.msra.mxu0 0
      %1981 = vmatprep.subr.bf16.mxu0 0
      %1982 = vmatpush1.bf16.msra.mxu0 0
      %1983 = vmatprep.subr.bf16.mxu0 0
      %1984 = vmatpush1.bf16.msra.mxu0 0
      %1985 = vmatprep.subr.bf16.mxu0 0
      %1986 = vmatpush1.bf16.msra.mxu0 0
      %1987 = vmatprep.subr.bf16.mxu0 0
      %1988 = vmatpush1.bf16.msra.mxu0 0
      %1989 = vmatprep.subr.bf16.mxu0 0
      %1990 = vmatpush1.bf16.msra.mxu0 0
      %1991 = vmatprep.subr.bf16.mxu0 0
      %1992 = vmatpush1.bf16.msra.mxu0 0
      %1993 = vmatprep.subr.bf16.mxu0 0
      %1994 = vmatpush1.bf16.msra.mxu0 %v1974
      %1995 = vmatprep.subr.bf16.mxu0 0
      %1996 = vmatpush2.bf16.msra.mxu0 0
      %1997 = vmatprep.subr.bf16.mxu0 0
      %1998 = vmatpush2.bf16.msra.mxu0 0
      %1999 = vmatprep.subr.bf16.mxu0 0
      %2000 = vmatpush2.bf16.msra.mxu0 0
      %2001 = vmatprep.subr.bf16.mxu0 0
      %2002 = vmatpush2.bf16.msra.mxu0 0
      %2003 = vmatprep.subr.bf16.mxu0 0
      %2004 = vmatpush2.bf16.msra.mxu0 0
      %2005 = vmatprep.subr.bf16.mxu0 0
      %2006 = vmatpush2.bf16.msra.mxu0 0
      %2007 = vmatprep.subr.bf16.mxu0 0
      %2008 = vmatpush2.bf16.msra.mxu0 0
      %2009 = vmatprep.subr.bf16.mxu0 0
      %2010 = vmatpush2.bf16.msra.mxu0 0
      %2011 = vmatprep.mubr.bf16.mxu0 0
      %2012 = vmatmul.mubr.bf16.gmra.mxu0 %v1167
      %v2013 = vpop.f32.mrf.mxu0
      %v2014 = vadd.f32 0.0, %v2013
      %v2015 = vpop.f32.mrf.mxu0
      %v2016 = vpop.f32.mrf.mxu0
      %v2017 = vadd.f32 0.0, %v2016
      %v2018 = vpop.f32.mrf.mxu0
      %2019 = vmatprep.mubr.bf16.mxu0 0
      %2020 = vmatmul.mubr.bf16.gmra.mxu0 %v1170
      %v2021 = vpop.f32.mrf.mxu0
      %v2022 = vadd.f32 0.0, %v2021
      %v2023 = vpop.f32.mrf.mxu0
      %v2024 = vpop.f32.mrf.mxu0
      %v2025 = vadd.f32 0.0, %v2024
      %v2026 = vpop.f32.mrf.mxu0
      %2027 = vmatprep.mubr.bf16.mxu0 0
      %2028 = vmatmul.mubr.bf16.gmra.mxu0 %v1173
      %v2029 = vpop.f32.mrf.mxu0
      %v2030 = vadd.f32 0.0, %v2029
      %v2031 = vpop.f32.mrf.mxu0
      %v2032 = vpop.f32.mrf.mxu0
      %v2033 = vadd.f32 0.0, %v2032
      %v2034 = vpop.f32.mrf.mxu0
      %2035 = vmatprep.mubr.bf16.mxu0 0
      %2036 = vmatmul.mubr.bf16.gmra.mxu0 %v1176
      %v2037 = vpop.f32.mrf.mxu0
      %v2038 = vadd.f32 0.0, %v2037
      %v2039 = vpop.f32.mrf.mxu0
      %v2040 = vpop.f32.mrf.mxu0
      %v2041 = vadd.f32 0.0, %v2040
      %v2042 = vpop.f32.mrf.mxu0
      %2043 = vmatprep.mubr.bf16.mxu0 0
      %2044 = vmatmul.mubr.bf16.gmra.mxu0 %v1179
      %v2045 = vpop.f32.mrf.mxu0
      %v2046 = vadd.f32 0.0, %v2045
      %v2047 = vpop.f32.mrf.mxu0
      %v2048 = vpop.f32.mrf.mxu0
      %v2049 = vadd.f32 0.0, %v2048
      %v2050 = vpop.f32.mrf.mxu0
      %2051 = vmatprep.mubr.bf16.mxu0 0
      %2052 = vmatmul.mubr.bf16.gmra.mxu0 %v1182
      %v2053 = vpop.f32.mrf.mxu0
      %v2054 = vadd.f32 0.0, %v2053
      %v2055 = vpop.f32.mrf.mxu0
      %v2056 = vpop.f32.mrf.mxu0
      %v2057 = vadd.f32 0.0, %v2056
      %v2058 = vpop.f32.mrf.mxu0
      %2059 = vmatprep.mubr.bf16.mxu0 0
      %2060 = vmatmul.mubr.bf16.gmra.mxu0 %v1185
      %v2061 = vpop.f32.mrf.mxu0
      %v2062 = vadd.f32 0.0, %v2061
      %v2063 = vpop.f32.mrf.mxu0
      %v2064 = vpop.f32.mrf.mxu0
      %v2065 = vadd.f32 0.0, %v2064
      %v2066 = vpop.f32.mrf.mxu0
      %2067 = vmatprep.mubr.bf16.mxu0 0
      %2068 = vmatmul.mubr.bf16.gmra.mxu0 %v1977
      %v2069 = vpop.f32.mrf.mxu0
      %v2070 = vadd.f32 0.0, %v2069
      %v2071 = vpop.f32.mrf.mxu0
      %v2072 = vpop.f32.mrf.mxu0
      %v2073 = vadd.f32 0.0, %v2072
      %v2074 = vpop.f32.mrf.mxu0
      %2075 = vdwg.mxu0
      %v2076 = vadd.f32 %v1820, %v2014
      %v2077 = vadd.f32 %v1821, %v2017
      %v2078 = vadd.f32 %v1822, %v2022
      %v2079 = vadd.f32 %v1823, %v2025
      %v2080 = vadd.f32 %v1824, %v2030
      %v2081 = vadd.f32 %v1825, %v2033
      %v2082 = vadd.f32 %v1826, %v2038
      %v2083 = vadd.f32 %v1827, %v2041
      %v2084 = vadd.f32 %v1828, %v2046
      %v2085 = vadd.f32 %v1829, %v2049
      %v2086 = vadd.f32 %v1830, %v2054
      %v2087 = vadd.f32 %v1831, %v2057
      %v2088 = vadd.f32 %v1832, %v2062
      %v2089 = vadd.f32 %v1833, %v2065
      %v2090 = vadd.f32 %v1834, %v2070
      %v2091 = vadd.f32 %v1835, %v2073
      %s2092 = scalar_lea.vmem %s2, 10
      %v2093 = vld [vmem:[%s2092] sm:$0x3]
      %v2094 = vsel %vm829, %v1969, 0
      %v2097 = vsel %vm846, %v2093, 0
      %2099 = vmatprep.subr.bf16.mxu0 0
      %2100 = vmatpush1.bf16.msra.mxu0 0
      %2101 = vmatprep.subr.bf16.mxu0 0
      %2102 = vmatpush1.bf16.msra.mxu0 0
      %2103 = vmatprep.subr.bf16.mxu0 0
      %2104 = vmatpush1.bf16.msra.mxu0 0
      %2105 = vmatprep.subr.bf16.mxu0 0
      %2106 = vmatpush1.bf16.msra.mxu0 0
      %2107 = vmatprep.subr.bf16.mxu0 0
      %2108 = vmatpush1.bf16.msra.mxu0 0
      %2109 = vmatprep.subr.bf16.mxu0 0
      %2110 = vmatpush1.bf16.msra.mxu0 0
      %2111 = vmatprep.subr.bf16.mxu0 0
      %2112 = vmatpush1.bf16.msra.mxu0 0
      %2113 = vmatprep.subr.bf16.mxu0 0
      %2114 = vmatpush1.bf16.msra.mxu0 %v2097
      %2115 = vmatprep.subr.bf16.mxu0 0
      %2116 = vmatpush2.bf16.msra.mxu0 0
      %2117 = vmatprep.subr.bf16.mxu0 0
      %2118 = vmatpush2.bf16.msra.mxu0 0
      %2119 = vmatprep.subr.bf16.mxu0 0
      %2120 = vmatpush2.bf16.msra.mxu0 0
      %2121 = vmatprep.subr.bf16.mxu0 0
      %2122 = vmatpush2.bf16.msra.mxu0 0
      %2123 = vmatprep.subr.bf16.mxu0 0
      %2124 = vmatpush2.bf16.msra.mxu0 0
      %2125 = vmatprep.subr.bf16.mxu0 0
      %2126 = vmatpush2.bf16.msra.mxu0 0
      %2127 = vmatprep.subr.bf16.mxu0 0
      %2128 = vmatpush2.bf16.msra.mxu0 0
      %2129 = vmatprep.subr.bf16.mxu0 0
      %2130 = vmatpush2.bf16.msra.mxu0 0
      %2131 = vmatprep.mubr.bf16.mxu0 0
      %2132 = vmatmul.mubr.bf16.gmra.mxu0 %v1304
      %v2133 = vpop.f32.mrf.mxu0
      %v2134 = vadd.f32 0.0, %v2133
      %v2135 = vpop.f32.mrf.mxu0
      %v2136 = vpop.f32.mrf.mxu0
      %v2137 = vadd.f32 0.0, %v2136
      %v2138 = vpop.f32.mrf.mxu0
      %2139 = vmatprep.mubr.bf16.mxu0 0
      %2140 = vmatmul.mubr.bf16.gmra.mxu0 %v1306
      %v2141 = vpop.f32.mrf.mxu0
      %v2142 = vadd.f32 0.0, %v2141
      %v2143 = vpop.f32.mrf.mxu0
      %v2144 = vpop.f32.mrf.mxu0
      %v2145 = vadd.f32 0.0, %v2144
      %v2146 = vpop.f32.mrf.mxu0
      %2147 = vmatprep.mubr.bf16.mxu0 0
      %2148 = vmatmul.mubr.bf16.gmra.mxu0 %v1308
      %v2149 = vpop.f32.mrf.mxu0
      %v2150 = vadd.f32 0.0, %v2149
      %v2151 = vpop.f32.mrf.mxu0
      %v2152 = vpop.f32.mrf.mxu0
      %v2153 = vadd.f32 0.0, %v2152
      %v2154 = vpop.f32.mrf.mxu0
      %2155 = vmatprep.mubr.bf16.mxu0 0
      %2156 = vmatmul.mubr.bf16.gmra.mxu0 %v1310
      %v2157 = vpop.f32.mrf.mxu0
      %v2158 = vadd.f32 0.0, %v2157
      %v2159 = vpop.f32.mrf.mxu0
      %v2160 = vpop.f32.mrf.mxu0
      %v2161 = vadd.f32 0.0, %v2160
      %v2162 = vpop.f32.mrf.mxu0
      %2163 = vmatprep.mubr.bf16.mxu0 0
      %2164 = vmatmul.mubr.bf16.gmra.mxu0 %v1312
      %v2165 = vpop.f32.mrf.mxu0
      %v2166 = vadd.f32 0.0, %v2165
      %v2167 = vpop.f32.mrf.mxu0
      %v2168 = vpop.f32.mrf.mxu0
      %v2169 = vadd.f32 0.0, %v2168
      %v2170 = vpop.f32.mrf.mxu0
      %2171 = vmatprep.mubr.bf16.mxu0 0
      %2172 = vmatmul.mubr.bf16.gmra.mxu0 %v1314
      %v2173 = vpop.f32.mrf.mxu0
      %v2174 = vadd.f32 0.0, %v2173
      %v2175 = vpop.f32.mrf.mxu0
      %v2176 = vpop.f32.mrf.mxu0
      %v2177 = vadd.f32 0.0, %v2176
      %v2178 = vpop.f32.mrf.mxu0
      %2179 = vmatprep.mubr.bf16.mxu0 0
      %2180 = vmatmul.mubr.bf16.gmra.mxu0 %v1316
      %v2181 = vpop.f32.mrf.mxu0
      %v2182 = vadd.f32 0.0, %v2181
      %v2183 = vpop.f32.mrf.mxu0
      %v2184 = vpop.f32.mrf.mxu0
      %v2185 = vadd.f32 0.0, %v2184
      %v2186 = vpop.f32.mrf.mxu0
      %2187 = vmatprep.mubr.bf16.mxu0 0
      %2188 = vmatmul.mubr.bf16.gmra.mxu0 %v2094
      %v2189 = vpop.f32.mrf.mxu0
      %v2190 = vadd.f32 0.0, %v2189
      %v2191 = vpop.f32.mrf.mxu0
      %v2192 = vpop.f32.mrf.mxu0
      %v2193 = vadd.f32 0.0, %v2192
      %v2194 = vpop.f32.mrf.mxu0
      %2195 = vdwg.mxu0
      %v2196 = vadd.f32 %v1940, %v2134
      %v2197 = vadd.f32 %v1941, %v2137
      %v2198 = vadd.f32 %v1942, %v2142
      %v2199 = vadd.f32 %v1943, %v2145
      %v2200 = vadd.f32 %v1944, %v2150
      %v2201 = vadd.f32 %v1945, %v2153
      %v2202 = vadd.f32 %v1946, %v2158
      %v2203 = vadd.f32 %v1947, %v2161
      %v2204 = vadd.f32 %v1948, %v2166
      %v2205 = vadd.f32 %v1949, %v2169
      %v2206 = vadd.f32 %v1950, %v2174
      %v2207 = vadd.f32 %v1951, %v2177
      %v2208 = vadd.f32 %v1952, %v2182
      %v2209 = vadd.f32 %v1953, %v2185
      %v2210 = vadd.f32 %v1954, %v2190
      %v2211 = vadd.f32 %v1955, %v2193
      %s2212 = scalar_lea.vmem %s1, 48
      %v2213 = vld [vmem:[%s2212] sm:$0xf]
      %v2214 = vld [vmem:[%s2212 + $0x4] sm:$0xf]
      %v2217 = vunpack.c.l.b16 %v304
      %v2218 = vunpack.c.l.b16 %v305
      %v2219 = vpack.c.b16 %v2218, %v2217
      %v2222 = vunpack.c.l.b16 %v2213
      %v2223 = vunpack.c.l.b16 %v2214
      %v2224 = vpack.c.b16 %v2223, %v2222
      %v2227 = vsel %vm538, %v2219, 0
      %2229 = vmatprep.subr.bf16.mxu0 0
      %2230 = vmatpush1.bf16.msra.mxu0 0
      %2231 = vmatprep.subr.bf16.mxu0 0
      %2232 = vmatpush1.bf16.msra.mxu0 0
      %2233 = vmatprep.subr.bf16.mxu0 0
      %2234 = vmatpush1.bf16.msra.mxu0 0
      %2235 = vmatprep.subr.bf16.mxu0 0
      %2236 = vmatpush1.bf16.msra.mxu0 0
      %2237 = vmatprep.subr.bf16.mxu0 0
      %2238 = vmatpush1.bf16.msra.mxu0 0
      %2239 = vmatprep.subr.bf16.mxu0 0
      %2240 = vmatpush1.bf16.msra.mxu0 0
      %2241 = vmatprep.subr.bf16.mxu0 0
      %2242 = vmatpush1.bf16.msra.mxu0 0
      %2243 = vmatprep.subr.bf16.mxu0 0
      %2244 = vmatpush1.bf16.msra.mxu0 %v2224
      %2245 = vmatprep.subr.bf16.mxu0 0
      %2246 = vmatpush2.bf16.msra.mxu0 0
      %2247 = vmatprep.subr.bf16.mxu0 0
      %2248 = vmatpush2.bf16.msra.mxu0 0
      %2249 = vmatprep.subr.bf16.mxu0 0
      %2250 = vmatpush2.bf16.msra.mxu0 0
      %2251 = vmatprep.subr.bf16.mxu0 0
      %2252 = vmatpush2.bf16.msra.mxu0 0
      %2253 = vmatprep.subr.bf16.mxu0 0
      %2254 = vmatpush2.bf16.msra.mxu0 0
      %2255 = vmatprep.subr.bf16.mxu0 0
      %2256 = vmatpush2.bf16.msra.mxu0 0
      %2257 = vmatprep.subr.bf16.mxu0 0
      %2258 = vmatpush2.bf16.msra.mxu0 0
      %2259 = vmatprep.subr.bf16.mxu0 0
      %2260 = vmatpush2.bf16.msra.mxu0 0
      %2261 = vmatprep.mubr.bf16.mxu0 0
      %2262 = vmatmul.mubr.bf16.gmra.mxu0 %v713
      %v2263 = vpop.f32.mrf.mxu0
      %v2264 = vadd.f32 0.0, %v2263
      %v2265 = vpop.f32.mrf.mxu0
      %v2266 = vpop.f32.mrf.mxu0
      %v2267 = vadd.f32 0.0, %v2266
      %v2268 = vpop.f32.mrf.mxu0
      %2269 = vmatprep.mubr.bf16.mxu0 0
      %2270 = vmatmul.mubr.bf16.gmra.mxu0 %v716
      %v2271 = vpop.f32.mrf.mxu0
      %v2272 = vadd.f32 0.0, %v2271
      %v2273 = vpop.f32.mrf.mxu0
      %v2274 = vpop.f32.mrf.mxu0
      %v2275 = vadd.f32 0.0, %v2274
      %v2276 = vpop.f32.mrf.mxu0
      %2277 = vmatprep.mubr.bf16.mxu0 0
      %2278 = vmatmul.mubr.bf16.gmra.mxu0 %v719
      %v2279 = vpop.f32.mrf.mxu0
      %v2280 = vadd.f32 0.0, %v2279
      %v2281 = vpop.f32.mrf.mxu0
      %v2282 = vpop.f32.mrf.mxu0
      %v2283 = vadd.f32 0.0, %v2282
      %v2284 = vpop.f32.mrf.mxu0
      %2285 = vmatprep.mubr.bf16.mxu0 0
      %2286 = vmatmul.mubr.bf16.gmra.mxu0 %v722
      %v2287 = vpop.f32.mrf.mxu0
      %v2288 = vadd.f32 0.0, %v2287
      %v2289 = vpop.f32.mrf.mxu0
      %v2290 = vpop.f32.mrf.mxu0
      %v2291 = vadd.f32 0.0, %v2290
      %v2292 = vpop.f32.mrf.mxu0
      %2293 = vmatprep.mubr.bf16.mxu0 0
      %2294 = vmatmul.mubr.bf16.gmra.mxu0 %v725
      %v2295 = vpop.f32.mrf.mxu0
      %v2296 = vadd.f32 0.0, %v2295
      %v2297 = vpop.f32.mrf.mxu0
      %v2298 = vpop.f32.mrf.mxu0
      %v2299 = vadd.f32 0.0, %v2298
      %v2300 = vpop.f32.mrf.mxu0
      %2301 = vmatprep.mubr.bf16.mxu0 0
      %2302 = vmatmul.mubr.bf16.gmra.mxu0 %v728
      %v2303 = vpop.f32.mrf.mxu0
      %v2304 = vadd.f32 0.0, %v2303
      %v2305 = vpop.f32.mrf.mxu0
      %v2306 = vpop.f32.mrf.mxu0
      %v2307 = vadd.f32 0.0, %v2306
      %v2308 = vpop.f32.mrf.mxu0
      %2309 = vmatprep.mubr.bf16.mxu0 0
      %2310 = vmatmul.mubr.bf16.gmra.mxu0 %v1449
      %v2311 = vpop.f32.mrf.mxu0
      %v2312 = vadd.f32 0.0, %v2311
      %v2313 = vpop.f32.mrf.mxu0
      %v2314 = vpop.f32.mrf.mxu0
      %v2315 = vadd.f32 0.0, %v2314
      %v2316 = vpop.f32.mrf.mxu0
      %2317 = vmatprep.mubr.bf16.mxu0 0
      %2318 = vmatmul.mubr.bf16.gmra.mxu0 %v2227
      %v2319 = vpop.f32.mrf.mxu0
      %v2320 = vadd.f32 0.0, %v2319
      %v2321 = vpop.f32.mrf.mxu0
      %v2322 = vpop.f32.mrf.mxu0
      %v2323 = vadd.f32 0.0, %v2322
      %v2324 = vpop.f32.mrf.mxu0
      %2325 = vdwg.mxu0
      %v2326 = vadd.f32 %v2076, %v2264
      %v2327 = vadd.f32 %v2077, %v2267
      %v2328 = vadd.f32 %v2078, %v2272
      %v2329 = vadd.f32 %v2079, %v2275
      %v2330 = vadd.f32 %v2080, %v2280
      %v2331 = vadd.f32 %v2081, %v2283
      %v2332 = vadd.f32 %v2082, %v2288
      %v2333 = vadd.f32 %v2083, %v2291
      %v2334 = vadd.f32 %v2084, %v2296
      %v2335 = vadd.f32 %v2085, %v2299
      %v2336 = vadd.f32 %v2086, %v2304
      %v2337 = vadd.f32 %v2087, %v2307
      %v2338 = vadd.f32 %v2088, %v2312
      %v2339 = vadd.f32 %v2089, %v2315
      %v2340 = vadd.f32 %v2090, %v2320
      %v2341 = vadd.f32 %v2091, %v2323
      %s2342 = scalar_lea.vmem %s2, 12
      %v2343 = vld [vmem:[%s2342] sm:$0x3]
      %v2344 = vsel %vm829, %v2219, 0
      %v2347 = vsel %vm846, %v2343, 0
      %2349 = vmatprep.subr.bf16.mxu0 0
      %2350 = vmatpush1.bf16.msra.mxu0 0
      %2351 = vmatprep.subr.bf16.mxu0 0
      %2352 = vmatpush1.bf16.msra.mxu0 0
      %2353 = vmatprep.subr.bf16.mxu0 0
      %2354 = vmatpush1.bf16.msra.mxu0 0
      %2355 = vmatprep.subr.bf16.mxu0 0
      %2356 = vmatpush1.bf16.msra.mxu0 0
      %2357 = vmatprep.subr.bf16.mxu0 0
      %2358 = vmatpush1.bf16.msra.mxu0 0
      %2359 = vmatprep.subr.bf16.mxu0 0
      %2360 = vmatpush1.bf16.msra.mxu0 0
      %2361 = vmatprep.subr.bf16.mxu0 0
      %2362 = vmatpush1.bf16.msra.mxu0 0
      %2363 = vmatprep.subr.bf16.mxu0 0
      %2364 = vmatpush1.bf16.msra.mxu0 %v2347
      %2365 = vmatprep.subr.bf16.mxu0 0
      %2366 = vmatpush2.bf16.msra.mxu0 0
      %2367 = vmatprep.subr.bf16.mxu0 0
      %2368 = vmatpush2.bf16.msra.mxu0 0
      %2369 = vmatprep.subr.bf16.mxu0 0
      %2370 = vmatpush2.bf16.msra.mxu0 0
      %2371 = vmatprep.subr.bf16.mxu0 0
      %2372 = vmatpush2.bf16.msra.mxu0 0
      %2373 = vmatprep.subr.bf16.mxu0 0
      %2374 = vmatpush2.bf16.msra.mxu0 0
      %2375 = vmatprep.subr.bf16.mxu0 0
      %2376 = vmatpush2.bf16.msra.mxu0 0
      %2377 = vmatprep.subr.bf16.mxu0 0
      %2378 = vmatpush2.bf16.msra.mxu0 0
      %2379 = vmatprep.subr.bf16.mxu0 0
      %2380 = vmatpush2.bf16.msra.mxu0 0
      %2381 = vmatprep.mubr.bf16.mxu0 0
      %2382 = vmatmul.mubr.bf16.gmra.mxu0 %v951
      %v2383 = vpop.f32.mrf.mxu0
      %v2384 = vadd.f32 0.0, %v2383
      %v2385 = vpop.f32.mrf.mxu0
      %v2386 = vpop.f32.mrf.mxu0
      %v2387 = vadd.f32 0.0, %v2386
      %v2388 = vpop.f32.mrf.mxu0
      %2389 = vmatprep.mubr.bf16.mxu0 0
      %2390 = vmatmul.mubr.bf16.gmra.mxu0 %v953
      %v2391 = vpop.f32.mrf.mxu0
      %v2392 = vadd.f32 0.0, %v2391
      %v2393 = vpop.f32.mrf.mxu0
      %v2394 = vpop.f32.mrf.mxu0
      %v2395 = vadd.f32 0.0, %v2394
      %v2396 = vpop.f32.mrf.mxu0
      %2397 = vmatprep.mubr.bf16.mxu0 0
      %2398 = vmatmul.mubr.bf16.gmra.mxu0 %v955
      %v2399 = vpop.f32.mrf.mxu0
      %v2400 = vadd.f32 0.0, %v2399
      %v2401 = vpop.f32.mrf.mxu0
      %v2402 = vpop.f32.mrf.mxu0
      %v2403 = vadd.f32 0.0, %v2402
      %v2404 = vpop.f32.mrf.mxu0
      %2405 = vmatprep.mubr.bf16.mxu0 0
      %2406 = vmatmul.mubr.bf16.gmra.mxu0 %v957
      %v2407 = vpop.f32.mrf.mxu0
      %v2408 = vadd.f32 0.0, %v2407
      %v2409 = vpop.f32.mrf.mxu0
      %v2410 = vpop.f32.mrf.mxu0
      %v2411 = vadd.f32 0.0, %v2410
      %v2412 = vpop.f32.mrf.mxu0
      %2413 = vmatprep.mubr.bf16.mxu0 0
      %2414 = vmatmul.mubr.bf16.gmra.mxu0 %v959
      %v2415 = vpop.f32.mrf.mxu0
      %v2416 = vadd.f32 0.0, %v2415
      %v2417 = vpop.f32.mrf.mxu0
      %v2418 = vpop.f32.mrf.mxu0
      %v2419 = vadd.f32 0.0, %v2418
      %v2420 = vpop.f32.mrf.mxu0
      %2421 = vmatprep.mubr.bf16.mxu0 0
      %2422 = vmatmul.mubr.bf16.gmra.mxu0 %v961
      %v2423 = vpop.f32.mrf.mxu0
      %v2424 = vadd.f32 0.0, %v2423
      %v2425 = vpop.f32.mrf.mxu0
      %v2426 = vpop.f32.mrf.mxu0
      %v2427 = vadd.f32 0.0, %v2426
      %v2428 = vpop.f32.mrf.mxu0
      %2429 = vmatprep.mubr.bf16.mxu0 0
      %2430 = vmatmul.mubr.bf16.gmra.mxu0 %v1566
      %v2431 = vpop.f32.mrf.mxu0
      %v2432 = vadd.f32 0.0, %v2431
      %v2433 = vpop.f32.mrf.mxu0
      %v2434 = vpop.f32.mrf.mxu0
      %v2435 = vadd.f32 0.0, %v2434
      %v2436 = vpop.f32.mrf.mxu0
      %2437 = vmatprep.mubr.bf16.mxu0 0
      %2438 = vmatmul.mubr.bf16.gmra.mxu0 %v2344
      %v2439 = vpop.f32.mrf.mxu0
      %v2440 = vadd.f32 0.0, %v2439
      %v2441 = vpop.f32.mrf.mxu0
      %v2442 = vpop.f32.mrf.mxu0
      %v2443 = vadd.f32 0.0, %v2442
      %v2444 = vpop.f32.mrf.mxu0
      %2445 = vdwg.mxu0
      %v2446 = vadd.f32 %v2196, %v2384
      %v2447 = vadd.f32 %v2197, %v2387
      %v2448 = vadd.f32 %v2198, %v2392
      %v2449 = vadd.f32 %v2199, %v2395
      %v2450 = vadd.f32 %v2200, %v2400
      %v2451 = vadd.f32 %v2201, %v2403
      %v2452 = vadd.f32 %v2202, %v2408
      %v2453 = vadd.f32 %v2203, %v2411
      %v2454 = vadd.f32 %v2204, %v2416
      %v2455 = vadd.f32 %v2205, %v2419
      %v2456 = vadd.f32 %v2206, %v2424
      %v2457 = vadd.f32 %v2207, %v2427
      %v2458 = vadd.f32 %v2208, %v2432
      %v2459 = vadd.f32 %v2209, %v2435
      %v2460 = vadd.f32 %v2210, %v2440
      %v2461 = vadd.f32 %v2211, %v2443
      %v2463 = vshrl.u32 %v304, 16
      %v2465 = vrot.slane %v2463, 4
      %v2466 = vshll.u32 %v304, 16
      %v2468 = vrot.slane %v2466, 5
      %v2469 = vor.u32 %v2465, %v2468
      %v2470 = vrot.slane %v2469, 4
      %v2472 = vshll.u32 %v305, 16
      %v2474 = vrot.slane %v2472, 5
      %v2475 = vsel %vm312, %v2470, %v2474
      %v2476 = vshrl.u32 %v305, 16
      %v2478 = vrot.slane %v2476, 4
      %v2479 = vor.u32 %v2478, %v2474
      %v2480 = vrot.slane %v2479, 4
      %v2482 = vshll.u32 %v306, 16
      %v2484 = vrot.slane %v2482, 5
      %v2485 = vsel %vm312, %v2480, %v2484
      %s2486 = scalar_lea.vmem %s1, 56
      %v2487 = vld [vmem:[%s2486] sm:$0xf]
      %v2488 = vld [vmem:[%s2486 + $0x4] sm:$0xf]
      %v2489 = vunpack.c.l.b16 %v2475
      %v2490 = vunpack.c.l.b16 %v2485
      %v2491 = vpack.c.b16 %v2490, %v2489
      %v2494 = vunpack.c.l.b16 %v2487
      %v2495 = vunpack.c.l.b16 %v2488
      %v2496 = vpack.c.b16 %v2495, %v2494
      %v2499 = vsel %vm538, %v2491, 0
      %2501 = vmatprep.subr.bf16.mxu0 0
      %2502 = vmatpush1.bf16.msra.mxu0 0
      %2503 = vmatprep.subr.bf16.mxu0 0
      %2504 = vmatpush1.bf16.msra.mxu0 0
      %2505 = vmatprep.subr.bf16.mxu0 0
      %2506 = vmatpush1.bf16.msra.mxu0 0
      %2507 = vmatprep.subr.bf16.mxu0 0
      %2508 = vmatpush1.bf16.msra.mxu0 0
      %2509 = vmatprep.subr.bf16.mxu0 0
      %2510 = vmatpush1.bf16.msra.mxu0 0
      %2511 = vmatprep.subr.bf16.mxu0 0
      %2512 = vmatpush1.bf16.msra.mxu0 0
      %2513 = vmatprep.subr.bf16.mxu0 0
      %2514 = vmatpush1.bf16.msra.mxu0 0
      %2515 = vmatprep.subr.bf16.mxu0 0
      %2516 = vmatpush1.bf16.msra.mxu0 %v2496
      %2517 = vmatprep.subr.bf16.mxu0 0
      %2518 = vmatpush2.bf16.msra.mxu0 0
      %2519 = vmatprep.subr.bf16.mxu0 0
      %2520 = vmatpush2.bf16.msra.mxu0 0
      %2521 = vmatprep.subr.bf16.mxu0 0
      %2522 = vmatpush2.bf16.msra.mxu0 0
      %2523 = vmatprep.subr.bf16.mxu0 0
      %2524 = vmatpush2.bf16.msra.mxu0 0
      %2525 = vmatprep.subr.bf16.mxu0 0
      %2526 = vmatpush2.bf16.msra.mxu0 0
      %2527 = vmatprep.subr.bf16.mxu0 0
      %2528 = vmatpush2.bf16.msra.mxu0 0
      %2529 = vmatprep.subr.bf16.mxu0 0
      %2530 = vmatpush2.bf16.msra.mxu0 0
      %2531 = vmatprep.subr.bf16.mxu0 0
      %2532 = vmatpush2.bf16.msra.mxu0 0
      %2533 = vmatprep.mubr.bf16.mxu0 0
      %2534 = vmatmul.mubr.bf16.gmra.mxu0 %v546
      %v2535 = vpop.f32.mrf.mxu0
      %v2536 = vadd.f32 0.0, %v2535
      %v2537 = vpop.f32.mrf.mxu0
      %v2538 = vpop.f32.mrf.mxu0
      %v2539 = vadd.f32 0.0, %v2538
      %v2540 = vpop.f32.mrf.mxu0
      %2541 = vmatprep.mubr.bf16.mxu0 0
      %2542 = vmatmul.mubr.bf16.gmra.mxu0 %v549
      %v2543 = vpop.f32.mrf.mxu0
      %v2544 = vadd.f32 0.0, %v2543
      %v2545 = vpop.f32.mrf.mxu0
      %v2546 = vpop.f32.mrf.mxu0
      %v2547 = vadd.f32 0.0, %v2546
      %v2548 = vpop.f32.mrf.mxu0
      %2549 = vmatprep.mubr.bf16.mxu0 0
      %2550 = vmatmul.mubr.bf16.gmra.mxu0 %v552
      %v2551 = vpop.f32.mrf.mxu0
      %v2552 = vadd.f32 0.0, %v2551
      %v2553 = vpop.f32.mrf.mxu0
      %v2554 = vpop.f32.mrf.mxu0
      %v2555 = vadd.f32 0.0, %v2554
      %v2556 = vpop.f32.mrf.mxu0
      %2557 = vmatprep.mubr.bf16.mxu0 0
      %2558 = vmatmul.mubr.bf16.gmra.mxu0 %v555
      %v2559 = vpop.f32.mrf.mxu0
      %v2560 = vadd.f32 0.0, %v2559
      %v2561 = vpop.f32.mrf.mxu0
      %v2562 = vpop.f32.mrf.mxu0
      %v2563 = vadd.f32 0.0, %v2562
      %v2564 = vpop.f32.mrf.mxu0
      %2565 = vmatprep.mubr.bf16.mxu0 0
      %2566 = vmatmul.mubr.bf16.gmra.mxu0 %v558
      %v2567 = vpop.f32.mrf.mxu0
      %v2568 = vadd.f32 0.0, %v2567
      %v2569 = vpop.f32.mrf.mxu0
      %v2570 = vpop.f32.mrf.mxu0
      %v2571 = vadd.f32 0.0, %v2570
      %v2572 = vpop.f32.mrf.mxu0
      %2573 = vmatprep.mubr.bf16.mxu0 0
      %2574 = vmatmul.mubr.bf16.gmra.mxu0 %v561
      %v2575 = vpop.f32.mrf.mxu0
      %v2576 = vadd.f32 0.0, %v2575
      %v2577 = vpop.f32.mrf.mxu0
      %v2578 = vpop.f32.mrf.mxu0
      %v2579 = vadd.f32 0.0, %v2578
      %v2580 = vpop.f32.mrf.mxu0
      %2581 = vmatprep.mubr.bf16.mxu0 0
      %2582 = vmatmul.mubr.bf16.gmra.mxu0 %v1721
      %v2583 = vpop.f32.mrf.mxu0
      %v2584 = vadd.f32 0.0, %v2583
      %v2585 = vpop.f32.mrf.mxu0
      %v2586 = vpop.f32.mrf.mxu0
      %v2587 = vadd.f32 0.0, %v2586
      %v2588 = vpop.f32.mrf.mxu0
      %2589 = vmatprep.mubr.bf16.mxu0 0
      %2590 = vmatmul.mubr.bf16.gmra.mxu0 %v2499
      %v2591 = vpop.f32.mrf.mxu0
      %v2592 = vadd.f32 0.0, %v2591
      %v2593 = vpop.f32.mrf.mxu0
      %v2594 = vpop.f32.mrf.mxu0
      %v2595 = vadd.f32 0.0, %v2594
      %v2596 = vpop.f32.mrf.mxu0
      %2597 = vdwg.mxu0
      %v2598 = vadd.f32 %v2326, %v2536
      %v2599 = vadd.f32 %v2327, %v2539
      %v2600 = vadd.f32 %v2328, %v2544
      %v2601 = vadd.f32 %v2329, %v2547
      %v2602 = vadd.f32 %v2330, %v2552
      %v2603 = vadd.f32 %v2331, %v2555
      %v2604 = vadd.f32 %v2332, %v2560
      %v2605 = vadd.f32 %v2333, %v2563
      %v2606 = vadd.f32 %v2334, %v2568
      %v2607 = vadd.f32 %v2335, %v2571
      %v2608 = vadd.f32 %v2336, %v2576
      %v2609 = vadd.f32 %v2337, %v2579
      %v2610 = vadd.f32 %v2338, %v2584
      %v2611 = vadd.f32 %v2339, %v2587
      %v2612 = vadd.f32 %v2340, %v2592
      %v2613 = vadd.f32 %v2341, %v2595
      %s2614 = scalar_lea.vmem %s2, 14
      %v2615 = vld [vmem:[%s2614] sm:$0x3]
      %v2616 = vsel %vm829, %v2491, 0
      %v2619 = vsel %vm846, %v2615, 0
      %2621 = vmatprep.subr.bf16.mxu0 0
      %2622 = vmatpush1.bf16.msra.mxu0 0
      %2623 = vmatprep.subr.bf16.mxu0 0
      %2624 = vmatpush1.bf16.msra.mxu0 0
      %2625 = vmatprep.subr.bf16.mxu0 0
      %2626 = vmatpush1.bf16.msra.mxu0 0
      %2627 = vmatprep.subr.bf16.mxu0 0
      %2628 = vmatpush1.bf16.msra.mxu0 0
      %2629 = vmatprep.subr.bf16.mxu0 0
      %2630 = vmatpush1.bf16.msra.mxu0 0
      %2631 = vmatprep.subr.bf16.mxu0 0
      %2632 = vmatpush1.bf16.msra.mxu0 0
      %2633 = vmatprep.subr.bf16.mxu0 0
      %2634 = vmatpush1.bf16.msra.mxu0 0
      %2635 = vmatprep.subr.bf16.mxu0 0
      %2636 = vmatpush1.bf16.msra.mxu0 %v2619
      %2637 = vmatprep.subr.bf16.mxu0 0
      %2638 = vmatpush2.bf16.msra.mxu0 0
      %2639 = vmatprep.subr.bf16.mxu0 0
      %2640 = vmatpush2.bf16.msra.mxu0 0
      %2641 = vmatprep.subr.bf16.mxu0 0
      %2642 = vmatpush2.bf16.msra.mxu0 0
      %2643 = vmatprep.subr.bf16.mxu0 0
      %2644 = vmatpush2.bf16.msra.mxu0 0
      %2645 = vmatprep.subr.bf16.mxu0 0
      %2646 = vmatpush2.bf16.msra.mxu0 0
      %2647 = vmatprep.subr.bf16.mxu0 0
      %2648 = vmatpush2.bf16.msra.mxu0 0
      %2649 = vmatprep.subr.bf16.mxu0 0
      %2650 = vmatpush2.bf16.msra.mxu0 0
      %2651 = vmatprep.subr.bf16.mxu0 0
      %2652 = vmatpush2.bf16.msra.mxu0 0
      %2653 = vmatprep.mubr.bf16.mxu0 0
      %2654 = vmatmul.mubr.bf16.gmra.mxu0 %v834
      %v2655 = vpop.f32.mrf.mxu0
      %v2656 = vadd.f32 0.0, %v2655
      %v2657 = vpop.f32.mrf.mxu0
      %v2658 = vpop.f32.mrf.mxu0
      %v2659 = vadd.f32 0.0, %v2658
      %v2660 = vpop.f32.mrf.mxu0
      %2661 = vmatprep.mubr.bf16.mxu0 0
      %2662 = vmatmul.mubr.bf16.gmra.mxu0 %v836
      %v2663 = vpop.f32.mrf.mxu0
      %v2664 = vadd.f32 0.0, %v2663
      %v2665 = vpop.f32.mrf.mxu0
      %v2666 = vpop.f32.mrf.mxu0
      %v2667 = vadd.f32 0.0, %v2666
      %v2668 = vpop.f32.mrf.mxu0
      %2669 = vmatprep.mubr.bf16.mxu0 0
      %2670 = vmatmul.mubr.bf16.gmra.mxu0 %v838
      %v2671 = vpop.f32.mrf.mxu0
      %v2672 = vadd.f32 0.0, %v2671
      %v2673 = vpop.f32.mrf.mxu0
      %v2674 = vpop.f32.mrf.mxu0
      %v2675 = vadd.f32 0.0, %v2674
      %v2676 = vpop.f32.mrf.mxu0
      %2677 = vmatprep.mubr.bf16.mxu0 0
      %2678 = vmatmul.mubr.bf16.gmra.mxu0 %v840
      %v2679 = vpop.f32.mrf.mxu0
      %v2680 = vadd.f32 0.0, %v2679
      %v2681 = vpop.f32.mrf.mxu0
      %v2682 = vpop.f32.mrf.mxu0
      %v2683 = vadd.f32 0.0, %v2682
      %v2684 = vpop.f32.mrf.mxu0
      %2685 = vmatprep.mubr.bf16.mxu0 0
      %2686 = vmatmul.mubr.bf16.gmra.mxu0 %v842
      %v2687 = vpop.f32.mrf.mxu0
      %v2688 = vadd.f32 0.0, %v2687
      %v2689 = vpop.f32.mrf.mxu0
      %v2690 = vpop.f32.mrf.mxu0
      %v2691 = vadd.f32 0.0, %v2690
      %v2692 = vpop.f32.mrf.mxu0
      %2693 = vmatprep.mubr.bf16.mxu0 0
      %2694 = vmatmul.mubr.bf16.gmra.mxu0 %v844
      %v2695 = vpop.f32.mrf.mxu0
      %v2696 = vadd.f32 0.0, %v2695
      %v2697 = vpop.f32.mrf.mxu0
      %v2698 = vpop.f32.mrf.mxu0
      %v2699 = vadd.f32 0.0, %v2698
      %v2700 = vpop.f32.mrf.mxu0
      %2701 = vmatprep.mubr.bf16.mxu0 0
      %2702 = vmatmul.mubr.bf16.gmra.mxu0 %v1838
      %v2703 = vpop.f32.mrf.mxu0
      %v2704 = vadd.f32 0.0, %v2703
      %v2705 = vpop.f32.mrf.mxu0
      %v2706 = vpop.f32.mrf.mxu0
      %v2707 = vadd.f32 0.0, %v2706
      %v2708 = vpop.f32.mrf.mxu0
      %2709 = vmatprep.mubr.bf16.mxu0 0
      %2710 = vmatmul.mubr.bf16.gmra.mxu0 %v2616
      %v2711 = vpop.f32.mrf.mxu0
      %v2712 = vadd.f32 0.0, %v2711
      %v2713 = vpop.f32.mrf.mxu0
      %v2714 = vpop.f32.mrf.mxu0
      %v2715 = vadd.f32 0.0, %v2714
      %v2716 = vpop.f32.mrf.mxu0
      %2717 = vdwg.mxu0
      %v2718 = vadd.f32 %v2446, %v2656
      %v2719 = vadd.f32 %v2447, %v2659
      %v2720 = vadd.f32 %v2448, %v2664
      %v2721 = vadd.f32 %v2449, %v2667
      %v2722 = vadd.f32 %v2450, %v2672
      %v2723 = vadd.f32 %v2451, %v2675
      %v2724 = vadd.f32 %v2452, %v2680
      %v2725 = vadd.f32 %v2453, %v2683
      %v2726 = vadd.f32 %v2454, %v2688
      %v2727 = vadd.f32 %v2455, %v2691
      %v2728 = vadd.f32 %v2456, %v2696
      %v2729 = vadd.f32 %v2457, %v2699
      %v2730 = vadd.f32 %v2458, %v2704
      %v2731 = vadd.f32 %v2459, %v2707
      %v2732 = vadd.f32 %v2460, %v2712
      %v2733 = vadd.f32 %v2461, %v2715
      %v2735 = vrot.slane %v304, 5
      %v2736 = vrot.slane %v2735, 4
      %v2737 = vrot.slane %v305, 5
      %v2738 = vsel %vm1073, %v2736, %v2737
      %v2739 = vrot.slane %v2737, 4
      %v2740 = vrot.slane %v306, 5
      %v2741 = vsel %vm1073, %v2739, %v2740
      %s2742 = scalar_lea.vmem %s1, 64
      %v2743 = vld [vmem:[%s2742] sm:$0xf]
      %v2744 = vld [vmem:[%s2742 + $0x4] sm:$0xf]
      %v2745 = vunpack.c.l.b16 %v2738
      %v2746 = vunpack.c.l.b16 %v2741
      %v2747 = vpack.c.b16 %v2746, %v2745
      %v2750 = vunpack.c.l.b16 %v2743
      %v2751 = vunpack.c.l.b16 %v2744
      %v2752 = vpack.c.b16 %v2751, %v2750
      %v2755 = vsel %vm538, %v2747, 0
      %2757 = vmatprep.subr.bf16.mxu0 0
      %2758 = vmatpush1.bf16.msra.mxu0 0
      %2759 = vmatprep.subr.bf16.mxu0 0
      %2760 = vmatpush1.bf16.msra.mxu0 0
      %2761 = vmatprep.subr.bf16.mxu0 0
      %2762 = vmatpush1.bf16.msra.mxu0 0
      %2763 = vmatprep.subr.bf16.mxu0 0
      %2764 = vmatpush1.bf16.msra.mxu0 0
      %2765 = vmatprep.subr.bf16.mxu0 0
      %2766 = vmatpush1.bf16.msra.mxu0 0
      %2767 = vmatprep.subr.bf16.mxu0 0
      %2768 = vmatpush1.bf16.msra.mxu0 0
      %2769 = vmatprep.subr.bf16.mxu0 0
      %2770 = vmatpush1.bf16.msra.mxu0 0
      %2771 = vmatprep.subr.bf16.mxu0 0
      %2772 = vmatpush1.bf16.msra.mxu0 %v2752
      %2773 = vmatprep.subr.bf16.mxu0 0
      %2774 = vmatpush2.bf16.msra.mxu0 0
      %2775 = vmatprep.subr.bf16.mxu0 0
      %2776 = vmatpush2.bf16.msra.mxu0 0
      %2777 = vmatprep.subr.bf16.mxu0 0
      %2778 = vmatpush2.bf16.msra.mxu0 0
      %2779 = vmatprep.subr.bf16.mxu0 0
      %2780 = vmatpush2.bf16.msra.mxu0 0
      %2781 = vmatprep.subr.bf16.mxu0 0
      %2782 = vmatpush2.bf16.msra.mxu0 0
      %2783 = vmatprep.subr.bf16.mxu0 0
      %2784 = vmatpush2.bf16.msra.mxu0 0
      %2785 = vmatprep.subr.bf16.mxu0 0
      %2786 = vmatpush2.bf16.msra.mxu0 0
      %2787 = vmatprep.subr.bf16.mxu0 0
      %2788 = vmatpush2.bf16.msra.mxu0 0
      %2789 = vmatprep.mubr.bf16.mxu0 0
      %2790 = vmatmul.mubr.bf16.gmra.mxu0 %v1170
      %v2791 = vpop.f32.mrf.mxu0
      %v2792 = vadd.f32 0.0, %v2791
      %v2793 = vpop.f32.mrf.mxu0
      %v2794 = vpop.f32.mrf.mxu0
      %v2795 = vadd.f32 0.0, %v2794
      %v2796 = vpop.f32.mrf.mxu0
      %2797 = vmatprep.mubr.bf16.mxu0 0
      %2798 = vmatmul.mubr.bf16.gmra.mxu0 %v1173
      %v2799 = vpop.f32.mrf.mxu0
      %v2800 = vadd.f32 0.0, %v2799
      %v2801 = vpop.f32.mrf.mxu0
      %v2802 = vpop.f32.mrf.mxu0
      %v2803 = vadd.f32 0.0, %v2802
      %v2804 = vpop.f32.mrf.mxu0
      %2805 = vmatprep.mubr.bf16.mxu0 0
      %2806 = vmatmul.mubr.bf16.gmra.mxu0 %v1176
      %v2807 = vpop.f32.mrf.mxu0
      %v2808 = vadd.f32 0.0, %v2807
      %v2809 = vpop.f32.mrf.mxu0
      %v2810 = vpop.f32.mrf.mxu0
      %v2811 = vadd.f32 0.0, %v2810
      %v2812 = vpop.f32.mrf.mxu0
      %2813 = vmatprep.mubr.bf16.mxu0 0
      %2814 = vmatmul.mubr.bf16.gmra.mxu0 %v1179
      %v2815 = vpop.f32.mrf.mxu0
      %v2816 = vadd.f32 0.0, %v2815
      %v2817 = vpop.f32.mrf.mxu0
      %v2818 = vpop.f32.mrf.mxu0
      %v2819 = vadd.f32 0.0, %v2818
      %v2820 = vpop.f32.mrf.mxu0
      %2821 = vmatprep.mubr.bf16.mxu0 0
      %2822 = vmatmul.mubr.bf16.gmra.mxu0 %v1182
      %v2823 = vpop.f32.mrf.mxu0
      %v2824 = vadd.f32 0.0, %v2823
      %v2825 = vpop.f32.mrf.mxu0
      %v2826 = vpop.f32.mrf.mxu0
      %v2827 = vadd.f32 0.0, %v2826
      %v2828 = vpop.f32.mrf.mxu0
      %2829 = vmatprep.mubr.bf16.mxu0 0
      %2830 = vmatmul.mubr.bf16.gmra.mxu0 %v1185
      %v2831 = vpop.f32.mrf.mxu0
      %v2832 = vadd.f32 0.0, %v2831
      %v2833 = vpop.f32.mrf.mxu0
      %v2834 = vpop.f32.mrf.mxu0
      %v2835 = vadd.f32 0.0, %v2834
      %v2836 = vpop.f32.mrf.mxu0
      %2837 = vmatprep.mubr.bf16.mxu0 0
      %2838 = vmatmul.mubr.bf16.gmra.mxu0 %v1977
      %v2839 = vpop.f32.mrf.mxu0
      %v2840 = vadd.f32 0.0, %v2839
      %v2841 = vpop.f32.mrf.mxu0
      %v2842 = vpop.f32.mrf.mxu0
      %v2843 = vadd.f32 0.0, %v2842
      %v2844 = vpop.f32.mrf.mxu0
      %2845 = vmatprep.mubr.bf16.mxu0 0
      %2846 = vmatmul.mubr.bf16.gmra.mxu0 %v2755
      %v2847 = vpop.f32.mrf.mxu0
      %v2848 = vadd.f32 0.0, %v2847
      %v2849 = vpop.f32.mrf.mxu0
      %v2850 = vpop.f32.mrf.mxu0
      %v2851 = vadd.f32 0.0, %v2850
      %v2852 = vpop.f32.mrf.mxu0
      %2853 = vdwg.mxu0
      %v2854 = vadd.f32 %v2598, %v2792
      %v2855 = vadd.f32 %v2599, %v2795
      %v2856 = vadd.f32 %v2600, %v2800
      %v2857 = vadd.f32 %v2601, %v2803
      %v2858 = vadd.f32 %v2602, %v2808
      %v2859 = vadd.f32 %v2603, %v2811
      %v2860 = vadd.f32 %v2604, %v2816
      %v2861 = vadd.f32 %v2605, %v2819
      %v2862 = vadd.f32 %v2606, %v2824
      %v2863 = vadd.f32 %v2607, %v2827
      %v2864 = vadd.f32 %v2608, %v2832
      %v2865 = vadd.f32 %v2609, %v2835
      %v2866 = vadd.f32 %v2610, %v2840
      %v2867 = vadd.f32 %v2611, %v2843
      %v2868 = vadd.f32 %v2612, %v2848
      %v2869 = vadd.f32 %v2613, %v2851
      %s2870 = scalar_lea.vmem %s2, 16
      %v2871 = vld [vmem:[%s2870] sm:$0x3]
      %v2872 = vsel %vm829, %v2747, 0
      %v2875 = vsel %vm846, %v2871, 0
      %2877 = vmatprep.subr.bf16.mxu0 0
      %2878 = vmatpush1.bf16.msra.mxu0 0
      %2879 = vmatprep.subr.bf16.mxu0 0
      %2880 = vmatpush1.bf16.msra.mxu0 0
      %2881 = vmatprep.subr.bf16.mxu0 0
      %2882 = vmatpush1.bf16.msra.mxu0 0
      %2883 = vmatprep.subr.bf16.mxu0 0
      %2884 = vmatpush1.bf16.msra.mxu0 0
      %2885 = vmatprep.subr.bf16.mxu0 0
      %2886 = vmatpush1.bf16.msra.mxu0 0
      %2887 = vmatprep.subr.bf16.mxu0 0
      %2888 = vmatpush1.bf16.msra.mxu0 0
      %2889 = vmatprep.subr.bf16.mxu0 0
      %2890 = vmatpush1.bf16.msra.mxu0 0
      %2891 = vmatprep.subr.bf16.mxu0 0
      %2892 = vmatpush1.bf16.msra.mxu0 %v2875
      %2893 = vmatprep.subr.bf16.mxu0 0
      %2894 = vmatpush2.bf16.msra.mxu0 0
      %2895 = vmatprep.subr.bf16.mxu0 0
      %2896 = vmatpush2.bf16.msra.mxu0 0
      %2897 = vmatprep.subr.bf16.mxu0 0
      %2898 = vmatpush2.bf16.msra.mxu0 0
      %2899 = vmatprep.subr.bf16.mxu0 0
      %2900 = vmatpush2.bf16.msra.mxu0 0
      %2901 = vmatprep.subr.bf16.mxu0 0
      %2902 = vmatpush2.bf16.msra.mxu0 0
      %2903 = vmatprep.subr.bf16.mxu0 0
      %2904 = vmatpush2.bf16.msra.mxu0 0
      %2905 = vmatprep.subr.bf16.mxu0 0
      %2906 = vmatpush2.bf16.msra.mxu0 0
      %2907 = vmatprep.subr.bf16.mxu0 0
      %2908 = vmatpush2.bf16.msra.mxu0 0
      %2909 = vmatprep.mubr.bf16.mxu0 0
      %2910 = vmatmul.mubr.bf16.gmra.mxu0 %v1306
      %v2911 = vpop.f32.mrf.mxu0
      %v2912 = vadd.f32 0.0, %v2911
      %v2913 = vpop.f32.mrf.mxu0
      %v2914 = vpop.f32.mrf.mxu0
      %v2915 = vadd.f32 0.0, %v2914
      %v2916 = vpop.f32.mrf.mxu0
      %2917 = vmatprep.mubr.bf16.mxu0 0
      %2918 = vmatmul.mubr.bf16.gmra.mxu0 %v1308
      %v2919 = vpop.f32.mrf.mxu0
      %v2920 = vadd.f32 0.0, %v2919
      %v2921 = vpop.f32.mrf.mxu0
      %v2922 = vpop.f32.mrf.mxu0
      %v2923 = vadd.f32 0.0, %v2922
      %v2924 = vpop.f32.mrf.mxu0
      %2925 = vmatprep.mubr.bf16.mxu0 0
      %2926 = vmatmul.mubr.bf16.gmra.mxu0 %v1310
      %v2927 = vpop.f32.mrf.mxu0
      %v2928 = vadd.f32 0.0, %v2927
      %v2929 = vpop.f32.mrf.mxu0
      %v2930 = vpop.f32.mrf.mxu0
      %v2931 = vadd.f32 0.0, %v2930
      %v2932 = vpop.f32.mrf.mxu0
      %2933 = vmatprep.mubr.bf16.mxu0 0
      %2934 = vmatmul.mubr.bf16.gmra.mxu0 %v1312
      %v2935 = vpop.f32.mrf.mxu0
      %v2936 = vadd.f32 0.0, %v2935
      %v2937 = vpop.f32.mrf.mxu0
      %v2938 = vpop.f32.mrf.mxu0
      %v2939 = vadd.f32 0.0, %v2938
      %v2940 = vpop.f32.mrf.mxu0
      %2941 = vmatprep.mubr.bf16.mxu0 0
      %2942 = vmatmul.mubr.bf16.gmra.mxu0 %v1314
      %v2943 = vpop.f32.mrf.mxu0
      %v2944 = vadd.f32 0.0, %v2943
      %v2945 = vpop.f32.mrf.mxu0
      %v2946 = vpop.f32.mrf.mxu0
      %v2947 = vadd.f32 0.0, %v2946
      %v2948 = vpop.f32.mrf.mxu0
      %2949 = vmatprep.mubr.bf16.mxu0 0
      %2950 = vmatmul.mubr.bf16.gmra.mxu0 %v1316
      %v2951 = vpop.f32.mrf.mxu0
      %v2952 = vadd.f32 0.0, %v2951
      %v2953 = vpop.f32.mrf.mxu0
      %v2954 = vpop.f32.mrf.mxu0
      %v2955 = vadd.f32 0.0, %v2954
      %v2956 = vpop.f32.mrf.mxu0
      %2957 = vmatprep.mubr.bf16.mxu0 0
      %2958 = vmatmul.mubr.bf16.gmra.mxu0 %v2094
      %v2959 = vpop.f32.mrf.mxu0
      %v2960 = vadd.f32 0.0, %v2959
      %v2961 = vpop.f32.mrf.mxu0
      %v2962 = vpop.f32.mrf.mxu0
      %v2963 = vadd.f32 0.0, %v2962
      %v2964 = vpop.f32.mrf.mxu0
      %2965 = vmatprep.mubr.bf16.mxu0 0
      %2966 = vmatmul.mubr.bf16.gmra.mxu0 %v2872
      %v2967 = vpop.f32.mrf.mxu0
      %v2968 = vadd.f32 0.0, %v2967
      %v2969 = vpop.f32.mrf.mxu0
      %v2970 = vpop.f32.mrf.mxu0
      %v2971 = vadd.f32 0.0, %v2970
      %v2972 = vpop.f32.mrf.mxu0
      %2973 = vdwg.mxu0
      %v2974 = vadd.f32 %v2718, %v2912
      %v2975 = vadd.f32 %v2719, %v2915
      %v2976 = vadd.f32 %v2720, %v2920
      %v2977 = vadd.f32 %v2721, %v2923
      %v2978 = vadd.f32 %v2722, %v2928
      %v2979 = vadd.f32 %v2723, %v2931
      %v2980 = vadd.f32 %v2724, %v2936
      %v2981 = vadd.f32 %v2725, %v2939
      %v2982 = vadd.f32 %v2726, %v2944
      %v2983 = vadd.f32 %v2727, %v2947
      %v2984 = vadd.f32 %v2728, %v2952
      %v2985 = vadd.f32 %v2729, %v2955
      %v2986 = vadd.f32 %v2730, %v2960
      %v2987 = vadd.f32 %v2731, %v2963
      %v2988 = vadd.f32 %v2732, %v2968
      %v2989 = vadd.f32 %v2733, %v2971
      %v2990 = vld [vmem:[%s3] sm:$0x1]
      %v2992 = vlaneseq
      %v2993 = vshrl.u32 %v2992, 7
      %v2994 = vsub.s32 0, %v2993
      %v2995 = vrot.slane %v2990, %v2994
      %v2997 = vadd.f32 %v2854, %v2995
      %v2998 = vadd.f32 %v2855, %v2995
      %v2999 = vadd.f32 %v2856, %v2995
      %v3000 = vadd.f32 %v2857, %v2995
      %v3001 = vadd.f32 %v2858, %v2995
      %v3002 = vadd.f32 %v2859, %v2995
      %v3003 = vadd.f32 %v2860, %v2995
      %v3004 = vadd.f32 %v2861, %v2995
      %v3005 = vadd.f32 %v2862, %v2995
      %v3006 = vadd.f32 %v2863, %v2995
      %v3007 = vadd.f32 %v2864, %v2995
      %v3008 = vadd.f32 %v2865, %v2995
      %v3009 = vadd.f32 %v2866, %v2995
      %v3010 = vadd.f32 %v2867, %v2995
      %v3011 = vadd.f32 %v2868, %v2995
      %v3012 = vadd.f32 %v2869, %v2995
      %v3013 = vmax.f32 %v2997, 0.0
      %v3014 = vmax.f32 %v2998, 0.0
      %v3015 = vmax.f32 %v2999, 0.0
      %v3016 = vmax.f32 %v3000, 0.0
      %v3017 = vmax.f32 %v3001, 0.0
      %v3018 = vmax.f32 %v3002, 0.0
      %v3019 = vmax.f32 %v3003, 0.0
      %v3020 = vmax.f32 %v3004, 0.0
      %v3021 = vmax.f32 %v3005, 0.0
      %v3022 = vmax.f32 %v3006, 0.0
      %v3023 = vmax.f32 %v3007, 0.0
      %v3024 = vmax.f32 %v3008, 0.0
      %v3025 = vmax.f32 %v3009, 0.0
      %v3026 = vmax.f32 %v3010, 0.0
      %v3027 = vmax.f32 %v3011, 0.0
      %v3028 = vmax.f32 %v3012, 0.0
      %3029 = vst.msk [vmem:[%s260] sm:$0xff] %vm829, %v3013
      %3030 = vst.msk [vmem:[%s260 + $0x8] sm:$0xff] %vm829, %v3014
      %3031 = vst.msk [vmem:[%s260 + $0x10] sm:$0xff] %vm829, %v3015
      %3032 = vst.msk [vmem:[%s260 + $0x18] sm:$0xff] %vm829, %v3016
      %3033 = vst.msk [vmem:[%s260 + $0x20] sm:$0xff] %vm829, %v3017
      %3034 = vst.msk [vmem:[%s260 + $0x28] sm:$0xff] %vm829, %v3018
      %3035 = vst.msk [vmem:[%s260 + $0x30] sm:$0xff] %vm829, %v3019
      %3036 = vst.msk [vmem:[%s260 + $0x38] sm:$0xff] %vm829, %v3020
      %3037 = vst.msk [vmem:[%s260 + $0x40] sm:$0xff] %vm829, %v3021
      %3038 = vst.msk [vmem:[%s260 + $0x48] sm:$0xff] %vm829, %v3022
      %3039 = vst.msk [vmem:[%s260 + $0x50] sm:$0xff] %vm829, %v3023
      %3040 = vst.msk [vmem:[%s260 + $0x58] sm:$0xff] %vm829, %v3024
      %3041 = vst.msk [vmem:[%s260 + $0x60] sm:$0xff] %vm829, %v3025
      %3042 = vst.msk [vmem:[%s260 + $0x68] sm:$0xff] %vm829, %v3026
      %3043 = vst.msk [vmem:[%s260 + $0x70] sm:$0xff] %vm829, %v3027
      %3044 = vst.msk [vmem:[%s260 + $0x78] sm:$0xff] %vm829, %v3028
      %vm3045 = vcmask 97280
      %3046 = vst.msk [vmem:[%s270] sm:$0xff] %vm3045, %v2974
      %3047 = vst.msk [vmem:[%s270 + $0x8] sm:$0xff] %vm3045, %v2975
      %3048 = vst.msk [vmem:[%s270 + $0x10] sm:$0xff] %vm3045, %v2976
      %3049 = vst.msk [vmem:[%s270 + $0x18] sm:$0xff] %vm3045, %v2977
      %3050 = vst.msk [vmem:[%s270 + $0x20] sm:$0xff] %vm3045, %v2978
      %3051 = vst.msk [vmem:[%s270 + $0x28] sm:$0xff] %vm3045, %v2979
      %3052 = vst.msk [vmem:[%s270 + $0x30] sm:$0xff] %vm3045, %v2980
      %3053 = vst.msk [vmem:[%s270 + $0x38] sm:$0xff] %vm3045, %v2981
      %3054 = vst.msk [vmem:[%s270 + $0x40] sm:$0xff] %vm3045, %v2982
      %3055 = vst.msk [vmem:[%s270 + $0x48] sm:$0xff] %vm3045, %v2983
      %3056 = vst.msk [vmem:[%s270 + $0x50] sm:$0xff] %vm3045, %v2984
      %3057 = vst.msk [vmem:[%s270 + $0x58] sm:$0xff] %vm3045, %v2985
      %3058 = vst.msk [vmem:[%s270 + $0x60] sm:$0xff] %vm3045, %v2986
      %3059 = vst.msk [vmem:[%s270 + $0x68] sm:$0xff] %vm3045, %v2987
      %3060 = vst.msk [vmem:[%s270 + $0x70] sm:$0xff] %vm3045, %v2988
      %3061 = vst.msk [vmem:[%s270 + $0x78] sm:$0xff] %vm3045, %v2989
      %s3062 = smul.u32 16, %s22
      %p3063 = scmp.lt.s32.totalorder %s21, 1
      %s3064 = scalar_select %p3063, %s21, 1
      %p3065 = scmp.lt.s32.totalorder %s3062, 31
      %s3066 = scalar_select %p3065, %s3062, 31
      %s3067 = smul.addr %s3064, 32
      %s3068 = sadd.s32 %s3066, %s3067
      %s3069 = smul.addr %s3068, 8
      %s3070 = scalar_lea.vmem %s4, %s3069
      %s3071 = smul.u32 16, %s22
      %p3072 = scmp.lt.s32.totalorder %s21, 1
      %s3073 = scalar_select %p3072, %s21, 1
      %p3074 = scmp.lt.s32.totalorder %s3071, 31
      %s3075 = scalar_select %p3074, %s3071, 31
      %s3076 = smul.addr %s3073, 32
      %s3077 = sadd.s32 %s3075, %s3076
      %s3078 = smul.addr %s3077, 8
      %s3079 = scalar_lea.vmem %s5, %s3078
      // Predicated region
      $region37: #{ffc_resnet_block_forward.8} parent=35 // pred_check
        %p3080 = pneg %p138
      $region38: #{ffc_resnet_block_forward.8} parent=35 // pred_check_branch
        %3082 = sbr.rel (%p3080) target = $region40
      $region39: #{ffc_resnet_block_forward.8} parent=35 // pred_region
        %s3083 = smul.u32 16, %s22
      $region40: #{ffc_resnet_block_forward.8} parent=35 // pred_fallthru
        _
      // Predicated region
      $region41: #{ffc_resnet_block_forward.8} parent=35 // pred_check
        %p3084 = pneg %p166
      $region42: #{ffc_resnet_block_forward.8} parent=35 // pred_check_branch
        %3086 = sbr.rel (%p3084) target = $region44
      $region43: #{ffc_resnet_block_forward.8} parent=35 // pred_region
        %s3087 = smul.u32 16, %s22
      $region44: #{ffc_resnet_block_forward.8} parent=35 // pred_fallthru
        _
    $region36: #{ffc_resnet_block_forward.8} parent=5 // pred_fallthru
      _
    %p3088 = scmp.le.s32.totalorder 2, %s12
    // Predicated region
    $region45: #{ffc_resnet_block_forward.8} parent=5 // pred_check
      %p3089 = pneg %p3088
    $region46: #{ffc_resnet_block_forward.8} parent=5 // pred_check_branch
      %3091 = sbr.rel (%p3089) target = $region48
    $region47: #{ffc_resnet_block_forward.8} parent=5 // pred_region
      %s3092 = ssub.s32 %s12, 2
      // Predicated region
      $region49: #{ffc_resnet_block_forward.8} parent=47 // pred_check
        %p3093 = pneg %p144
      $region50: #{ffc_resnet_block_forward.8} parent=47 // pred_check_branch
        %3095 = sbr.rel (%p3093) target = $region52
      $region51: #{ffc_resnet_block_forward.8} parent=47 // pred_region
        %s3096 = smul.u32 16, %s24
        %p3097 = scmp.lt.s32.totalorder %s23, 1
        %s3098 = scalar_select %p3097, %s23, 1
        %p3099 = scmp.lt.s32.totalorder %s3096, 31
        %s3100 = scalar_select %p3099, %s3096, 31
        %s3101 = smul.addr %s3098, 32
        %s3102 = sadd.s32 %s3100, %s3101
        %s3103 = smul.addr %s3102, 8
        %s3104 = scalar_lea.vmem %s4, %s3103
      $region52: #{ffc_resnet_block_forward.8} parent=47 // pred_fallthru
        _
      // Predicated region
      $region53: #{ffc_resnet_block_forward.8} parent=47 // pred_check
        %p3105 = pneg %p172
      $region54: #{ffc_resnet_block_forward.8} parent=47 // pred_check_branch
        %3107 = sbr.rel (%p3105) target = $region56
      $region55: #{ffc_resnet_block_forward.8} parent=47 // pred_region
        %s3108 = smul.u32 16, %s24
        %p3109 = scmp.lt.s32.totalorder %s23, 1
        %s3110 = scalar_select %p3109, %s23, 1
        %p3111 = scmp.lt.s32.totalorder %s3108, 31
        %s3112 = scalar_select %p3111, %s3108, 31
        %s3113 = smul.addr %s3110, 32
        %s3114 = sadd.s32 %s3112, %s3113
        %s3115 = smul.addr %s3114, 8
        %s3116 = scalar_lea.vmem %s5, %s3115
      $region56: #{ffc_resnet_block_forward.8} parent=47 // pred_fallthru
        _
    $region48: #{ffc_resnet_block_forward.8} parent=5 // pred_fallthru
      _
  $region6: #{ffc_resnet_block_forward.8} parent=0 // loop_footer
    %s16 = sadd.s32 1, %s12
  $region7: #{ffc_resnet_block_forward.8} parent=0 // loop_footer_branch
    %11 = sbr.rel target = $region3
  $region8: #{ffc_resnet_block_forward.8} parent=0 // loop_exit
    _

// kernel: ffc_resnet_block_forward.15
$region0: #{ffc_resnet_block_forward.15}
  #allocation0 [shape = 'u32[]', space=smem, size = 0x4, offset = 0x4, fixed_abs, tag = 'smem constant byte address 0x4 - core index']
  #allocation1 [shape = 'u32[144,128]{1,0:T(1,128)}', space=vmem, size = 0x12000, scoped, tag = 'internal scratch']
  %s0 = inlined_call_operand.vmem [shape: f32[2,256,6], index: 0, kind: input, shape index: {}]
  %s1 = inlined_call_operand.vmem [shape: bf16[6,12], index: 1, kind: input, shape index: {}]
  %s2 = inlined_call_operand.vmem [shape: f32[1,12], index: 2, kind: input, shape index: {}]
  %s3 = inlined_call_operand.vmem [shape: f32[2,256,6], index: 3, kind: input, shape index: {}]
  %s4 = inlined_call_operand.vmem [shape: f32[2,256,12], index: 4, kind: input, shape index: {}]
  %s5 = inlined_call_operand.vmem [shape: f32[2,256,12], index: 5, kind: input, shape index: {}]
  %s6 = inlined_call_operand.vmem [shape: f32[2,256,12], index: 6, kind: output, shape index: {}]
  %s7 = sld [smem:[#allocation0]]
  $region57: #{ffc_resnet_block_forward.15} parent=0
    _
  %s9 = ssub.s32 1, %s7
  %s10 = scalar_select 0, %s9, %s7
  loop: start=0, step=1, limit=6
  $region2: #{ffc_resnet_block_forward.15} parent=0 // loop_pre_header
    _
  $region3: #{ffc_resnet_block_forward.15} parent=0 // loop_header
    %s12 = sphi 0, %s16
    %p13 = scmp.ge.s32.totalorder %s12, 6
    %s19 = sphi 0, %s31
    %s20 = sphi 0, %s27
    %s21 = sphi 0, %s19
    %s22 = sphi 0, %s20
    %s23 = sphi 0, %s21
    %s24 = sphi 0, %s22
    %s36 = sphi 0, %s38
    %s39 = sphi 0, %s36
    %s40 = sphi 0, %s39
    %s56 = sphi 0, %s40
    %s60 = sphi 0, %s60
    %s62 = sphi 0, %s60
    %s63 = sphi 0, %s62
    %s77 = sphi 0, %s63
    %s81 = sphi 0, %s81
    %s83 = sphi 0, %s81
    %s84 = sphi 0, %s83
    %s98 = sphi 0, %s84
    %s106 = sphi 0, %s108
    %s109 = sphi 0, %s106
    %s110 = sphi 0, %s109
    %s126 = sphi 0, %s110
    %s134 = sphi 0, %s136
    %s137 = sphi 0, %s134
    %s138 = sphi 0, %s137
    %s154 = sphi 0, %s138
    %s162 = sphi 0, %s164
    %s165 = sphi 0, %s162
    %s166 = sphi 0, %s165
    %s182 = sphi 0, %s166
    %s190 = sphi 0, %s192
    %s193 = sphi 0, %s190
    %s194 = sphi 0, %s193
    %s210 = sphi 0, %s194
  $region4: #{ffc_resnet_block_forward.15} parent=0 // loop_header_branch
    %15 = sbr.rel (%p13) target = $region8
  $region5: #{ffc_resnet_block_forward.15} parent=0 // loop_body
    %s17 = ssub.s32 %s12, 1
    %s18 = ssub.s32 %s12, 2
    %s25 = sadd.s32 1, %s20
    %p26 = scmp.ge.s32.totalorder %s25, 2
    %s27 = scalar_select %p26, 0, %s25
    %s28 = sadd.s32 1, %s19
    %s29 = scalar_select %p26, %s28, %s19
    %p30 = scmp.ge.s32.totalorder %s29, 2
    %s31 = scalar_select %p30, 0, %s29
    %s32 = ssub.s32 %s19, %s31
    %s33 = ssub.s32 %s20, %s27
    %s34 = sor.u32 %s32, %s33
    %p35 = scmp.eq.s32.totalorder %s34, 0
    %s37 = sadd.s32 %s36, 1
    %s38 = scalar_select %p35, %s36, %s37
    %p41 = pneg %p35
    %p42 = scmp.eq.s32.totalorder %s12, 3
    %p43 = por %p41, %p42
    %p44 = scmp.ne.s32.totalorder %s36, %s39
    %p45 = scmp.eq.s32.totalorder %s12, 0
    %p46 = por %p44, %p45
    %p47 = scmp.ne.s32.totalorder %s36, %s39
    %p48 = scmp.eq.s32.totalorder %s17, 3
    %p49 = por %p47, %p48
    %p50 = scmp.ne.s32.totalorder %s39, %s40
    %p51 = scmp.eq.s32.totalorder %s17, 0
    %p52 = por %p50, %p51
    %p53 = scmp.ne.s32.totalorder %s39, %s40
    %p54 = scmp.eq.s32.totalorder %s18, 3
    %p55 = por %p53, %p54
    %p57 = scmp.ne.s32.totalorder %s40, %s56
    %p58 = scmp.eq.s32.totalorder %s18, 0
    %p59 = por %p57, %p58
    %s61 = sadd.s32 %s60, 1
    %p64 = scmp.eq.s32.totalorder %s12, 3
    %p65 = scmp.ne.s32.totalorder %s60, %s62
    %p66 = scmp.eq.s32.totalorder %s12, 0
    %p67 = por %p65, %p66
    %p68 = scmp.ne.s32.totalorder %s60, %s62
    %p69 = scmp.eq.s32.totalorder %s17, 3
    %p70 = por %p68, %p69
    %p71 = scmp.ne.s32.totalorder %s62, %s63
    %p72 = scmp.eq.s32.totalorder %s17, 0
    %p73 = por %p71, %p72
    %p74 = scmp.ne.s32.totalorder %s62, %s63
    %p75 = scmp.eq.s32.totalorder %s18, 3
    %p76 = por %p74, %p75
    %p78 = scmp.ne.s32.totalorder %s63, %s77
    %p79 = scmp.eq.s32.totalorder %s18, 0
    %p80 = por %p78, %p79
    %s82 = sadd.s32 %s81, 1
    %p85 = scmp.eq.s32.totalorder %s12, 3
    %p86 = scmp.ne.s32.totalorder %s81, %s83
    %p87 = scmp.eq.s32.totalorder %s12, 0
    %p88 = por %p86, %p87
    %p89 = scmp.ne.s32.totalorder %s81, %s83
    %p90 = scmp.eq.s32.totalorder %s17, 3
    %p91 = por %p89, %p90
    %p92 = scmp.ne.s32.totalorder %s83, %s84
    %p93 = scmp.eq.s32.totalorder %s17, 0
    %p94 = por %p92, %p93
    %p95 = scmp.ne.s32.totalorder %s83, %s84
    %p96 = scmp.eq.s32.totalorder %s18, 3
    %p97 = por %p95, %p96
    %p99 = scmp.ne.s32.totalorder %s84, %s98
    %p100 = scmp.eq.s32.totalorder %s18, 0
    %p101 = por %p99, %p100
    %s102 = ssub.s32 %s19, %s31
    %s103 = ssub.s32 %s20, %s27
    %s104 = sor.u32 %s102, %s103
    %p105 = scmp.eq.s32.totalorder %s104, 0
    %s107 = sadd.s32 %s106, 1
    %s108 = scalar_select %p105, %s106, %s107
    %p111 = pneg %p105
    %p112 = scmp.eq.s32.totalorder %s12, 3
    %p113 = por %p111, %p112
    %p114 = scmp.ne.s32.totalorder %s106, %s109
    %p115 = scmp.eq.s32.totalorder %s12, 0
    %p116 = por %p114, %p115
    %p117 = scmp.ne.s32.totalorder %s106, %s109
    %p118 = scmp.eq.s32.totalorder %s17, 3
    %p119 = por %p117, %p118
    %p120 = scmp.ne.s32.totalorder %s109, %s110
    %p121 = scmp.eq.s32.totalorder %s17, 0
    %p122 = por %p120, %p121
    %p123 = scmp.ne.s32.totalorder %s109, %s110
    %p124 = scmp.eq.s32.totalorder %s18, 3
    %p125 = por %p123, %p124
    %p127 = scmp.ne.s32.totalorder %s110, %s126
    %p128 = scmp.eq.s32.totalorder %s18, 0
    %p129 = por %p127, %p128
    %s130 = ssub.s32 %s19, %s31
    %s131 = ssub.s32 %s20, %s27
    %s132 = sor.u32 %s130, %s131
    %p133 = scmp.eq.s32.totalorder %s132, 0
    %s135 = sadd.s32 %s134, 1
    %s136 = scalar_select %p133, %s134, %s135
    %p139 = pneg %p133
    %p140 = scmp.eq.s32.totalorder %s12, 3
    %p141 = por %p139, %p140
    %p142 = scmp.ne.s32.totalorder %s134, %s137
    %p143 = scmp.eq.s32.totalorder %s12, 0
    %p144 = por %p142, %p143
    %p145 = scmp.ne.s32.totalorder %s134, %s137
    %p146 = scmp.eq.s32.totalorder %s17, 3
    %p147 = por %p145, %p146
    %p148 = scmp.ne.s32.totalorder %s137, %s138
    %p149 = scmp.eq.s32.totalorder %s17, 0
    %p150 = por %p148, %p149
    %p151 = scmp.ne.s32.totalorder %s137, %s138
    %p152 = scmp.eq.s32.totalorder %s18, 3
    %p153 = por %p151, %p152
    %p155 = scmp.ne.s32.totalorder %s138, %s154
    %p156 = scmp.eq.s32.totalorder %s18, 0
    %p157 = por %p155, %p156
    %s158 = ssub.s32 %s19, %s31
    %s159 = ssub.s32 %s20, %s27
    %s160 = sor.u32 %s158, %s159
    %p161 = scmp.eq.s32.totalorder %s160, 0
    %s163 = sadd.s32 %s162, 1
    %s164 = scalar_select %p161, %s162, %s163
    %p167 = pneg %p161
    %p168 = scmp.eq.s32.totalorder %s12, 3
    %p169 = por %p167, %p168
    %p170 = scmp.ne.s32.totalorder %s162, %s165
    %p171 = scmp.eq.s32.totalorder %s12, 0
    %p172 = por %p170, %p171
    %p173 = scmp.ne.s32.totalorder %s162, %s165
    %p174 = scmp.eq.s32.totalorder %s17, 3
    %p175 = por %p173, %p174
    %p176 = scmp.ne.s32.totalorder %s165, %s166
    %p177 = scmp.eq.s32.totalorder %s17, 0
    %p178 = por %p176, %p177
    %p179 = scmp.ne.s32.totalorder %s165, %s166
    %p180 = scmp.eq.s32.totalorder %s18, 3
    %p181 = por %p179, %p180
    %p183 = scmp.ne.s32.totalorder %s166, %s182
    %p184 = scmp.eq.s32.totalorder %s18, 0
    %p185 = por %p183, %p184
    %s186 = ssub.s32 %s19, %s31
    %s187 = ssub.s32 %s20, %s27
    %s188 = sor.u32 %s186, %s187
    %p189 = scmp.eq.s32.totalorder %s188, 0
    %s191 = sadd.s32 %s190, 1
    %s192 = scalar_select %p189, %s190, %s191
    %p195 = pneg %p189
    %p196 = scmp.eq.s32.totalorder %s12, 3
    %p197 = por %p195, %p196
    %p198 = scmp.ne.s32.totalorder %s190, %s193
    %p199 = scmp.eq.s32.totalorder %s12, 0
    %p200 = por %p198, %p199
    %p201 = scmp.ne.s32.totalorder %s190, %s193
    %p202 = scmp.eq.s32.totalorder %s17, 3
    %p203 = por %p201, %p202
    %p204 = scmp.ne.s32.totalorder %s193, %s194
    %p205 = scmp.eq.s32.totalorder %s17, 0
    %p206 = por %p204, %p205
    %p207 = scmp.ne.s32.totalorder %s193, %s194
    %p208 = scmp.eq.s32.totalorder %s18, 3
    %p209 = por %p207, %p208
    %p211 = scmp.ne.s32.totalorder %s194, %s210
    %p212 = scmp.eq.s32.totalorder %s18, 0
    %p213 = por %p211, %p212
    %p214 = scmp.le.s32.totalorder 1, %s12
    %p215 = scmp.lt.s32.totalorder %s12, 5
    %p216 = pnand %p214, %p215
    %p217 = pneg %p216
    // Predicated region
    $region9: #{ffc_resnet_block_forward.15} parent=5 // pred_check
      _
    $region10: #{ffc_resnet_block_forward.15} parent=5 // pred_check_branch
      %219 = sbr.rel (%p216) target = $region12
    $region11: #{ffc_resnet_block_forward.15} parent=5 // pred_region
      %s220 = ssub.s32 %s12, 1
      // Predicated region
      $region13: #{ffc_resnet_block_forward.15} parent=11 // pred_check
        %p221 = pneg %p73
      $region14: #{ffc_resnet_block_forward.15} parent=11 // pred_check_branch
        %223 = sbr.rel (%p221) target = $region16
      $region15: #{ffc_resnet_block_forward.15} parent=11 // pred_region
        _
      $region16: #{ffc_resnet_block_forward.15} parent=11 // pred_fallthru
        _
      // Predicated region
      $region17: #{ffc_resnet_block_forward.15} parent=11 // pred_check
        %p224 = pneg %p94
      $region18: #{ffc_resnet_block_forward.15} parent=11 // pred_check_branch
        %226 = sbr.rel (%p224) target = $region20
      $region19: #{ffc_resnet_block_forward.15} parent=11 // pred_region
        _
      $region20: #{ffc_resnet_block_forward.15} parent=11 // pred_fallthru
        _
    $region12: #{ffc_resnet_block_forward.15} parent=5 // pred_fallthru
      _
    %p227 = scmp.lt.s32.totalorder %s12, 4
    // Predicated region
    $region21: #{ffc_resnet_block_forward.15} parent=5 // pred_check
      %p228 = pneg %p227
    $region22: #{ffc_resnet_block_forward.15} parent=5 // pred_check_branch
      %230 = sbr.rel (%p228) target = $region24
    $region23: #{ffc_resnet_block_forward.15} parent=5 // pred_region
      // Predicated region
      $region25: #{ffc_resnet_block_forward.15} parent=23 // pred_check
        %p231 = pneg %p46
      $region26: #{ffc_resnet_block_forward.15} parent=23 // pred_check_branch
        %233 = sbr.rel (%p231) target = $region28
      $region27: #{ffc_resnet_block_forward.15} parent=23 // pred_region
        %s234 = smul.u32 16, %s20
        %p235 = scmp.lt.s32.totalorder %s19, 1
        %s236 = scalar_select %p235, %s19, 1
        %p237 = scmp.lt.s32.totalorder %s234, 31
        %s238 = scalar_select %p237, %s234, 31
        %s239 = smul.addr %s236, 32
        %s240 = sadd.s32 %s238, %s239
        %s241 = smul.addr %s240, 8
        %s242 = scalar_lea.vmem %s0, %s241
        %s243 = smul.u32 16, %s20
      $region28: #{ffc_resnet_block_forward.15} parent=23 // pred_fallthru
        _
      // Predicated region
      $region29: #{ffc_resnet_block_forward.15} parent=23 // pred_check
        %p244 = pneg %p116
      $region30: #{ffc_resnet_block_forward.15} parent=23 // pred_check_branch
        %246 = sbr.rel (%p244) target = $region32
      $region31: #{ffc_resnet_block_forward.15} parent=23 // pred_region
        %s247 = smul.u32 16, %s20
        %p248 = scmp.lt.s32.totalorder %s19, 1
        %s249 = scalar_select %p248, %s19, 1
        %p250 = scmp.lt.s32.totalorder %s247, 31
        %s251 = scalar_select %p250, %s247, 31
        %s252 = smul.addr %s249, 32
        %s253 = sadd.s32 %s251, %s252
        %s254 = smul.addr %s253, 8
        %s255 = scalar_lea.vmem %s3, %s254
        %s256 = smul.u32 16, %s20
      $region32: #{ffc_resnet_block_forward.15} parent=23 // pred_fallthru
        _
      // Predicated region
      $region33: #{ffc_resnet_block_forward.15} parent=23 // pred_check
        %p257 = pneg %p144
      $region34: #{ffc_resnet_block_forward.15} parent=23 // pred_check_branch
        %259 = sbr.rel (%p257) target = $region36
      $region35: #{ffc_resnet_block_forward.15} parent=23 // pred_region
        %s260 = smul.u32 16, %s20
        %p261 = scmp.lt.s32.totalorder %s19, 1
        %s262 = scalar_select %p261, %s19, 1
        %p263 = scmp.lt.s32.totalorder %s260, 31
        %s264 = scalar_select %p263, %s260, 31
        %s265 = smul.addr %s262, 32
        %s266 = sadd.s32 %s264, %s265
        %s267 = smul.addr %s266, 8
        %s268 = scalar_lea.vmem %s4, %s267
        %s269 = smul.u32 16, %s20
      $region36: #{ffc_resnet_block_forward.15} parent=23 // pred_fallthru
        _
      // Predicated region
      $region37: #{ffc_resnet_block_forward.15} parent=23 // pred_check
        %p270 = pneg %p172
      $region38: #{ffc_resnet_block_forward.15} parent=23 // pred_check_branch
        %272 = sbr.rel (%p270) target = $region40
      $region39: #{ffc_resnet_block_forward.15} parent=23 // pred_region
        %s273 = smul.u32 16, %s20
        %p274 = scmp.lt.s32.totalorder %s19, 1
        %s275 = scalar_select %p274, %s19, 1
        %p276 = scmp.lt.s32.totalorder %s273, 31
        %s277 = scalar_select %p276, %s273, 31
        %s278 = smul.addr %s275, 32
        %s279 = sadd.s32 %s277, %s278
        %s280 = smul.addr %s279, 8
        %s281 = scalar_lea.vmem %s5, %s280
        %s282 = smul.u32 16, %s20
      $region40: #{ffc_resnet_block_forward.15} parent=23 // pred_fallthru
        _
    $region24: #{ffc_resnet_block_forward.15} parent=5 // pred_fallthru
      _
    %p283 = scmp.le.s32.totalorder 1, %s12
    %p284 = scmp.lt.s32.totalorder %s12, 5
    %p285 = pnand %p283, %p284
    %p286 = pneg %p285
    // Predicated region
    $region41: #{ffc_resnet_block_forward.15} parent=5 // pred_check
      _
    $region42: #{ffc_resnet_block_forward.15} parent=5 // pred_check_branch
      %288 = sbr.rel (%p285) target = $region44
    $region43: #{ffc_resnet_block_forward.15} parent=5 // pred_region
      %s289 = ssub.s32 %s12, 1
      %s290 = smul.u32 16, %s22
      %p291 = scmp.lt.s32.totalorder %s21, 1
      %s292 = scalar_select %p291, %s21, 1
      %p293 = scmp.lt.s32.totalorder %s290, 31
      %s294 = scalar_select %p293, %s290, 31
      %s295 = smul.addr %s292, 32
      %s296 = sadd.s32 %s294, %s295
      %s297 = smul.addr %s296, 8
      %s298 = scalar_lea.vmem %s0, %s297
      %p299 = pneg %p52
      %p300 = pneg %p49
      %p301 = pneg %p73
      %p302 = pneg %p70
      %p303 = pneg %p94
      %p304 = pneg %p91
      %s305 = smul.u32 16, %s22
      %p306 = scmp.lt.s32.totalorder %s21, 1
      %s307 = scalar_select %p306, %s21, 1
      %p308 = scmp.lt.s32.totalorder %s305, 31
      %s309 = scalar_select %p308, %s305, 31
      %s310 = smul.addr %s307, 32
      %s311 = sadd.s32 %s309, %s310
      %s312 = smul.addr %s311, 8
      %s313 = scalar_lea.vmem %s3, %s312
      %p314 = pneg %p122
      %p315 = pneg %p119
      %s316 = smul.u32 16, %s22
      %p317 = scmp.lt.s32.totalorder %s21, 1
      %s318 = scalar_select %p317, %s21, 1
      %p319 = scmp.lt.s32.totalorder %s316, 31
      %s320 = scalar_select %p319, %s316, 31
      %s321 = smul.addr %s318, 32
      %s322 = sadd.s32 %s320, %s321
      %s323 = smul.addr %s322, 8
      %s324 = scalar_lea.vmem %s4, %s323
      %p325 = pneg %p150
      %p326 = pneg %p147
      %s327 = smul.u32 16, %s22
      %p328 = scmp.lt.s32.totalorder %s21, 1
      %s329 = scalar_select %p328, %s21, 1
      %p330 = scmp.lt.s32.totalorder %s327, 31
      %s331 = scalar_select %p330, %s327, 31
      %s332 = smul.addr %s329, 32
      %s333 = sadd.s32 %s331, %s332
      %s334 = smul.addr %s333, 8
      %s335 = scalar_lea.vmem %s5, %s334
      %p336 = pneg %p178
      %p337 = pneg %p175
      %p338 = pneg %p206
      %p339 = pneg %p203
      %s340 = smul.u32 16, %s22
      %p341 = scmp.lt.s32.totalorder %s21, 1
      %s342 = scalar_select %p341, %s21, 1
      %p343 = scmp.lt.s32.totalorder %s340, 31
      %s344 = scalar_select %p343, %s340, 31
      %s345 = smul.addr %s342, 32
      %s346 = sadd.s32 %s344, %s345
      %s347 = smul.addr %s346, 8
      %s348 = scalar_lea.vmem %s6, %s347
      %s349 = smul.u32 16, %s22
      %p350 = scmp.lt.s32.totalorder %s21, 1
      %s351 = scalar_select %p350, %s21, 1
      %p352 = scmp.lt.s32.totalorder %s349, 31
      %s353 = scalar_select %p352, %s349, 31
      %s354 = smul.addr %s351, 32
      %s355 = sadd.s32 %s353, %s354
      %s356 = smul.addr %s355, 8
      %s357 = scalar_lea.vmem %s0, %s356
      %s358 = smul.u32 16, %s22
      %s359 = smul.u32 16, %s22
      %p360 = scmp.lt.s32.totalorder %s21, 1
      %s361 = scalar_select %p360, %s21, 1
      %p362 = scmp.lt.s32.totalorder %s359, 31
      %s363 = scalar_select %p362, %s359, 31
      %s364 = smul.addr %s361, 32
      %s365 = sadd.s32 %s363, %s364
      %s366 = smul.addr %s365, 8
      %s367 = scalar_lea.vmem %s3, %s366
      %s368 = smul.u32 16, %s22
      %s369 = smul.u32 16, %s22
      %p370 = scmp.lt.s32.totalorder %s21, 1
      %s371 = scalar_select %p370, %s21, 1
      %p372 = scmp.lt.s32.totalorder %s369, 31
      %s373 = scalar_select %p372, %s369, 31
      %s374 = smul.addr %s371, 32
      %s375 = sadd.s32 %s373, %s374
      %s376 = smul.addr %s375, 8
      %s377 = scalar_lea.vmem %s4, %s376
      %s378 = smul.u32 16, %s22
      %s379 = smul.u32 16, %s22
      %p380 = scmp.lt.s32.totalorder %s21, 1
      %s381 = scalar_select %p380, %s21, 1
      %p382 = scmp.lt.s32.totalorder %s379, 31
      %s383 = scalar_select %p382, %s379, 31
      %s384 = smul.addr %s381, 32
      %s385 = sadd.s32 %s383, %s384
      %s386 = smul.addr %s385, 8
      %s387 = scalar_lea.vmem %s5, %s386
      %s388 = smul.u32 16, %s22
      %s389 = smul.u32 16, %s22
      %p390 = scmp.lt.s32.totalorder %s21, 1
      %s391 = scalar_select %p390, %s21, 1
      %p392 = scmp.lt.s32.totalorder %s389, 31
      %s393 = scalar_select %p392, %s389, 31
      %s394 = smul.addr %s391, 32
      %s395 = sadd.s32 %s393, %s394
      %s396 = smul.addr %s395, 8
      %s397 = scalar_lea.vmem %s6, %s396
      %s398 = smul.u32 16, %s22
      %v400 = vld [vmem:[%s357] sm:$0xff]
      %v401 = vld [vmem:[%s357 + $0x8] sm:$0xff]
      %v402 = vld [vmem:[%s357 + $0x10] sm:$0xff]
      %v403 = vld [vmem:[%s357 + $0x18] sm:$0xff]
      %v404 = vld [vmem:[%s357 + $0x20] sm:$0xff]
      %v405 = vld [vmem:[%s357 + $0x28] sm:$0xff]
      %v406 = vld [vmem:[%s357 + $0x30] sm:$0xff]
      %v407 = vld [vmem:[%s357 + $0x38] sm:$0xff]
      %v408 = vld [vmem:[%s357 + $0x40] sm:$0xff]
      %v409 = vld [vmem:[%s357 + $0x48] sm:$0xff]
      %v410 = vld [vmem:[%s357 + $0x50] sm:$0xff]
      %v411 = vld [vmem:[%s357 + $0x58] sm:$0xff]
      %v412 = vld [vmem:[%s357 + $0x60] sm:$0xff]
      %v413 = vld [vmem:[%s357 + $0x68] sm:$0xff]
      %v414 = vld [vmem:[%s357 + $0x70] sm:$0xff]
      %v415 = vld [vmem:[%s357 + $0x78] sm:$0xff]
      %v416 = vld [vmem:[%s367] sm:$0xff]
      %v417 = vld [vmem:[%s367 + $0x8] sm:$0xff]
      %v418 = vld [vmem:[%s367 + $0x10] sm:$0xff]
      %v419 = vld [vmem:[%s367 + $0x18] sm:$0xff]
      %v420 = vld [vmem:[%s367 + $0x20] sm:$0xff]
      %v421 = vld [vmem:[%s367 + $0x28] sm:$0xff]
      %v422 = vld [vmem:[%s367 + $0x30] sm:$0xff]
      %v423 = vld [vmem:[%s367 + $0x38] sm:$0xff]
      %v424 = vld [vmem:[%s367 + $0x40] sm:$0xff]
      %v425 = vld [vmem:[%s367 + $0x48] sm:$0xff]
      %v426 = vld [vmem:[%s367 + $0x50] sm:$0xff]
      %v427 = vld [vmem:[%s367 + $0x58] sm:$0xff]
      %v428 = vld [vmem:[%s367 + $0x60] sm:$0xff]
      %v429 = vld [vmem:[%s367 + $0x68] sm:$0xff]
      %v430 = vld [vmem:[%s367 + $0x70] sm:$0xff]
      %v431 = vld [vmem:[%s367 + $0x78] sm:$0xff]
      %v432 = vadd.f32 %v400, %v416
      %v433 = vadd.f32 %v401, %v417
      %v434 = vadd.f32 %v402, %v418
      %v435 = vadd.f32 %v403, %v419
      %v436 = vadd.f32 %v404, %v420
      %v437 = vadd.f32 %v405, %v421
      %v438 = vadd.f32 %v406, %v422
      %v439 = vadd.f32 %v407, %v423
      %v440 = vadd.f32 %v408, %v424
      %v441 = vadd.f32 %v409, %v425
      %v442 = vadd.f32 %v410, %v426
      %v443 = vadd.f32 %v411, %v427
      %v444 = vadd.f32 %v412, %v428
      %v445 = vadd.f32 %v413, %v429
      %v446 = vadd.f32 %v414, %v430
      %v447 = vadd.f32 %v415, %v431
      %v448 = vpack.c.bf16 %v433, %v432
      %v449 = vpack.c.bf16 %v435, %v434
      %v450 = vpack.c.bf16 %v437, %v436
      %v451 = vpack.c.bf16 %v439, %v438
      %v452 = vpack.c.bf16 %v441, %v440
      %v453 = vpack.c.bf16 %v443, %v442
      %v454 = vpack.c.bf16 %v445, %v444
      %v455 = vpack.c.bf16 %v447, %v446
      %v456 = vld [vmem:[%s1] sm:$0x7]
      %v457 = vld [vmem:[%s2] sm:$0x1]
      %v459 = vlaneseq
      %v460 = vshrl.u32 %v459, 7
      %v461 = vsub.s32 0, %v460
      %v462 = vrot.slane %v457, %v461
      %vm464 = vcmask 48128
      %v466 = vsel %vm464, %v448, 0
      %v469 = vsel %vm464, %v449, 0
      %v472 = vsel %vm464, %v450, 0
      %v475 = vsel %vm464, %v451, 0
      %v478 = vsel %vm464, %v452, 0
      %v481 = vsel %vm464, %v453, 0
      %v484 = vsel %vm464, %v454, 0
      %v487 = vsel %vm464, %v455, 0
      %vm489 = vcmask 1042432
      %v491 = vsel %vm489, %v456, 0
      %493 = vmatprep.subr.bf16.mxu0 0
      %494 = vmatpush1.bf16.msra.mxu0 0
      %495 = vmatprep.subr.bf16.mxu0 0
      %496 = vmatpush1.bf16.msra.mxu0 0
      %497 = vmatprep.subr.bf16.mxu0 0
      %498 = vmatpush1.bf16.msra.mxu0 0
      %499 = vmatprep.subr.bf16.mxu0 0
      %500 = vmatpush1.bf16.msra.mxu0 0
      %501 = vmatprep.subr.bf16.mxu0 0
      %502 = vmatpush1.bf16.msra.mxu0 0
      %503 = vmatprep.subr.bf16.mxu0 0
      %504 = vmatpush1.bf16.msra.mxu0 0
      %505 = vmatprep.subr.bf16.mxu0 0
      %506 = vmatpush1.bf16.msra.mxu0 0
      %507 = vmatprep.subr.bf16.mxu0 0
      %508 = vmatpush1.bf16.msra.mxu0 %v491
      %509 = vmatprep.subr.bf16.mxu0 0
      %510 = vmatpush2.bf16.msra.mxu0 0
      %511 = vmatprep.subr.bf16.mxu0 0
      %512 = vmatpush2.bf16.msra.mxu0 0
      %513 = vmatprep.subr.bf16.mxu0 0
      %514 = vmatpush2.bf16.msra.mxu0 0
      %515 = vmatprep.subr.bf16.mxu0 0
      %516 = vmatpush2.bf16.msra.mxu0 0
      %517 = vmatprep.subr.bf16.mxu0 0
      %518 = vmatpush2.bf16.msra.mxu0 0
      %519 = vmatprep.subr.bf16.mxu0 0
      %520 = vmatpush2.bf16.msra.mxu0 0
      %521 = vmatprep.subr.bf16.mxu0 0
      %522 = vmatpush2.bf16.msra.mxu0 0
      %523 = vmatprep.subr.bf16.mxu0 0
      %524 = vmatpush2.bf16.msra.mxu0 0
      %525 = vmatprep.mubr.bf16.mxu0 0
      %526 = vmatmul.mubr.bf16.gmra.mxu0 %v466
      %v527 = vpop.f32.mrf.mxu0
      %v528 = vadd.f32 %v462, %v527
      %v529 = vpop.f32.mrf.mxu0
      %v530 = vpop.f32.mrf.mxu0
      %v531 = vadd.f32 %v462, %v530
      %v532 = vpop.f32.mrf.mxu0
      %533 = vmatprep.mubr.bf16.mxu0 0
      %534 = vmatmul.mubr.bf16.gmra.mxu0 %v469
      %v535 = vpop.f32.mrf.mxu0
      %v536 = vadd.f32 %v462, %v535
      %v537 = vpop.f32.mrf.mxu0
      %v538 = vpop.f32.mrf.mxu0
      %v539 = vadd.f32 %v462, %v538
      %v540 = vpop.f32.mrf.mxu0
      %541 = vmatprep.mubr.bf16.mxu0 0
      %542 = vmatmul.mubr.bf16.gmra.mxu0 %v472
      %v543 = vpop.f32.mrf.mxu0
      %v544 = vadd.f32 %v462, %v543
      %v545 = vpop.f32.mrf.mxu0
      %v546 = vpop.f32.mrf.mxu0
      %v547 = vadd.f32 %v462, %v546
      %v548 = vpop.f32.mrf.mxu0
      %549 = vmatprep.mubr.bf16.mxu0 0
      %550 = vmatmul.mubr.bf16.gmra.mxu0 %v475
      %v551 = vpop.f32.mrf.mxu0
      %v552 = vadd.f32 %v462, %v551
      %v553 = vpop.f32.mrf.mxu0
      %v554 = vpop.f32.mrf.mxu0
      %v555 = vadd.f32 %v462, %v554
      %v556 = vpop.f32.mrf.mxu0
      %557 = vmatprep.mubr.bf16.mxu0 0
      %558 = vmatmul.mubr.bf16.gmra.mxu0 %v478
      %v559 = vpop.f32.mrf.mxu0
      %v560 = vadd.f32 %v462, %v559
      %v561 = vpop.f32.mrf.mxu0
      %v562 = vpop.f32.mrf.mxu0
      %v563 = vadd.f32 %v462, %v562
      %v564 = vpop.f32.mrf.mxu0
      %565 = vmatprep.mubr.bf16.mxu0 0
      %566 = vmatmul.mubr.bf16.gmra.mxu0 %v481
      %v567 = vpop.f32.mrf.mxu0
      %v568 = vadd.f32 %v462, %v567
      %v569 = vpop.f32.mrf.mxu0
      %v570 = vpop.f32.mrf.mxu0
      %v571 = vadd.f32 %v462, %v570
      %v572 = vpop.f32.mrf.mxu0
      %573 = vmatprep.mubr.bf16.mxu0 0
      %574 = vmatmul.mubr.bf16.gmra.mxu0 %v484
      %v575 = vpop.f32.mrf.mxu0
      %v576 = vadd.f32 %v462, %v575
      %v577 = vpop.f32.mrf.mxu0
      %v578 = vpop.f32.mrf.mxu0
      %v579 = vadd.f32 %v462, %v578
      %v580 = vpop.f32.mrf.mxu0
      %581 = vmatprep.mubr.bf16.mxu0 0
      %582 = vmatmul.mubr.bf16.gmra.mxu0 %v487
      %v583 = vpop.f32.mrf.mxu0
      %v584 = vadd.f32 %v462, %v583
      %v585 = vpop.f32.mrf.mxu0
      %v586 = vpop.f32.mrf.mxu0
      %v587 = vadd.f32 %v462, %v586
      %v588 = vpop.f32.mrf.mxu0
      %589 = vdwg.mxu0
      %v590 = vld [vmem:[%s377] sm:$0xff]
      %v591 = vld [vmem:[%s377 + $0x8] sm:$0xff]
      %v592 = vld [vmem:[%s377 + $0x10] sm:$0xff]
      %v593 = vld [vmem:[%s377 + $0x18] sm:$0xff]
      %v594 = vld [vmem:[%s377 + $0x20] sm:$0xff]
      %v595 = vld [vmem:[%s377 + $0x28] sm:$0xff]
      %v596 = vld [vmem:[%s377 + $0x30] sm:$0xff]
      %v597 = vld [vmem:[%s377 + $0x38] sm:$0xff]
      %v598 = vld [vmem:[%s377 + $0x40] sm:$0xff]
      %v599 = vld [vmem:[%s377 + $0x48] sm:$0xff]
      %v600 = vld [vmem:[%s377 + $0x50] sm:$0xff]
      %v601 = vld [vmem:[%s377 + $0x58] sm:$0xff]
      %v602 = vld [vmem:[%s377 + $0x60] sm:$0xff]
      %v603 = vld [vmem:[%s377 + $0x68] sm:$0xff]
      %v604 = vld [vmem:[%s377 + $0x70] sm:$0xff]
      %v605 = vld [vmem:[%s377 + $0x78] sm:$0xff]
      %v606 = vadd.f32 %v528, %v590
      %v607 = vadd.f32 %v531, %v591
      %v608 = vadd.f32 %v536, %v592
      %v609 = vadd.f32 %v539, %v593
      %v610 = vadd.f32 %v544, %v594
      %v611 = vadd.f32 %v547, %v595
      %v612 = vadd.f32 %v552, %v596
      %v613 = vadd.f32 %v555, %v597
      %v614 = vadd.f32 %v560, %v598
      %v615 = vadd.f32 %v563, %v599
      %v616 = vadd.f32 %v568, %v600
      %v617 = vadd.f32 %v571, %v601
      %v618 = vadd.f32 %v576, %v602
      %v619 = vadd.f32 %v579, %v603
      %v620 = vadd.f32 %v584, %v604
      %v621 = vadd.f32 %v587, %v605
      %v622 = vmax.f32 %v606, 0.0
      %v623 = vmax.f32 %v607, 0.0
      %v624 = vmax.f32 %v608, 0.0
      %v625 = vmax.f32 %v609, 0.0
      %v626 = vmax.f32 %v610, 0.0
      %v627 = vmax.f32 %v611, 0.0
      %v628 = vmax.f32 %v612, 0.0
      %v629 = vmax.f32 %v613, 0.0
      %v630 = vmax.f32 %v614, 0.0
      %v631 = vmax.f32 %v615, 0.0
      %v632 = vmax.f32 %v616, 0.0
      %v633 = vmax.f32 %v617, 0.0
      %v634 = vmax.f32 %v618, 0.0
      %v635 = vmax.f32 %v619, 0.0
      %v636 = vmax.f32 %v620, 0.0
      %v637 = vmax.f32 %v621, 0.0
      %v638 = vld [vmem:[%s387] sm:$0xff]
      %v639 = vld [vmem:[%s387 + $0x8] sm:$0xff]
      %v640 = vld [vmem:[%s387 + $0x10] sm:$0xff]
      %v641 = vld [vmem:[%s387 + $0x18] sm:$0xff]
      %v642 = vld [vmem:[%s387 + $0x20] sm:$0xff]
      %v643 = vld [vmem:[%s387 + $0x28] sm:$0xff]
      %v644 = vld [vmem:[%s387 + $0x30] sm:$0xff]
      %v645 = vld [vmem:[%s387 + $0x38] sm:$0xff]
      %v646 = vld [vmem:[%s387 + $0x40] sm:$0xff]
      %v647 = vld [vmem:[%s387 + $0x48] sm:$0xff]
      %v648 = vld [vmem:[%s387 + $0x50] sm:$0xff]
      %v649 = vld [vmem:[%s387 + $0x58] sm:$0xff]
      %v650 = vld [vmem:[%s387 + $0x60] sm:$0xff]
      %v651 = vld [vmem:[%s387 + $0x68] sm:$0xff]
      %v652 = vld [vmem:[%s387 + $0x70] sm:$0xff]
      %v653 = vld [vmem:[%s387 + $0x78] sm:$0xff]
      %v654 = vadd.f32 %v622, %v638
      %v655 = vadd.f32 %v623, %v639
      %v656 = vadd.f32 %v624, %v640
      %v657 = vadd.f32 %v625, %v641
      %v658 = vadd.f32 %v626, %v642
      %v659 = vadd.f32 %v627, %v643
      %v660 = vadd.f32 %v628, %v644
      %v661 = vadd.f32 %v629, %v645
      %v662 = vadd.f32 %v630, %v646
      %v663 = vadd.f32 %v631, %v647
      %v664 = vadd.f32 %v632, %v648
      %v665 = vadd.f32 %v633, %v649
      %v666 = vadd.f32 %v634, %v650
      %v667 = vadd.f32 %v635, %v651
      %v668 = vadd.f32 %v636, %v652
      %v669 = vadd.f32 %v637, %v653
      %vm670 = vcmask 97280
      %671 = vst.msk [vmem:[%s397] sm:$0xff] %vm670, %v654
      %672 = vst.msk [vmem:[%s397 + $0x8] sm:$0xff] %vm670, %v655
      %673 = vst.msk [vmem:[%s397 + $0x10] sm:$0xff] %vm670, %v656
      %674 = vst.msk [vmem:[%s397 + $0x18] sm:$0xff] %vm670, %v657
      %675 = vst.msk [vmem:[%s397 + $0x20] sm:$0xff] %vm670, %v658
      %676 = vst.msk [vmem:[%s397 + $0x28] sm:$0xff] %vm670, %v659
      %677 = vst.msk [vmem:[%s397 + $0x30] sm:$0xff] %vm670, %v660
      %678 = vst.msk [vmem:[%s397 + $0x38] sm:$0xff] %vm670, %v661
      %679 = vst.msk [vmem:[%s397 + $0x40] sm:$0xff] %vm670, %v662
      %680 = vst.msk [vmem:[%s397 + $0x48] sm:$0xff] %vm670, %v663
      %681 = vst.msk [vmem:[%s397 + $0x50] sm:$0xff] %vm670, %v664
      %682 = vst.msk [vmem:[%s397 + $0x58] sm:$0xff] %vm670, %v665
      %683 = vst.msk [vmem:[%s397 + $0x60] sm:$0xff] %vm670, %v666
      %684 = vst.msk [vmem:[%s397 + $0x68] sm:$0xff] %vm670, %v667
      %685 = vst.msk [vmem:[%s397 + $0x70] sm:$0xff] %vm670, %v668
      %686 = vst.msk [vmem:[%s397 + $0x78] sm:$0xff] %vm670, %v669
      %s687 = smul.u32 16, %s22
      %p688 = scmp.lt.s32.totalorder %s21, 1
      %s689 = scalar_select %p688, %s21, 1
      %p690 = scmp.lt.s32.totalorder %s687, 31
      %s691 = scalar_select %p690, %s687, 31
      %s692 = smul.addr %s689, 32
      %s693 = sadd.s32 %s691, %s692
      %s694 = smul.addr %s693, 8
      %s695 = scalar_lea.vmem %s6, %s694
      // Predicated region
      $region45: #{ffc_resnet_block_forward.15} parent=43 // pred_check
        %p696 = pneg %p203
      $region46: #{ffc_resnet_block_forward.15} parent=43 // pred_check_branch
        %698 = sbr.rel (%p696) target = $region48
      $region47: #{ffc_resnet_block_forward.15} parent=43 // pred_region
        %s699 = smul.u32 16, %s22
      $region48: #{ffc_resnet_block_forward.15} parent=43 // pred_fallthru
        _
    $region44: #{ffc_resnet_block_forward.15} parent=5 // pred_fallthru
      _
    %p700 = scmp.le.s32.totalorder 2, %s12
    // Predicated region
    $region49: #{ffc_resnet_block_forward.15} parent=5 // pred_check
      %p701 = pneg %p700
    $region50: #{ffc_resnet_block_forward.15} parent=5 // pred_check_branch
      %703 = sbr.rel (%p701) target = $region52
    $region51: #{ffc_resnet_block_forward.15} parent=5 // pred_region
      %s704 = ssub.s32 %s12, 2
      // Predicated region
      $region53: #{ffc_resnet_block_forward.15} parent=51 // pred_check
        %p705 = pneg %p209
      $region54: #{ffc_resnet_block_forward.15} parent=51 // pred_check_branch
        %707 = sbr.rel (%p705) target = $region56
      $region55: #{ffc_resnet_block_forward.15} parent=51 // pred_region
        %s708 = smul.u32 16, %s24
        %p709 = scmp.lt.s32.totalorder %s23, 1
        %s710 = scalar_select %p709, %s23, 1
        %p711 = scmp.lt.s32.totalorder %s708, 31
        %s712 = scalar_select %p711, %s708, 31
        %s713 = smul.addr %s710, 32
        %s714 = sadd.s32 %s712, %s713
        %s715 = smul.addr %s714, 8
        %s716 = scalar_lea.vmem %s6, %s715
      $region56: #{ffc_resnet_block_forward.15} parent=51 // pred_fallthru
        _
    $region52: #{ffc_resnet_block_forward.15} parent=5 // pred_fallthru
      _
  $region6: #{ffc_resnet_block_forward.15} parent=0 // loop_footer
    %s16 = sadd.s32 1, %s12
  $region7: #{ffc_resnet_block_forward.15} parent=0 // loop_footer_branch
    %11 = sbr.rel target = $region3
  $region8: #{ffc_resnet_block_forward.15} parent=0 // loop_exit
    _

// kernel: ffc_resnet_block_forward.12
$region0: #{ffc_resnet_block_forward.12}
  #allocation0 [shape = 'u32[]', space=smem, size = 0x4, offset = 0x4, fixed_abs, tag = 'smem constant byte address 0x4 - core index']
  #allocation1 [shape = 'u32[144,128]{1,0:T(1,128)}', space=vmem, size = 0x12000, scoped, tag = 'internal scratch']
  %s0 = inlined_call_operand.vmem [shape: bf16[2,18,18,16], index: 0, kind: input, shape index: {}]
  %s1 = inlined_call_operand.vmem [shape: bf16[9,16,4], index: 1, kind: input, shape index: {}]
  %s2 = inlined_call_operand.vmem [shape: bf16[9,4,12], index: 2, kind: input, shape index: {}]
  %s3 = inlined_call_operand.vmem [shape: f32[1,4], index: 3, kind: input, shape index: {}]
  %s4 = inlined_call_operand.vmem [shape: f32[2,256,4], index: 4, kind: input, shape index: {}]
  %s5 = inlined_call_operand.vmem [shape: f32[2,256,4], index: 5, kind: output, shape index: {0}]
  %s6 = inlined_call_operand.vmem [shape: f32[2,256,12], index: 6, kind: output, shape index: {1}]
  %7 = xla_tuple %s5, %s6
  %s8 = sld [smem:[#allocation0]]
  $region61: #{ffc_resnet_block_forward.12} parent=0
    _
  %s10 = ssub.s32 1, %s8
  %s11 = scalar_select 0, %s10, %s8
  loop: start=0, step=1, limit=6
  $region2: #{ffc_resnet_block_forward.12} parent=0 // loop_pre_header
    _
  $region3: #{ffc_resnet_block_forward.12} parent=0 // loop_header
    %s13 = sphi 0, %s17
    %p14 = scmp.ge.s32.totalorder %s13, 6
    %s20 = sphi 0, %s32
    %s21 = sphi 0, %s28
    %s22 = sphi 0, %s20
    %s23 = sphi 0, %s21
    %s24 = sphi 0, %s22
    %s25 = sphi 0, %s23
    %s35 = sphi 0, %s37
    %s38 = sphi 0, %s35
    %s39 = sphi 0, %s38
    %s55 = sphi 0, %s39
    %s59 = sphi 0, %s59
    %s61 = sphi 0, %s59
    %s62 = sphi 0, %s61
    %s76 = sphi 0, %s62
    %s80 = sphi 0, %s80
    %s82 = sphi 0, %s80
    %s83 = sphi 0, %s82
    %s97 = sphi 0, %s83
    %s101 = sphi 0, %s101
    %s103 = sphi 0, %s101
    %s104 = sphi 0, %s103
    %s118 = sphi 0, %s104
    %s126 = sphi 0, %s128
    %s129 = sphi 0, %s126
    %s130 = sphi 0, %s129
    %s146 = sphi 0, %s130
    %s154 = sphi 0, %s156
    %s157 = sphi 0, %s154
    %s158 = sphi 0, %s157
    %s174 = sphi 0, %s158
    %s182 = sphi 0, %s184
    %s185 = sphi 0, %s182
    %s186 = sphi 0, %s185
    %s202 = sphi 0, %s186
  $region4: #{ffc_resnet_block_forward.12} parent=0 // loop_header_branch
    %16 = sbr.rel (%p14) target = $region8
  $region5: #{ffc_resnet_block_forward.12} parent=0 // loop_body
    %s18 = ssub.s32 %s13, 1
    %s19 = ssub.s32 %s13, 2
    %s26 = sadd.s32 1, %s21
    %p27 = scmp.ge.s32.totalorder %s26, 2
    %s28 = scalar_select %p27, 0, %s26
    %s29 = sadd.s32 1, %s20
    %s30 = scalar_select %p27, %s29, %s20
    %p31 = scmp.ge.s32.totalorder %s30, 2
    %s32 = scalar_select %p31, 0, %s30
    %s33 = ssub.s32 %s20, %s32
    %p34 = scmp.eq.s32.totalorder %s33, 0
    %s36 = sadd.s32 %s35, 1
    %s37 = scalar_select %p34, %s35, %s36
    %p40 = pneg %p34
    %p41 = scmp.eq.s32.totalorder %s13, 3
    %p42 = por %p40, %p41
    %p43 = scmp.ne.s32.totalorder %s35, %s38
    %p44 = scmp.eq.s32.totalorder %s13, 0
    %p45 = por %p43, %p44
    %p46 = scmp.ne.s32.totalorder %s35, %s38
    %p47 = scmp.eq.s32.totalorder %s18, 3
    %p48 = por %p46, %p47
    %p49 = scmp.ne.s32.totalorder %s38, %s39
    %p50 = scmp.eq.s32.totalorder %s18, 0
    %p51 = por %p49, %p50
    %p52 = scmp.ne.s32.totalorder %s38, %s39
    %p53 = scmp.eq.s32.totalorder %s19, 3
    %p54 = por %p52, %p53
    %p56 = scmp.ne.s32.totalorder %s39, %s55
    %p57 = scmp.eq.s32.totalorder %s19, 0
    %p58 = por %p56, %p57
    %s60 = sadd.s32 %s59, 1
    %p63 = scmp.eq.s32.totalorder %s13, 3
    %p64 = scmp.ne.s32.totalorder %s59, %s61
    %p65 = scmp.eq.s32.totalorder %s13, 0
    %p66 = por %p64, %p65
    %p67 = scmp.ne.s32.totalorder %s59, %s61
    %p68 = scmp.eq.s32.totalorder %s18, 3
    %p69 = por %p67, %p68
    %p70 = scmp.ne.s32.totalorder %s61, %s62
    %p71 = scmp.eq.s32.totalorder %s18, 0
    %p72 = por %p70, %p71
    %p73 = scmp.ne.s32.totalorder %s61, %s62
    %p74 = scmp.eq.s32.totalorder %s19, 3
    %p75 = por %p73, %p74
    %p77 = scmp.ne.s32.totalorder %s62, %s76
    %p78 = scmp.eq.s32.totalorder %s19, 0
    %p79 = por %p77, %p78
    %s81 = sadd.s32 %s80, 1
    %p84 = scmp.eq.s32.totalorder %s13, 3
    %p85 = scmp.ne.s32.totalorder %s80, %s82
    %p86 = scmp.eq.s32.totalorder %s13, 0
    %p87 = por %p85, %p86
    %p88 = scmp.ne.s32.totalorder %s80, %s82
    %p89 = scmp.eq.s32.totalorder %s18, 3
    %p90 = por %p88, %p89
    %p91 = scmp.ne.s32.totalorder %s82, %s83
    %p92 = scmp.eq.s32.totalorder %s18, 0
    %p93 = por %p91, %p92
    %p94 = scmp.ne.s32.totalorder %s82, %s83
    %p95 = scmp.eq.s32.totalorder %s19, 3
    %p96 = por %p94, %p95
    %p98 = scmp.ne.s32.totalorder %s83, %s97
    %p99 = scmp.eq.s32.totalorder %s19, 0
    %p100 = por %p98, %p99
    %s102 = sadd.s32 %s101, 1
    %p105 = scmp.eq.s32.totalorder %s13, 3
    %p106 = scmp.ne.s32.totalorder %s101, %s103
    %p107 = scmp.eq.s32.totalorder %s13, 0
    %p108 = por %p106, %p107
    %p109 = scmp.ne.s32.totalorder %s101, %s103
    %p110 = scmp.eq.s32.totalorder %s18, 3
    %p111 = por %p109, %p110
    %p112 = scmp.ne.s32.totalorder %s103, %s104
    %p113 = scmp.eq.s32.totalorder %s18, 0
    %p114 = por %p112, %p113
    %p115 = scmp.ne.s32.totalorder %s103, %s104
    %p116 = scmp.eq.s32.totalorder %s19, 3
    %p117 = por %p115, %p116
    %p119 = scmp.ne.s32.totalorder %s104, %s118
    %p120 = scmp.eq.s32.totalorder %s19, 0
    %p121 = por %p119, %p120
    %s122 = ssub.s32 %s20, %s32
    %s123 = ssub.s32 %s21, %s28
    %s124 = sor.u32 %s122, %s123
    %p125 = scmp.eq.s32.totalorder %s124, 0
    %s127 = sadd.s32 %s126, 1
    %s128 = scalar_select %p125, %s126, %s127
    %p131 = pneg %p125
    %p132 = scmp.eq.s32.totalorder %s13, 3
    %p133 = por %p131, %p132
    %p134 = scmp.ne.s32.totalorder %s126, %s129
    %p135 = scmp.eq.s32.totalorder %s13, 0
    %p136 = por %p134, %p135
    %p137 = scmp.ne.s32.totalorder %s126, %s129
    %p138 = scmp.eq.s32.totalorder %s18, 3
    %p139 = por %p137, %p138
    %p140 = scmp.ne.s32.totalorder %s129, %s130
    %p141 = scmp.eq.s32.totalorder %s18, 0
    %p142 = por %p140, %p141
    %p143 = scmp.ne.s32.totalorder %s129, %s130
    %p144 = scmp.eq.s32.totalorder %s19, 3
    %p145 = por %p143, %p144
    %p147 = scmp.ne.s32.totalorder %s130, %s146
    %p148 = scmp.eq.s32.totalorder %s19, 0
    %p149 = por %p147, %p148
    %s150 = ssub.s32 %s20, %s32
    %s151 = ssub.s32 %s21, %s28
    %s152 = sor.u32 %s150, %s151
    %p153 = scmp.eq.s32.totalorder %s152, 0
    %s155 = sadd.s32 %s154, 1
    %s156 = scalar_select %p153, %s154, %s155
    %p159 = pneg %p153
    %p160 = scmp.eq.s32.totalorder %s13, 3
    %p161 = por %p159, %p160
    %p162 = scmp.ne.s32.totalorder %s154, %s157
    %p163 = scmp.eq.s32.totalorder %s13, 0
    %p164 = por %p162, %p163
    %p165 = scmp.ne.s32.totalorder %s154, %s157
    %p166 = scmp.eq.s32.totalorder %s18, 3
    %p167 = por %p165, %p166
    %p168 = scmp.ne.s32.totalorder %s157, %s158
    %p169 = scmp.eq.s32.totalorder %s18, 0
    %p170 = por %p168, %p169
    %p171 = scmp.ne.s32.totalorder %s157, %s158
    %p172 = scmp.eq.s32.totalorder %s19, 3
    %p173 = por %p171, %p172
    %p175 = scmp.ne.s32.totalorder %s158, %s174
    %p176 = scmp.eq.s32.totalorder %s19, 0
    %p177 = por %p175, %p176
    %s178 = ssub.s32 %s20, %s32
    %s179 = ssub.s32 %s21, %s28
    %s180 = sor.u32 %s178, %s179
    %p181 = scmp.eq.s32.totalorder %s180, 0
    %s183 = sadd.s32 %s182, 1
    %s184 = scalar_select %p181, %s182, %s183
    %p187 = pneg %p181
    %p188 = scmp.eq.s32.totalorder %s13, 3
    %p189 = por %p187, %p188
    %p190 = scmp.ne.s32.totalorder %s182, %s185
    %p191 = scmp.eq.s32.totalorder %s13, 0
    %p192 = por %p190, %p191
    %p193 = scmp.ne.s32.totalorder %s182, %s185
    %p194 = scmp.eq.s32.totalorder %s18, 3
    %p195 = por %p193, %p194
    %p196 = scmp.ne.s32.totalorder %s185, %s186
    %p197 = scmp.eq.s32.totalorder %s18, 0
    %p198 = por %p196, %p197
    %p199 = scmp.ne.s32.totalorder %s185, %s186
    %p200 = scmp.eq.s32.totalorder %s19, 3
    %p201 = por %p199, %p200
    %p203 = scmp.ne.s32.totalorder %s186, %s202
    %p204 = scmp.eq.s32.totalorder %s19, 0
    %p205 = por %p203, %p204
    %p206 = scmp.le.s32.totalorder 1, %s13
    %p207 = scmp.lt.s32.totalorder %s13, 5
    %p208 = pnand %p206, %p207
    %p209 = pneg %p208
    // Predicated region
    $region9: #{ffc_resnet_block_forward.12} parent=5 // pred_check
      _
    $region10: #{ffc_resnet_block_forward.12} parent=5 // pred_check_branch
      %211 = sbr.rel (%p208) target = $region12
    $region11: #{ffc_resnet_block_forward.12} parent=5 // pred_region
      %s212 = ssub.s32 %s13, 1
      // Predicated region
      $region13: #{ffc_resnet_block_forward.12} parent=11 // pred_check
        %p213 = pneg %p72
      $region14: #{ffc_resnet_block_forward.12} parent=11 // pred_check_branch
        %215 = sbr.rel (%p213) target = $region16
      $region15: #{ffc_resnet_block_forward.12} parent=11 // pred_region
        _
      $region16: #{ffc_resnet_block_forward.12} parent=11 // pred_fallthru
        _
      // Predicated region
      $region17: #{ffc_resnet_block_forward.12} parent=11 // pred_check
        %p216 = pneg %p93
      $region18: #{ffc_resnet_block_forward.12} parent=11 // pred_check_branch
        %218 = sbr.rel (%p216) target = $region20
      $region19: #{ffc_resnet_block_forward.12} parent=11 // pred_region
        _
      $region20: #{ffc_resnet_block_forward.12} parent=11 // pred_fallthru
        _
      // Predicated region
      $region21: #{ffc_resnet_block_forward.12} parent=11 // pred_check
        %p219 = pneg %p114
      $region22: #{ffc_resnet_block_forward.12} parent=11 // pred_check_branch
        %221 = sbr.rel (%p219) target = $region24
      $region23: #{ffc_resnet_block_forward.12} parent=11 // pred_region
        _
      $region24: #{ffc_resnet_block_forward.12} parent=11 // pred_fallthru
        _
    $region12: #{ffc_resnet_block_forward.12} parent=5 // pred_fallthru
      _
    %p222 = scmp.lt.s32.totalorder %s13, 4
    // Predicated region
    $region25: #{ffc_resnet_block_forward.12} parent=5 // pred_check
      %p223 = pneg %p222
    $region26: #{ffc_resnet_block_forward.12} parent=5 // pred_check_branch
      %225 = sbr.rel (%p223) target = $region28
    $region27: #{ffc_resnet_block_forward.12} parent=5 // pred_region
      // Predicated region
      $region29: #{ffc_resnet_block_forward.12} parent=27 // pred_check
        %p226 = pneg %p45
      $region30: #{ffc_resnet_block_forward.12} parent=27 // pred_check_branch
        %228 = sbr.rel (%p226) target = $region32
      $region31: #{ffc_resnet_block_forward.12} parent=27 // pred_region
        %p229 = scmp.lt.s32.totalorder %s20, 1
        %s230 = scalar_select %p229, %s20, 1
        %s231 = smul.addr %s230, 54
        %s232 = smul.addr %s231, 4
        %s233 = scalar_lea.vmem %s0, %s232
      $region32: #{ffc_resnet_block_forward.12} parent=27 // pred_fallthru
        _
      // Predicated region
      $region33: #{ffc_resnet_block_forward.12} parent=27 // pred_check
        %p234 = pneg %p136
      $region34: #{ffc_resnet_block_forward.12} parent=27 // pred_check_branch
        %236 = sbr.rel (%p234) target = $region36
      $region35: #{ffc_resnet_block_forward.12} parent=27 // pred_region
        %s237 = smul.u32 16, %s21
        %p238 = scmp.lt.s32.totalorder %s20, 1
        %s239 = scalar_select %p238, %s20, 1
        %p240 = scmp.lt.s32.totalorder %s237, 31
        %s241 = scalar_select %p240, %s237, 31
        %s242 = smul.addr %s239, 32
        %s243 = sadd.s32 %s241, %s242
        %s244 = smul.addr %s243, 8
        %s245 = scalar_lea.vmem %s4, %s244
        %s246 = smul.u32 16, %s21
      $region36: #{ffc_resnet_block_forward.12} parent=27 // pred_fallthru
        _
    $region28: #{ffc_resnet_block_forward.12} parent=5 // pred_fallthru
      _
    %p247 = scmp.le.s32.totalorder 1, %s13
    %p248 = scmp.lt.s32.totalorder %s13, 5
    %p249 = pnand %p247, %p248
    %p250 = pneg %p249
    // Predicated region
    $region37: #{ffc_resnet_block_forward.12} parent=5 // pred_check
      _
    $region38: #{ffc_resnet_block_forward.12} parent=5 // pred_check_branch
      %252 = sbr.rel (%p249) target = $region40
    $region39: #{ffc_resnet_block_forward.12} parent=5 // pred_region
      %s253 = ssub.s32 %s13, 1
      %p254 = scmp.lt.s32.totalorder %s22, 1
      %s255 = scalar_select %p254, %s22, 1
      %s256 = smul.addr %s255, 54
      %s257 = smul.addr %s256, 4
      %s258 = scalar_lea.vmem %s0, %s257
      %p259 = pneg %p51
      %p260 = pneg %p48
      %p261 = pneg %p72
      %p262 = pneg %p69
      %p263 = pneg %p93
      %p264 = pneg %p90
      %p265 = pneg %p114
      %p266 = pneg %p111
      %s267 = smul.u32 16, %s23
      %p268 = scmp.lt.s32.totalorder %s22, 1
      %s269 = scalar_select %p268, %s22, 1
      %p270 = scmp.lt.s32.totalorder %s267, 31
      %s271 = scalar_select %p270, %s267, 31
      %s272 = smul.addr %s269, 32
      %s273 = sadd.s32 %s271, %s272
      %s274 = smul.addr %s273, 8
      %s275 = scalar_lea.vmem %s4, %s274
      %p276 = pneg %p142
      %p277 = pneg %p139
      %p278 = pneg %p170
      %p279 = pneg %p167
      %s280 = smul.u32 16, %s23
      %p281 = scmp.lt.s32.totalorder %s22, 1
      %s282 = scalar_select %p281, %s22, 1
      %p283 = scmp.lt.s32.totalorder %s280, 31
      %s284 = scalar_select %p283, %s280, 31
      %s285 = smul.addr %s282, 32
      %s286 = sadd.s32 %s284, %s285
      %s287 = smul.addr %s286, 8
      %s288 = scalar_lea.vmem %s5, %s287
      %p289 = pneg %p198
      %p290 = pneg %p195
      %s291 = smul.u32 16, %s23
      %p292 = scmp.lt.s32.totalorder %s22, 1
      %s293 = scalar_select %p292, %s22, 1
      %p294 = scmp.lt.s32.totalorder %s291, 31
      %s295 = scalar_select %p294, %s291, 31
      %s296 = smul.addr %s293, 32
      %s297 = sadd.s32 %s295, %s296
      %s298 = smul.addr %s297, 8
      %s299 = scalar_lea.vmem %s6, %s298
      %p300 = scmp.lt.s32.totalorder %s22, 1
      %s301 = scalar_select %p300, %s22, 1
      %s302 = smul.addr %s301, 54
      %s303 = smul.addr %s302, 4
      %s304 = scalar_lea.vmem %s0, %s303
      %s305 = smul.u32 16, %s23
      %p306 = scmp.lt.s32.totalorder %s22, 1
      %s307 = scalar_select %p306, %s22, 1
      %p308 = scmp.lt.s32.totalorder %s305, 31
      %s309 = scalar_select %p308, %s305, 31
      %s310 = smul.addr %s307, 32
      %s311 = sadd.s32 %s309, %s310
      %s312 = smul.addr %s311, 8
      %s313 = scalar_lea.vmem %s4, %s312
      %s314 = smul.u32 16, %s23
      %s315 = smul.u32 16, %s23
      %p316 = scmp.lt.s32.totalorder %s22, 1
      %s317 = scalar_select %p316, %s22, 1
      %p318 = scmp.lt.s32.totalorder %s315, 31
      %s319 = scalar_select %p318, %s315, 31
      %s320 = smul.addr %s317, 32
      %s321 = sadd.s32 %s319, %s320
      %s322 = smul.addr %s321, 8
      %s323 = scalar_lea.vmem %s5, %s322
      %s324 = smul.u32 16, %s23
      %s325 = smul.u32 16, %s23
      %p326 = scmp.lt.s32.totalorder %s22, 1
      %s327 = scalar_select %p326, %s22, 1
      %p328 = scmp.lt.s32.totalorder %s325, 31
      %s329 = scalar_select %p328, %s325, 31
      %s330 = smul.addr %s327, 32
      %s331 = sadd.s32 %s329, %s330
      %s332 = smul.addr %s331, 8
      %s333 = scalar_lea.vmem %s6, %s332
      %s334 = smul.u32 16, %s23
      %s336 = smul.u32 %s23, 8
      %s337 = smul.u32 %s336, 3
      %s338 = smul.addr %s337, 4
      %s339 = scalar_lea.vmem %s304, %s338
      %v340 = vld [vmem:[%s339] sm:$0xf]
      %v341 = vld [vmem:[%s339 + $0x4] sm:$0xf]
      %v342 = vld [vmem:[%s339 + $0x8] sm:$0x1]
      %v343 = vld [vmem:[%s339 + $0xc] sm:$0xf]
      %v344 = vld [vmem:[%s339 + $0x10] sm:$0xf]
      %v345 = vld [vmem:[%s339 + $0x14] sm:$0x1]
      %v346 = vld [vmem:[%s339 + $0x18] sm:$0xf]
      %v347 = vld [vmem:[%s339 + $0x1c] sm:$0xf]
      %v348 = vld [vmem:[%s339 + $0x20] sm:$0x1]
      %v349 = vld [vmem:[%s339 + $0x24] sm:$0xf]
      %v350 = vld [vmem:[%s339 + $0x28] sm:$0xf]
      %v351 = vld [vmem:[%s339 + $0x2c] sm:$0x1]
      %v352 = vld [vmem:[%s339 + $0x30] sm:$0xf]
      %v353 = vld [vmem:[%s339 + $0x34] sm:$0xf]
      %v354 = vld [vmem:[%s339 + $0x38] sm:$0x1]
      %v355 = vld [vmem:[%s339 + $0x3c] sm:$0xf]
      %v356 = vld [vmem:[%s339 + $0x40] sm:$0xf]
      %v357 = vld [vmem:[%s339 + $0x44] sm:$0x1]
      %v358 = vld [vmem:[%s339 + $0x48] sm:$0xf]
      %v359 = vld [vmem:[%s339 + $0x4c] sm:$0xf]
      %v360 = vld [vmem:[%s339 + $0x50] sm:$0x1]
      %v361 = vld [vmem:[%s339 + $0x54] sm:$0xf]
      %v362 = vld [vmem:[%s339 + $0x58] sm:$0xf]
      %v363 = vld [vmem:[%s339 + $0x5c] sm:$0x1]
      %v364 = vld [vmem:[%s339 + $0x60] sm:$0xf]
      %v365 = vld [vmem:[%s339 + $0x64] sm:$0xf]
      %v366 = vld [vmem:[%s339 + $0x68] sm:$0x1]
      %v367 = vld [vmem:[%s339 + $0x6c] sm:$0xf]
      %v368 = vld [vmem:[%s339 + $0x70] sm:$0xf]
      %v369 = vld [vmem:[%s339 + $0x74] sm:$0x1]
      %v370 = vld [vmem:[%s1] sm:$0xf]
      %v371 = vld [vmem:[%s1 + $0x4] sm:$0xf]
      %v372 = vld [vmem:[%s2] sm:$0x3]
      %vm373 = vsmask.f32 3328
      %vm374 = vsmask.f32 7440
      %vm375 = vmor %vm373, %vm374
      %v377 = vshrl.u32 %v340, 16
      %v379 = vrot.slane %v377, 4
      %v380 = vshll.u32 %v340, 16
      %v382 = vrot.slane %v380, 5
      %v383 = vor.u32 %v379, %v382
      %v384 = vrot.slane %v383, 4
      %v386 = vshll.u32 %v341, 16
      %v388 = vrot.slane %v386, 5
      %v389 = vsel %vm375, %v384, %v388
      %v390 = vshrl.u32 %v341, 16
      %v392 = vrot.slane %v390, 4
      %v393 = vor.u32 %v392, %v388
      %v394 = vrot.slane %v393, 4
      %v396 = vshll.u32 %v342, 16
      %v398 = vrot.slane %v396, 5
      %v399 = vsel %vm375, %v394, %v398
      %v401 = vshrl.u32 %v343, 16
      %v403 = vrot.slane %v401, 4
      %v404 = vshll.u32 %v343, 16
      %v406 = vrot.slane %v404, 5
      %v407 = vor.u32 %v403, %v406
      %v408 = vrot.slane %v407, 4
      %v410 = vshll.u32 %v344, 16
      %v412 = vrot.slane %v410, 5
      %v413 = vsel %vm375, %v408, %v412
      %v414 = vshrl.u32 %v344, 16
      %v416 = vrot.slane %v414, 4
      %v417 = vor.u32 %v416, %v412
      %v418 = vrot.slane %v417, 4
      %v420 = vshll.u32 %v345, 16
      %v422 = vrot.slane %v420, 5
      %v423 = vsel %vm375, %v418, %v422
      %v425 = vshrl.u32 %v346, 16
      %v427 = vrot.slane %v425, 4
      %v428 = vshll.u32 %v346, 16
      %v430 = vrot.slane %v428, 5
      %v431 = vor.u32 %v427, %v430
      %v432 = vrot.slane %v431, 4
      %v434 = vshll.u32 %v347, 16
      %v436 = vrot.slane %v434, 5
      %v437 = vsel %vm375, %v432, %v436
      %v438 = vshrl.u32 %v347, 16
      %v440 = vrot.slane %v438, 4
      %v441 = vor.u32 %v440, %v436
      %v442 = vrot.slane %v441, 4
      %v444 = vshll.u32 %v348, 16
      %v446 = vrot.slane %v444, 5
      %v447 = vsel %vm375, %v442, %v446
      %v449 = vshrl.u32 %v349, 16
      %v451 = vrot.slane %v449, 4
      %v452 = vshll.u32 %v349, 16
      %v454 = vrot.slane %v452, 5
      %v455 = vor.u32 %v451, %v454
      %v456 = vrot.slane %v455, 4
      %v458 = vshll.u32 %v350, 16
      %v460 = vrot.slane %v458, 5
      %v461 = vsel %vm375, %v456, %v460
      %v462 = vshrl.u32 %v350, 16
      %v464 = vrot.slane %v462, 4
      %v465 = vor.u32 %v464, %v460
      %v466 = vrot.slane %v465, 4
      %v468 = vshll.u32 %v351, 16
      %v470 = vrot.slane %v468, 5
      %v471 = vsel %vm375, %v466, %v470
      %v473 = vshrl.u32 %v352, 16
      %v475 = vrot.slane %v473, 4
      %v476 = vshll.u32 %v352, 16
      %v478 = vrot.slane %v476, 5
      %v479 = vor.u32 %v475, %v478
      %v480 = vrot.slane %v479, 4
      %v482 = vshll.u32 %v353, 16
      %v484 = vrot.slane %v482, 5
      %v485 = vsel %vm375, %v480, %v484
      %v486 = vshrl.u32 %v353, 16
      %v488 = vrot.slane %v486, 4
      %v489 = vor.u32 %v488, %v484
      %v490 = vrot.slane %v489, 4
      %v492 = vshll.u32 %v354, 16
      %v494 = vrot.slane %v492, 5
      %v495 = vsel %vm375, %v490, %v494
      %v497 = vshrl.u32 %v355, 16
      %v499 = vrot.slane %v497, 4
      %v500 = vshll.u32 %v355, 16
      %v502 = vrot.slane %v500, 5
      %v503 = vor.u32 %v499, %v502
      %v504 = vrot.slane %v503, 4
      %v506 = vshll.u32 %v356, 16
      %v508 = vrot.slane %v506, 5
      %v509 = vsel %vm375, %v504, %v508
      %v510 = vshrl.u32 %v356, 16
      %v512 = vrot.slane %v510, 4
      %v513 = vor.u32 %v512, %v508
      %v514 = vrot.slane %v513, 4
      %v516 = vshll.u32 %v357, 16
      %v518 = vrot.slane %v516, 5
      %v519 = vsel %vm375, %v514, %v518
      %v521 = vshrl.u32 %v358, 16
      %v523 = vrot.slane %v521, 4
      %v524 = vshll.u32 %v358, 16
      %v526 = vrot.slane %v524, 5
      %v527 = vor.u32 %v523, %v526
      %v528 = vrot.slane %v527, 4
      %v530 = vshll.u32 %v359, 16
      %v532 = vrot.slane %v530, 5
      %v533 = vsel %vm375, %v528, %v532
      %v534 = vshrl.u32 %v359, 16
      %v536 = vrot.slane %v534, 4
      %v537 = vor.u32 %v536, %v532
      %v538 = vrot.slane %v537, 4
      %v540 = vshll.u32 %v360, 16
      %v542 = vrot.slane %v540, 5
      %v543 = vsel %vm375, %v538, %v542
      %v545 = vshrl.u32 %v361, 16
      %v547 = vrot.slane %v545, 4
      %v548 = vshll.u32 %v361, 16
      %v550 = vrot.slane %v548, 5
      %v551 = vor.u32 %v547, %v550
      %v552 = vrot.slane %v551, 4
      %v554 = vshll.u32 %v362, 16
      %v556 = vrot.slane %v554, 5
      %v557 = vsel %vm375, %v552, %v556
      %v558 = vshrl.u32 %v362, 16
      %v560 = vrot.slane %v558, 4
      %v561 = vor.u32 %v560, %v556
      %v562 = vrot.slane %v561, 4
      %v564 = vshll.u32 %v363, 16
      %v566 = vrot.slane %v564, 5
      %v567 = vsel %vm375, %v562, %v566
      %s568 = scalar_lea.vmem %s1, 8
      %v569 = vld [vmem:[%s568] sm:$0xf]
      %v570 = vld [vmem:[%s568 + $0x4] sm:$0xf]
      %v571 = vunpack.c.l.b16 %v389
      %v572 = vunpack.c.l.b16 %v399
      %v573 = vunpack.c.l.b16 %v413
      %v574 = vunpack.c.l.b16 %v423
      %v575 = vunpack.c.l.b16 %v437
      %v576 = vunpack.c.l.b16 %v447
      %v577 = vunpack.c.l.b16 %v461
      %v578 = vunpack.c.l.b16 %v471
      %v579 = vunpack.c.l.b16 %v485
      %v580 = vunpack.c.l.b16 %v495
      %v581 = vunpack.c.l.b16 %v509
      %v582 = vunpack.c.l.b16 %v519
      %v583 = vunpack.c.l.b16 %v533
      %v584 = vunpack.c.l.b16 %v543
      %v585 = vunpack.c.l.b16 %v557
      %v586 = vunpack.c.l.b16 %v567
      %v587 = vpack.c.b16 %v572, %v571
      %v588 = vpack.c.b16 %v574, %v573
      %v589 = vpack.c.b16 %v576, %v575
      %v590 = vpack.c.b16 %v578, %v577
      %v591 = vpack.c.b16 %v580, %v579
      %v592 = vpack.c.b16 %v582, %v581
      %v593 = vpack.c.b16 %v584, %v583
      %v594 = vpack.c.b16 %v586, %v585
      %v597 = vunpack.c.l.b16 %v569
      %v598 = vunpack.c.l.b16 %v570
      %v599 = vpack.c.b16 %v598, %v597
      %vm601 = vcmask 130048
      %v603 = vsel %vm601, %v587, 0
      %v606 = vsel %vm601, %v588, 0
      %v609 = vsel %vm601, %v589, 0
      %v612 = vsel %vm601, %v590, 0
      %v615 = vsel %vm601, %v591, 0
      %v618 = vsel %vm601, %v592, 0
      %v621 = vsel %vm601, %v593, 0
      %v624 = vsel %vm601, %v594, 0
      %626 = vmatprep.subr.bf16.mxu0 0
      %627 = vmatpush1.bf16.msra.mxu0 0
      %628 = vmatprep.subr.bf16.mxu0 0
      %629 = vmatpush1.bf16.msra.mxu0 0
      %630 = vmatprep.subr.bf16.mxu0 0
      %631 = vmatpush1.bf16.msra.mxu0 0
      %632 = vmatprep.subr.bf16.mxu0 0
      %633 = vmatpush1.bf16.msra.mxu0 0
      %634 = vmatprep.subr.bf16.mxu0 0
      %635 = vmatpush1.bf16.msra.mxu0 0
      %636 = vmatprep.subr.bf16.mxu0 0
      %637 = vmatpush1.bf16.msra.mxu0 0
      %638 = vmatprep.subr.bf16.mxu0 0
      %639 = vmatpush1.bf16.msra.mxu0 0
      %640 = vmatprep.subr.bf16.mxu0 0
      %641 = vmatpush1.bf16.msra.mxu0 %v599
      %642 = vmatprep.subr.bf16.mxu0 0
      %643 = vmatpush2.bf16.msra.mxu0 0
      %644 = vmatprep.subr.bf16.mxu0 0
      %645 = vmatpush2.bf16.msra.mxu0 0
      %646 = vmatprep.subr.bf16.mxu0 0
      %647 = vmatpush2.bf16.msra.mxu0 0
      %648 = vmatprep.subr.bf16.mxu0 0
      %649 = vmatpush2.bf16.msra.mxu0 0
      %650 = vmatprep.subr.bf16.mxu0 0
      %651 = vmatpush2.bf16.msra.mxu0 0
      %652 = vmatprep.subr.bf16.mxu0 0
      %653 = vmatpush2.bf16.msra.mxu0 0
      %654 = vmatprep.subr.bf16.mxu0 0
      %655 = vmatpush2.bf16.msra.mxu0 0
      %656 = vmatprep.subr.bf16.mxu0 0
      %657 = vmatpush2.bf16.msra.mxu0 0
      %658 = vmatprep.mubr.bf16.mxu0 0
      %659 = vmatmul.mubr.bf16.gmra.mxu0 %v603
      %v660 = vpop.f32.mrf.mxu0
      %v661 = vadd.f32 0.0, %v660
      %v662 = vpop.f32.mrf.mxu0
      %v663 = vpop.f32.mrf.mxu0
      %v664 = vadd.f32 0.0, %v663
      %v665 = vpop.f32.mrf.mxu0
      %666 = vmatprep.mubr.bf16.mxu0 0
      %667 = vmatmul.mubr.bf16.gmra.mxu0 %v606
      %v668 = vpop.f32.mrf.mxu0
      %v669 = vadd.f32 0.0, %v668
      %v670 = vpop.f32.mrf.mxu0
      %v671 = vpop.f32.mrf.mxu0
      %v672 = vadd.f32 0.0, %v671
      %v673 = vpop.f32.mrf.mxu0
      %674 = vmatprep.mubr.bf16.mxu0 0
      %675 = vmatmul.mubr.bf16.gmra.mxu0 %v609
      %v676 = vpop.f32.mrf.mxu0
      %v677 = vadd.f32 0.0, %v676
      %v678 = vpop.f32.mrf.mxu0
      %v679 = vpop.f32.mrf.mxu0
      %v680 = vadd.f32 0.0, %v679
      %v681 = vpop.f32.mrf.mxu0
      %682 = vmatprep.mubr.bf16.mxu0 0
      %683 = vmatmul.mubr.bf16.gmra.mxu0 %v612
      %v684 = vpop.f32.mrf.mxu0
      %v685 = vadd.f32 0.0, %v684
      %v686 = vpop.f32.mrf.mxu0
      %v687 = vpop.f32.mrf.mxu0
      %v688 = vadd.f32 0.0, %v687
      %v689 = vpop.f32.mrf.mxu0
      %690 = vmatprep.mubr.bf16.mxu0 0
      %691 = vmatmul.mubr.bf16.gmra.mxu0 %v615
      %v692 = vpop.f32.mrf.mxu0
      %v693 = vadd.f32 0.0, %v692
      %v694 = vpop.f32.mrf.mxu0
      %v695 = vpop.f32.mrf.mxu0
      %v696 = vadd.f32 0.0, %v695
      %v697 = vpop.f32.mrf.mxu0
      %698 = vmatprep.mubr.bf16.mxu0 0
      %699 = vmatmul.mubr.bf16.gmra.mxu0 %v618
      %v700 = vpop.f32.mrf.mxu0
      %v701 = vadd.f32 0.0, %v700
      %v702 = vpop.f32.mrf.mxu0
      %v703 = vpop.f32.mrf.mxu0
      %v704 = vadd.f32 0.0, %v703
      %v705 = vpop.f32.mrf.mxu0
      %706 = vmatprep.mubr.bf16.mxu0 0
      %707 = vmatmul.mubr.bf16.gmra.mxu0 %v621
      %v708 = vpop.f32.mrf.mxu0
      %v709 = vadd.f32 0.0, %v708
      %v710 = vpop.f32.mrf.mxu0
      %v711 = vpop.f32.mrf.mxu0
      %v712 = vadd.f32 0.0, %v711
      %v713 = vpop.f32.mrf.mxu0
      %714 = vmatprep.mubr.bf16.mxu0 0
      %715 = vmatmul.mubr.bf16.gmra.mxu0 %v624
      %v716 = vpop.f32.mrf.mxu0
      %v717 = vadd.f32 0.0, %v716
      %v718 = vpop.f32.mrf.mxu0
      %v719 = vpop.f32.mrf.mxu0
      %v720 = vadd.f32 0.0, %v719
      %v721 = vpop.f32.mrf.mxu0
      %722 = vdwg.mxu0
      %v739 = vunpack.c.l.b16 %v340
      %v740 = vunpack.c.l.b16 %v341
      %v741 = vunpack.c.l.b16 %v343
      %v742 = vunpack.c.l.b16 %v344
      %v743 = vunpack.c.l.b16 %v346
      %v744 = vunpack.c.l.b16 %v347
      %v745 = vunpack.c.l.b16 %v349
      %v746 = vunpack.c.l.b16 %v350
      %v747 = vunpack.c.l.b16 %v352
      %v748 = vunpack.c.l.b16 %v353
      %v749 = vunpack.c.l.b16 %v355
      %v750 = vunpack.c.l.b16 %v356
      %v751 = vunpack.c.l.b16 %v358
      %v752 = vunpack.c.l.b16 %v359
      %v753 = vunpack.c.l.b16 %v361
      %v754 = vunpack.c.l.b16 %v362
      %v755 = vpack.c.b16 %v740, %v739
      %v756 = vpack.c.b16 %v742, %v741
      %v757 = vpack.c.b16 %v744, %v743
      %v758 = vpack.c.b16 %v746, %v745
      %v759 = vpack.c.b16 %v748, %v747
      %v760 = vpack.c.b16 %v750, %v749
      %v761 = vpack.c.b16 %v752, %v751
      %v762 = vpack.c.b16 %v754, %v753
      %v765 = vunpack.c.l.b16 %v370
      %v766 = vunpack.c.l.b16 %v371
      %v767 = vpack.c.b16 %v766, %v765
      %v770 = vsel %vm601, %v755, 0
      %v773 = vsel %vm601, %v756, 0
      %v776 = vsel %vm601, %v757, 0
      %v779 = vsel %vm601, %v758, 0
      %v782 = vsel %vm601, %v759, 0
      %v785 = vsel %vm601, %v760, 0
      %v788 = vsel %vm601, %v761, 0
      %v791 = vsel %vm601, %v762, 0
      %793 = vmatprep.subr.bf16.mxu0 0
      %794 = vmatpush1.bf16.msra.mxu0 0
      %795 = vmatprep.subr.bf16.mxu0 0
      %796 = vmatpush1.bf16.msra.mxu0 0
      %797 = vmatprep.subr.bf16.mxu0 0
      %798 = vmatpush1.bf16.msra.mxu0 0
      %799 = vmatprep.subr.bf16.mxu0 0
      %800 = vmatpush1.bf16.msra.mxu0 0
      %801 = vmatprep.subr.bf16.mxu0 0
      %802 = vmatpush1.bf16.msra.mxu0 0
      %803 = vmatprep.subr.bf16.mxu0 0
      %804 = vmatpush1.bf16.msra.mxu0 0
      %805 = vmatprep.subr.bf16.mxu0 0
      %806 = vmatpush1.bf16.msra.mxu0 0
      %807 = vmatprep.subr.bf16.mxu0 0
      %808 = vmatpush1.bf16.msra.mxu0 %v767
      %809 = vmatprep.subr.bf16.mxu0 0
      %810 = vmatpush2.bf16.msra.mxu0 0
      %811 = vmatprep.subr.bf16.mxu0 0
      %812 = vmatpush2.bf16.msra.mxu0 0
      %813 = vmatprep.subr.bf16.mxu0 0
      %814 = vmatpush2.bf16.msra.mxu0 0
      %815 = vmatprep.subr.bf16.mxu0 0
      %816 = vmatpush2.bf16.msra.mxu0 0
      %817 = vmatprep.subr.bf16.mxu0 0
      %818 = vmatpush2.bf16.msra.mxu0 0
      %819 = vmatprep.subr.bf16.mxu0 0
      %820 = vmatpush2.bf16.msra.mxu0 0
      %821 = vmatprep.subr.bf16.mxu0 0
      %822 = vmatpush2.bf16.msra.mxu0 0
      %823 = vmatprep.subr.bf16.mxu0 0
      %824 = vmatpush2.bf16.msra.mxu0 0
      %825 = vmatprep.mubr.bf16.mxu0 0
      %826 = vmatmul.mubr.bf16.gmra.mxu0 %v770
      %v827 = vpop.f32.mrf.mxu0
      %v828 = vadd.f32 %v661, %v827
      %v829 = vpop.f32.mrf.mxu0
      %v830 = vpop.f32.mrf.mxu0
      %v831 = vadd.f32 %v664, %v830
      %v832 = vpop.f32.mrf.mxu0
      %833 = vmatprep.mubr.bf16.mxu0 0
      %834 = vmatmul.mubr.bf16.gmra.mxu0 %v773
      %v835 = vpop.f32.mrf.mxu0
      %v836 = vadd.f32 %v669, %v835
      %v837 = vpop.f32.mrf.mxu0
      %v838 = vpop.f32.mrf.mxu0
      %v839 = vadd.f32 %v672, %v838
      %v840 = vpop.f32.mrf.mxu0
      %841 = vmatprep.mubr.bf16.mxu0 0
      %842 = vmatmul.mubr.bf16.gmra.mxu0 %v776
      %v843 = vpop.f32.mrf.mxu0
      %v844 = vadd.f32 %v677, %v843
      %v845 = vpop.f32.mrf.mxu0
      %v846 = vpop.f32.mrf.mxu0
      %v847 = vadd.f32 %v680, %v846
      %v848 = vpop.f32.mrf.mxu0
      %849 = vmatprep.mubr.bf16.mxu0 0
      %850 = vmatmul.mubr.bf16.gmra.mxu0 %v779
      %v851 = vpop.f32.mrf.mxu0
      %v852 = vadd.f32 %v685, %v851
      %v853 = vpop.f32.mrf.mxu0
      %v854 = vpop.f32.mrf.mxu0
      %v855 = vadd.f32 %v688, %v854
      %v856 = vpop.f32.mrf.mxu0
      %857 = vmatprep.mubr.bf16.mxu0 0
      %858 = vmatmul.mubr.bf16.gmra.mxu0 %v782
      %v859 = vpop.f32.mrf.mxu0
      %v860 = vadd.f32 %v693, %v859
      %v861 = vpop.f32.mrf.mxu0
      %v862 = vpop.f32.mrf.mxu0
      %v863 = vadd.f32 %v696, %v862
      %v864 = vpop.f32.mrf.mxu0
      %865 = vmatprep.mubr.bf16.mxu0 0
      %866 = vmatmul.mubr.bf16.gmra.mxu0 %v785
      %v867 = vpop.f32.mrf.mxu0
      %v868 = vadd.f32 %v701, %v867
      %v869 = vpop.f32.mrf.mxu0
      %v870 = vpop.f32.mrf.mxu0
      %v871 = vadd.f32 %v704, %v870
      %v872 = vpop.f32.mrf.mxu0
      %873 = vmatprep.mubr.bf16.mxu0 0
      %874 = vmatmul.mubr.bf16.gmra.mxu0 %v788
      %v875 = vpop.f32.mrf.mxu0
      %v876 = vadd.f32 %v709, %v875
      %v877 = vpop.f32.mrf.mxu0
      %v878 = vpop.f32.mrf.mxu0
      %v879 = vadd.f32 %v712, %v878
      %v880 = vpop.f32.mrf.mxu0
      %881 = vmatprep.mubr.bf16.mxu0 0
      %882 = vmatmul.mubr.bf16.gmra.mxu0 %v791
      %v883 = vpop.f32.mrf.mxu0
      %v884 = vadd.f32 %v717, %v883
      %v885 = vpop.f32.mrf.mxu0
      %v886 = vpop.f32.mrf.mxu0
      %v887 = vadd.f32 %v720, %v886
      %v888 = vpop.f32.mrf.mxu0
      %889 = vdwg.mxu0
      %s890 = scalar_lea.vmem %s2, 2
      %v891 = vld [vmem:[%s890] sm:$0x3]
      %vm892 = vcmask 31744
      %v893 = vsel %vm892, %v587, 0
      %v895 = vsel %vm892, %v588, 0
      %v897 = vsel %vm892, %v589, 0
      %v899 = vsel %vm892, %v590, 0
      %v901 = vsel %vm892, %v591, 0
      %v903 = vsel %vm892, %v592, 0
      %v905 = vsel %vm892, %v593, 0
      %v907 = vsel %vm892, %v594, 0
      %vm909 = vcmask 1041408
      %v911 = vsel %vm909, %v891, 0
      %913 = vmatprep.subr.bf16.mxu0 0
      %914 = vmatpush1.bf16.msra.mxu0 0
      %915 = vmatprep.subr.bf16.mxu0 0
      %916 = vmatpush1.bf16.msra.mxu0 0
      %917 = vmatprep.subr.bf16.mxu0 0
      %918 = vmatpush1.bf16.msra.mxu0 0
      %919 = vmatprep.subr.bf16.mxu0 0
      %920 = vmatpush1.bf16.msra.mxu0 0
      %921 = vmatprep.subr.bf16.mxu0 0
      %922 = vmatpush1.bf16.msra.mxu0 0
      %923 = vmatprep.subr.bf16.mxu0 0
      %924 = vmatpush1.bf16.msra.mxu0 0
      %925 = vmatprep.subr.bf16.mxu0 0
      %926 = vmatpush1.bf16.msra.mxu0 0
      %927 = vmatprep.subr.bf16.mxu0 0
      %928 = vmatpush1.bf16.msra.mxu0 %v911
      %929 = vmatprep.subr.bf16.mxu0 0
      %930 = vmatpush2.bf16.msra.mxu0 0
      %931 = vmatprep.subr.bf16.mxu0 0
      %932 = vmatpush2.bf16.msra.mxu0 0
      %933 = vmatprep.subr.bf16.mxu0 0
      %934 = vmatpush2.bf16.msra.mxu0 0
      %935 = vmatprep.subr.bf16.mxu0 0
      %936 = vmatpush2.bf16.msra.mxu0 0
      %937 = vmatprep.subr.bf16.mxu0 0
      %938 = vmatpush2.bf16.msra.mxu0 0
      %939 = vmatprep.subr.bf16.mxu0 0
      %940 = vmatpush2.bf16.msra.mxu0 0
      %941 = vmatprep.subr.bf16.mxu0 0
      %942 = vmatpush2.bf16.msra.mxu0 0
      %943 = vmatprep.subr.bf16.mxu0 0
      %944 = vmatpush2.bf16.msra.mxu0 0
      %945 = vmatprep.mubr.bf16.mxu0 0
      %946 = vmatmul.mubr.bf16.gmra.mxu0 %v893
      %v947 = vpop.f32.mrf.mxu0
      %v948 = vadd.f32 0.0, %v947
      %v949 = vpop.f32.mrf.mxu0
      %v950 = vpop.f32.mrf.mxu0
      %v951 = vadd.f32 0.0, %v950
      %v952 = vpop.f32.mrf.mxu0
      %953 = vmatprep.mubr.bf16.mxu0 0
      %954 = vmatmul.mubr.bf16.gmra.mxu0 %v895
      %v955 = vpop.f32.mrf.mxu0
      %v956 = vadd.f32 0.0, %v955
      %v957 = vpop.f32.mrf.mxu0
      %v958 = vpop.f32.mrf.mxu0
      %v959 = vadd.f32 0.0, %v958
      %v960 = vpop.f32.mrf.mxu0
      %961 = vmatprep.mubr.bf16.mxu0 0
      %962 = vmatmul.mubr.bf16.gmra.mxu0 %v897
      %v963 = vpop.f32.mrf.mxu0
      %v964 = vadd.f32 0.0, %v963
      %v965 = vpop.f32.mrf.mxu0
      %v966 = vpop.f32.mrf.mxu0
      %v967 = vadd.f32 0.0, %v966
      %v968 = vpop.f32.mrf.mxu0
      %969 = vmatprep.mubr.bf16.mxu0 0
      %970 = vmatmul.mubr.bf16.gmra.mxu0 %v899
      %v971 = vpop.f32.mrf.mxu0
      %v972 = vadd.f32 0.0, %v971
      %v973 = vpop.f32.mrf.mxu0
      %v974 = vpop.f32.mrf.mxu0
      %v975 = vadd.f32 0.0, %v974
      %v976 = vpop.f32.mrf.mxu0
      %977 = vmatprep.mubr.bf16.mxu0 0
      %978 = vmatmul.mubr.bf16.gmra.mxu0 %v901
      %v979 = vpop.f32.mrf.mxu0
      %v980 = vadd.f32 0.0, %v979
      %v981 = vpop.f32.mrf.mxu0
      %v982 = vpop.f32.mrf.mxu0
      %v983 = vadd.f32 0.0, %v982
      %v984 = vpop.f32.mrf.mxu0
      %985 = vmatprep.mubr.bf16.mxu0 0
      %986 = vmatmul.mubr.bf16.gmra.mxu0 %v903
      %v987 = vpop.f32.mrf.mxu0
      %v988 = vadd.f32 0.0, %v987
      %v989 = vpop.f32.mrf.mxu0
      %v990 = vpop.f32.mrf.mxu0
      %v991 = vadd.f32 0.0, %v990
      %v992 = vpop.f32.mrf.mxu0
      %993 = vmatprep.mubr.bf16.mxu0 0
      %994 = vmatmul.mubr.bf16.gmra.mxu0 %v905
      %v995 = vpop.f32.mrf.mxu0
      %v996 = vadd.f32 0.0, %v995
      %v997 = vpop.f32.mrf.mxu0
      %v998 = vpop.f32.mrf.mxu0
      %v999 = vadd.f32 0.0, %v998
      %v1000 = vpop.f32.mrf.mxu0
      %1001 = vmatprep.mubr.bf16.mxu0 0
      %1002 = vmatmul.mubr.bf16.gmra.mxu0 %v907
      %v1003 = vpop.f32.mrf.mxu0
      %v1004 = vadd.f32 0.0, %v1003
      %v1005 = vpop.f32.mrf.mxu0
      %v1006 = vpop.f32.mrf.mxu0
      %v1007 = vadd.f32 0.0, %v1006
      %v1008 = vpop.f32.mrf.mxu0
      %1009 = vdwg.mxu0
      %v1010 = vsel %vm892, %v755, 0
      %v1012 = vsel %vm892, %v756, 0
      %v1014 = vsel %vm892, %v757, 0
      %v1016 = vsel %vm892, %v758, 0
      %v1018 = vsel %vm892, %v759, 0
      %v1020 = vsel %vm892, %v760, 0
      %v1022 = vsel %vm892, %v761, 0
      %v1024 = vsel %vm892, %v762, 0
      %v1027 = vsel %vm909, %v372, 0
      %1029 = vmatprep.subr.bf16.mxu0 0
      %1030 = vmatpush1.bf16.msra.mxu0 0
      %1031 = vmatprep.subr.bf16.mxu0 0
      %1032 = vmatpush1.bf16.msra.mxu0 0
      %1033 = vmatprep.subr.bf16.mxu0 0
      %1034 = vmatpush1.bf16.msra.mxu0 0
      %1035 = vmatprep.subr.bf16.mxu0 0
      %1036 = vmatpush1.bf16.msra.mxu0 0
      %1037 = vmatprep.subr.bf16.mxu0 0
      %1038 = vmatpush1.bf16.msra.mxu0 0
      %1039 = vmatprep.subr.bf16.mxu0 0
      %1040 = vmatpush1.bf16.msra.mxu0 0
      %1041 = vmatprep.subr.bf16.mxu0 0
      %1042 = vmatpush1.bf16.msra.mxu0 0
      %1043 = vmatprep.subr.bf16.mxu0 0
      %1044 = vmatpush1.bf16.msra.mxu0 %v1027
      %1045 = vmatprep.subr.bf16.mxu0 0
      %1046 = vmatpush2.bf16.msra.mxu0 0
      %1047 = vmatprep.subr.bf16.mxu0 0
      %1048 = vmatpush2.bf16.msra.mxu0 0
      %1049 = vmatprep.subr.bf16.mxu0 0
      %1050 = vmatpush2.bf16.msra.mxu0 0
      %1051 = vmatprep.subr.bf16.mxu0 0
      %1052 = vmatpush2.bf16.msra.mxu0 0
      %1053 = vmatprep.subr.bf16.mxu0 0
      %1054 = vmatpush2.bf16.msra.mxu0 0
      %1055 = vmatprep.subr.bf16.mxu0 0
      %1056 = vmatpush2.bf16.msra.mxu0 0
      %1057 = vmatprep.subr.bf16.mxu0 0
      %1058 = vmatpush2.bf16.msra.mxu0 0
      %1059 = vmatprep.subr.bf16.mxu0 0
      %1060 = vmatpush2.bf16.msra.mxu0 0
      %1061 = vmatprep.mubr.bf16.mxu0 0
      %1062 = vmatmul.mubr.bf16.gmra.mxu0 %v1010
      %v1063 = vpop.f32.mrf.mxu0
      %v1064 = vadd.f32 %v948, %v1063
      %v1065 = vpop.f32.mrf.mxu0
      %v1066 = vpop.f32.mrf.mxu0
      %v1067 = vadd.f32 %v951, %v1066
      %v1068 = vpop.f32.mrf.mxu0
      %1069 = vmatprep.mubr.bf16.mxu0 0
      %1070 = vmatmul.mubr.bf16.gmra.mxu0 %v1012
      %v1071 = vpop.f32.mrf.mxu0
      %v1072 = vadd.f32 %v956, %v1071
      %v1073 = vpop.f32.mrf.mxu0
      %v1074 = vpop.f32.mrf.mxu0
      %v1075 = vadd.f32 %v959, %v1074
      %v1076 = vpop.f32.mrf.mxu0
      %1077 = vmatprep.mubr.bf16.mxu0 0
      %1078 = vmatmul.mubr.bf16.gmra.mxu0 %v1014
      %v1079 = vpop.f32.mrf.mxu0
      %v1080 = vadd.f32 %v964, %v1079
      %v1081 = vpop.f32.mrf.mxu0
      %v1082 = vpop.f32.mrf.mxu0
      %v1083 = vadd.f32 %v967, %v1082
      %v1084 = vpop.f32.mrf.mxu0
      %1085 = vmatprep.mubr.bf16.mxu0 0
      %1086 = vmatmul.mubr.bf16.gmra.mxu0 %v1016
      %v1087 = vpop.f32.mrf.mxu0
      %v1088 = vadd.f32 %v972, %v1087
      %v1089 = vpop.f32.mrf.mxu0
      %v1090 = vpop.f32.mrf.mxu0
      %v1091 = vadd.f32 %v975, %v1090
      %v1092 = vpop.f32.mrf.mxu0
      %1093 = vmatprep.mubr.bf16.mxu0 0
      %1094 = vmatmul.mubr.bf16.gmra.mxu0 %v1018
      %v1095 = vpop.f32.mrf.mxu0
      %v1096 = vadd.f32 %v980, %v1095
      %v1097 = vpop.f32.mrf.mxu0
      %v1098 = vpop.f32.mrf.mxu0
      %v1099 = vadd.f32 %v983, %v1098
      %v1100 = vpop.f32.mrf.mxu0
      %1101 = vmatprep.mubr.bf16.mxu0 0
      %1102 = vmatmul.mubr.bf16.gmra.mxu0 %v1020
      %v1103 = vpop.f32.mrf.mxu0
      %v1104 = vadd.f32 %v988, %v1103
      %v1105 = vpop.f32.mrf.mxu0
      %v1106 = vpop.f32.mrf.mxu0
      %v1107 = vadd.f32 %v991, %v1106
      %v1108 = vpop.f32.mrf.mxu0
      %1109 = vmatprep.mubr.bf16.mxu0 0
      %1110 = vmatmul.mubr.bf16.gmra.mxu0 %v1022
      %v1111 = vpop.f32.mrf.mxu0
      %v1112 = vadd.f32 %v996, %v1111
      %v1113 = vpop.f32.mrf.mxu0
      %v1114 = vpop.f32.mrf.mxu0
      %v1115 = vadd.f32 %v999, %v1114
      %v1116 = vpop.f32.mrf.mxu0
      %1117 = vmatprep.mubr.bf16.mxu0 0
      %1118 = vmatmul.mubr.bf16.gmra.mxu0 %v1024
      %v1119 = vpop.f32.mrf.mxu0
      %v1120 = vadd.f32 %v1004, %v1119
      %v1121 = vpop.f32.mrf.mxu0
      %v1122 = vpop.f32.mrf.mxu0
      %v1123 = vadd.f32 %v1007, %v1122
      %v1124 = vpop.f32.mrf.mxu0
      %1125 = vdwg.mxu0
      %vm1134 = vcmask 1042432
      %vm1135 = vcmask 1046532
      %vm1136 = vmor %vm1134, %vm1135
      %v1137 = vrot.slane %v340, 5
      %v1138 = vrot.slane %v1137, 4
      %v1139 = vrot.slane %v341, 5
      %v1140 = vsel %vm1136, %v1138, %v1139
      %v1141 = vrot.slane %v1139, 4
      %v1142 = vrot.slane %v342, 5
      %v1143 = vsel %vm1136, %v1141, %v1142
      %v1144 = vrot.slane %v343, 5
      %v1145 = vrot.slane %v1144, 4
      %v1146 = vrot.slane %v344, 5
      %v1147 = vsel %vm1136, %v1145, %v1146
      %v1148 = vrot.slane %v1146, 4
      %v1149 = vrot.slane %v345, 5
      %v1150 = vsel %vm1136, %v1148, %v1149
      %v1151 = vrot.slane %v346, 5
      %v1152 = vrot.slane %v1151, 4
      %v1153 = vrot.slane %v347, 5
      %v1154 = vsel %vm1136, %v1152, %v1153
      %v1155 = vrot.slane %v1153, 4
      %v1156 = vrot.slane %v348, 5
      %v1157 = vsel %vm1136, %v1155, %v1156
      %v1158 = vrot.slane %v349, 5
      %v1159 = vrot.slane %v1158, 4
      %v1160 = vrot.slane %v350, 5
      %v1161 = vsel %vm1136, %v1159, %v1160
      %v1162 = vrot.slane %v1160, 4
      %v1163 = vrot.slane %v351, 5
      %v1164 = vsel %vm1136, %v1162, %v1163
      %v1165 = vrot.slane %v352, 5
      %v1166 = vrot.slane %v1165, 4
      %v1167 = vrot.slane %v353, 5
      %v1168 = vsel %vm1136, %v1166, %v1167
      %v1169 = vrot.slane %v1167, 4
      %v1170 = vrot.slane %v354, 5
      %v1171 = vsel %vm1136, %v1169, %v1170
      %v1172 = vrot.slane %v355, 5
      %v1173 = vrot.slane %v1172, 4
      %v1174 = vrot.slane %v356, 5
      %v1175 = vsel %vm1136, %v1173, %v1174
      %v1176 = vrot.slane %v1174, 4
      %v1177 = vrot.slane %v357, 5
      %v1178 = vsel %vm1136, %v1176, %v1177
      %v1179 = vrot.slane %v358, 5
      %v1180 = vrot.slane %v1179, 4
      %v1181 = vrot.slane %v359, 5
      %v1182 = vsel %vm1136, %v1180, %v1181
      %v1183 = vrot.slane %v1181, 4
      %v1184 = vrot.slane %v360, 5
      %v1185 = vsel %vm1136, %v1183, %v1184
      %v1186 = vrot.slane %v361, 5
      %v1187 = vrot.slane %v1186, 4
      %v1188 = vrot.slane %v362, 5
      %v1189 = vsel %vm1136, %v1187, %v1188
      %v1190 = vrot.slane %v1188, 4
      %v1191 = vrot.slane %v363, 5
      %v1192 = vsel %vm1136, %v1190, %v1191
      %s1193 = scalar_lea.vmem %s1, 16
      %v1194 = vld [vmem:[%s1193] sm:$0xf]
      %v1195 = vld [vmem:[%s1193 + $0x4] sm:$0xf]
      %v1196 = vunpack.c.l.b16 %v1140
      %v1197 = vunpack.c.l.b16 %v1143
      %v1198 = vunpack.c.l.b16 %v1147
      %v1199 = vunpack.c.l.b16 %v1150
      %v1200 = vunpack.c.l.b16 %v1154
      %v1201 = vunpack.c.l.b16 %v1157
      %v1202 = vunpack.c.l.b16 %v1161
      %v1203 = vunpack.c.l.b16 %v1164
      %v1204 = vunpack.c.l.b16 %v1168
      %v1205 = vunpack.c.l.b16 %v1171
      %v1206 = vunpack.c.l.b16 %v1175
      %v1207 = vunpack.c.l.b16 %v1178
      %v1208 = vunpack.c.l.b16 %v1182
      %v1209 = vunpack.c.l.b16 %v1185
      %v1210 = vunpack.c.l.b16 %v1189
      %v1211 = vunpack.c.l.b16 %v1192
      %v1212 = vpack.c.b16 %v1197, %v1196
      %v1213 = vpack.c.b16 %v1199, %v1198
      %v1214 = vpack.c.b16 %v1201, %v1200
      %v1215 = vpack.c.b16 %v1203, %v1202
      %v1216 = vpack.c.b16 %v1205, %v1204
      %v1217 = vpack.c.b16 %v1207, %v1206
      %v1218 = vpack.c.b16 %v1209, %v1208
      %v1219 = vpack.c.b16 %v1211, %v1210
      %v1222 = vunpack.c.l.b16 %v1194
      %v1223 = vunpack.c.l.b16 %v1195
      %v1224 = vpack.c.b16 %v1223, %v1222
      %v1227 = vsel %vm601, %v1212, 0
      %v1230 = vsel %vm601, %v1213, 0
      %v1233 = vsel %vm601, %v1214, 0
      %v1236 = vsel %vm601, %v1215, 0
      %v1239 = vsel %vm601, %v1216, 0
      %v1242 = vsel %vm601, %v1217, 0
      %v1245 = vsel %vm601, %v1218, 0
      %v1248 = vsel %vm601, %v1219, 0
      %1250 = vmatprep.subr.bf16.mxu0 0
      %1251 = vmatpush1.bf16.msra.mxu0 0
      %1252 = vmatprep.subr.bf16.mxu0 0
      %1253 = vmatpush1.bf16.msra.mxu0 0
      %1254 = vmatprep.subr.bf16.mxu0 0
      %1255 = vmatpush1.bf16.msra.mxu0 0
      %1256 = vmatprep.subr.bf16.mxu0 0
      %1257 = vmatpush1.bf16.msra.mxu0 0
      %1258 = vmatprep.subr.bf16.mxu0 0
      %1259 = vmatpush1.bf16.msra.mxu0 0
      %1260 = vmatprep.subr.bf16.mxu0 0
      %1261 = vmatpush1.bf16.msra.mxu0 0
      %1262 = vmatprep.subr.bf16.mxu0 0
      %1263 = vmatpush1.bf16.msra.mxu0 0
      %1264 = vmatprep.subr.bf16.mxu0 0
      %1265 = vmatpush1.bf16.msra.mxu0 %v1224
      %1266 = vmatprep.subr.bf16.mxu0 0
      %1267 = vmatpush2.bf16.msra.mxu0 0
      %1268 = vmatprep.subr.bf16.mxu0 0
      %1269 = vmatpush2.bf16.msra.mxu0 0
      %1270 = vmatprep.subr.bf16.mxu0 0
      %1271 = vmatpush2.bf16.msra.mxu0 0
      %1272 = vmatprep.subr.bf16.mxu0 0
      %1273 = vmatpush2.bf16.msra.mxu0 0
      %1274 = vmatprep.subr.bf16.mxu0 0
      %1275 = vmatpush2.bf16.msra.mxu0 0
      %1276 = vmatprep.subr.bf16.mxu0 0
      %1277 = vmatpush2.bf16.msra.mxu0 0
      %1278 = vmatprep.subr.bf16.mxu0 0
      %1279 = vmatpush2.bf16.msra.mxu0 0
      %1280 = vmatprep.subr.bf16.mxu0 0
      %1281 = vmatpush2.bf16.msra.mxu0 0
      %1282 = vmatprep.mubr.bf16.mxu0 0
      %1283 = vmatmul.mubr.bf16.gmra.mxu0 %v1227
      %v1284 = vpop.f32.mrf.mxu0
      %v1285 = vadd.f32 0.0, %v1284
      %v1286 = vpop.f32.mrf.mxu0
      %v1287 = vpop.f32.mrf.mxu0
      %v1288 = vadd.f32 0.0, %v1287
      %v1289 = vpop.f32.mrf.mxu0
      %1290 = vmatprep.mubr.bf16.mxu0 0
      %1291 = vmatmul.mubr.bf16.gmra.mxu0 %v1230
      %v1292 = vpop.f32.mrf.mxu0
      %v1293 = vadd.f32 0.0, %v1292
      %v1294 = vpop.f32.mrf.mxu0
      %v1295 = vpop.f32.mrf.mxu0
      %v1296 = vadd.f32 0.0, %v1295
      %v1297 = vpop.f32.mrf.mxu0
      %1298 = vmatprep.mubr.bf16.mxu0 0
      %1299 = vmatmul.mubr.bf16.gmra.mxu0 %v1233
      %v1300 = vpop.f32.mrf.mxu0
      %v1301 = vadd.f32 0.0, %v1300
      %v1302 = vpop.f32.mrf.mxu0
      %v1303 = vpop.f32.mrf.mxu0
      %v1304 = vadd.f32 0.0, %v1303
      %v1305 = vpop.f32.mrf.mxu0
      %1306 = vmatprep.mubr.bf16.mxu0 0
      %1307 = vmatmul.mubr.bf16.gmra.mxu0 %v1236
      %v1308 = vpop.f32.mrf.mxu0
      %v1309 = vadd.f32 0.0, %v1308
      %v1310 = vpop.f32.mrf.mxu0
      %v1311 = vpop.f32.mrf.mxu0
      %v1312 = vadd.f32 0.0, %v1311
      %v1313 = vpop.f32.mrf.mxu0
      %1314 = vmatprep.mubr.bf16.mxu0 0
      %1315 = vmatmul.mubr.bf16.gmra.mxu0 %v1239
      %v1316 = vpop.f32.mrf.mxu0
      %v1317 = vadd.f32 0.0, %v1316
      %v1318 = vpop.f32.mrf.mxu0
      %v1319 = vpop.f32.mrf.mxu0
      %v1320 = vadd.f32 0.0, %v1319
      %v1321 = vpop.f32.mrf.mxu0
      %1322 = vmatprep.mubr.bf16.mxu0 0
      %1323 = vmatmul.mubr.bf16.gmra.mxu0 %v1242
      %v1324 = vpop.f32.mrf.mxu0
      %v1325 = vadd.f32 0.0, %v1324
      %v1326 = vpop.f32.mrf.mxu0
      %v1327 = vpop.f32.mrf.mxu0
      %v1328 = vadd.f32 0.0, %v1327
      %v1329 = vpop.f32.mrf.mxu0
      %1330 = vmatprep.mubr.bf16.mxu0 0
      %1331 = vmatmul.mubr.bf16.gmra.mxu0 %v1245
      %v1332 = vpop.f32.mrf.mxu0
      %v1333 = vadd.f32 0.0, %v1332
      %v1334 = vpop.f32.mrf.mxu0
      %v1335 = vpop.f32.mrf.mxu0
      %v1336 = vadd.f32 0.0, %v1335
      %v1337 = vpop.f32.mrf.mxu0
      %1338 = vmatprep.mubr.bf16.mxu0 0
      %1339 = vmatmul.mubr.bf16.gmra.mxu0 %v1248
      %v1340 = vpop.f32.mrf.mxu0
      %v1341 = vadd.f32 0.0, %v1340
      %v1342 = vpop.f32.mrf.mxu0
      %v1343 = vpop.f32.mrf.mxu0
      %v1344 = vadd.f32 0.0, %v1343
      %v1345 = vpop.f32.mrf.mxu0
      %1346 = vdwg.mxu0
      %v1347 = vadd.f32 %v828, %v1285
      %v1348 = vadd.f32 %v831, %v1288
      %v1349 = vadd.f32 %v836, %v1293
      %v1350 = vadd.f32 %v839, %v1296
      %v1351 = vadd.f32 %v844, %v1301
      %v1352 = vadd.f32 %v847, %v1304
      %v1353 = vadd.f32 %v852, %v1309
      %v1354 = vadd.f32 %v855, %v1312
      %v1355 = vadd.f32 %v860, %v1317
      %v1356 = vadd.f32 %v863, %v1320
      %v1357 = vadd.f32 %v868, %v1325
      %v1358 = vadd.f32 %v871, %v1328
      %v1359 = vadd.f32 %v876, %v1333
      %v1360 = vadd.f32 %v879, %v1336
      %v1361 = vadd.f32 %v884, %v1341
      %v1362 = vadd.f32 %v887, %v1344
      %s1363 = scalar_lea.vmem %s2, 4
      %v1364 = vld [vmem:[%s1363] sm:$0x3]
      %v1365 = vsel %vm892, %v1212, 0
      %v1367 = vsel %vm892, %v1213, 0
      %v1369 = vsel %vm892, %v1214, 0
      %v1371 = vsel %vm892, %v1215, 0
      %v1373 = vsel %vm892, %v1216, 0
      %v1375 = vsel %vm892, %v1217, 0
      %v1377 = vsel %vm892, %v1218, 0
      %v1379 = vsel %vm892, %v1219, 0
      %v1382 = vsel %vm909, %v1364, 0
      %1384 = vmatprep.subr.bf16.mxu0 0
      %1385 = vmatpush1.bf16.msra.mxu0 0
      %1386 = vmatprep.subr.bf16.mxu0 0
      %1387 = vmatpush1.bf16.msra.mxu0 0
      %1388 = vmatprep.subr.bf16.mxu0 0
      %1389 = vmatpush1.bf16.msra.mxu0 0
      %1390 = vmatprep.subr.bf16.mxu0 0
      %1391 = vmatpush1.bf16.msra.mxu0 0
      %1392 = vmatprep.subr.bf16.mxu0 0
      %1393 = vmatpush1.bf16.msra.mxu0 0
      %1394 = vmatprep.subr.bf16.mxu0 0
      %1395 = vmatpush1.bf16.msra.mxu0 0
      %1396 = vmatprep.subr.bf16.mxu0 0
      %1397 = vmatpush1.bf16.msra.mxu0 0
      %1398 = vmatprep.subr.bf16.mxu0 0
      %1399 = vmatpush1.bf16.msra.mxu0 %v1382
      %1400 = vmatprep.subr.bf16.mxu0 0
      %1401 = vmatpush2.bf16.msra.mxu0 0
      %1402 = vmatprep.subr.bf16.mxu0 0
      %1403 = vmatpush2.bf16.msra.mxu0 0
      %1404 = vmatprep.subr.bf16.mxu0 0
      %1405 = vmatpush2.bf16.msra.mxu0 0
      %1406 = vmatprep.subr.bf16.mxu0 0
      %1407 = vmatpush2.bf16.msra.mxu0 0
      %1408 = vmatprep.subr.bf16.mxu0 0
      %1409 = vmatpush2.bf16.msra.mxu0 0
      %1410 = vmatprep.subr.bf16.mxu0 0
      %1411 = vmatpush2.bf16.msra.mxu0 0
      %1412 = vmatprep.subr.bf16.mxu0 0
      %1413 = vmatpush2.bf16.msra.mxu0 0
      %1414 = vmatprep.subr.bf16.mxu0 0
      %1415 = vmatpush2.bf16.msra.mxu0 0
      %1416 = vmatprep.mubr.bf16.mxu0 0
      %1417 = vmatmul.mubr.bf16.gmra.mxu0 %v1365
      %v1418 = vpop.f32.mrf.mxu0
      %v1419 = vadd.f32 0.0, %v1418
      %v1420 = vpop.f32.mrf.mxu0
      %v1421 = vpop.f32.mrf.mxu0
      %v1422 = vadd.f32 0.0, %v1421
      %v1423 = vpop.f32.mrf.mxu0
      %1424 = vmatprep.mubr.bf16.mxu0 0
      %1425 = vmatmul.mubr.bf16.gmra.mxu0 %v1367
      %v1426 = vpop.f32.mrf.mxu0
      %v1427 = vadd.f32 0.0, %v1426
      %v1428 = vpop.f32.mrf.mxu0
      %v1429 = vpop.f32.mrf.mxu0
      %v1430 = vadd.f32 0.0, %v1429
      %v1431 = vpop.f32.mrf.mxu0
      %1432 = vmatprep.mubr.bf16.mxu0 0
      %1433 = vmatmul.mubr.bf16.gmra.mxu0 %v1369
      %v1434 = vpop.f32.mrf.mxu0
      %v1435 = vadd.f32 0.0, %v1434
      %v1436 = vpop.f32.mrf.mxu0
      %v1437 = vpop.f32.mrf.mxu0
      %v1438 = vadd.f32 0.0, %v1437
      %v1439 = vpop.f32.mrf.mxu0
      %1440 = vmatprep.mubr.bf16.mxu0 0
      %1441 = vmatmul.mubr.bf16.gmra.mxu0 %v1371
      %v1442 = vpop.f32.mrf.mxu0
      %v1443 = vadd.f32 0.0, %v1442
      %v1444 = vpop.f32.mrf.mxu0
      %v1445 = vpop.f32.mrf.mxu0
      %v1446 = vadd.f32 0.0, %v1445
      %v1447 = vpop.f32.mrf.mxu0
      %1448 = vmatprep.mubr.bf16.mxu0 0
      %1449 = vmatmul.mubr.bf16.gmra.mxu0 %v1373
      %v1450 = vpop.f32.mrf.mxu0
      %v1451 = vadd.f32 0.0, %v1450
      %v1452 = vpop.f32.mrf.mxu0
      %v1453 = vpop.f32.mrf.mxu0
      %v1454 = vadd.f32 0.0, %v1453
      %v1455 = vpop.f32.mrf.mxu0
      %1456 = vmatprep.mubr.bf16.mxu0 0
      %1457 = vmatmul.mubr.bf16.gmra.mxu0 %v1375
      %v1458 = vpop.f32.mrf.mxu0
      %v1459 = vadd.f32 0.0, %v1458
      %v1460 = vpop.f32.mrf.mxu0
      %v1461 = vpop.f32.mrf.mxu0
      %v1462 = vadd.f32 0.0, %v1461
      %v1463 = vpop.f32.mrf.mxu0
      %1464 = vmatprep.mubr.bf16.mxu0 0
      %1465 = vmatmul.mubr.bf16.gmra.mxu0 %v1377
      %v1466 = vpop.f32.mrf.mxu0
      %v1467 = vadd.f32 0.0, %v1466
      %v1468 = vpop.f32.mrf.mxu0
      %v1469 = vpop.f32.mrf.mxu0
      %v1470 = vadd.f32 0.0, %v1469
      %v1471 = vpop.f32.mrf.mxu0
      %1472 = vmatprep.mubr.bf16.mxu0 0
      %1473 = vmatmul.mubr.bf16.gmra.mxu0 %v1379
      %v1474 = vpop.f32.mrf.mxu0
      %v1475 = vadd.f32 0.0, %v1474
      %v1476 = vpop.f32.mrf.mxu0
      %v1477 = vpop.f32.mrf.mxu0
      %v1478 = vadd.f32 0.0, %v1477
      %v1479 = vpop.f32.mrf.mxu0
      %1480 = vdwg.mxu0
      %v1481 = vadd.f32 %v1064, %v1419
      %v1482 = vadd.f32 %v1067, %v1422
      %v1483 = vadd.f32 %v1072, %v1427
      %v1484 = vadd.f32 %v1075, %v1430
      %v1485 = vadd.f32 %v1080, %v1435
      %v1486 = vadd.f32 %v1083, %v1438
      %v1487 = vadd.f32 %v1088, %v1443
      %v1488 = vadd.f32 %v1091, %v1446
      %v1489 = vadd.f32 %v1096, %v1451
      %v1490 = vadd.f32 %v1099, %v1454
      %v1491 = vadd.f32 %v1104, %v1459
      %v1492 = vadd.f32 %v1107, %v1462
      %v1493 = vadd.f32 %v1112, %v1467
      %v1494 = vadd.f32 %v1115, %v1470
      %v1495 = vadd.f32 %v1120, %v1475
      %v1496 = vadd.f32 %v1123, %v1478
      %s1497 = scalar_lea.vmem %s1, 24
      %v1498 = vld [vmem:[%s1497] sm:$0xf]
      %v1499 = vld [vmem:[%s1497 + $0x4] sm:$0xf]
      %v1502 = vunpack.c.l.b16 %v364
      %v1503 = vunpack.c.l.b16 %v365
      %v1504 = vpack.c.b16 %v1503, %v1502
      %v1507 = vunpack.c.l.b16 %v1498
      %v1508 = vunpack.c.l.b16 %v1499
      %v1509 = vpack.c.b16 %v1508, %v1507
      %v1512 = vsel %vm601, %v1504, 0
      %1514 = vmatprep.subr.bf16.mxu0 0
      %1515 = vmatpush1.bf16.msra.mxu0 0
      %1516 = vmatprep.subr.bf16.mxu0 0
      %1517 = vmatpush1.bf16.msra.mxu0 0
      %1518 = vmatprep.subr.bf16.mxu0 0
      %1519 = vmatpush1.bf16.msra.mxu0 0
      %1520 = vmatprep.subr.bf16.mxu0 0
      %1521 = vmatpush1.bf16.msra.mxu0 0
      %1522 = vmatprep.subr.bf16.mxu0 0
      %1523 = vmatpush1.bf16.msra.mxu0 0
      %1524 = vmatprep.subr.bf16.mxu0 0
      %1525 = vmatpush1.bf16.msra.mxu0 0
      %1526 = vmatprep.subr.bf16.mxu0 0
      %1527 = vmatpush1.bf16.msra.mxu0 0
      %1528 = vmatprep.subr.bf16.mxu0 0
      %1529 = vmatpush1.bf16.msra.mxu0 %v1509
      %1530 = vmatprep.subr.bf16.mxu0 0
      %1531 = vmatpush2.bf16.msra.mxu0 0
      %1532 = vmatprep.subr.bf16.mxu0 0
      %1533 = vmatpush2.bf16.msra.mxu0 0
      %1534 = vmatprep.subr.bf16.mxu0 0
      %1535 = vmatpush2.bf16.msra.mxu0 0
      %1536 = vmatprep.subr.bf16.mxu0 0
      %1537 = vmatpush2.bf16.msra.mxu0 0
      %1538 = vmatprep.subr.bf16.mxu0 0
      %1539 = vmatpush2.bf16.msra.mxu0 0
      %1540 = vmatprep.subr.bf16.mxu0 0
      %1541 = vmatpush2.bf16.msra.mxu0 0
      %1542 = vmatprep.subr.bf16.mxu0 0
      %1543 = vmatpush2.bf16.msra.mxu0 0
      %1544 = vmatprep.subr.bf16.mxu0 0
      %1545 = vmatpush2.bf16.msra.mxu0 0
      %1546 = vmatprep.mubr.bf16.mxu0 0
      %1547 = vmatmul.mubr.bf16.gmra.mxu0 %v773
      %v1548 = vpop.f32.mrf.mxu0
      %v1549 = vadd.f32 0.0, %v1548
      %v1550 = vpop.f32.mrf.mxu0
      %v1551 = vpop.f32.mrf.mxu0
      %v1552 = vadd.f32 0.0, %v1551
      %v1553 = vpop.f32.mrf.mxu0
      %1554 = vmatprep.mubr.bf16.mxu0 0
      %1555 = vmatmul.mubr.bf16.gmra.mxu0 %v776
      %v1556 = vpop.f32.mrf.mxu0
      %v1557 = vadd.f32 0.0, %v1556
      %v1558 = vpop.f32.mrf.mxu0
      %v1559 = vpop.f32.mrf.mxu0
      %v1560 = vadd.f32 0.0, %v1559
      %v1561 = vpop.f32.mrf.mxu0
      %1562 = vmatprep.mubr.bf16.mxu0 0
      %1563 = vmatmul.mubr.bf16.gmra.mxu0 %v779
      %v1564 = vpop.f32.mrf.mxu0
      %v1565 = vadd.f32 0.0, %v1564
      %v1566 = vpop.f32.mrf.mxu0
      %v1567 = vpop.f32.mrf.mxu0
      %v1568 = vadd.f32 0.0, %v1567
      %v1569 = vpop.f32.mrf.mxu0
      %1570 = vmatprep.mubr.bf16.mxu0 0
      %1571 = vmatmul.mubr.bf16.gmra.mxu0 %v782
      %v1572 = vpop.f32.mrf.mxu0
      %v1573 = vadd.f32 0.0, %v1572
      %v1574 = vpop.f32.mrf.mxu0
      %v1575 = vpop.f32.mrf.mxu0
      %v1576 = vadd.f32 0.0, %v1575
      %v1577 = vpop.f32.mrf.mxu0
      %1578 = vmatprep.mubr.bf16.mxu0 0
      %1579 = vmatmul.mubr.bf16.gmra.mxu0 %v785
      %v1580 = vpop.f32.mrf.mxu0
      %v1581 = vadd.f32 0.0, %v1580
      %v1582 = vpop.f32.mrf.mxu0
      %v1583 = vpop.f32.mrf.mxu0
      %v1584 = vadd.f32 0.0, %v1583
      %v1585 = vpop.f32.mrf.mxu0
      %1586 = vmatprep.mubr.bf16.mxu0 0
      %1587 = vmatmul.mubr.bf16.gmra.mxu0 %v788
      %v1588 = vpop.f32.mrf.mxu0
      %v1589 = vadd.f32 0.0, %v1588
      %v1590 = vpop.f32.mrf.mxu0
      %v1591 = vpop.f32.mrf.mxu0
      %v1592 = vadd.f32 0.0, %v1591
      %v1593 = vpop.f32.mrf.mxu0
      %1594 = vmatprep.mubr.bf16.mxu0 0
      %1595 = vmatmul.mubr.bf16.gmra.mxu0 %v791
      %v1596 = vpop.f32.mrf.mxu0
      %v1597 = vadd.f32 0.0, %v1596
      %v1598 = vpop.f32.mrf.mxu0
      %v1599 = vpop.f32.mrf.mxu0
      %v1600 = vadd.f32 0.0, %v1599
      %v1601 = vpop.f32.mrf.mxu0
      %1602 = vmatprep.mubr.bf16.mxu0 0
      %1603 = vmatmul.mubr.bf16.gmra.mxu0 %v1512
      %v1604 = vpop.f32.mrf.mxu0
      %v1605 = vadd.f32 0.0, %v1604
      %v1606 = vpop.f32.mrf.mxu0
      %v1607 = vpop.f32.mrf.mxu0
      %v1608 = vadd.f32 0.0, %v1607
      %v1609 = vpop.f32.mrf.mxu0
      %1610 = vdwg.mxu0
      %v1611 = vadd.f32 %v1347, %v1549
      %v1612 = vadd.f32 %v1348, %v1552
      %v1613 = vadd.f32 %v1349, %v1557
      %v1614 = vadd.f32 %v1350, %v1560
      %v1615 = vadd.f32 %v1351, %v1565
      %v1616 = vadd.f32 %v1352, %v1568
      %v1617 = vadd.f32 %v1353, %v1573
      %v1618 = vadd.f32 %v1354, %v1576
      %v1619 = vadd.f32 %v1355, %v1581
      %v1620 = vadd.f32 %v1356, %v1584
      %v1621 = vadd.f32 %v1357, %v1589
      %v1622 = vadd.f32 %v1358, %v1592
      %v1623 = vadd.f32 %v1359, %v1597
      %v1624 = vadd.f32 %v1360, %v1600
      %v1625 = vadd.f32 %v1361, %v1605
      %v1626 = vadd.f32 %v1362, %v1608
      %s1627 = scalar_lea.vmem %s2, 6
      %v1628 = vld [vmem:[%s1627] sm:$0x3]
      %v1629 = vsel %vm892, %v1504, 0
      %v1632 = vsel %vm909, %v1628, 0
      %1634 = vmatprep.subr.bf16.mxu0 0
      %1635 = vmatpush1.bf16.msra.mxu0 0
      %1636 = vmatprep.subr.bf16.mxu0 0
      %1637 = vmatpush1.bf16.msra.mxu0 0
      %1638 = vmatprep.subr.bf16.mxu0 0
      %1639 = vmatpush1.bf16.msra.mxu0 0
      %1640 = vmatprep.subr.bf16.mxu0 0
      %1641 = vmatpush1.bf16.msra.mxu0 0
      %1642 = vmatprep.subr.bf16.mxu0 0
      %1643 = vmatpush1.bf16.msra.mxu0 0
      %1644 = vmatprep.subr.bf16.mxu0 0
      %1645 = vmatpush1.bf16.msra.mxu0 0
      %1646 = vmatprep.subr.bf16.mxu0 0
      %1647 = vmatpush1.bf16.msra.mxu0 0
      %1648 = vmatprep.subr.bf16.mxu0 0
      %1649 = vmatpush1.bf16.msra.mxu0 %v1632
      %1650 = vmatprep.subr.bf16.mxu0 0
      %1651 = vmatpush2.bf16.msra.mxu0 0
      %1652 = vmatprep.subr.bf16.mxu0 0
      %1653 = vmatpush2.bf16.msra.mxu0 0
      %1654 = vmatprep.subr.bf16.mxu0 0
      %1655 = vmatpush2.bf16.msra.mxu0 0
      %1656 = vmatprep.subr.bf16.mxu0 0
      %1657 = vmatpush2.bf16.msra.mxu0 0
      %1658 = vmatprep.subr.bf16.mxu0 0
      %1659 = vmatpush2.bf16.msra.mxu0 0
      %1660 = vmatprep.subr.bf16.mxu0 0
      %1661 = vmatpush2.bf16.msra.mxu0 0
      %1662 = vmatprep.subr.bf16.mxu0 0
      %1663 = vmatpush2.bf16.msra.mxu0 0
      %1664 = vmatprep.subr.bf16.mxu0 0
      %1665 = vmatpush2.bf16.msra.mxu0 0
      %1666 = vmatprep.mubr.bf16.mxu0 0
      %1667 = vmatmul.mubr.bf16.gmra.mxu0 %v1012
      %v1668 = vpop.f32.mrf.mxu0
      %v1669 = vadd.f32 0.0, %v1668
      %v1670 = vpop.f32.mrf.mxu0
      %v1671 = vpop.f32.mrf.mxu0
      %v1672 = vadd.f32 0.0, %v1671
      %v1673 = vpop.f32.mrf.mxu0
      %1674 = vmatprep.mubr.bf16.mxu0 0
      %1675 = vmatmul.mubr.bf16.gmra.mxu0 %v1014
      %v1676 = vpop.f32.mrf.mxu0
      %v1677 = vadd.f32 0.0, %v1676
      %v1678 = vpop.f32.mrf.mxu0
      %v1679 = vpop.f32.mrf.mxu0
      %v1680 = vadd.f32 0.0, %v1679
      %v1681 = vpop.f32.mrf.mxu0
      %1682 = vmatprep.mubr.bf16.mxu0 0
      %1683 = vmatmul.mubr.bf16.gmra.mxu0 %v1016
      %v1684 = vpop.f32.mrf.mxu0
      %v1685 = vadd.f32 0.0, %v1684
      %v1686 = vpop.f32.mrf.mxu0
      %v1687 = vpop.f32.mrf.mxu0
      %v1688 = vadd.f32 0.0, %v1687
      %v1689 = vpop.f32.mrf.mxu0
      %1690 = vmatprep.mubr.bf16.mxu0 0
      %1691 = vmatmul.mubr.bf16.gmra.mxu0 %v1018
      %v1692 = vpop.f32.mrf.mxu0
      %v1693 = vadd.f32 0.0, %v1692
      %v1694 = vpop.f32.mrf.mxu0
      %v1695 = vpop.f32.mrf.mxu0
      %v1696 = vadd.f32 0.0, %v1695
      %v1697 = vpop.f32.mrf.mxu0
      %1698 = vmatprep.mubr.bf16.mxu0 0
      %1699 = vmatmul.mubr.bf16.gmra.mxu0 %v1020
      %v1700 = vpop.f32.mrf.mxu0
      %v1701 = vadd.f32 0.0, %v1700
      %v1702 = vpop.f32.mrf.mxu0
      %v1703 = vpop.f32.mrf.mxu0
      %v1704 = vadd.f32 0.0, %v1703
      %v1705 = vpop.f32.mrf.mxu0
      %1706 = vmatprep.mubr.bf16.mxu0 0
      %1707 = vmatmul.mubr.bf16.gmra.mxu0 %v1022
      %v1708 = vpop.f32.mrf.mxu0
      %v1709 = vadd.f32 0.0, %v1708
      %v1710 = vpop.f32.mrf.mxu0
      %v1711 = vpop.f32.mrf.mxu0
      %v1712 = vadd.f32 0.0, %v1711
      %v1713 = vpop.f32.mrf.mxu0
      %1714 = vmatprep.mubr.bf16.mxu0 0
      %1715 = vmatmul.mubr.bf16.gmra.mxu0 %v1024
      %v1716 = vpop.f32.mrf.mxu0
      %v1717 = vadd.f32 0.0, %v1716
      %v1718 = vpop.f32.mrf.mxu0
      %v1719 = vpop.f32.mrf.mxu0
      %v1720 = vadd.f32 0.0, %v1719
      %v1721 = vpop.f32.mrf.mxu0
      %1722 = vmatprep.mubr.bf16.mxu0 0
      %1723 = vmatmul.mubr.bf16.gmra.mxu0 %v1629
      %v1724 = vpop.f32.mrf.mxu0
      %v1725 = vadd.f32 0.0, %v1724
      %v1726 = vpop.f32.mrf.mxu0
      %v1727 = vpop.f32.mrf.mxu0
      %v1728 = vadd.f32 0.0, %v1727
      %v1729 = vpop.f32.mrf.mxu0
      %1730 = vdwg.mxu0
      %v1731 = vadd.f32 %v1481, %v1669
      %v1732 = vadd.f32 %v1482, %v1672
      %v1733 = vadd.f32 %v1483, %v1677
      %v1734 = vadd.f32 %v1484, %v1680
      %v1735 = vadd.f32 %v1485, %v1685
      %v1736 = vadd.f32 %v1486, %v1688
      %v1737 = vadd.f32 %v1487, %v1693
      %v1738 = vadd.f32 %v1488, %v1696
      %v1739 = vadd.f32 %v1489, %v1701
      %v1740 = vadd.f32 %v1490, %v1704
      %v1741 = vadd.f32 %v1491, %v1709
      %v1742 = vadd.f32 %v1492, %v1712
      %v1743 = vadd.f32 %v1493, %v1717
      %v1744 = vadd.f32 %v1494, %v1720
      %v1745 = vadd.f32 %v1495, %v1725
      %v1746 = vadd.f32 %v1496, %v1728
      %v1748 = vshrl.u32 %v364, 16
      %v1750 = vrot.slane %v1748, 4
      %v1751 = vshll.u32 %v364, 16
      %v1753 = vrot.slane %v1751, 5
      %v1754 = vor.u32 %v1750, %v1753
      %v1755 = vrot.slane %v1754, 4
      %v1757 = vshll.u32 %v365, 16
      %v1759 = vrot.slane %v1757, 5
      %v1760 = vsel %vm375, %v1755, %v1759
      %v1761 = vshrl.u32 %v365, 16
      %v1763 = vrot.slane %v1761, 4
      %v1764 = vor.u32 %v1763, %v1759
      %v1765 = vrot.slane %v1764, 4
      %v1767 = vshll.u32 %v366, 16
      %v1769 = vrot.slane %v1767, 5
      %v1770 = vsel %vm375, %v1765, %v1769
      %s1771 = scalar_lea.vmem %s1, 32
      %v1772 = vld [vmem:[%s1771] sm:$0xf]
      %v1773 = vld [vmem:[%s1771 + $0x4] sm:$0xf]
      %v1774 = vunpack.c.l.b16 %v1760
      %v1775 = vunpack.c.l.b16 %v1770
      %v1776 = vpack.c.b16 %v1775, %v1774
      %v1779 = vunpack.c.l.b16 %v1772
      %v1780 = vunpack.c.l.b16 %v1773
      %v1781 = vpack.c.b16 %v1780, %v1779
      %v1784 = vsel %vm601, %v1776, 0
      %1786 = vmatprep.subr.bf16.mxu0 0
      %1787 = vmatpush1.bf16.msra.mxu0 0
      %1788 = vmatprep.subr.bf16.mxu0 0
      %1789 = vmatpush1.bf16.msra.mxu0 0
      %1790 = vmatprep.subr.bf16.mxu0 0
      %1791 = vmatpush1.bf16.msra.mxu0 0
      %1792 = vmatprep.subr.bf16.mxu0 0
      %1793 = vmatpush1.bf16.msra.mxu0 0
      %1794 = vmatprep.subr.bf16.mxu0 0
      %1795 = vmatpush1.bf16.msra.mxu0 0
      %1796 = vmatprep.subr.bf16.mxu0 0
      %1797 = vmatpush1.bf16.msra.mxu0 0
      %1798 = vmatprep.subr.bf16.mxu0 0
      %1799 = vmatpush1.bf16.msra.mxu0 0
      %1800 = vmatprep.subr.bf16.mxu0 0
      %1801 = vmatpush1.bf16.msra.mxu0 %v1781
      %1802 = vmatprep.subr.bf16.mxu0 0
      %1803 = vmatpush2.bf16.msra.mxu0 0
      %1804 = vmatprep.subr.bf16.mxu0 0
      %1805 = vmatpush2.bf16.msra.mxu0 0
      %1806 = vmatprep.subr.bf16.mxu0 0
      %1807 = vmatpush2.bf16.msra.mxu0 0
      %1808 = vmatprep.subr.bf16.mxu0 0
      %1809 = vmatpush2.bf16.msra.mxu0 0
      %1810 = vmatprep.subr.bf16.mxu0 0
      %1811 = vmatpush2.bf16.msra.mxu0 0
      %1812 = vmatprep.subr.bf16.mxu0 0
      %1813 = vmatpush2.bf16.msra.mxu0 0
      %1814 = vmatprep.subr.bf16.mxu0 0
      %1815 = vmatpush2.bf16.msra.mxu0 0
      %1816 = vmatprep.subr.bf16.mxu0 0
      %1817 = vmatpush2.bf16.msra.mxu0 0
      %1818 = vmatprep.mubr.bf16.mxu0 0
      %1819 = vmatmul.mubr.bf16.gmra.mxu0 %v606
      %v1820 = vpop.f32.mrf.mxu0
      %v1821 = vadd.f32 0.0, %v1820
      %v1822 = vpop.f32.mrf.mxu0
      %v1823 = vpop.f32.mrf.mxu0
      %v1824 = vadd.f32 0.0, %v1823
      %v1825 = vpop.f32.mrf.mxu0
      %1826 = vmatprep.mubr.bf16.mxu0 0
      %1827 = vmatmul.mubr.bf16.gmra.mxu0 %v609
      %v1828 = vpop.f32.mrf.mxu0
      %v1829 = vadd.f32 0.0, %v1828
      %v1830 = vpop.f32.mrf.mxu0
      %v1831 = vpop.f32.mrf.mxu0
      %v1832 = vadd.f32 0.0, %v1831
      %v1833 = vpop.f32.mrf.mxu0
      %1834 = vmatprep.mubr.bf16.mxu0 0
      %1835 = vmatmul.mubr.bf16.gmra.mxu0 %v612
      %v1836 = vpop.f32.mrf.mxu0
      %v1837 = vadd.f32 0.0, %v1836
      %v1838 = vpop.f32.mrf.mxu0
      %v1839 = vpop.f32.mrf.mxu0
      %v1840 = vadd.f32 0.0, %v1839
      %v1841 = vpop.f32.mrf.mxu0
      %1842 = vmatprep.mubr.bf16.mxu0 0
      %1843 = vmatmul.mubr.bf16.gmra.mxu0 %v615
      %v1844 = vpop.f32.mrf.mxu0
      %v1845 = vadd.f32 0.0, %v1844
      %v1846 = vpop.f32.mrf.mxu0
      %v1847 = vpop.f32.mrf.mxu0
      %v1848 = vadd.f32 0.0, %v1847
      %v1849 = vpop.f32.mrf.mxu0
      %1850 = vmatprep.mubr.bf16.mxu0 0
      %1851 = vmatmul.mubr.bf16.gmra.mxu0 %v618
      %v1852 = vpop.f32.mrf.mxu0
      %v1853 = vadd.f32 0.0, %v1852
      %v1854 = vpop.f32.mrf.mxu0
      %v1855 = vpop.f32.mrf.mxu0
      %v1856 = vadd.f32 0.0, %v1855
      %v1857 = vpop.f32.mrf.mxu0
      %1858 = vmatprep.mubr.bf16.mxu0 0
      %1859 = vmatmul.mubr.bf16.gmra.mxu0 %v621
      %v1860 = vpop.f32.mrf.mxu0
      %v1861 = vadd.f32 0.0, %v1860
      %v1862 = vpop.f32.mrf.mxu0
      %v1863 = vpop.f32.mrf.mxu0
      %v1864 = vadd.f32 0.0, %v1863
      %v1865 = vpop.f32.mrf.mxu0
      %1866 = vmatprep.mubr.bf16.mxu0 0
      %1867 = vmatmul.mubr.bf16.gmra.mxu0 %v624
      %v1868 = vpop.f32.mrf.mxu0
      %v1869 = vadd.f32 0.0, %v1868
      %v1870 = vpop.f32.mrf.mxu0
      %v1871 = vpop.f32.mrf.mxu0
      %v1872 = vadd.f32 0.0, %v1871
      %v1873 = vpop.f32.mrf.mxu0
      %1874 = vmatprep.mubr.bf16.mxu0 0
      %1875 = vmatmul.mubr.bf16.gmra.mxu0 %v1784
      %v1876 = vpop.f32.mrf.mxu0
      %v1877 = vadd.f32 0.0, %v1876
      %v1878 = vpop.f32.mrf.mxu0
      %v1879 = vpop.f32.mrf.mxu0
      %v1880 = vadd.f32 0.0, %v1879
      %v1881 = vpop.f32.mrf.mxu0
      %1882 = vdwg.mxu0
      %v1883 = vadd.f32 %v1611, %v1821
      %v1884 = vadd.f32 %v1612, %v1824
      %v1885 = vadd.f32 %v1613, %v1829
      %v1886 = vadd.f32 %v1614, %v1832
      %v1887 = vadd.f32 %v1615, %v1837
      %v1888 = vadd.f32 %v1616, %v1840
      %v1889 = vadd.f32 %v1617, %v1845
      %v1890 = vadd.f32 %v1618, %v1848
      %v1891 = vadd.f32 %v1619, %v1853
      %v1892 = vadd.f32 %v1620, %v1856
      %v1893 = vadd.f32 %v1621, %v1861
      %v1894 = vadd.f32 %v1622, %v1864
      %v1895 = vadd.f32 %v1623, %v1869
      %v1896 = vadd.f32 %v1624, %v1872
      %v1897 = vadd.f32 %v1625, %v1877
      %v1898 = vadd.f32 %v1626, %v1880
      %s1899 = scalar_lea.vmem %s2, 8
      %v1900 = vld [vmem:[%s1899] sm:$0x3]
      %v1901 = vsel %vm892, %v1776, 0
      %v1904 = vsel %vm909, %v1900, 0
      %1906 = vmatprep.subr.bf16.mxu0 0
      %1907 = vmatpush1.bf16.msra.mxu0 0
      %1908 = vmatprep.subr.bf16.mxu0 0
      %1909 = vmatpush1.bf16.msra.mxu0 0
      %1910 = vmatprep.subr.bf16.mxu0 0
      %1911 = vmatpush1.bf16.msra.mxu0 0
      %1912 = vmatprep.subr.bf16.mxu0 0
      %1913 = vmatpush1.bf16.msra.mxu0 0
      %1914 = vmatprep.subr.bf16.mxu0 0
      %1915 = vmatpush1.bf16.msra.mxu0 0
      %1916 = vmatprep.subr.bf16.mxu0 0
      %1917 = vmatpush1.bf16.msra.mxu0 0
      %1918 = vmatprep.subr.bf16.mxu0 0
      %1919 = vmatpush1.bf16.msra.mxu0 0
      %1920 = vmatprep.subr.bf16.mxu0 0
      %1921 = vmatpush1.bf16.msra.mxu0 %v1904
      %1922 = vmatprep.subr.bf16.mxu0 0
      %1923 = vmatpush2.bf16.msra.mxu0 0
      %1924 = vmatprep.subr.bf16.mxu0 0
      %1925 = vmatpush2.bf16.msra.mxu0 0
      %1926 = vmatprep.subr.bf16.mxu0 0
      %1927 = vmatpush2.bf16.msra.mxu0 0
      %1928 = vmatprep.subr.bf16.mxu0 0
      %1929 = vmatpush2.bf16.msra.mxu0 0
      %1930 = vmatprep.subr.bf16.mxu0 0
      %1931 = vmatpush2.bf16.msra.mxu0 0
      %1932 = vmatprep.subr.bf16.mxu0 0
      %1933 = vmatpush2.bf16.msra.mxu0 0
      %1934 = vmatprep.subr.bf16.mxu0 0
      %1935 = vmatpush2.bf16.msra.mxu0 0
      %1936 = vmatprep.subr.bf16.mxu0 0
      %1937 = vmatpush2.bf16.msra.mxu0 0
      %1938 = vmatprep.mubr.bf16.mxu0 0
      %1939 = vmatmul.mubr.bf16.gmra.mxu0 %v895
      %v1940 = vpop.f32.mrf.mxu0
      %v1941 = vadd.f32 0.0, %v1940
      %v1942 = vpop.f32.mrf.mxu0
      %v1943 = vpop.f32.mrf.mxu0
      %v1944 = vadd.f32 0.0, %v1943
      %v1945 = vpop.f32.mrf.mxu0
      %1946 = vmatprep.mubr.bf16.mxu0 0
      %1947 = vmatmul.mubr.bf16.gmra.mxu0 %v897
      %v1948 = vpop.f32.mrf.mxu0
      %v1949 = vadd.f32 0.0, %v1948
      %v1950 = vpop.f32.mrf.mxu0
      %v1951 = vpop.f32.mrf.mxu0
      %v1952 = vadd.f32 0.0, %v1951
      %v1953 = vpop.f32.mrf.mxu0
      %1954 = vmatprep.mubr.bf16.mxu0 0
      %1955 = vmatmul.mubr.bf16.gmra.mxu0 %v899
      %v1956 = vpop.f32.mrf.mxu0
      %v1957 = vadd.f32 0.0, %v1956
      %v1958 = vpop.f32.mrf.mxu0
      %v1959 = vpop.f32.mrf.mxu0
      %v1960 = vadd.f32 0.0, %v1959
      %v1961 = vpop.f32.mrf.mxu0
      %1962 = vmatprep.mubr.bf16.mxu0 0
      %1963 = vmatmul.mubr.bf16.gmra.mxu0 %v901
      %v1964 = vpop.f32.mrf.mxu0
      %v1965 = vadd.f32 0.0, %v1964
      %v1966 = vpop.f32.mrf.mxu0
      %v1967 = vpop.f32.mrf.mxu0
      %v1968 = vadd.f32 0.0, %v1967
      %v1969 = vpop.f32.mrf.mxu0
      %1970 = vmatprep.mubr.bf16.mxu0 0
      %1971 = vmatmul.mubr.bf16.gmra.mxu0 %v903
      %v1972 = vpop.f32.mrf.mxu0
      %v1973 = vadd.f32 0.0, %v1972
      %v1974 = vpop.f32.mrf.mxu0
      %v1975 = vpop.f32.mrf.mxu0
      %v1976 = vadd.f32 0.0, %v1975
      %v1977 = vpop.f32.mrf.mxu0
      %1978 = vmatprep.mubr.bf16.mxu0 0
      %1979 = vmatmul.mubr.bf16.gmra.mxu0 %v905
      %v1980 = vpop.f32.mrf.mxu0
      %v1981 = vadd.f32 0.0, %v1980
      %v1982 = vpop.f32.mrf.mxu0
      %v1983 = vpop.f32.mrf.mxu0
      %v1984 = vadd.f32 0.0, %v1983
      %v1985 = vpop.f32.mrf.mxu0
      %1986 = vmatprep.mubr.bf16.mxu0 0
      %1987 = vmatmul.mubr.bf16.gmra.mxu0 %v907
      %v1988 = vpop.f32.mrf.mxu0
      %v1989 = vadd.f32 0.0, %v1988
      %v1990 = vpop.f32.mrf.mxu0
      %v1991 = vpop.f32.mrf.mxu0
      %v1992 = vadd.f32 0.0, %v1991
      %v1993 = vpop.f32.mrf.mxu0
      %1994 = vmatprep.mubr.bf16.mxu0 0
      %1995 = vmatmul.mubr.bf16.gmra.mxu0 %v1901
      %v1996 = vpop.f32.mrf.mxu0
      %v1997 = vadd.f32 0.0, %v1996
      %v1998 = vpop.f32.mrf.mxu0
      %v1999 = vpop.f32.mrf.mxu0
      %v2000 = vadd.f32 0.0, %v1999
      %v2001 = vpop.f32.mrf.mxu0
      %2002 = vdwg.mxu0
      %v2003 = vadd.f32 %v1731, %v1941
      %v2004 = vadd.f32 %v1732, %v1944
      %v2005 = vadd.f32 %v1733, %v1949
      %v2006 = vadd.f32 %v1734, %v1952
      %v2007 = vadd.f32 %v1735, %v1957
      %v2008 = vadd.f32 %v1736, %v1960
      %v2009 = vadd.f32 %v1737, %v1965
      %v2010 = vadd.f32 %v1738, %v1968
      %v2011 = vadd.f32 %v1739, %v1973
      %v2012 = vadd.f32 %v1740, %v1976
      %v2013 = vadd.f32 %v1741, %v1981
      %v2014 = vadd.f32 %v1742, %v1984
      %v2015 = vadd.f32 %v1743, %v1989
      %v2016 = vadd.f32 %v1744, %v1992
      %v2017 = vadd.f32 %v1745, %v1997
      %v2018 = vadd.f32 %v1746, %v2000
      %v2020 = vrot.slane %v364, 5
      %v2021 = vrot.slane %v2020, 4
      %v2022 = vrot.slane %v365, 5
      %v2023 = vsel %vm1136, %v2021, %v2022
      %v2024 = vrot.slane %v2022, 4
      %v2025 = vrot.slane %v366, 5
      %v2026 = vsel %vm1136, %v2024, %v2025
      %s2027 = scalar_lea.vmem %s1, 40
      %v2028 = vld [vmem:[%s2027] sm:$0xf]
      %v2029 = vld [vmem:[%s2027 + $0x4] sm:$0xf]
      %v2030 = vunpack.c.l.b16 %v2023
      %v2031 = vunpack.c.l.b16 %v2026
      %v2032 = vpack.c.b16 %v2031, %v2030
      %v2035 = vunpack.c.l.b16 %v2028
      %v2036 = vunpack.c.l.b16 %v2029
      %v2037 = vpack.c.b16 %v2036, %v2035
      %v2040 = vsel %vm601, %v2032, 0
      %2042 = vmatprep.subr.bf16.mxu0 0
      %2043 = vmatpush1.bf16.msra.mxu0 0
      %2044 = vmatprep.subr.bf16.mxu0 0
      %2045 = vmatpush1.bf16.msra.mxu0 0
      %2046 = vmatprep.subr.bf16.mxu0 0
      %2047 = vmatpush1.bf16.msra.mxu0 0
      %2048 = vmatprep.subr.bf16.mxu0 0
      %2049 = vmatpush1.bf16.msra.mxu0 0
      %2050 = vmatprep.subr.bf16.mxu0 0
      %2051 = vmatpush1.bf16.msra.mxu0 0
      %2052 = vmatprep.subr.bf16.mxu0 0
      %2053 = vmatpush1.bf16.msra.mxu0 0
      %2054 = vmatprep.subr.bf16.mxu0 0
      %2055 = vmatpush1.bf16.msra.mxu0 0
      %2056 = vmatprep.subr.bf16.mxu0 0
      %2057 = vmatpush1.bf16.msra.mxu0 %v2037
      %2058 = vmatprep.subr.bf16.mxu0 0
      %2059 = vmatpush2.bf16.msra.mxu0 0
      %2060 = vmatprep.subr.bf16.mxu0 0
      %2061 = vmatpush2.bf16.msra.mxu0 0
      %2062 = vmatprep.subr.bf16.mxu0 0
      %2063 = vmatpush2.bf16.msra.mxu0 0
      %2064 = vmatprep.subr.bf16.mxu0 0
      %2065 = vmatpush2.bf16.msra.mxu0 0
      %2066 = vmatprep.subr.bf16.mxu0 0
      %2067 = vmatpush2.bf16.msra.mxu0 0
      %2068 = vmatprep.subr.bf16.mxu0 0
      %2069 = vmatpush2.bf16.msra.mxu0 0
      %2070 = vmatprep.subr.bf16.mxu0 0
      %2071 = vmatpush2.bf16.msra.mxu0 0
      %2072 = vmatprep.subr.bf16.mxu0 0
      %2073 = vmatpush2.bf16.msra.mxu0 0
      %2074 = vmatprep.mubr.bf16.mxu0 0
      %2075 = vmatmul.mubr.bf16.gmra.mxu0 %v1230
      %v2076 = vpop.f32.mrf.mxu0
      %v2077 = vadd.f32 0.0, %v2076
      %v2078 = vpop.f32.mrf.mxu0
      %v2079 = vpop.f32.mrf.mxu0
      %v2080 = vadd.f32 0.0, %v2079
      %v2081 = vpop.f32.mrf.mxu0
      %2082 = vmatprep.mubr.bf16.mxu0 0
      %2083 = vmatmul.mubr.bf16.gmra.mxu0 %v1233
      %v2084 = vpop.f32.mrf.mxu0
      %v2085 = vadd.f32 0.0, %v2084
      %v2086 = vpop.f32.mrf.mxu0
      %v2087 = vpop.f32.mrf.mxu0
      %v2088 = vadd.f32 0.0, %v2087
      %v2089 = vpop.f32.mrf.mxu0
      %2090 = vmatprep.mubr.bf16.mxu0 0
      %2091 = vmatmul.mubr.bf16.gmra.mxu0 %v1236
      %v2092 = vpop.f32.mrf.mxu0
      %v2093 = vadd.f32 0.0, %v2092
      %v2094 = vpop.f32.mrf.mxu0
      %v2095 = vpop.f32.mrf.mxu0
      %v2096 = vadd.f32 0.0, %v2095
      %v2097 = vpop.f32.mrf.mxu0
      %2098 = vmatprep.mubr.bf16.mxu0 0
      %2099 = vmatmul.mubr.bf16.gmra.mxu0 %v1239
      %v2100 = vpop.f32.mrf.mxu0
      %v2101 = vadd.f32 0.0, %v2100
      %v2102 = vpop.f32.mrf.mxu0
      %v2103 = vpop.f32.mrf.mxu0
      %v2104 = vadd.f32 0.0, %v2103
      %v2105 = vpop.f32.mrf.mxu0
      %2106 = vmatprep.mubr.bf16.mxu0 0
      %2107 = vmatmul.mubr.bf16.gmra.mxu0 %v1242
      %v2108 = vpop.f32.mrf.mxu0
      %v2109 = vadd.f32 0.0, %v2108
      %v2110 = vpop.f32.mrf.mxu0
      %v2111 = vpop.f32.mrf.mxu0
      %v2112 = vadd.f32 0.0, %v2111
      %v2113 = vpop.f32.mrf.mxu0
      %2114 = vmatprep.mubr.bf16.mxu0 0
      %2115 = vmatmul.mubr.bf16.gmra.mxu0 %v1245
      %v2116 = vpop.f32.mrf.mxu0
      %v2117 = vadd.f32 0.0, %v2116
      %v2118 = vpop.f32.mrf.mxu0
      %v2119 = vpop.f32.mrf.mxu0
      %v2120 = vadd.f32 0.0, %v2119
      %v2121 = vpop.f32.mrf.mxu0
      %2122 = vmatprep.mubr.bf16.mxu0 0
      %2123 = vmatmul.mubr.bf16.gmra.mxu0 %v1248
      %v2124 = vpop.f32.mrf.mxu0
      %v2125 = vadd.f32 0.0, %v2124
      %v2126 = vpop.f32.mrf.mxu0
      %v2127 = vpop.f32.mrf.mxu0
      %v2128 = vadd.f32 0.0, %v2127
      %v2129 = vpop.f32.mrf.mxu0
      %2130 = vmatprep.mubr.bf16.mxu0 0
      %2131 = vmatmul.mubr.bf16.gmra.mxu0 %v2040
      %v2132 = vpop.f32.mrf.mxu0
      %v2133 = vadd.f32 0.0, %v2132
      %v2134 = vpop.f32.mrf.mxu0
      %v2135 = vpop.f32.mrf.mxu0
      %v2136 = vadd.f32 0.0, %v2135
      %v2137 = vpop.f32.mrf.mxu0
      %2138 = vdwg.mxu0
      %v2139 = vadd.f32 %v1883, %v2077
      %v2140 = vadd.f32 %v1884, %v2080
      %v2141 = vadd.f32 %v1885, %v2085
      %v2142 = vadd.f32 %v1886, %v2088
      %v2143 = vadd.f32 %v1887, %v2093
      %v2144 = vadd.f32 %v1888, %v2096
      %v2145 = vadd.f32 %v1889, %v2101
      %v2146 = vadd.f32 %v1890, %v2104
      %v2147 = vadd.f32 %v1891, %v2109
      %v2148 = vadd.f32 %v1892, %v2112
      %v2149 = vadd.f32 %v1893, %v2117
      %v2150 = vadd.f32 %v1894, %v2120
      %v2151 = vadd.f32 %v1895, %v2125
      %v2152 = vadd.f32 %v1896, %v2128
      %v2153 = vadd.f32 %v1897, %v2133
      %v2154 = vadd.f32 %v1898, %v2136
      %s2155 = scalar_lea.vmem %s2, 10
      %v2156 = vld [vmem:[%s2155] sm:$0x3]
      %v2157 = vsel %vm892, %v2032, 0
      %v2160 = vsel %vm909, %v2156, 0
      %2162 = vmatprep.subr.bf16.mxu0 0
      %2163 = vmatpush1.bf16.msra.mxu0 0
      %2164 = vmatprep.subr.bf16.mxu0 0
      %2165 = vmatpush1.bf16.msra.mxu0 0
      %2166 = vmatprep.subr.bf16.mxu0 0
      %2167 = vmatpush1.bf16.msra.mxu0 0
      %2168 = vmatprep.subr.bf16.mxu0 0
      %2169 = vmatpush1.bf16.msra.mxu0 0
      %2170 = vmatprep.subr.bf16.mxu0 0
      %2171 = vmatpush1.bf16.msra.mxu0 0
      %2172 = vmatprep.subr.bf16.mxu0 0
      %2173 = vmatpush1.bf16.msra.mxu0 0
      %2174 = vmatprep.subr.bf16.mxu0 0
      %2175 = vmatpush1.bf16.msra.mxu0 0
      %2176 = vmatprep.subr.bf16.mxu0 0
      %2177 = vmatpush1.bf16.msra.mxu0 %v2160
      %2178 = vmatprep.subr.bf16.mxu0 0
      %2179 = vmatpush2.bf16.msra.mxu0 0
      %2180 = vmatprep.subr.bf16.mxu0 0
      %2181 = vmatpush2.bf16.msra.mxu0 0
      %2182 = vmatprep.subr.bf16.mxu0 0
      %2183 = vmatpush2.bf16.msra.mxu0 0
      %2184 = vmatprep.subr.bf16.mxu0 0
      %2185 = vmatpush2.bf16.msra.mxu0 0
      %2186 = vmatprep.subr.bf16.mxu0 0
      %2187 = vmatpush2.bf16.msra.mxu0 0
      %2188 = vmatprep.subr.bf16.mxu0 0
      %2189 = vmatpush2.bf16.msra.mxu0 0
      %2190 = vmatprep.subr.bf16.mxu0 0
      %2191 = vmatpush2.bf16.msra.mxu0 0
      %2192 = vmatprep.subr.bf16.mxu0 0
      %2193 = vmatpush2.bf16.msra.mxu0 0
      %2194 = vmatprep.mubr.bf16.mxu0 0
      %2195 = vmatmul.mubr.bf16.gmra.mxu0 %v1367
      %v2196 = vpop.f32.mrf.mxu0
      %v2197 = vadd.f32 0.0, %v2196
      %v2198 = vpop.f32.mrf.mxu0
      %v2199 = vpop.f32.mrf.mxu0
      %v2200 = vadd.f32 0.0, %v2199
      %v2201 = vpop.f32.mrf.mxu0
      %2202 = vmatprep.mubr.bf16.mxu0 0
      %2203 = vmatmul.mubr.bf16.gmra.mxu0 %v1369
      %v2204 = vpop.f32.mrf.mxu0
      %v2205 = vadd.f32 0.0, %v2204
      %v2206 = vpop.f32.mrf.mxu0
      %v2207 = vpop.f32.mrf.mxu0
      %v2208 = vadd.f32 0.0, %v2207
      %v2209 = vpop.f32.mrf.mxu0
      %2210 = vmatprep.mubr.bf16.mxu0 0
      %2211 = vmatmul.mubr.bf16.gmra.mxu0 %v1371
      %v2212 = vpop.f32.mrf.mxu0
      %v2213 = vadd.f32 0.0, %v2212
      %v2214 = vpop.f32.mrf.mxu0
      %v2215 = vpop.f32.mrf.mxu0
      %v2216 = vadd.f32 0.0, %v2215
      %v2217 = vpop.f32.mrf.mxu0
      %2218 = vmatprep.mubr.bf16.mxu0 0
      %2219 = vmatmul.mubr.bf16.gmra.mxu0 %v1373
      %v2220 = vpop.f32.mrf.mxu0
      %v2221 = vadd.f32 0.0, %v2220
      %v2222 = vpop.f32.mrf.mxu0
      %v2223 = vpop.f32.mrf.mxu0
      %v2224 = vadd.f32 0.0, %v2223
      %v2225 = vpop.f32.mrf.mxu0
      %2226 = vmatprep.mubr.bf16.mxu0 0
      %2227 = vmatmul.mubr.bf16.gmra.mxu0 %v1375
      %v2228 = vpop.f32.mrf.mxu0
      %v2229 = vadd.f32 0.0, %v2228
      %v2230 = vpop.f32.mrf.mxu0
      %v2231 = vpop.f32.mrf.mxu0
      %v2232 = vadd.f32 0.0, %v2231
      %v2233 = vpop.f32.mrf.mxu0
      %2234 = vmatprep.mubr.bf16.mxu0 0
      %2235 = vmatmul.mubr.bf16.gmra.mxu0 %v1377
      %v2236 = vpop.f32.mrf.mxu0
      %v2237 = vadd.f32 0.0, %v2236
      %v2238 = vpop.f32.mrf.mxu0
      %v2239 = vpop.f32.mrf.mxu0
      %v2240 = vadd.f32 0.0, %v2239
      %v2241 = vpop.f32.mrf.mxu0
      %2242 = vmatprep.mubr.bf16.mxu0 0
      %2243 = vmatmul.mubr.bf16.gmra.mxu0 %v1379
      %v2244 = vpop.f32.mrf.mxu0
      %v2245 = vadd.f32 0.0, %v2244
      %v2246 = vpop.f32.mrf.mxu0
      %v2247 = vpop.f32.mrf.mxu0
      %v2248 = vadd.f32 0.0, %v2247
      %v2249 = vpop.f32.mrf.mxu0
      %2250 = vmatprep.mubr.bf16.mxu0 0
      %2251 = vmatmul.mubr.bf16.gmra.mxu0 %v2157
      %v2252 = vpop.f32.mrf.mxu0
      %v2253 = vadd.f32 0.0, %v2252
      %v2254 = vpop.f32.mrf.mxu0
      %v2255 = vpop.f32.mrf.mxu0
      %v2256 = vadd.f32 0.0, %v2255
      %v2257 = vpop.f32.mrf.mxu0
      %2258 = vdwg.mxu0
      %v2259 = vadd.f32 %v2003, %v2197
      %v2260 = vadd.f32 %v2004, %v2200
      %v2261 = vadd.f32 %v2005, %v2205
      %v2262 = vadd.f32 %v2006, %v2208
      %v2263 = vadd.f32 %v2007, %v2213
      %v2264 = vadd.f32 %v2008, %v2216
      %v2265 = vadd.f32 %v2009, %v2221
      %v2266 = vadd.f32 %v2010, %v2224
      %v2267 = vadd.f32 %v2011, %v2229
      %v2268 = vadd.f32 %v2012, %v2232
      %v2269 = vadd.f32 %v2013, %v2237
      %v2270 = vadd.f32 %v2014, %v2240
      %v2271 = vadd.f32 %v2015, %v2245
      %v2272 = vadd.f32 %v2016, %v2248
      %v2273 = vadd.f32 %v2017, %v2253
      %v2274 = vadd.f32 %v2018, %v2256
      %s2275 = scalar_lea.vmem %s1, 48
      %v2276 = vld [vmem:[%s2275] sm:$0xf]
      %v2277 = vld [vmem:[%s2275 + $0x4] sm:$0xf]
      %v2280 = vunpack.c.l.b16 %v367
      %v2281 = vunpack.c.l.b16 %v368
      %v2282 = vpack.c.b16 %v2281, %v2280
      %v2285 = vunpack.c.l.b16 %v2276
      %v2286 = vunpack.c.l.b16 %v2277
      %v2287 = vpack.c.b16 %v2286, %v2285
      %v2290 = vsel %vm601, %v2282, 0
      %2292 = vmatprep.subr.bf16.mxu0 0
      %2293 = vmatpush1.bf16.msra.mxu0 0
      %2294 = vmatprep.subr.bf16.mxu0 0
      %2295 = vmatpush1.bf16.msra.mxu0 0
      %2296 = vmatprep.subr.bf16.mxu0 0
      %2297 = vmatpush1.bf16.msra.mxu0 0
      %2298 = vmatprep.subr.bf16.mxu0 0
      %2299 = vmatpush1.bf16.msra.mxu0 0
      %2300 = vmatprep.subr.bf16.mxu0 0
      %2301 = vmatpush1.bf16.msra.mxu0 0
      %2302 = vmatprep.subr.bf16.mxu0 0
      %2303 = vmatpush1.bf16.msra.mxu0 0
      %2304 = vmatprep.subr.bf16.mxu0 0
      %2305 = vmatpush1.bf16.msra.mxu0 0
      %2306 = vmatprep.subr.bf16.mxu0 0
      %2307 = vmatpush1.bf16.msra.mxu0 %v2287
      %2308 = vmatprep.subr.bf16.mxu0 0
      %2309 = vmatpush2.bf16.msra.mxu0 0
      %2310 = vmatprep.subr.bf16.mxu0 0
      %2311 = vmatpush2.bf16.msra.mxu0 0
      %2312 = vmatprep.subr.bf16.mxu0 0
      %2313 = vmatpush2.bf16.msra.mxu0 0
      %2314 = vmatprep.subr.bf16.mxu0 0
      %2315 = vmatpush2.bf16.msra.mxu0 0
      %2316 = vmatprep.subr.bf16.mxu0 0
      %2317 = vmatpush2.bf16.msra.mxu0 0
      %2318 = vmatprep.subr.bf16.mxu0 0
      %2319 = vmatpush2.bf16.msra.mxu0 0
      %2320 = vmatprep.subr.bf16.mxu0 0
      %2321 = vmatpush2.bf16.msra.mxu0 0
      %2322 = vmatprep.subr.bf16.mxu0 0
      %2323 = vmatpush2.bf16.msra.mxu0 0
      %2324 = vmatprep.mubr.bf16.mxu0 0
      %2325 = vmatmul.mubr.bf16.gmra.mxu0 %v776
      %v2326 = vpop.f32.mrf.mxu0
      %v2327 = vadd.f32 0.0, %v2326
      %v2328 = vpop.f32.mrf.mxu0
      %v2329 = vpop.f32.mrf.mxu0
      %v2330 = vadd.f32 0.0, %v2329
      %v2331 = vpop.f32.mrf.mxu0
      %2332 = vmatprep.mubr.bf16.mxu0 0
      %2333 = vmatmul.mubr.bf16.gmra.mxu0 %v779
      %v2334 = vpop.f32.mrf.mxu0
      %v2335 = vadd.f32 0.0, %v2334
      %v2336 = vpop.f32.mrf.mxu0
      %v2337 = vpop.f32.mrf.mxu0
      %v2338 = vadd.f32 0.0, %v2337
      %v2339 = vpop.f32.mrf.mxu0
      %2340 = vmatprep.mubr.bf16.mxu0 0
      %2341 = vmatmul.mubr.bf16.gmra.mxu0 %v782
      %v2342 = vpop.f32.mrf.mxu0
      %v2343 = vadd.f32 0.0, %v2342
      %v2344 = vpop.f32.mrf.mxu0
      %v2345 = vpop.f32.mrf.mxu0
      %v2346 = vadd.f32 0.0, %v2345
      %v2347 = vpop.f32.mrf.mxu0
      %2348 = vmatprep.mubr.bf16.mxu0 0
      %2349 = vmatmul.mubr.bf16.gmra.mxu0 %v785
      %v2350 = vpop.f32.mrf.mxu0
      %v2351 = vadd.f32 0.0, %v2350
      %v2352 = vpop.f32.mrf.mxu0
      %v2353 = vpop.f32.mrf.mxu0
      %v2354 = vadd.f32 0.0, %v2353
      %v2355 = vpop.f32.mrf.mxu0
      %2356 = vmatprep.mubr.bf16.mxu0 0
      %2357 = vmatmul.mubr.bf16.gmra.mxu0 %v788
      %v2358 = vpop.f32.mrf.mxu0
      %v2359 = vadd.f32 0.0, %v2358
      %v2360 = vpop.f32.mrf.mxu0
      %v2361 = vpop.f32.mrf.mxu0
      %v2362 = vadd.f32 0.0, %v2361
      %v2363 = vpop.f32.mrf.mxu0
      %2364 = vmatprep.mubr.bf16.mxu0 0
      %2365 = vmatmul.mubr.bf16.gmra.mxu0 %v791
      %v2366 = vpop.f32.mrf.mxu0
      %v2367 = vadd.f32 0.0, %v2366
      %v2368 = vpop.f32.mrf.mxu0
      %v2369 = vpop.f32.mrf.mxu0
      %v2370 = vadd.f32 0.0, %v2369
      %v2371 = vpop.f32.mrf.mxu0
      %2372 = vmatprep.mubr.bf16.mxu0 0
      %2373 = vmatmul.mubr.bf16.gmra.mxu0 %v1512
      %v2374 = vpop.f32.mrf.mxu0
      %v2375 = vadd.f32 0.0, %v2374
      %v2376 = vpop.f32.mrf.mxu0
      %v2377 = vpop.f32.mrf.mxu0
      %v2378 = vadd.f32 0.0, %v2377
      %v2379 = vpop.f32.mrf.mxu0
      %2380 = vmatprep.mubr.bf16.mxu0 0
      %2381 = vmatmul.mubr.bf16.gmra.mxu0 %v2290
      %v2382 = vpop.f32.mrf.mxu0
      %v2383 = vadd.f32 0.0, %v2382
      %v2384 = vpop.f32.mrf.mxu0
      %v2385 = vpop.f32.mrf.mxu0
      %v2386 = vadd.f32 0.0, %v2385
      %v2387 = vpop.f32.mrf.mxu0
      %2388 = vdwg.mxu0
      %v2389 = vadd.f32 %v2139, %v2327
      %v2390 = vadd.f32 %v2140, %v2330
      %v2391 = vadd.f32 %v2141, %v2335
      %v2392 = vadd.f32 %v2142, %v2338
      %v2393 = vadd.f32 %v2143, %v2343
      %v2394 = vadd.f32 %v2144, %v2346
      %v2395 = vadd.f32 %v2145, %v2351
      %v2396 = vadd.f32 %v2146, %v2354
      %v2397 = vadd.f32 %v2147, %v2359
      %v2398 = vadd.f32 %v2148, %v2362
      %v2399 = vadd.f32 %v2149, %v2367
      %v2400 = vadd.f32 %v2150, %v2370
      %v2401 = vadd.f32 %v2151, %v2375
      %v2402 = vadd.f32 %v2152, %v2378
      %v2403 = vadd.f32 %v2153, %v2383
      %v2404 = vadd.f32 %v2154, %v2386
      %s2405 = scalar_lea.vmem %s2, 12
      %v2406 = vld [vmem:[%s2405] sm:$0x3]
      %v2407 = vsel %vm892, %v2282, 0
      %v2410 = vsel %vm909, %v2406, 0
      %2412 = vmatprep.subr.bf16.mxu0 0
      %2413 = vmatpush1.bf16.msra.mxu0 0
      %2414 = vmatprep.subr.bf16.mxu0 0
      %2415 = vmatpush1.bf16.msra.mxu0 0
      %2416 = vmatprep.subr.bf16.mxu0 0
      %2417 = vmatpush1.bf16.msra.mxu0 0
      %2418 = vmatprep.subr.bf16.mxu0 0
      %2419 = vmatpush1.bf16.msra.mxu0 0
      %2420 = vmatprep.subr.bf16.mxu0 0
      %2421 = vmatpush1.bf16.msra.mxu0 0
      %2422 = vmatprep.subr.bf16.mxu0 0
      %2423 = vmatpush1.bf16.msra.mxu0 0
      %2424 = vmatprep.subr.bf16.mxu0 0
      %2425 = vmatpush1.bf16.msra.mxu0 0
      %2426 = vmatprep.subr.bf16.mxu0 0
      %2427 = vmatpush1.bf16.msra.mxu0 %v2410
      %2428 = vmatprep.subr.bf16.mxu0 0
      %2429 = vmatpush2.bf16.msra.mxu0 0
      %2430 = vmatprep.subr.bf16.mxu0 0
      %2431 = vmatpush2.bf16.msra.mxu0 0
      %2432 = vmatprep.subr.bf16.mxu0 0
      %2433 = vmatpush2.bf16.msra.mxu0 0
      %2434 = vmatprep.subr.bf16.mxu0 0
      %2435 = vmatpush2.bf16.msra.mxu0 0
      %2436 = vmatprep.subr.bf16.mxu0 0
      %2437 = vmatpush2.bf16.msra.mxu0 0
      %2438 = vmatprep.subr.bf16.mxu0 0
      %2439 = vmatpush2.bf16.msra.mxu0 0
      %2440 = vmatprep.subr.bf16.mxu0 0
      %2441 = vmatpush2.bf16.msra.mxu0 0
      %2442 = vmatprep.subr.bf16.mxu0 0
      %2443 = vmatpush2.bf16.msra.mxu0 0
      %2444 = vmatprep.mubr.bf16.mxu0 0
      %2445 = vmatmul.mubr.bf16.gmra.mxu0 %v1014
      %v2446 = vpop.f32.mrf.mxu0
      %v2447 = vadd.f32 0.0, %v2446
      %v2448 = vpop.f32.mrf.mxu0
      %v2449 = vpop.f32.mrf.mxu0
      %v2450 = vadd.f32 0.0, %v2449
      %v2451 = vpop.f32.mrf.mxu0
      %2452 = vmatprep.mubr.bf16.mxu0 0
      %2453 = vmatmul.mubr.bf16.gmra.mxu0 %v1016
      %v2454 = vpop.f32.mrf.mxu0
      %v2455 = vadd.f32 0.0, %v2454
      %v2456 = vpop.f32.mrf.mxu0
      %v2457 = vpop.f32.mrf.mxu0
      %v2458 = vadd.f32 0.0, %v2457
      %v2459 = vpop.f32.mrf.mxu0
      %2460 = vmatprep.mubr.bf16.mxu0 0
      %2461 = vmatmul.mubr.bf16.gmra.mxu0 %v1018
      %v2462 = vpop.f32.mrf.mxu0
      %v2463 = vadd.f32 0.0, %v2462
      %v2464 = vpop.f32.mrf.mxu0
      %v2465 = vpop.f32.mrf.mxu0
      %v2466 = vadd.f32 0.0, %v2465
      %v2467 = vpop.f32.mrf.mxu0
      %2468 = vmatprep.mubr.bf16.mxu0 0
      %2469 = vmatmul.mubr.bf16.gmra.mxu0 %v1020
      %v2470 = vpop.f32.mrf.mxu0
      %v2471 = vadd.f32 0.0, %v2470
      %v2472 = vpop.f32.mrf.mxu0
      %v2473 = vpop.f32.mrf.mxu0
      %v2474 = vadd.f32 0.0, %v2473
      %v2475 = vpop.f32.mrf.mxu0
      %2476 = vmatprep.mubr.bf16.mxu0 0
      %2477 = vmatmul.mubr.bf16.gmra.mxu0 %v1022
      %v2478 = vpop.f32.mrf.mxu0
      %v2479 = vadd.f32 0.0, %v2478
      %v2480 = vpop.f32.mrf.mxu0
      %v2481 = vpop.f32.mrf.mxu0
      %v2482 = vadd.f32 0.0, %v2481
      %v2483 = vpop.f32.mrf.mxu0
      %2484 = vmatprep.mubr.bf16.mxu0 0
      %2485 = vmatmul.mubr.bf16.gmra.mxu0 %v1024
      %v2486 = vpop.f32.mrf.mxu0
      %v2487 = vadd.f32 0.0, %v2486
      %v2488 = vpop.f32.mrf.mxu0
      %v2489 = vpop.f32.mrf.mxu0
      %v2490 = vadd.f32 0.0, %v2489
      %v2491 = vpop.f32.mrf.mxu0
      %2492 = vmatprep.mubr.bf16.mxu0 0
      %2493 = vmatmul.mubr.bf16.gmra.mxu0 %v1629
      %v2494 = vpop.f32.mrf.mxu0
      %v2495 = vadd.f32 0.0, %v2494
      %v2496 = vpop.f32.mrf.mxu0
      %v2497 = vpop.f32.mrf.mxu0
      %v2498 = vadd.f32 0.0, %v2497
      %v2499 = vpop.f32.mrf.mxu0
      %2500 = vmatprep.mubr.bf16.mxu0 0
      %2501 = vmatmul.mubr.bf16.gmra.mxu0 %v2407
      %v2502 = vpop.f32.mrf.mxu0
      %v2503 = vadd.f32 0.0, %v2502
      %v2504 = vpop.f32.mrf.mxu0
      %v2505 = vpop.f32.mrf.mxu0
      %v2506 = vadd.f32 0.0, %v2505
      %v2507 = vpop.f32.mrf.mxu0
      %2508 = vdwg.mxu0
      %v2509 = vadd.f32 %v2259, %v2447
      %v2510 = vadd.f32 %v2260, %v2450
      %v2511 = vadd.f32 %v2261, %v2455
      %v2512 = vadd.f32 %v2262, %v2458
      %v2513 = vadd.f32 %v2263, %v2463
      %v2514 = vadd.f32 %v2264, %v2466
      %v2515 = vadd.f32 %v2265, %v2471
      %v2516 = vadd.f32 %v2266, %v2474
      %v2517 = vadd.f32 %v2267, %v2479
      %v2518 = vadd.f32 %v2268, %v2482
      %v2519 = vadd.f32 %v2269, %v2487
      %v2520 = vadd.f32 %v2270, %v2490
      %v2521 = vadd.f32 %v2271, %v2495
      %v2522 = vadd.f32 %v2272, %v2498
      %v2523 = vadd.f32 %v2273, %v2503
      %v2524 = vadd.f32 %v2274, %v2506
      %v2526 = vshrl.u32 %v367, 16
      %v2528 = vrot.slane %v2526, 4
      %v2529 = vshll.u32 %v367, 16
      %v2531 = vrot.slane %v2529, 5
      %v2532 = vor.u32 %v2528, %v2531
      %v2533 = vrot.slane %v2532, 4
      %v2535 = vshll.u32 %v368, 16
      %v2537 = vrot.slane %v2535, 5
      %v2538 = vsel %vm375, %v2533, %v2537
      %v2539 = vshrl.u32 %v368, 16
      %v2541 = vrot.slane %v2539, 4
      %v2542 = vor.u32 %v2541, %v2537
      %v2543 = vrot.slane %v2542, 4
      %v2545 = vshll.u32 %v369, 16
      %v2547 = vrot.slane %v2545, 5
      %v2548 = vsel %vm375, %v2543, %v2547
      %s2549 = scalar_lea.vmem %s1, 56
      %v2550 = vld [vmem:[%s2549] sm:$0xf]
      %v2551 = vld [vmem:[%s2549 + $0x4] sm:$0xf]
      %v2552 = vunpack.c.l.b16 %v2538
      %v2553 = vunpack.c.l.b16 %v2548
      %v2554 = vpack.c.b16 %v2553, %v2552
      %v2557 = vunpack.c.l.b16 %v2550
      %v2558 = vunpack.c.l.b16 %v2551
      %v2559 = vpack.c.b16 %v2558, %v2557
      %v2562 = vsel %vm601, %v2554, 0
      %2564 = vmatprep.subr.bf16.mxu0 0
      %2565 = vmatpush1.bf16.msra.mxu0 0
      %2566 = vmatprep.subr.bf16.mxu0 0
      %2567 = vmatpush1.bf16.msra.mxu0 0
      %2568 = vmatprep.subr.bf16.mxu0 0
      %2569 = vmatpush1.bf16.msra.mxu0 0
      %2570 = vmatprep.subr.bf16.mxu0 0
      %2571 = vmatpush1.bf16.msra.mxu0 0
      %2572 = vmatprep.subr.bf16.mxu0 0
      %2573 = vmatpush1.bf16.msra.mxu0 0
      %2574 = vmatprep.subr.bf16.mxu0 0
      %2575 = vmatpush1.bf16.msra.mxu0 0
      %2576 = vmatprep.subr.bf16.mxu0 0
      %2577 = vmatpush1.bf16.msra.mxu0 0
      %2578 = vmatprep.subr.bf16.mxu0 0
      %2579 = vmatpush1.bf16.msra.mxu0 %v2559
      %2580 = vmatprep.subr.bf16.mxu0 0
      %2581 = vmatpush2.bf16.msra.mxu0 0
      %2582 = vmatprep.subr.bf16.mxu0 0
      %2583 = vmatpush2.bf16.msra.mxu0 0
      %2584 = vmatprep.subr.bf16.mxu0 0
      %2585 = vmatpush2.bf16.msra.mxu0 0
      %2586 = vmatprep.subr.bf16.mxu0 0
      %2587 = vmatpush2.bf16.msra.mxu0 0
      %2588 = vmatprep.subr.bf16.mxu0 0
      %2589 = vmatpush2.bf16.msra.mxu0 0
      %2590 = vmatprep.subr.bf16.mxu0 0
      %2591 = vmatpush2.bf16.msra.mxu0 0
      %2592 = vmatprep.subr.bf16.mxu0 0
      %2593 = vmatpush2.bf16.msra.mxu0 0
      %2594 = vmatprep.subr.bf16.mxu0 0
      %2595 = vmatpush2.bf16.msra.mxu0 0
      %2596 = vmatprep.mubr.bf16.mxu0 0
      %2597 = vmatmul.mubr.bf16.gmra.mxu0 %v609
      %v2598 = vpop.f32.mrf.mxu0
      %v2599 = vadd.f32 0.0, %v2598
      %v2600 = vpop.f32.mrf.mxu0
      %v2601 = vpop.f32.mrf.mxu0
      %v2602 = vadd.f32 0.0, %v2601
      %v2603 = vpop.f32.mrf.mxu0
      %2604 = vmatprep.mubr.bf16.mxu0 0
      %2605 = vmatmul.mubr.bf16.gmra.mxu0 %v612
      %v2606 = vpop.f32.mrf.mxu0
      %v2607 = vadd.f32 0.0, %v2606
      %v2608 = vpop.f32.mrf.mxu0
      %v2609 = vpop.f32.mrf.mxu0
      %v2610 = vadd.f32 0.0, %v2609
      %v2611 = vpop.f32.mrf.mxu0
      %2612 = vmatprep.mubr.bf16.mxu0 0
      %2613 = vmatmul.mubr.bf16.gmra.mxu0 %v615
      %v2614 = vpop.f32.mrf.mxu0
      %v2615 = vadd.f32 0.0, %v2614
      %v2616 = vpop.f32.mrf.mxu0
      %v2617 = vpop.f32.mrf.mxu0
      %v2618 = vadd.f32 0.0, %v2617
      %v2619 = vpop.f32.mrf.mxu0
      %2620 = vmatprep.mubr.bf16.mxu0 0
      %2621 = vmatmul.mubr.bf16.gmra.mxu0 %v618
      %v2622 = vpop.f32.mrf.mxu0
      %v2623 = vadd.f32 0.0, %v2622
      %v2624 = vpop.f32.mrf.mxu0
      %v2625 = vpop.f32.mrf.mxu0
      %v2626 = vadd.f32 0.0, %v2625
      %v2627 = vpop.f32.mrf.mxu0
      %2628 = vmatprep.mubr.bf16.mxu0 0
      %2629 = vmatmul.mubr.bf16.gmra.mxu0 %v621
      %v2630 = vpop.f32.mrf.mxu0
      %v2631 = vadd.f32 0.0, %v2630
      %v2632 = vpop.f32.mrf.mxu0
      %v2633 = vpop.f32.mrf.mxu0
      %v2634 = vadd.f32 0.0, %v2633
      %v2635 = vpop.f32.mrf.mxu0
      %2636 = vmatprep.mubr.bf16.mxu0 0
      %2637 = vmatmul.mubr.bf16.gmra.mxu0 %v624
      %v2638 = vpop.f32.mrf.mxu0
      %v2639 = vadd.f32 0.0, %v2638
      %v2640 = vpop.f32.mrf.mxu0
      %v2641 = vpop.f32.mrf.mxu0
      %v2642 = vadd.f32 0.0, %v2641
      %v2643 = vpop.f32.mrf.mxu0
      %2644 = vmatprep.mubr.bf16.mxu0 0
      %2645 = vmatmul.mubr.bf16.gmra.mxu0 %v1784
      %v2646 = vpop.f32.mrf.mxu0
      %v2647 = vadd.f32 0.0, %v2646
      %v2648 = vpop.f32.mrf.mxu0
      %v2649 = vpop.f32.mrf.mxu0
      %v2650 = vadd.f32 0.0, %v2649
      %v2651 = vpop.f32.mrf.mxu0
      %2652 = vmatprep.mubr.bf16.mxu0 0
      %2653 = vmatmul.mubr.bf16.gmra.mxu0 %v2562
      %v2654 = vpop.f32.mrf.mxu0
      %v2655 = vadd.f32 0.0, %v2654
      %v2656 = vpop.f32.mrf.mxu0
      %v2657 = vpop.f32.mrf.mxu0
      %v2658 = vadd.f32 0.0, %v2657
      %v2659 = vpop.f32.mrf.mxu0
      %2660 = vdwg.mxu0
      %v2661 = vadd.f32 %v2389, %v2599
      %v2662 = vadd.f32 %v2390, %v2602
      %v2663 = vadd.f32 %v2391, %v2607
      %v2664 = vadd.f32 %v2392, %v2610
      %v2665 = vadd.f32 %v2393, %v2615
      %v2666 = vadd.f32 %v2394, %v2618
      %v2667 = vadd.f32 %v2395, %v2623
      %v2668 = vadd.f32 %v2396, %v2626
      %v2669 = vadd.f32 %v2397, %v2631
      %v2670 = vadd.f32 %v2398, %v2634
      %v2671 = vadd.f32 %v2399, %v2639
      %v2672 = vadd.f32 %v2400, %v2642
      %v2673 = vadd.f32 %v2401, %v2647
      %v2674 = vadd.f32 %v2402, %v2650
      %v2675 = vadd.f32 %v2403, %v2655
      %v2676 = vadd.f32 %v2404, %v2658
      %s2677 = scalar_lea.vmem %s2, 14
      %v2678 = vld [vmem:[%s2677] sm:$0x3]
      %v2679 = vsel %vm892, %v2554, 0
      %v2682 = vsel %vm909, %v2678, 0
      %2684 = vmatprep.subr.bf16.mxu0 0
      %2685 = vmatpush1.bf16.msra.mxu0 0
      %2686 = vmatprep.subr.bf16.mxu0 0
      %2687 = vmatpush1.bf16.msra.mxu0 0
      %2688 = vmatprep.subr.bf16.mxu0 0
      %2689 = vmatpush1.bf16.msra.mxu0 0
      %2690 = vmatprep.subr.bf16.mxu0 0
      %2691 = vmatpush1.bf16.msra.mxu0 0
      %2692 = vmatprep.subr.bf16.mxu0 0
      %2693 = vmatpush1.bf16.msra.mxu0 0
      %2694 = vmatprep.subr.bf16.mxu0 0
      %2695 = vmatpush1.bf16.msra.mxu0 0
      %2696 = vmatprep.subr.bf16.mxu0 0
      %2697 = vmatpush1.bf16.msra.mxu0 0
      %2698 = vmatprep.subr.bf16.mxu0 0
      %2699 = vmatpush1.bf16.msra.mxu0 %v2682
      %2700 = vmatprep.subr.bf16.mxu0 0
      %2701 = vmatpush2.bf16.msra.mxu0 0
      %2702 = vmatprep.subr.bf16.mxu0 0
      %2703 = vmatpush2.bf16.msra.mxu0 0
      %2704 = vmatprep.subr.bf16.mxu0 0
      %2705 = vmatpush2.bf16.msra.mxu0 0
      %2706 = vmatprep.subr.bf16.mxu0 0
      %2707 = vmatpush2.bf16.msra.mxu0 0
      %2708 = vmatprep.subr.bf16.mxu0 0
      %2709 = vmatpush2.bf16.msra.mxu0 0
      %2710 = vmatprep.subr.bf16.mxu0 0
      %2711 = vmatpush2.bf16.msra.mxu0 0
      %2712 = vmatprep.subr.bf16.mxu0 0
      %2713 = vmatpush2.bf16.msra.mxu0 0
      %2714 = vmatprep.subr.bf16.mxu0 0
      %2715 = vmatpush2.bf16.msra.mxu0 0
      %2716 = vmatprep.mubr.bf16.mxu0 0
      %2717 = vmatmul.mubr.bf16.gmra.mxu0 %v897
      %v2718 = vpop.f32.mrf.mxu0
      %v2719 = vadd.f32 0.0, %v2718
      %v2720 = vpop.f32.mrf.mxu0
      %v2721 = vpop.f32.mrf.mxu0
      %v2722 = vadd.f32 0.0, %v2721
      %v2723 = vpop.f32.mrf.mxu0
      %2724 = vmatprep.mubr.bf16.mxu0 0
      %2725 = vmatmul.mubr.bf16.gmra.mxu0 %v899
      %v2726 = vpop.f32.mrf.mxu0
      %v2727 = vadd.f32 0.0, %v2726
      %v2728 = vpop.f32.mrf.mxu0
      %v2729 = vpop.f32.mrf.mxu0
      %v2730 = vadd.f32 0.0, %v2729
      %v2731 = vpop.f32.mrf.mxu0
      %2732 = vmatprep.mubr.bf16.mxu0 0
      %2733 = vmatmul.mubr.bf16.gmra.mxu0 %v901
      %v2734 = vpop.f32.mrf.mxu0
      %v2735 = vadd.f32 0.0, %v2734
      %v2736 = vpop.f32.mrf.mxu0
      %v2737 = vpop.f32.mrf.mxu0
      %v2738 = vadd.f32 0.0, %v2737
      %v2739 = vpop.f32.mrf.mxu0
      %2740 = vmatprep.mubr.bf16.mxu0 0
      %2741 = vmatmul.mubr.bf16.gmra.mxu0 %v903
      %v2742 = vpop.f32.mrf.mxu0
      %v2743 = vadd.f32 0.0, %v2742
      %v2744 = vpop.f32.mrf.mxu0
      %v2745 = vpop.f32.mrf.mxu0
      %v2746 = vadd.f32 0.0, %v2745
      %v2747 = vpop.f32.mrf.mxu0
      %2748 = vmatprep.mubr.bf16.mxu0 0
      %2749 = vmatmul.mubr.bf16.gmra.mxu0 %v905
      %v2750 = vpop.f32.mrf.mxu0
      %v2751 = vadd.f32 0.0, %v2750
      %v2752 = vpop.f32.mrf.mxu0
      %v2753 = vpop.f32.mrf.mxu0
      %v2754 = vadd.f32 0.0, %v2753
      %v2755 = vpop.f32.mrf.mxu0
      %2756 = vmatprep.mubr.bf16.mxu0 0
      %2757 = vmatmul.mubr.bf16.gmra.mxu0 %v907
      %v2758 = vpop.f32.mrf.mxu0
      %v2759 = vadd.f32 0.0, %v2758
      %v2760 = vpop.f32.mrf.mxu0
      %v2761 = vpop.f32.mrf.mxu0
      %v2762 = vadd.f32 0.0, %v2761
      %v2763 = vpop.f32.mrf.mxu0
      %2764 = vmatprep.mubr.bf16.mxu0 0
      %2765 = vmatmul.mubr.bf16.gmra.mxu0 %v1901
      %v2766 = vpop.f32.mrf.mxu0
      %v2767 = vadd.f32 0.0, %v2766
      %v2768 = vpop.f32.mrf.mxu0
      %v2769 = vpop.f32.mrf.mxu0
      %v2770 = vadd.f32 0.0, %v2769
      %v2771 = vpop.f32.mrf.mxu0
      %2772 = vmatprep.mubr.bf16.mxu0 0
      %2773 = vmatmul.mubr.bf16.gmra.mxu0 %v2679
      %v2774 = vpop.f32.mrf.mxu0
      %v2775 = vadd.f32 0.0, %v2774
      %v2776 = vpop.f32.mrf.mxu0
      %v2777 = vpop.f32.mrf.mxu0
      %v2778 = vadd.f32 0.0, %v2777
      %v2779 = vpop.f32.mrf.mxu0
      %2780 = vdwg.mxu0
      %v2781 = vadd.f32 %v2509, %v2719
      %v2782 = vadd.f32 %v2510, %v2722
      %v2783 = vadd.f32 %v2511, %v2727
      %v2784 = vadd.f32 %v2512, %v2730
      %v2785 = vadd.f32 %v2513, %v2735
      %v2786 = vadd.f32 %v2514, %v2738
      %v2787 = vadd.f32 %v2515, %v2743
      %v2788 = vadd.f32 %v2516, %v2746
      %v2789 = vadd.f32 %v2517, %v2751
      %v2790 = vadd.f32 %v2518, %v2754
      %v2791 = vadd.f32 %v2519, %v2759
      %v2792 = vadd.f32 %v2520, %v2762
      %v2793 = vadd.f32 %v2521, %v2767
      %v2794 = vadd.f32 %v2522, %v2770
      %v2795 = vadd.f32 %v2523, %v2775
      %v2796 = vadd.f32 %v2524, %v2778
      %v2798 = vrot.slane %v367, 5
      %v2799 = vrot.slane %v2798, 4
      %v2800 = vrot.slane %v368, 5
      %v2801 = vsel %vm1136, %v2799, %v2800
      %v2802 = vrot.slane %v2800, 4
      %v2803 = vrot.slane %v369, 5
      %v2804 = vsel %vm1136, %v2802, %v2803
      %s2805 = scalar_lea.vmem %s1, 64
      %v2806 = vld [vmem:[%s2805] sm:$0xf]
      %v2807 = vld [vmem:[%s2805 + $0x4] sm:$0xf]
      %v2808 = vunpack.c.l.b16 %v2801
      %v2809 = vunpack.c.l.b16 %v2804
      %v2810 = vpack.c.b16 %v2809, %v2808
      %v2813 = vunpack.c.l.b16 %v2806
      %v2814 = vunpack.c.l.b16 %v2807
      %v2815 = vpack.c.b16 %v2814, %v2813
      %v2818 = vsel %vm601, %v2810, 0
      %2820 = vmatprep.subr.bf16.mxu0 0
      %2821 = vmatpush1.bf16.msra.mxu0 0
      %2822 = vmatprep.subr.bf16.mxu0 0
      %2823 = vmatpush1.bf16.msra.mxu0 0
      %2824 = vmatprep.subr.bf16.mxu0 0
      %2825 = vmatpush1.bf16.msra.mxu0 0
      %2826 = vmatprep.subr.bf16.mxu0 0
      %2827 = vmatpush1.bf16.msra.mxu0 0
      %2828 = vmatprep.subr.bf16.mxu0 0
      %2829 = vmatpush1.bf16.msra.mxu0 0
      %2830 = vmatprep.subr.bf16.mxu0 0
      %2831 = vmatpush1.bf16.msra.mxu0 0
      %2832 = vmatprep.subr.bf16.mxu0 0
      %2833 = vmatpush1.bf16.msra.mxu0 0
      %2834 = vmatprep.subr.bf16.mxu0 0
      %2835 = vmatpush1.bf16.msra.mxu0 %v2815
      %2836 = vmatprep.subr.bf16.mxu0 0
      %2837 = vmatpush2.bf16.msra.mxu0 0
      %2838 = vmatprep.subr.bf16.mxu0 0
      %2839 = vmatpush2.bf16.msra.mxu0 0
      %2840 = vmatprep.subr.bf16.mxu0 0
      %2841 = vmatpush2.bf16.msra.mxu0 0
      %2842 = vmatprep.subr.bf16.mxu0 0
      %2843 = vmatpush2.bf16.msra.mxu0 0
      %2844 = vmatprep.subr.bf16.mxu0 0
      %2845 = vmatpush2.bf16.msra.mxu0 0
      %2846 = vmatprep.subr.bf16.mxu0 0
      %2847 = vmatpush2.bf16.msra.mxu0 0
      %2848 = vmatprep.subr.bf16.mxu0 0
      %2849 = vmatpush2.bf16.msra.mxu0 0
      %2850 = vmatprep.subr.bf16.mxu0 0
      %2851 = vmatpush2.bf16.msra.mxu0 0
      %2852 = vmatprep.mubr.bf16.mxu0 0
      %2853 = vmatmul.mubr.bf16.gmra.mxu0 %v1233
      %v2854 = vpop.f32.mrf.mxu0
      %v2855 = vadd.f32 0.0, %v2854
      %v2856 = vpop.f32.mrf.mxu0
      %v2857 = vpop.f32.mrf.mxu0
      %v2858 = vadd.f32 0.0, %v2857
      %v2859 = vpop.f32.mrf.mxu0
      %2860 = vmatprep.mubr.bf16.mxu0 0
      %2861 = vmatmul.mubr.bf16.gmra.mxu0 %v1236
      %v2862 = vpop.f32.mrf.mxu0
      %v2863 = vadd.f32 0.0, %v2862
      %v2864 = vpop.f32.mrf.mxu0
      %v2865 = vpop.f32.mrf.mxu0
      %v2866 = vadd.f32 0.0, %v2865
      %v2867 = vpop.f32.mrf.mxu0
      %2868 = vmatprep.mubr.bf16.mxu0 0
      %2869 = vmatmul.mubr.bf16.gmra.mxu0 %v1239
      %v2870 = vpop.f32.mrf.mxu0
      %v2871 = vadd.f32 0.0, %v2870
      %v2872 = vpop.f32.mrf.mxu0
      %v2873 = vpop.f32.mrf.mxu0
      %v2874 = vadd.f32 0.0, %v2873
      %v2875 = vpop.f32.mrf.mxu0
      %2876 = vmatprep.mubr.bf16.mxu0 0
      %2877 = vmatmul.mubr.bf16.gmra.mxu0 %v1242
      %v2878 = vpop.f32.mrf.mxu0
      %v2879 = vadd.f32 0.0, %v2878
      %v2880 = vpop.f32.mrf.mxu0
      %v2881 = vpop.f32.mrf.mxu0
      %v2882 = vadd.f32 0.0, %v2881
      %v2883 = vpop.f32.mrf.mxu0
      %2884 = vmatprep.mubr.bf16.mxu0 0
      %2885 = vmatmul.mubr.bf16.gmra.mxu0 %v1245
      %v2886 = vpop.f32.mrf.mxu0
      %v2887 = vadd.f32 0.0, %v2886
      %v2888 = vpop.f32.mrf.mxu0
      %v2889 = vpop.f32.mrf.mxu0
      %v2890 = vadd.f32 0.0, %v2889
      %v2891 = vpop.f32.mrf.mxu0
      %2892 = vmatprep.mubr.bf16.mxu0 0
      %2893 = vmatmul.mubr.bf16.gmra.mxu0 %v1248
      %v2894 = vpop.f32.mrf.mxu0
      %v2895 = vadd.f32 0.0, %v2894
      %v2896 = vpop.f32.mrf.mxu0
      %v2897 = vpop.f32.mrf.mxu0
      %v2898 = vadd.f32 0.0, %v2897
      %v2899 = vpop.f32.mrf.mxu0
      %2900 = vmatprep.mubr.bf16.mxu0 0
      %2901 = vmatmul.mubr.bf16.gmra.mxu0 %v2040
      %v2902 = vpop.f32.mrf.mxu0
      %v2903 = vadd.f32 0.0, %v2902
      %v2904 = vpop.f32.mrf.mxu0
      %v2905 = vpop.f32.mrf.mxu0
      %v2906 = vadd.f32 0.0, %v2905
      %v2907 = vpop.f32.mrf.mxu0
      %2908 = vmatprep.mubr.bf16.mxu0 0
      %2909 = vmatmul.mubr.bf16.gmra.mxu0 %v2818
      %v2910 = vpop.f32.mrf.mxu0
      %v2911 = vadd.f32 0.0, %v2910
      %v2912 = vpop.f32.mrf.mxu0
      %v2913 = vpop.f32.mrf.mxu0
      %v2914 = vadd.f32 0.0, %v2913
      %v2915 = vpop.f32.mrf.mxu0
      %2916 = vdwg.mxu0
      %v2917 = vadd.f32 %v2661, %v2855
      %v2918 = vadd.f32 %v2662, %v2858
      %v2919 = vadd.f32 %v2663, %v2863
      %v2920 = vadd.f32 %v2664, %v2866
      %v2921 = vadd.f32 %v2665, %v2871
      %v2922 = vadd.f32 %v2666, %v2874
      %v2923 = vadd.f32 %v2667, %v2879
      %v2924 = vadd.f32 %v2668, %v2882
      %v2925 = vadd.f32 %v2669, %v2887
      %v2926 = vadd.f32 %v2670, %v2890
      %v2927 = vadd.f32 %v2671, %v2895
      %v2928 = vadd.f32 %v2672, %v2898
      %v2929 = vadd.f32 %v2673, %v2903
      %v2930 = vadd.f32 %v2674, %v2906
      %v2931 = vadd.f32 %v2675, %v2911
      %v2932 = vadd.f32 %v2676, %v2914
      %s2933 = scalar_lea.vmem %s2, 16
      %v2934 = vld [vmem:[%s2933] sm:$0x3]
      %v2935 = vsel %vm892, %v2810, 0
      %v2938 = vsel %vm909, %v2934, 0
      %2940 = vmatprep.subr.bf16.mxu0 0
      %2941 = vmatpush1.bf16.msra.mxu0 0
      %2942 = vmatprep.subr.bf16.mxu0 0
      %2943 = vmatpush1.bf16.msra.mxu0 0
      %2944 = vmatprep.subr.bf16.mxu0 0
      %2945 = vmatpush1.bf16.msra.mxu0 0
      %2946 = vmatprep.subr.bf16.mxu0 0
      %2947 = vmatpush1.bf16.msra.mxu0 0
      %2948 = vmatprep.subr.bf16.mxu0 0
      %2949 = vmatpush1.bf16.msra.mxu0 0
      %2950 = vmatprep.subr.bf16.mxu0 0
      %2951 = vmatpush1.bf16.msra.mxu0 0
      %2952 = vmatprep.subr.bf16.mxu0 0
      %2953 = vmatpush1.bf16.msra.mxu0 0
      %2954 = vmatprep.subr.bf16.mxu0 0
      %2955 = vmatpush1.bf16.msra.mxu0 %v2938
      %2956 = vmatprep.subr.bf16.mxu0 0
      %2957 = vmatpush2.bf16.msra.mxu0 0
      %2958 = vmatprep.subr.bf16.mxu0 0
      %2959 = vmatpush2.bf16.msra.mxu0 0
      %2960 = vmatprep.subr.bf16.mxu0 0
      %2961 = vmatpush2.bf16.msra.mxu0 0
      %2962 = vmatprep.subr.bf16.mxu0 0
      %2963 = vmatpush2.bf16.msra.mxu0 0
      %2964 = vmatprep.subr.bf16.mxu0 0
      %2965 = vmatpush2.bf16.msra.mxu0 0
      %2966 = vmatprep.subr.bf16.mxu0 0
      %2967 = vmatpush2.bf16.msra.mxu0 0
      %2968 = vmatprep.subr.bf16.mxu0 0
      %2969 = vmatpush2.bf16.msra.mxu0 0
      %2970 = vmatprep.subr.bf16.mxu0 0
      %2971 = vmatpush2.bf16.msra.mxu0 0
      %2972 = vmatprep.mubr.bf16.mxu0 0
      %2973 = vmatmul.mubr.bf16.gmra.mxu0 %v1369
      %v2974 = vpop.f32.mrf.mxu0
      %v2975 = vadd.f32 0.0, %v2974
      %v2976 = vpop.f32.mrf.mxu0
      %v2977 = vpop.f32.mrf.mxu0
      %v2978 = vadd.f32 0.0, %v2977
      %v2979 = vpop.f32.mrf.mxu0
      %2980 = vmatprep.mubr.bf16.mxu0 0
      %2981 = vmatmul.mubr.bf16.gmra.mxu0 %v1371
      %v2982 = vpop.f32.mrf.mxu0
      %v2983 = vadd.f32 0.0, %v2982
      %v2984 = vpop.f32.mrf.mxu0
      %v2985 = vpop.f32.mrf.mxu0
      %v2986 = vadd.f32 0.0, %v2985
      %v2987 = vpop.f32.mrf.mxu0
      %2988 = vmatprep.mubr.bf16.mxu0 0
      %2989 = vmatmul.mubr.bf16.gmra.mxu0 %v1373
      %v2990 = vpop.f32.mrf.mxu0
      %v2991 = vadd.f32 0.0, %v2990
      %v2992 = vpop.f32.mrf.mxu0
      %v2993 = vpop.f32.mrf.mxu0
      %v2994 = vadd.f32 0.0, %v2993
      %v2995 = vpop.f32.mrf.mxu0
      %2996 = vmatprep.mubr.bf16.mxu0 0
      %2997 = vmatmul.mubr.bf16.gmra.mxu0 %v1375
      %v2998 = vpop.f32.mrf.mxu0
      %v2999 = vadd.f32 0.0, %v2998
      %v3000 = vpop.f32.mrf.mxu0
      %v3001 = vpop.f32.mrf.mxu0
      %v3002 = vadd.f32 0.0, %v3001
      %v3003 = vpop.f32.mrf.mxu0
      %3004 = vmatprep.mubr.bf16.mxu0 0
      %3005 = vmatmul.mubr.bf16.gmra.mxu0 %v1377
      %v3006 = vpop.f32.mrf.mxu0
      %v3007 = vadd.f32 0.0, %v3006
      %v3008 = vpop.f32.mrf.mxu0
      %v3009 = vpop.f32.mrf.mxu0
      %v3010 = vadd.f32 0.0, %v3009
      %v3011 = vpop.f32.mrf.mxu0
      %3012 = vmatprep.mubr.bf16.mxu0 0
      %3013 = vmatmul.mubr.bf16.gmra.mxu0 %v1379
      %v3014 = vpop.f32.mrf.mxu0
      %v3015 = vadd.f32 0.0, %v3014
      %v3016 = vpop.f32.mrf.mxu0
      %v3017 = vpop.f32.mrf.mxu0
      %v3018 = vadd.f32 0.0, %v3017
      %v3019 = vpop.f32.mrf.mxu0
      %3020 = vmatprep.mubr.bf16.mxu0 0
      %3021 = vmatmul.mubr.bf16.gmra.mxu0 %v2157
      %v3022 = vpop.f32.mrf.mxu0
      %v3023 = vadd.f32 0.0, %v3022
      %v3024 = vpop.f32.mrf.mxu0
      %v3025 = vpop.f32.mrf.mxu0
      %v3026 = vadd.f32 0.0, %v3025
      %v3027 = vpop.f32.mrf.mxu0
      %3028 = vmatprep.mubr.bf16.mxu0 0
      %3029 = vmatmul.mubr.bf16.gmra.mxu0 %v2935
      %v3030 = vpop.f32.mrf.mxu0
      %v3031 = vadd.f32 0.0, %v3030
      %v3032 = vpop.f32.mrf.mxu0
      %v3033 = vpop.f32.mrf.mxu0
      %v3034 = vadd.f32 0.0, %v3033
      %v3035 = vpop.f32.mrf.mxu0
      %3036 = vdwg.mxu0
      %v3037 = vadd.f32 %v2781, %v2975
      %v3038 = vadd.f32 %v2782, %v2978
      %v3039 = vadd.f32 %v2783, %v2983
      %v3040 = vadd.f32 %v2784, %v2986
      %v3041 = vadd.f32 %v2785, %v2991
      %v3042 = vadd.f32 %v2786, %v2994
      %v3043 = vadd.f32 %v2787, %v2999
      %v3044 = vadd.f32 %v2788, %v3002
      %v3045 = vadd.f32 %v2789, %v3007
      %v3046 = vadd.f32 %v2790, %v3010
      %v3047 = vadd.f32 %v2791, %v3015
      %v3048 = vadd.f32 %v2792, %v3018
      %v3049 = vadd.f32 %v2793, %v3023
      %v3050 = vadd.f32 %v2794, %v3026
      %v3051 = vadd.f32 %v2795, %v3031
      %v3052 = vadd.f32 %v2796, %v3034
      %v3053 = vld [vmem:[%s3] sm:$0x1]
      %v3055 = vlaneseq
      %v3056 = vshrl.u32 %v3055, 7
      %v3057 = vsub.s32 0, %v3056
      %v3058 = vrot.slane %v3053, %v3057
      %v3060 = vadd.f32 %v2917, %v3058
      %v3061 = vadd.f32 %v2918, %v3058
      %v3062 = vadd.f32 %v2919, %v3058
      %v3063 = vadd.f32 %v2920, %v3058
      %v3064 = vadd.f32 %v2921, %v3058
      %v3065 = vadd.f32 %v2922, %v3058
      %v3066 = vadd.f32 %v2923, %v3058
      %v3067 = vadd.f32 %v2924, %v3058
      %v3068 = vadd.f32 %v2925, %v3058
      %v3069 = vadd.f32 %v2926, %v3058
      %v3070 = vadd.f32 %v2927, %v3058
      %v3071 = vadd.f32 %v2928, %v3058
      %v3072 = vadd.f32 %v2929, %v3058
      %v3073 = vadd.f32 %v2930, %v3058
      %v3074 = vadd.f32 %v2931, %v3058
      %v3075 = vadd.f32 %v2932, %v3058
      %v3076 = vmax.f32 %v3060, 0.0
      %v3077 = vmax.f32 %v3061, 0.0
      %v3078 = vmax.f32 %v3062, 0.0
      %v3079 = vmax.f32 %v3063, 0.0
      %v3080 = vmax.f32 %v3064, 0.0
      %v3081 = vmax.f32 %v3065, 0.0
      %v3082 = vmax.f32 %v3066, 0.0
      %v3083 = vmax.f32 %v3067, 0.0
      %v3084 = vmax.f32 %v3068, 0.0
      %v3085 = vmax.f32 %v3069, 0.0
      %v3086 = vmax.f32 %v3070, 0.0
      %v3087 = vmax.f32 %v3071, 0.0
      %v3088 = vmax.f32 %v3072, 0.0
      %v3089 = vmax.f32 %v3073, 0.0
      %v3090 = vmax.f32 %v3074, 0.0
      %v3091 = vmax.f32 %v3075, 0.0
      %v3092 = vld [vmem:[%s313] sm:$0xff]
      %v3093 = vld [vmem:[%s313 + $0x8] sm:$0xff]
      %v3094 = vld [vmem:[%s313 + $0x10] sm:$0xff]
      %v3095 = vld [vmem:[%s313 + $0x18] sm:$0xff]
      %v3096 = vld [vmem:[%s313 + $0x20] sm:$0xff]
      %v3097 = vld [vmem:[%s313 + $0x28] sm:$0xff]
      %v3098 = vld [vmem:[%s313 + $0x30] sm:$0xff]
      %v3099 = vld [vmem:[%s313 + $0x38] sm:$0xff]
      %v3100 = vld [vmem:[%s313 + $0x40] sm:$0xff]
      %v3101 = vld [vmem:[%s313 + $0x48] sm:$0xff]
      %v3102 = vld [vmem:[%s313 + $0x50] sm:$0xff]
      %v3103 = vld [vmem:[%s313 + $0x58] sm:$0xff]
      %v3104 = vld [vmem:[%s313 + $0x60] sm:$0xff]
      %v3105 = vld [vmem:[%s313 + $0x68] sm:$0xff]
      %v3106 = vld [vmem:[%s313 + $0x70] sm:$0xff]
      %v3107 = vld [vmem:[%s313 + $0x78] sm:$0xff]
      %v3108 = vadd.f32 %v3076, %v3092
      %v3109 = vadd.f32 %v3077, %v3093
      %v3110 = vadd.f32 %v3078, %v3094
      %v3111 = vadd.f32 %v3079, %v3095
      %v3112 = vadd.f32 %v3080, %v3096
      %v3113 = vadd.f32 %v3081, %v3097
      %v3114 = vadd.f32 %v3082, %v3098
      %v3115 = vadd.f32 %v3083, %v3099
      %v3116 = vadd.f32 %v3084, %v3100
      %v3117 = vadd.f32 %v3085, %v3101
      %v3118 = vadd.f32 %v3086, %v3102
      %v3119 = vadd.f32 %v3087, %v3103
      %v3120 = vadd.f32 %v3088, %v3104
      %v3121 = vadd.f32 %v3089, %v3105
      %v3122 = vadd.f32 %v3090, %v3106
      %v3123 = vadd.f32 %v3091, %v3107
      %3124 = vst.msk [vmem:[%s323] sm:$0xff] %vm892, %v3108
      %3125 = vst.msk [vmem:[%s323 + $0x8] sm:$0xff] %vm892, %v3109
      %3126 = vst.msk [vmem:[%s323 + $0x10] sm:$0xff] %vm892, %v3110
      %3127 = vst.msk [vmem:[%s323 + $0x18] sm:$0xff] %vm892, %v3111
      %3128 = vst.msk [vmem:[%s323 + $0x20] sm:$0xff] %vm892, %v3112
      %3129 = vst.msk [vmem:[%s323 + $0x28] sm:$0xff] %vm892, %v3113
      %3130 = vst.msk [vmem:[%s323 + $0x30] sm:$0xff] %vm892, %v3114
      %3131 = vst.msk [vmem:[%s323 + $0x38] sm:$0xff] %vm892, %v3115
      %3132 = vst.msk [vmem:[%s323 + $0x40] sm:$0xff] %vm892, %v3116
      %3133 = vst.msk [vmem:[%s323 + $0x48] sm:$0xff] %vm892, %v3117
      %3134 = vst.msk [vmem:[%s323 + $0x50] sm:$0xff] %vm892, %v3118
      %3135 = vst.msk [vmem:[%s323 + $0x58] sm:$0xff] %vm892, %v3119
      %3136 = vst.msk [vmem:[%s323 + $0x60] sm:$0xff] %vm892, %v3120
      %3137 = vst.msk [vmem:[%s323 + $0x68] sm:$0xff] %vm892, %v3121
      %3138 = vst.msk [vmem:[%s323 + $0x70] sm:$0xff] %vm892, %v3122
      %3139 = vst.msk [vmem:[%s323 + $0x78] sm:$0xff] %vm892, %v3123
      %vm3140 = vcmask 97280
      %3141 = vst.msk [vmem:[%s333] sm:$0xff] %vm3140, %v3037
      %3142 = vst.msk [vmem:[%s333 + $0x8] sm:$0xff] %vm3140, %v3038
      %3143 = vst.msk [vmem:[%s333 + $0x10] sm:$0xff] %vm3140, %v3039
      %3144 = vst.msk [vmem:[%s333 + $0x18] sm:$0xff] %vm3140, %v3040
      %3145 = vst.msk [vmem:[%s333 + $0x20] sm:$0xff] %vm3140, %v3041
      %3146 = vst.msk [vmem:[%s333 + $0x28] sm:$0xff] %vm3140, %v3042
      %3147 = vst.msk [vmem:[%s333 + $0x30] sm:$0xff] %vm3140, %v3043
      %3148 = vst.msk [vmem:[%s333 + $0x38] sm:$0xff] %vm3140, %v3044
      %3149 = vst.msk [vmem:[%s333 + $0x40] sm:$0xff] %vm3140, %v3045
      %3150 = vst.msk [vmem:[%s333 + $0x48] sm:$0xff] %vm3140, %v3046
      %3151 = vst.msk [vmem:[%s333 + $0x50] sm:$0xff] %vm3140, %v3047
      %3152 = vst.msk [vmem:[%s333 + $0x58] sm:$0xff] %vm3140, %v3048
      %3153 = vst.msk [vmem:[%s333 + $0x60] sm:$0xff] %vm3140, %v3049
      %3154 = vst.msk [vmem:[%s333 + $0x68] sm:$0xff] %vm3140, %v3050
      %3155 = vst.msk [vmem:[%s333 + $0x70] sm:$0xff] %vm3140, %v3051
      %3156 = vst.msk [vmem:[%s333 + $0x78] sm:$0xff] %vm3140, %v3052
      %s3157 = smul.u32 16, %s23
      %p3158 = scmp.lt.s32.totalorder %s22, 1
      %s3159 = scalar_select %p3158, %s22, 1
      %p3160 = scmp.lt.s32.totalorder %s3157, 31
      %s3161 = scalar_select %p3160, %s3157, 31
      %s3162 = smul.addr %s3159, 32
      %s3163 = sadd.s32 %s3161, %s3162
      %s3164 = smul.addr %s3163, 8
      %s3165 = scalar_lea.vmem %s5, %s3164
      %s3166 = smul.u32 16, %s23
      %p3167 = scmp.lt.s32.totalorder %s22, 1
      %s3168 = scalar_select %p3167, %s22, 1
      %p3169 = scmp.lt.s32.totalorder %s3166, 31
      %s3170 = scalar_select %p3169, %s3166, 31
      %s3171 = smul.addr %s3168, 32
      %s3172 = sadd.s32 %s3170, %s3171
      %s3173 = smul.addr %s3172, 8
      %s3174 = scalar_lea.vmem %s6, %s3173
      // Predicated region
      $region41: #{ffc_resnet_block_forward.12} parent=39 // pred_check
        %p3175 = pneg %p167
      $region42: #{ffc_resnet_block_forward.12} parent=39 // pred_check_branch
        %3177 = sbr.rel (%p3175) target = $region44
      $region43: #{ffc_resnet_block_forward.12} parent=39 // pred_region
        %s3178 = smul.u32 16, %s23
      $region44: #{ffc_resnet_block_forward.12} parent=39 // pred_fallthru
        _
      // Predicated region
      $region45: #{ffc_resnet_block_forward.12} parent=39 // pred_check
        %p3179 = pneg %p195
      $region46: #{ffc_resnet_block_forward.12} parent=39 // pred_check_branch
        %3181 = sbr.rel (%p3179) target = $region48
      $region47: #{ffc_resnet_block_forward.12} parent=39 // pred_region
        %s3182 = smul.u32 16, %s23
      $region48: #{ffc_resnet_block_forward.12} parent=39 // pred_fallthru
        _
    $region40: #{ffc_resnet_block_forward.12} parent=5 // pred_fallthru
      _
    %p3183 = scmp.le.s32.totalorder 2, %s13
    // Predicated region
    $region49: #{ffc_resnet_block_forward.12} parent=5 // pred_check
      %p3184 = pneg %p3183
    $region50: #{ffc_resnet_block_forward.12} parent=5 // pred_check_branch
      %3186 = sbr.rel (%p3184) target = $region52
    $region51: #{ffc_resnet_block_forward.12} parent=5 // pred_region
      %s3187 = ssub.s32 %s13, 2
      // Predicated region
      $region53: #{ffc_resnet_block_forward.12} parent=51 // pred_check
        %p3188 = pneg %p173
      $region54: #{ffc_resnet_block_forward.12} parent=51 // pred_check_branch
        %3190 = sbr.rel (%p3188) target = $region56
      $region55: #{ffc_resnet_block_forward.12} parent=51 // pred_region
        %s3191 = smul.u32 16, %s25
        %p3192 = scmp.lt.s32.totalorder %s24, 1
        %s3193 = scalar_select %p3192, %s24, 1
        %p3194 = scmp.lt.s32.totalorder %s3191, 31
        %s3195 = scalar_select %p3194, %s3191, 31
        %s3196 = smul.addr %s3193, 32
        %s3197 = sadd.s32 %s3195, %s3196
        %s3198 = smul.addr %s3197, 8
        %s3199 = scalar_lea.vmem %s5, %s3198
      $region56: #{ffc_resnet_block_forward.12} parent=51 // pred_fallthru
        _
      // Predicated region
      $region57: #{ffc_resnet_block_forward.12} parent=51 // pred_check
        %p3200 = pneg %p201
      $region58: #{ffc_resnet_block_forward.12} parent=51 // pred_check_branch
        %3202 = sbr.rel (%p3200) target = $region60
      $region59: #{ffc_resnet_block_forward.12} parent=51 // pred_region
        %s3203 = smul.u32 16, %s25
        %p3204 = scmp.lt.s32.totalorder %s24, 1
        %s3205 = scalar_select %p3204, %s24, 1
        %p3206 = scmp.lt.s32.totalorder %s3203, 31
        %s3207 = scalar_select %p3206, %s3203, 31
        %s3208 = smul.addr %s3205, 32
        %s3209 = sadd.s32 %s3207, %s3208
        %s3210 = smul.addr %s3209, 8
        %s3211 = scalar_lea.vmem %s6, %s3210
      $region60: #{ffc_resnet_block_forward.12} parent=51 // pred_fallthru
        _
    $region52: #{ffc_resnet_block_forward.12} parent=5 // pred_fallthru
      _
  $region6: #{ffc_resnet_block_forward.12} parent=0 // loop_footer
    %s17 = sadd.s32 1, %s13
  $region7: #{ffc_resnet_block_forward.12} parent=0 // loop_footer_branch
    %12 = sbr.rel target = $region3
  $region8: #{ffc_resnet_block_forward.12} parent=0 // loop_exit
    _

</llo_original>
